<compile_context>
chip_gen: v5e
topology: v5e:2x2
jax: 0.10.0
libtpu: 0.0.40
codegen_flags: <defaults>
</compile_context>

<pallas_src>
import jax
import jax.numpy as jnp
from jax.experimental import pallas as pl
from jax.experimental.pallas import tpu as pltpu


# ---------------------------------------------------------------------------
# helpers
# ---------------------------------------------------------------------------
def _silu(y):
    # SiLU(x) = x * sigmoid(x); written with exp so it lowers cleanly to the EUP.
    return y * (1.0 / (1.0 + jnp.exp(-y)))


def _fold_bn(w, bn, eps=1e-5):
    """Fold inference BatchNorm (gamma, beta, mean, var) into conv weight/bias."""
    gamma, beta, mean, var = bn
    scale = gamma / jnp.sqrt(var + eps)
    w_f = w * scale.reshape(-1, 1, 1, 1)
    b_f = beta - mean * scale
    return w_f.astype(jnp.float32), b_f.astype(jnp.float32)


def _dw5x5(pad_ref, w_ref, h, w):
    """5x5 depthwise conv (padding already applied in pad_ref), f32 accumulate.

    pad_ref : VMEM scratch (h+4, w+4, C), zero border, data in the center
    w_ref   : (25, C) per-channel taps
    """
    acc = None
    for dy in range(5):
        for dx in range(5):
            tap = pad_ref[dy:dy + h, dx:dx + w, :]          # (h, w, C), f32
            t = 5 * dy + dx
            contrib = tap * w_ref[t:t + 1, :]               # bcast (1, C)
            acc = contrib if acc is None else acc + contrib
    return acc


# ---------------------------------------------------------------------------
# fused GhostBottleneck kernel (one grid step per batch element)
# ---------------------------------------------------------------------------
def _ghost_bottleneck_kernel(x_ref, w1_ref, b1_ref, w2_ref, b2_ref,
                             w3a_ref, w3b_ref, b3_ref, w4_ref, b4_ref,
                             o_ref, a_pad, p_pad):
    _, H, W, C1 = x_ref.shape
    ch1 = w1_ref.shape[1]          # GhostConv-1 half width
    ch2 = w3a_ref.shape[1]         # GhostConv-2 half width (== C2 // 2)

    x = x_ref[0].astype(jnp.float32)                     # (H, W, C1)
    x2d = x.reshape(H * W, C1)

    # ---- GhostConv-1 cv1: 1x1 conv + folded BN + SiLU (MXU) -----------------
    a2d = _silu(jnp.dot(x2d, w1_ref[...],
                        preferred_element_type=jnp.float32) + b1_ref[...])
    a = a2d.reshape(H, W, ch1)                            # (H, W, ch1)

    # ---- GhostConv-1 cv2: depthwise 5x5 + folded BN + SiLU (VPU) ------------
    a_pad[...] = jnp.zeros(a_pad.shape, jnp.float32)
    a_pad[2:2 + H, 2:2 + W, :] = a
    b = _silu(_dw5x5(a_pad, w2_ref, H, W) + b2_ref[...])  # (H, W, ch1)

    # ---- GhostConv-2 cv1: 1x1 conv on cat([a, b], C), concat fused away -----
    #   cat([a, b], C) @ W  ==  a @ W[:ch1, :] + b @ W[ch1:, :]
    p2d = (jnp.dot(a2d, w3a_ref[...], preferred_element_type=jnp.float32)
           + jnp.dot(b.reshape(H * W, ch1), w3b_ref[...],
                     preferred_element_type=jnp.float32)
           + b3_ref[...])                                 # (H*W, ch2), no act
    p = p2d.reshape(H, W, ch2)

    # ---- GhostConv-2 cv2: depthwise 5x5 + folded BN (no act) ----------------
    p_pad[...] = jnp.zeros(p_pad.shape, jnp.float32)
    p_pad[2:2 + H, 2:2 + W, :] = p
    q = _dw5x5(p_pad, w4_ref, H, W) + b4_ref[...]         # (H, W, ch2)

    # ---- channel concat + identity residual, single HBM write ---------------
    out = jnp.concatenate([p + x[..., :ch2], q + x[..., ch2:]], axis=-1)
    o_ref[0] = out.astype(o_ref.dtype)


# ---------------------------------------------------------------------------
# GhostBottleneck forward (Pallas)
# ---------------------------------------------------------------------------
_VMEM_LIMIT = 32 * 1024 * 1024  # safe scoped-VMEM ceiling on v5e / v6e / v7x


def ghost_bottleneck_forward(x, params, s=1):
    """GhostBottleneck.forward, s == 1 path.

    x      : (N, C1, H, W) NCHW
    params : dict of conv weights + BatchNorm tuples (gamma, beta, mean, var)
    returns: (N, C2, H, W)  (identity shortcut requires C1 == C2)
    """
    if s != 1:
        # TODO(synk): stride-2 path (DWConv k x k s=2 + DWConv/Conv shortcut).
        raise NotImplementedError("only the default s == 1 path is implemented")

    n, c1, h, w = x.shape
    dtype = x.dtype

    # Fold BatchNorm (inference) into conv weights / bias.
    w1, b1 = _fold_bn(params["g1_pw_w"], params["g1_pw_bn"])  # (ch1, c1, 1, 1)
    w2, b2 = _fold_bn(params["g1_dw_w"], params["g1_dw_bn"])  # (ch1, 1, 5, 5)
    w3, b3 = _fold_bn(params["g2_pw_w"], params["g2_pw_bn"])  # (ch2, c_, 1, 1)
    w4, b4 = _fold_bn(params["g2_dw_w"], params["g2_dw_bn"])  # (ch2, 1, 5, 5)

    ch1 = w1.shape[0]
    c_ = w3.shape[1]
    ch2 = w3.shape[0]
    c2 = 2 * ch2
    assert c_ == 2 * ch1, "GhostConv channel mismatch"
    assert c2 == c1, "identity shortcut requires c1 == c2"

    # Wrapper-side layout prep: NHWC activations, pre-transposed (Cin, Cout) weights.
    x_nhwc = jnp.transpose(x, (0, 2, 3, 1))                        # (N, H, W, C1)
    w1_t = jnp.transpose(w1.reshape(ch1, c1), (1, 0))              # (C1, ch1)
    w3_2d = w3.reshape(ch2, c_)
    w3a_t = jnp.transpose(w3_2d[:, :ch1], (1, 0))                  # (ch1, ch2)
    w3b_t = jnp.transpose(w3_2d[:, ch1:], (1, 0))                  # (ch1, ch2)
    w2_t = jnp.transpose(w2.reshape(ch1, 25), (1, 0))              # (25, ch1)
    w4_t = jnp.transpose(w4.reshape(ch2, 25), (1, 0))              # (25, ch2)
    b1r = b1.reshape(1, ch1)
    b2r = b2.reshape(1, ch1)
    b3r = b3.reshape(1, ch2)
    b4r = b4.reshape(1, ch2)

    resident = lambda arr: pl.BlockSpec(arr.shape, lambda i: (0, 0))

    out_nhwc = pl.pallas_call(
        _ghost_bottleneck_kernel,
        out_shape=jax.ShapeDtypeStruct((n, h, w, c2), dtype),
        grid=(n,),
        in_specs=[
            pl.BlockSpec((1, h, w, c1), lambda i: (i, 0, 0, 0)),   # x
            resident(w1_t), resident(b1r),
            resident(w2_t), resident(b2r),
            resident(w3a_t), resident(w3b_t), resident(b3r),
            resident(w4_t), resident(b4r),
        ],
        out_specs=pl.BlockSpec((1, h, w, c2), lambda i: (i, 0, 0, 0)),
        scratch_shapes=[
            pltpu.VMEM((h + 4, w + 4, ch1), jnp.float32),   # padded GhostConv-1 cv1 out
            pltpu.VMEM((h + 4, w + 4, ch2), jnp.float32),   # padded GhostConv-2 cv1 out
        ],
        compiler_params=pltpu.CompilerParams(
            dimension_semantics=("parallel",),
            vmem_limit_bytes=_VMEM_LIMIT),
    )(x_nhwc, w1_t, b1r, w2_t, b2r, w3a_t, w3b_t, b3r, w4_t, b4r)

    return jnp.transpose(out_nhwc, (0, 3, 1, 2))                    # NCHW


# ---------------------------------------------------------------------------
# pure-JAX reference (mirrors the torch module in eval mode)
# ---------------------------------------------------------------------------
def _conv_bn_act_ref(x, w, bn, groups, padding, act):
    gamma, beta, mean, var = bn
    y = jax.lax.conv_general_dilated(
        x, w, window_strides=(1, 1), padding=[(padding, padding)] * 2,
        dimension_numbers=("NCHW", "OIHW", "NCHW"), feature_group_count=groups)
    scale = gamma / jnp.sqrt(var + 1e-5)
    y = y * scale[None, :, None, None] + (beta - mean * scale)[None, :, None, None]
    if act:
        y = _silu(y)
    return y


def ghost_bottleneck_ref(x, params):
    a = _conv_bn_act_ref(x, params["g1_pw_w"], params["g1_pw_bn"], 1, 0, True)
    b = _conv_bn_act_ref(a, params["g1_dw_w"], params["g1_dw_bn"], a.shape[1], 2, True)
    y = jnp.concatenate([a, b], axis=1)
    p = _conv_bn_act_ref(y, params["g2_pw_w"], params["g2_pw_bn"], 1, 0, False)
    q = _conv_bn_act_ref(p, params["g2_dw_w"], params["g2_dw_bn"], p.shape[1], 2, False)
    return jnp.concatenate([p, q], axis=1) + x


# ---------------------------------------------------------------------------
# demo / self-test
# ---------------------------------------------------------------------------
if __name__ == "__main__":
    key = jax.random.PRNGKey(0)
    keys = jax.random.split(key, 10)

    N, C1, C2, H, W = 2, 16, 16, 16, 16          # GhostBottleneck(c1=16, c2=16)
    c_ = C2 // 2                                  # 8
    ch1 = c_ // 2                                 # 4  (GhostConv-1 half)
    ch2 = C2 // 2                                 # 8  (GhostConv-2 half)

    def bn_params(k, c):
        k1, k2, k3, k4 = jax.random.split(k, 4)
        gamma = jax.random.uniform(k1, (c,), jnp.float32, 0.5, 1.5)
        beta = jax.random.uniform(k2, (c,), jnp.float32, -0.2, 0.2)
        mean = jax.random.normal(k3, (c,), jnp.float32) * 0.1
        var = jax.random.uniform(k4, (c,), jnp.float32, 0.5, 1.5)
        return gamma, beta, mean, var

    x = jax.random.normal(keys[0], (N, C1, H, W), jnp.float32)

    params = dict(
        g1_pw_w=jax.random.normal(keys[1], (ch1, C1, 1, 1), jnp.float32) / (C1 ** 0.5),
        g1_pw_bn=bn_params(keys[2], ch1),
        g1_dw_w=jax.random.normal(keys[3], (ch1, 1, 5, 5), jnp.float32) * 0.2,
        g1_dw_bn=bn_params(keys[4], ch1),
        g2_pw_w=jax.random.normal(keys[5], (ch2, c_, 1, 1), jnp.float32) / (c_ ** 0.5),
        g2_pw_bn=bn_params(keys[6], ch2),
        g2_dw_w=jax.random.normal(keys[7], (ch2, 1, 5, 5), jnp.float32) * 0.2,
        g2_dw_bn=bn_params(keys[8], ch2),
    )

    out = ghost_bottleneck_forward(x, params)
    out = jax.block_until_ready(out)

    ref = ghost_bottleneck_ref(x, params)
    assert out.shape == (N, C2, H, W), out.shape
    assert jnp.allclose(out, ref, atol=1e-4, rtol=1e-4), (
        "mismatch vs reference, max err = %e"
        % float(jnp.max(jnp.abs(out - ref))))

    print("KERNEL_OK")
</pallas_src>

<mosaic_0001>
module attributes {stable_mosaic.version = 11 : i64} {
  func.func @_ghost_bottleneck_kernel(%arg0: i32, %arg1: memref<1x16x16x16xf32, #tpu.memory_space<vmem>>, %arg2: memref<16x4xf32, #tpu.memory_space<vmem>>, %arg3: memref<1x4xf32, #tpu.memory_space<vmem>>, %arg4: memref<25x4xf32, #tpu.memory_space<vmem>>, %arg5: memref<1x4xf32, #tpu.memory_space<vmem>>, %arg6: memref<4x8xf32, #tpu.memory_space<vmem>>, %arg7: memref<4x8xf32, #tpu.memory_space<vmem>>, %arg8: memref<1x8xf32, #tpu.memory_space<vmem>>, %arg9: memref<25x8xf32, #tpu.memory_space<vmem>>, %arg10: memref<1x8xf32, #tpu.memory_space<vmem>>, %arg11: memref<1x16x16x16xf32, #tpu.memory_space<vmem>>, %arg12: memref<20x20x4xf32, #tpu.memory_space<vmem>>, %arg13: memref<20x20x8xf32, #tpu.memory_space<vmem>>) attributes {dimension_semantics = [#tpu.dimension_semantics<parallel>], iteration_bounds = array<i64: 2>, scalar_prefetch = 0 : i64, scratch_operands = 2 : i64, tpu.core_type = #tpu.core_type<tc>, window_params = [{transform_indices = @transform_0, window_bounds = array<i64: 1, 16, 16, 16>}, {pipeline_mode = #tpu.pipeline_mode<synchronous>, transform_indices = @transform_1, window_bounds = array<i64: 16, 4>}, {pipeline_mode = #tpu.pipeline_mode<synchronous>, transform_indices = @transform_2, window_bounds = array<i64: 1, 4>}, {pipeline_mode = #tpu.pipeline_mode<synchronous>, transform_indices = @transform_3, window_bounds = array<i64: 25, 4>}, {pipeline_mode = #tpu.pipeline_mode<synchronous>, transform_indices = @transform_4, window_bounds = array<i64: 1, 4>}, {pipeline_mode = #tpu.pipeline_mode<synchronous>, transform_indices = @transform_5, window_bounds = array<i64: 4, 8>}, {pipeline_mode = #tpu.pipeline_mode<synchronous>, transform_indices = @transform_6, window_bounds = array<i64: 4, 8>}, {pipeline_mode = #tpu.pipeline_mode<synchronous>, transform_indices = @transform_7, window_bounds = array<i64: 1, 8>}, {pipeline_mode = #tpu.pipeline_mode<synchronous>, transform_indices = @transform_8, window_bounds = array<i64: 25, 8>}, {pipeline_mode = #tpu.pipeline_mode<synchronous>, transform_indices = @transform_9, window_bounds = array<i64: 1, 8>}, {transform_indices = @transform_10, window_bounds = array<i64: 1, 16, 16, 16>}]} {
    %c0 = arith.constant 0 : index
    %c0_0 = arith.constant 0 : index
    %c0_1 = arith.constant 0 : index
    %c0_2 = arith.constant 0 : index
    %0 = vector.load %arg1[%c0, %c0_0, %c0_1, %c0_2] : memref<1x16x16x16xf32, #tpu.memory_space<vmem>>, vector<1x16x16x16xf32>
    %1 = vector.shape_cast %0 : vector<1x16x16x16xf32> to vector<16x16x16xf32>
    %2 = vector.shape_cast %1 : vector<16x16x16xf32> to vector<256x16xf32>
    %c0_3 = arith.constant 0 : index
    %c0_4 = arith.constant 0 : index
    %3 = vector.load %arg2[%c0_3, %c0_4] : memref<16x4xf32, #tpu.memory_space<vmem>>, vector<16x4xf32>
    %cst = arith.constant dense<0.000000e+00> : vector<256x4xf32>
    %4 = tpu.matmul %2, %3, %cst {dimension_numbers = #tpu.dot_dimension_numbers<[1], [0], [0], [1], [0, 0, 1, 1], [], []>} : vector<256x16xf32>, vector<16x4xf32>, vector<256x4xf32> -> vector<256x4xf32>
    %c0_5 = arith.constant 0 : index
    %c0_6 = arith.constant 0 : index
    %5 = vector.load %arg3[%c0_5, %c0_6] : memref<1x4xf32, #tpu.memory_space<vmem>>, vector<1x4xf32>
    %6 = vector.broadcast %5 : vector<1x4xf32> to vector<256x4xf32>
    %7 = arith.addf %4, %6 : vector<256x4xf32>
    %cst_7 = arith.constant 0.000000e+00 : f32
    %8 = vector.broadcast %cst_7 : f32 to vector<256x4xf32>
    %9 = arith.subf %8, %7 : vector<256x4xf32>
    %10 = math.exp %9 : vector<256x4xf32>
    %cst_8 = arith.constant 1.000000e+00 : f32
    %11 = vector.broadcast %cst_8 : f32 to vector<256x4xf32>
    %12 = arith.addf %11, %10 : vector<256x4xf32>
    %cst_9 = arith.constant 1.000000e+00 : f32
    %13 = vector.broadcast %cst_9 : f32 to vector<256x4xf32>
    %14 = arith.divf %13, %12 : vector<256x4xf32>
    %15 = arith.mulf %7, %14 : vector<256x4xf32>
    %16 = vector.shape_cast %15 : vector<256x4xf32> to vector<16x16x4xf32>
    %cst_10 = arith.constant 0.000000e+00 : f32
    %17 = vector.broadcast %cst_10 : f32 to vector<20x20x4xf32>
    %c0_11 = arith.constant 0 : index
    %c0_12 = arith.constant 0 : index
    %c0_13 = arith.constant 0 : index
    %18 = vector.load %arg12[%c0_11, %c0_12, %c0_13] : memref<20x20x4xf32, #tpu.memory_space<vmem>>, vector<20x20x4xf32>
    tpu.vector_store %arg12[%c0_11, %c0_12, %c0_13], %17 {strides = array<i32>} : memref<20x20x4xf32, #tpu.memory_space<vmem>>, vector<20x20x4xf32>,
    %c2 = arith.constant 2 : index
    %c2_14 = arith.constant 2 : index
    %c0_15 = arith.constant 0 : index
    %19 = vector.load %arg12[%c2, %c2_14, %c0_15] : memref<20x20x4xf32, #tpu.memory_space<vmem>>, vector<16x16x4xf32>
    tpu.vector_store %arg12[%c2, %c2_14, %c0_15], %16 {strides = array<i32>} : memref<20x20x4xf32, #tpu.memory_space<vmem>>, vector<16x16x4xf32>,
    %c0_16 = arith.constant 0 : index
    %c0_17 = arith.constant 0 : index
    %c0_18 = arith.constant 0 : index
    %20 = vector.load %arg12[%c0_16, %c0_17, %c0_18] : memref<20x20x4xf32, #tpu.memory_space<vmem>>, vector<16x16x4xf32>
    %c0_19 = arith.constant 0 : index
    %c0_20 = arith.constant 0 : index
    %21 = vector.load %arg4[%c0_19, %c0_20] : memref<25x4xf32, #tpu.memory_space<vmem>>, vector<1x4xf32>
    %22 = vector.shape_cast %21 : vector<1x4xf32> to vector<1x1x4xf32>
    %23 = vector.broadcast %22 : vector<1x1x4xf32> to vector<16x16x4xf32>
    %24 = arith.mulf %20, %23 : vector<16x16x4xf32>
    %c0_21 = arith.constant 0 : index
    %c1 = arith.constant 1 : index
    %c0_22 = arith.constant 0 : index
    %25 = vector.load %arg12[%c0_21, %c1, %c0_22] : memref<20x20x4xf32, #tpu.memory_space<vmem>>, vector<16x16x4xf32>
    %c1_23 = arith.constant 1 : index
    %c0_24 = arith.constant 0 : index
    %26 = vector.load %arg4[%c1_23, %c0_24] : memref<25x4xf32, #tpu.memory_space<vmem>>, vector<1x4xf32>
    %27 = vector.shape_cast %26 : vector<1x4xf32> to vector<1x1x4xf32>
    %28 = vector.broadcast %27 : vector<1x1x4xf32> to vector<16x16x4xf32>
    %29 = arith.mulf %25, %28 : vector<16x16x4xf32>
    %30 = arith.addf %24, %29 : vector<16x16x4xf32>
    %c0_25 = arith.constant 0 : index
    %c2_26 = arith.constant 2 : index
    %c0_27 = arith.constant 0 : index
    %31 = vector.load %arg12[%c0_25, %c2_26, %c0_27] : memref<20x20x4xf32, #tpu.memory_space<vmem>>, vector<16x16x4xf32>
    %c2_28 = arith.constant 2 : index
    %c0_29 = arith.constant 0 : index
    %32 = vector.load %arg4[%c2_28, %c0_29] : memref<25x4xf32, #tpu.memory_space<vmem>>, vector<1x4xf32>
    %33 = vector.shape_cast %32 : vector<1x4xf32> to vector<1x1x4xf32>
    %34 = vector.broadcast %33 : vector<1x1x4xf32> to vector<16x16x4xf32>
    %35 = arith.mulf %31, %34 : vector<16x16x4xf32>
    %36 = arith.addf %30, %35 : vector<16x16x4xf32>
    %c0_30 = arith.constant 0 : index
    %c3 = arith.constant 3 : index
    %c0_31 = arith.constant 0 : index
    %37 = vector.load %arg12[%c0_30, %c3, %c0_31] : memref<20x20x4xf32, #tpu.memory_space<vmem>>, vector<16x16x4xf32>
    %c3_32 = arith.constant 3 : index
    %c0_33 = arith.constant 0 : index
    %38 = vector.load %arg4[%c3_32, %c0_33] : memref<25x4xf32, #tpu.memory_space<vmem>>, vector<1x4xf32>
    %39 = vector.shape_cast %38 : vector<1x4xf32> to vector<1x1x4xf32>
    %40 = vector.broadcast %39 : vector<1x1x4xf32> to vector<16x16x4xf32>
    %41 = arith.mulf %37, %40 : vector<16x16x4xf32>
    %42 = arith.addf %36, %41 : vector<16x16x4xf32>
    %c0_34 = arith.constant 0 : index
    %c4 = arith.constant 4 : index
    %c0_35 = arith.constant 0 : index
    %43 = vector.load %arg12[%c0_34, %c4, %c0_35] : memref<20x20x4xf32, #tpu.memory_space<vmem>>, vector<16x16x4xf32>
    %c4_36 = arith.constant 4 : index
    %c0_37 = arith.constant 0 : index
    %44 = vector.load %arg4[%c4_36, %c0_37] : memref<25x4xf32, #tpu.memory_space<vmem>>, vector<1x4xf32>
    %45 = vector.shape_cast %44 : vector<1x4xf32> to vector<1x1x4xf32>
    %46 = vector.broadcast %45 : vector<1x1x4xf32> to vector<16x16x4xf32>
    %47 = arith.mulf %43, %46 : vector<16x16x4xf32>
    %48 = arith.addf %42, %47 : vector<16x16x4xf32>
    %c1_38 = arith.constant 1 : index
    %c0_39 = arith.constant 0 : index
    %c0_40 = arith.constant 0 : index
    %49 = vector.load %arg12[%c1_38, %c0_39, %c0_40] : memref<20x20x4xf32, #tpu.memory_space<vmem>>, vector<16x16x4xf32>
    %c5 = arith.constant 5 : index
    %c0_41 = arith.constant 0 : index
    %50 = vector.load %arg4[%c5, %c0_41] : memref<25x4xf32, #tpu.memory_space<vmem>>, vector<1x4xf32>
    %51 = vector.shape_cast %50 : vector<1x4xf32> to vector<1x1x4xf32>
    %52 = vector.broadcast %51 : vector<1x1x4xf32> to vector<16x16x4xf32>
    %53 = arith.mulf %49, %52 : vector<16x16x4xf32>
    %54 = arith.addf %48, %53 : vector<16x16x4xf32>
    %c1_42 = arith.constant 1 : index
    %c1_43 = arith.constant 1 : index
    %c0_44 = arith.constant 0 : index
    %55 = vector.load %arg12[%c1_42, %c1_43, %c0_44] : memref<20x20x4xf32, #tpu.memory_space<vmem>>, vector<16x16x4xf32>
    %c6 = arith.constant 6 : index
    %c0_45 = arith.constant 0 : index
    %56 = vector.load %arg4[%c6, %c0_45] : memref<25x4xf32, #tpu.memory_space<vmem>>, vector<1x4xf32>
    %57 = vector.shape_cast %56 : vector<1x4xf32> to vector<1x1x4xf32>
    %58 = vector.broadcast %57 : vector<1x1x4xf32> to vector<16x16x4xf32>
    %59 = arith.mulf %55, %58 : vector<16x16x4xf32>
    %60 = arith.addf %54, %59 : vector<16x16x4xf32>
    %c1_46 = arith.constant 1 : index
    %c2_47 = arith.constant 2 : index
    %c0_48 = arith.constant 0 : index
    %61 = vector.load %arg12[%c1_46, %c2_47, %c0_48] : memref<20x20x4xf32, #tpu.memory_space<vmem>>, vector<16x16x4xf32>
    %c7 = arith.constant 7 : index
    %c0_49 = arith.constant 0 : index
    %62 = vector.load %arg4[%c7, %c0_49] : memref<25x4xf32, #tpu.memory_space<vmem>>, vector<1x4xf32>
    %63 = vector.shape_cast %62 : vector<1x4xf32> to vector<1x1x4xf32>
    %64 = vector.broadcast %63 : vector<1x1x4xf32> to vector<16x16x4xf32>
    %65 = arith.mulf %61, %64 : vector<16x16x4xf32>
    %66 = arith.addf %60, %65 : vector<16x16x4xf32>
    %c1_50 = arith.constant 1 : index
    %c3_51 = arith.constant 3 : index
    %c0_52 = arith.constant 0 : index
    %67 = vector.load %arg12[%c1_50, %c3_51, %c0_52] : memref<20x20x4xf32, #tpu.memory_space<vmem>>, vector<16x16x4xf32>
    %c8 = arith.constant 8 : index
    %c0_53 = arith.constant 0 : index
    %68 = vector.load %arg4[%c8, %c0_53] : memref<25x4xf32, #tpu.memory_space<vmem>>, vector<1x4xf32>
    %69 = vector.shape_cast %68 : vector<1x4xf32> to vector<1x1x4xf32>
    %70 = vector.broadcast %69 : vector<1x1x4xf32> to vector<16x16x4xf32>
    %71 = arith.mulf %67, %70 : vector<16x16x4xf32>
    %72 = arith.addf %66, %71 : vector<16x16x4xf32>
    %c1_54 = arith.constant 1 : index
    %c4_55 = arith.constant 4 : index
    %c0_56 = arith.constant 0 : index
    %73 = vector.load %arg12[%c1_54, %c4_55, %c0_56] : memref<20x20x4xf32, #tpu.memory_space<vmem>>, vector<16x16x4xf32>
    %c9 = arith.constant 9 : index
    %c0_57 = arith.constant 0 : index
    %74 = vector.load %arg4[%c9, %c0_57] : memref<25x4xf32, #tpu.memory_space<vmem>>, vector<1x4xf32>
    %75 = vector.shape_cast %74 : vector<1x4xf32> to vector<1x1x4xf32>
    %76 = vector.broadcast %75 : vector<1x1x4xf32> to vector<16x16x4xf32>
    %77 = arith.mulf %73, %76 : vector<16x16x4xf32>
    %78 = arith.addf %72, %77 : vector<16x16x4xf32>
    %c2_58 = arith.constant 2 : index
    %c0_59 = arith.constant 0 : index
    %c0_60 = arith.constant 0 : index
    %79 = vector.load %arg12[%c2_58, %c0_59, %c0_60] : memref<20x20x4xf32, #tpu.memory_space<vmem>>, vector<16x16x4xf32>
    %c10 = arith.constant 10 : index
    %c0_61 = arith.constant 0 : index
    %80 = vector.load %arg4[%c10, %c0_61] : memref<25x4xf32, #tpu.memory_space<vmem>>, vector<1x4xf32>
    %81 = vector.shape_cast %80 : vector<1x4xf32> to vector<1x1x4xf32>
    %82 = vector.broadcast %81 : vector<1x1x4xf32> to vector<16x16x4xf32>
    %83 = arith.mulf %79, %82 : vector<16x16x4xf32>
    %84 = arith.addf %78, %83 : vector<16x16x4xf32>
    %c2_62 = arith.constant 2 : index
    %c1_63 = arith.constant 1 : index
    %c0_64 = arith.constant 0 : index
    %85 = vector.load %arg12[%c2_62, %c1_63, %c0_64] : memref<20x20x4xf32, #tpu.memory_space<vmem>>, vector<16x16x4xf32>
    %c11 = arith.constant 11 : index
    %c0_65 = arith.constant 0 : index
    %86 = vector.load %arg4[%c11, %c0_65] : memref<25x4xf32, #tpu.memory_space<vmem>>, vector<1x4xf32>
    %87 = vector.shape_cast %86 : vector<1x4xf32> to vector<1x1x4xf32>
    %88 = vector.broadcast %87 : vector<1x1x4xf32> to vector<16x16x4xf32>
    %89 = arith.mulf %85, %88 : vector<16x16x4xf32>
    %90 = arith.addf %84, %89 : vector<16x16x4xf32>
    %c2_66 = arith.constant 2 : index
    %c2_67 = arith.constant 2 : index
    %c0_68 = arith.constant 0 : index
    %91 = vector.load %arg12[%c2_66, %c2_67, %c0_68] : memref<20x20x4xf32, #tpu.memory_space<vmem>>, vector<16x16x4xf32>
    %c12 = arith.constant 12 : index
    %c0_69 = arith.constant 0 : index
    %92 = vector.load %arg4[%c12, %c0_69] : memref<25x4xf32, #tpu.memory_space<vmem>>, vector<1x4xf32>
    %93 = vector.shape_cast %92 : vector<1x4xf32> to vector<1x1x4xf32>
    %94 = vector.broadcast %93 : vector<1x1x4xf32> to vector<16x16x4xf32>
    %95 = arith.mulf %91, %94 : vector<16x16x4xf32>
    %96 = arith.addf %90, %95 : vector<16x16x4xf32>
    %c2_70 = arith.constant 2 : index
    %c3_71 = arith.constant 3 : index
    %c0_72 = arith.constant 0 : index
    %97 = vector.load %arg12[%c2_70, %c3_71, %c0_72] : memref<20x20x4xf32, #tpu.memory_space<vmem>>, vector<16x16x4xf32>
    %c13 = arith.constant 13 : index
    %c0_73 = arith.constant 0 : index
    %98 = vector.load %arg4[%c13, %c0_73] : memref<25x4xf32, #tpu.memory_space<vmem>>, vector<1x4xf32>
    %99 = vector.shape_cast %98 : vector<1x4xf32> to vector<1x1x4xf32>
    %100 = vector.broadcast %99 : vector<1x1x4xf32> to vector<16x16x4xf32>
    %101 = arith.mulf %97, %100 : vector<16x16x4xf32>
    %102 = arith.addf %96, %101 : vector<16x16x4xf32>
    %c2_74 = arith.constant 2 : index
    %c4_75 = arith.constant 4 : index
    %c0_76 = arith.constant 0 : index
    %103 = vector.load %arg12[%c2_74, %c4_75, %c0_76] : memref<20x20x4xf32, #tpu.memory_space<vmem>>, vector<16x16x4xf32>
    %c14 = arith.constant 14 : index
    %c0_77 = arith.constant 0 : index
    %104 = vector.load %arg4[%c14, %c0_77] : memref<25x4xf32, #tpu.memory_space<vmem>>, vector<1x4xf32>
    %105 = vector.shape_cast %104 : vector<1x4xf32> to vector<1x1x4xf32>
    %106 = vector.broadcast %105 : vector<1x1x4xf32> to vector<16x16x4xf32>
    %107 = arith.mulf %103, %106 : vector<16x16x4xf32>
    %108 = arith.addf %102, %107 : vector<16x16x4xf32>
    %c3_78 = arith.constant 3 : index
    %c0_79 = arith.constant 0 : index
    %c0_80 = arith.constant 0 : index
    %109 = vector.load %arg12[%c3_78, %c0_79, %c0_80] : memref<20x20x4xf32, #tpu.memory_space<vmem>>, vector<16x16x4xf32>
    %c15 = arith.constant 15 : index
    %c0_81 = arith.constant 0 : index
    %110 = vector.load %arg4[%c15, %c0_81] : memref<25x4xf32, #tpu.memory_space<vmem>>, vector<1x4xf32>
    %111 = vector.shape_cast %110 : vector<1x4xf32> to vector<1x1x4xf32>
    %112 = vector.broadcast %111 : vector<1x1x4xf32> to vector<16x16x4xf32>
    %113 = arith.mulf %109, %112 : vector<16x16x4xf32>
    %114 = arith.addf %108, %113 : vector<16x16x4xf32>
    %c3_82 = arith.constant 3 : index
    %c1_83 = arith.constant 1 : index
    %c0_84 = arith.constant 0 : index
    %115 = vector.load %arg12[%c3_82, %c1_83, %c0_84] : memref<20x20x4xf32, #tpu.memory_space<vmem>>, vector<16x16x4xf32>
    %c16 = arith.constant 16 : index
    %c0_85 = arith.constant 0 : index
    %116 = vector.load %arg4[%c16, %c0_85] : memref<25x4xf32, #tpu.memory_space<vmem>>, vector<1x4xf32>
    %117 = vector.shape_cast %116 : vector<1x4xf32> to vector<1x1x4xf32>
    %118 = vector.broadcast %117 : vector<1x1x4xf32> to vector<16x16x4xf32>
    %119 = arith.mulf %115, %118 : vector<16x16x4xf32>
    %120 = arith.addf %114, %119 : vector<16x16x4xf32>
    %c3_86 = arith.constant 3 : index
    %c2_87 = arith.constant 2 : index
    %c0_88 = arith.constant 0 : index
    %121 = vector.load %arg12[%c3_86, %c2_87, %c0_88] : memref<20x20x4xf32, #tpu.memory_space<vmem>>, vector<16x16x4xf32>
    %c17 = arith.constant 17 : index
    %c0_89 = arith.constant 0 : index
    %122 = vector.load %arg4[%c17, %c0_89] : memref<25x4xf32, #tpu.memory_space<vmem>>, vector<1x4xf32>
    %123 = vector.shape_cast %122 : vector<1x4xf32> to vector<1x1x4xf32>
    %124 = vector.broadcast %123 : vector<1x1x4xf32> to vector<16x16x4xf32>
    %125 = arith.mulf %121, %124 : vector<16x16x4xf32>
    %126 = arith.addf %120, %125 : vector<16x16x4xf32>
    %c3_90 = arith.constant 3 : index
    %c3_91 = arith.constant 3 : index
    %c0_92 = arith.constant 0 : index
    %127 = vector.load %arg12[%c3_90, %c3_91, %c0_92] : memref<20x20x4xf32, #tpu.memory_space<vmem>>, vector<16x16x4xf32>
    %c18 = arith.constant 18 : index
    %c0_93 = arith.constant 0 : index
    %128 = vector.load %arg4[%c18, %c0_93] : memref<25x4xf32, #tpu.memory_space<vmem>>, vector<1x4xf32>
    %129 = vector.shape_cast %128 : vector<1x4xf32> to vector<1x1x4xf32>
    %130 = vector.broadcast %129 : vector<1x1x4xf32> to vector<16x16x4xf32>
    %131 = arith.mulf %127, %130 : vector<16x16x4xf32>
    %132 = arith.addf %126, %131 : vector<16x16x4xf32>
    %c3_94 = arith.constant 3 : index
    %c4_95 = arith.constant 4 : index
    %c0_96 = arith.constant 0 : index
    %133 = vector.load %arg12[%c3_94, %c4_95, %c0_96] : memref<20x20x4xf32, #tpu.memory_space<vmem>>, vector<16x16x4xf32>
    %c19 = arith.constant 19 : index
    %c0_97 = arith.constant 0 : index
    %134 = vector.load %arg4[%c19, %c0_97] : memref<25x4xf32, #tpu.memory_space<vmem>>, vector<1x4xf32>
    %135 = vector.shape_cast %134 : vector<1x4xf32> to vector<1x1x4xf32>
    %136 = vector.broadcast %135 : vector<1x1x4xf32> to vector<16x16x4xf32>
    %137 = arith.mulf %133, %136 : vector<16x16x4xf32>
    %138 = arith.addf %132, %137 : vector<16x16x4xf32>
    %c4_98 = arith.constant 4 : index
    %c0_99 = arith.constant 0 : index
    %c0_100 = arith.constant 0 : index
    %139 = vector.load %arg12[%c4_98, %c0_99, %c0_100] : memref<20x20x4xf32, #tpu.memory_space<vmem>>, vector<16x16x4xf32>
    %c20 = arith.constant 20 : index
    %c0_101 = arith.constant 0 : index
    %140 = vector.load %arg4[%c20, %c0_101] : memref<25x4xf32, #tpu.memory_space<vmem>>, vector<1x4xf32>
    %141 = vector.shape_cast %140 : vector<1x4xf32> to vector<1x1x4xf32>
    %142 = vector.broadcast %141 : vector<1x1x4xf32> to vector<16x16x4xf32>
    %143 = arith.mulf %139, %142 : vector<16x16x4xf32>
    %144 = arith.addf %138, %143 : vector<16x16x4xf32>
    %c4_102 = arith.constant 4 : index
    %c1_103 = arith.constant 1 : index
    %c0_104 = arith.constant 0 : index
    %145 = vector.load %arg12[%c4_102, %c1_103, %c0_104] : memref<20x20x4xf32, #tpu.memory_space<vmem>>, vector<16x16x4xf32>
    %c21 = arith.constant 21 : index
    %c0_105 = arith.constant 0 : index
    %146 = vector.load %arg4[%c21, %c0_105] : memref<25x4xf32, #tpu.memory_space<vmem>>, vector<1x4xf32>
    %147 = vector.shape_cast %146 : vector<1x4xf32> to vector<1x1x4xf32>
    %148 = vector.broadcast %147 : vector<1x1x4xf32> to vector<16x16x4xf32>
    %149 = arith.mulf %145, %148 : vector<16x16x4xf32>
    %150 = arith.addf %144, %149 : vector<16x16x4xf32>
    %c4_106 = arith.constant 4 : index
    %c2_107 = arith.constant 2 : index
    %c0_108 = arith.constant 0 : index
    %151 = vector.load %arg12[%c4_106, %c2_107, %c0_108] : memref<20x20x4xf32, #tpu.memory_space<vmem>>, vector<16x16x4xf32>
    %c22 = arith.constant 22 : index
    %c0_109 = arith.constant 0 : index
    %152 = vector.load %arg4[%c22, %c0_109] : memref<25x4xf32, #tpu.memory_space<vmem>>, vector<1x4xf32>
    %153 = vector.shape_cast %152 : vector<1x4xf32> to vector<1x1x4xf32>
    %154 = vector.broadcast %153 : vector<1x1x4xf32> to vector<16x16x4xf32>
    %155 = arith.mulf %151, %154 : vector<16x16x4xf32>
    %156 = arith.addf %150, %155 : vector<16x16x4xf32>
    %c4_110 = arith.constant 4 : index
    %c3_111 = arith.constant 3 : index
    %c0_112 = arith.constant 0 : index
    %157 = vector.load %arg12[%c4_110, %c3_111, %c0_112] : memref<20x20x4xf32, #tpu.memory_space<vmem>>, vector<16x16x4xf32>
    %c23 = arith.constant 23 : index
    %c0_113 = arith.constant 0 : index
    %158 = vector.load %arg4[%c23, %c0_113] : memref<25x4xf32, #tpu.memory_space<vmem>>, vector<1x4xf32>
    %159 = vector.shape_cast %158 : vector<1x4xf32> to vector<1x1x4xf32>
    %160 = vector.broadcast %159 : vector<1x1x4xf32> to vector<16x16x4xf32>
    %161 = arith.mulf %157, %160 : vector<16x16x4xf32>
    %162 = arith.addf %156, %161 : vector<16x16x4xf32>
    %c4_114 = arith.constant 4 : index
    %c4_115 = arith.constant 4 : index
    %c0_116 = arith.constant 0 : index
    %163 = vector.load %arg12[%c4_114, %c4_115, %c0_116] : memref<20x20x4xf32, #tpu.memory_space<vmem>>, vector<16x16x4xf32>
    %c24 = arith.constant 24 : index
    %c0_117 = arith.constant 0 : index
    %164 = vector.load %arg4[%c24, %c0_117] : memref<25x4xf32, #tpu.memory_space<vmem>>, vector<1x4xf32>
    %165 = vector.shape_cast %164 : vector<1x4xf32> to vector<1x1x4xf32>
    %166 = vector.broadcast %165 : vector<1x1x4xf32> to vector<16x16x4xf32>
    %167 = arith.mulf %163, %166 : vector<16x16x4xf32>
    %168 = arith.addf %162, %167 : vector<16x16x4xf32>
    %c0_118 = arith.constant 0 : index
    %c0_119 = arith.constant 0 : index
    %169 = vector.load %arg5[%c0_118, %c0_119] : memref<1x4xf32, #tpu.memory_space<vmem>>, vector<1x4xf32>
    %170 = vector.shape_cast %169 : vector<1x4xf32> to vector<1x1x4xf32>
    %171 = vector.broadcast %170 : vector<1x1x4xf32> to vector<16x16x4xf32>
    %172 = arith.addf %168, %171 : vector<16x16x4xf32>
    %cst_120 = arith.constant 0.000000e+00 : f32
    %173 = vector.broadcast %cst_120 : f32 to vector<16x16x4xf32>
    %174 = arith.subf %173, %172 : vector<16x16x4xf32>
    %175 = math.exp %174 : vector<16x16x4xf32>
    %cst_121 = arith.constant 1.000000e+00 : f32
    %176 = vector.broadcast %cst_121 : f32 to vector<16x16x4xf32>
    %177 = arith.addf %176, %175 : vector<16x16x4xf32>
    %cst_122 = arith.constant 1.000000e+00 : f32
    %178 = vector.broadcast %cst_122 : f32 to vector<16x16x4xf32>
    %179 = arith.divf %178, %177 : vector<16x16x4xf32>
    %180 = arith.mulf %172, %179 : vector<16x16x4xf32>
    %c0_123 = arith.constant 0 : index
    %c0_124 = arith.constant 0 : index
    %181 = vector.load %arg6[%c0_123, %c0_124] : memref<4x8xf32, #tpu.memory_space<vmem>>, vector<4x8xf32>
    %cst_125 = arith.constant dense<0.000000e+00> : vector<256x8xf32>
    %182 = tpu.matmul %15, %181, %cst_125 {dimension_numbers = #tpu.dot_dimension_numbers<[1], [0], [0], [1], [0, 0, 1, 1], [], []>} : vector<256x4xf32>, vector<4x8xf32>, vector<256x8xf32> -> vector<256x8xf32>
    %183 = vector.shape_cast %180 : vector<16x16x4xf32> to vector<256x4xf32>
    %c0_126 = arith.constant 0 : index
    %c0_127 = arith.constant 0 : index
    %184 = vector.load %arg7[%c0_126, %c0_127] : memref<4x8xf32, #tpu.memory_space<vmem>>, vector<4x8xf32>
    %cst_128 = arith.constant dense<0.000000e+00> : vector<256x8xf32>
    %185 = tpu.matmul %183, %184, %cst_128 {dimension_numbers = #tpu.dot_dimension_numbers<[1], [0], [0], [1], [0, 0, 1, 1], [], []>} : vector<256x4xf32>, vector<4x8xf32>, vector<256x8xf32> -> vector<256x8xf32>
    %186 = arith.addf %182, %185 : vector<256x8xf32>
    %c0_129 = arith.constant 0 : index
    %c0_130 = arith.constant 0 : index
    %187 = vector.load %arg8[%c0_129, %c0_130] : memref<1x8xf32, #tpu.memory_space<vmem>>, vector<1x8xf32>
    %188 = vector.broadcast %187 : vector<1x8xf32> to vector<256x8xf32>
    %189 = arith.addf %186, %188 : vector<256x8xf32>
    %190 = vector.shape_cast %189 : vector<256x8xf32> to vector<16x16x8xf32>
    %cst_131 = arith.constant 0.000000e+00 : f32
    %191 = vector.broadcast %cst_131 : f32 to vector<20x20x8xf32>
    %c0_132 = arith.constant 0 : index
    %c0_133 = arith.constant 0 : index
    %c0_134 = arith.constant 0 : index
    %192 = vector.load %arg13[%c0_132, %c0_133, %c0_134] : memref<20x20x8xf32, #tpu.memory_space<vmem>>, vector<20x20x8xf32>
    tpu.vector_store %arg13[%c0_132, %c0_133, %c0_134], %191 {strides = array<i32>} : memref<20x20x8xf32, #tpu.memory_space<vmem>>, vector<20x20x8xf32>,
    %c2_135 = arith.constant 2 : index
    %c2_136 = arith.constant 2 : index
    %c0_137 = arith.constant 0 : index
    %193 = vector.load %arg13[%c2_135, %c2_136, %c0_137] : memref<20x20x8xf32, #tpu.memory_space<vmem>>, vector<16x16x8xf32>
    tpu.vector_store %arg13[%c2_135, %c2_136, %c0_137], %190 {strides = array<i32>} : memref<20x20x8xf32, #tpu.memory_space<vmem>>, vector<16x16x8xf32>,
    %c0_138 = arith.constant 0 : index
    %c0_139 = arith.constant 0 : index
    %c0_140 = arith.constant 0 : index
    %194 = vector.load %arg13[%c0_138, %c0_139, %c0_140] : memref<20x20x8xf32, #tpu.memory_space<vmem>>, vector<16x16x8xf32>
    %c0_141 = arith.constant 0 : index
    %c0_142 = arith.constant 0 : index
    %195 = vector.load %arg9[%c0_141, %c0_142] : memref<25x8xf32, #tpu.memory_space<vmem>>, vector<1x8xf32>
    %196 = vector.shape_cast %195 : vector<1x8xf32> to vector<1x1x8xf32>
    %197 = vector.broadcast %196 : vector<1x1x8xf32> to vector<16x16x8xf32>
    %198 = arith.mulf %194, %197 : vector<16x16x8xf32>
    %c0_143 = arith.constant 0 : index
    %c1_144 = arith.constant 1 : index
    %c0_145 = arith.constant 0 : index
    %199 = vector.load %arg13[%c0_143, %c1_144, %c0_145] : memref<20x20x8xf32, #tpu.memory_space<vmem>>, vector<16x16x8xf32>
    %c1_146 = arith.constant 1 : index
    %c0_147 = arith.constant 0 : index
    %200 = vector.load %arg9[%c1_146, %c0_147] : memref<25x8xf32, #tpu.memory_space<vmem>>, vector<1x8xf32>
    %201 = vector.shape_cast %200 : vector<1x8xf32> to vector<1x1x8xf32>
    %202 = vector.broadcast %201 : vector<1x1x8xf32> to vector<16x16x8xf32>
    %203 = arith.mulf %199, %202 : vector<16x16x8xf32>
    %204 = arith.addf %198, %203 : vector<16x16x8xf32>
    %c0_148 = arith.constant 0 : index
    %c2_149 = arith.constant 2 : index
    %c0_150 = arith.constant 0 : index
    %205 = vector.load %arg13[%c0_148, %c2_149, %c0_150] : memref<20x20x8xf32, #tpu.memory_space<vmem>>, vector<16x16x8xf32>
    %c2_151 = arith.constant 2 : index
    %c0_152 = arith.constant 0 : index
    %206 = vector.load %arg9[%c2_151, %c0_152] : memref<25x8xf32, #tpu.memory_space<vmem>>, vector<1x8xf32>
    %207 = vector.shape_cast %206 : vector<1x8xf32> to vector<1x1x8xf32>
    %208 = vector.broadcast %207 : vector<1x1x8xf32> to vector<16x16x8xf32>
    %209 = arith.mulf %205, %208 : vector<16x16x8xf32>
    %210 = arith.addf %204, %209 : vector<16x16x8xf32>
    %c0_153 = arith.constant 0 : index
    %c3_154 = arith.constant 3 : index
    %c0_155 = arith.constant 0 : index
    %211 = vector.load %arg13[%c0_153, %c3_154, %c0_155] : memref<20x20x8xf32, #tpu.memory_space<vmem>>, vector<16x16x8xf32>
    %c3_156 = arith.constant 3 : index
    %c0_157 = arith.constant 0 : index
    %212 = vector.load %arg9[%c3_156, %c0_157] : memref<25x8xf32, #tpu.memory_space<vmem>>, vector<1x8xf32>
    %213 = vector.shape_cast %212 : vector<1x8xf32> to vector<1x1x8xf32>
    %214 = vector.broadcast %213 : vector<1x1x8xf32> to vector<16x16x8xf32>
    %215 = arith.mulf %211, %214 : vector<16x16x8xf32>
    %216 = arith.addf %210, %215 : vector<16x16x8xf32>
    %c0_158 = arith.constant 0 : index
    %c4_159 = arith.constant 4 : index
    %c0_160 = arith.constant 0 : index
    %217 = vector.load %arg13[%c0_158, %c4_159, %c0_160] : memref<20x20x8xf32, #tpu.memory_space<vmem>>, vector<16x16x8xf32>
    %c4_161 = arith.constant 4 : index
    %c0_162 = arith.constant 0 : index
    %218 = vector.load %arg9[%c4_161, %c0_162] : memref<25x8xf32, #tpu.memory_space<vmem>>, vector<1x8xf32>
    %219 = vector.shape_cast %218 : vector<1x8xf32> to vector<1x1x8xf32>
    %220 = vector.broadcast %219 : vector<1x1x8xf32> to vector<16x16x8xf32>
    %221 = arith.mulf %217, %220 : vector<16x16x8xf32>
    %222 = arith.addf %216, %221 : vector<16x16x8xf32>
    %c1_163 = arith.constant 1 : index
    %c0_164 = arith.constant 0 : index
    %c0_165 = arith.constant 0 : index
    %223 = vector.load %arg13[%c1_163, %c0_164, %c0_165] : memref<20x20x8xf32, #tpu.memory_space<vmem>>, vector<16x16x8xf32>
    %c5_166 = arith.constant 5 : index
    %c0_167 = arith.constant 0 : index
    %224 = vector.load %arg9[%c5_166, %c0_167] : memref<25x8xf32, #tpu.memory_space<vmem>>, vector<1x8xf32>
    %225 = vector.shape_cast %224 : vector<1x8xf32> to vector<1x1x8xf32>
    %226 = vector.broadcast %225 : vector<1x1x8xf32> to vector<16x16x8xf32>
    %227 = arith.mulf %223, %226 : vector<16x16x8xf32>
    %228 = arith.addf %222, %227 : vector<16x16x8xf32>
    %c1_168 = arith.constant 1 : index
    %c1_169 = arith.constant 1 : index
    %c0_170 = arith.constant 0 : index
    %229 = vector.load %arg13[%c1_168, %c1_169, %c0_170] : memref<20x20x8xf32, #tpu.memory_space<vmem>>, vector<16x16x8xf32>
    %c6_171 = arith.constant 6 : index
    %c0_172 = arith.constant 0 : index
    %230 = vector.load %arg9[%c6_171, %c0_172] : memref<25x8xf32, #tpu.memory_space<vmem>>, vector<1x8xf32>
    %231 = vector.shape_cast %230 : vector<1x8xf32> to vector<1x1x8xf32>
    %232 = vector.broadcast %231 : vector<1x1x8xf32> to vector<16x16x8xf32>
    %233 = arith.mulf %229, %232 : vector<16x16x8xf32>
    %234 = arith.addf %228, %233 : vector<16x16x8xf32>
    %c1_173 = arith.constant 1 : index
    %c2_174 = arith.constant 2 : index
    %c0_175 = arith.constant 0 : index
    %235 = vector.load %arg13[%c1_173, %c2_174, %c0_175] : memref<20x20x8xf32, #tpu.memory_space<vmem>>, vector<16x16x8xf32>
    %c7_176 = arith.constant 7 : index
    %c0_177 = arith.constant 0 : index
    %236 = vector.load %arg9[%c7_176, %c0_177] : memref<25x8xf32, #tpu.memory_space<vmem>>, vector<1x8xf32>
    %237 = vector.shape_cast %236 : vector<1x8xf32> to vector<1x1x8xf32>
    %238 = vector.broadcast %237 : vector<1x1x8xf32> to vector<16x16x8xf32>
    %239 = arith.mulf %235, %238 : vector<16x16x8xf32>
    %240 = arith.addf %234, %239 : vector<16x16x8xf32>
    %c1_178 = arith.constant 1 : index
    %c3_179 = arith.constant 3 : index
    %c0_180 = arith.constant 0 : index
    %241 = vector.load %arg13[%c1_178, %c3_179, %c0_180] : memref<20x20x8xf32, #tpu.memory_space<vmem>>, vector<16x16x8xf32>
    %c8_181 = arith.constant 8 : index
    %c0_182 = arith.constant 0 : index
    %242 = vector.load %arg9[%c8_181, %c0_182] : memref<25x8xf32, #tpu.memory_space<vmem>>, vector<1x8xf32>
    %243 = vector.shape_cast %242 : vector<1x8xf32> to vector<1x1x8xf32>
    %244 = vector.broadcast %243 : vector<1x1x8xf32> to vector<16x16x8xf32>
    %245 = arith.mulf %241, %244 : vector<16x16x8xf32>
    %246 = arith.addf %240, %245 : vector<16x16x8xf32>
    %c1_183 = arith.constant 1 : index
    %c4_184 = arith.constant 4 : index
    %c0_185 = arith.constant 0 : index
    %247 = vector.load %arg13[%c1_183, %c4_184, %c0_185] : memref<20x20x8xf32, #tpu.memory_space<vmem>>, vector<16x16x8xf32>
    %c9_186 = arith.constant 9 : index
    %c0_187 = arith.constant 0 : index
    %248 = vector.load %arg9[%c9_186, %c0_187] : memref<25x8xf32, #tpu.memory_space<vmem>>, vector<1x8xf32>
    %249 = vector.shape_cast %248 : vector<1x8xf32> to vector<1x1x8xf32>
    %250 = vector.broadcast %249 : vector<1x1x8xf32> to vector<16x16x8xf32>
    %251 = arith.mulf %247, %250 : vector<16x16x8xf32>
    %252 = arith.addf %246, %251 : vector<16x16x8xf32>
    %c2_188 = arith.constant 2 : index
    %c0_189 = arith.constant 0 : index
    %c0_190 = arith.constant 0 : index
    %253 = vector.load %arg13[%c2_188, %c0_189, %c0_190] : memref<20x20x8xf32, #tpu.memory_space<vmem>>, vector<16x16x8xf32>
    %c10_191 = arith.constant 10 : index
    %c0_192 = arith.constant 0 : index
    %254 = vector.load %arg9[%c10_191, %c0_192] : memref<25x8xf32, #tpu.memory_space<vmem>>, vector<1x8xf32>
    %255 = vector.shape_cast %254 : vector<1x8xf32> to vector<1x1x8xf32>
    %256 = vector.broadcast %255 : vector<1x1x8xf32> to vector<16x16x8xf32>
    %257 = arith.mulf %253, %256 : vector<16x16x8xf32>
    %258 = arith.addf %252, %257 : vector<16x16x8xf32>
    %c2_193 = arith.constant 2 : index
    %c1_194 = arith.constant 1 : index
    %c0_195 = arith.constant 0 : index
    %259 = vector.load %arg13[%c2_193, %c1_194, %c0_195] : memref<20x20x8xf32, #tpu.memory_space<vmem>>, vector<16x16x8xf32>
    %c11_196 = arith.constant 11 : index
    %c0_197 = arith.constant 0 : index
    %260 = vector.load %arg9[%c11_196, %c0_197] : memref<25x8xf32, #tpu.memory_space<vmem>>, vector<1x8xf32>
    %261 = vector.shape_cast %260 : vector<1x8xf32> to vector<1x1x8xf32>
    %262 = vector.broadcast %261 : vector<1x1x8xf32> to vector<16x16x8xf32>
    %263 = arith.mulf %259, %262 : vector<16x16x8xf32>
    %264 = arith.addf %258, %263 : vector<16x16x8xf32>
    %c2_198 = arith.constant 2 : index
    %c2_199 = arith.constant 2 : index
    %c0_200 = arith.constant 0 : index
    %265 = vector.load %arg13[%c2_198, %c2_199, %c0_200] : memref<20x20x8xf32, #tpu.memory_space<vmem>>, vector<16x16x8xf32>
    %c12_201 = arith.constant 12 : index
    %c0_202 = arith.constant 0 : index
    %266 = vector.load %arg9[%c12_201, %c0_202] : memref<25x8xf32, #tpu.memory_space<vmem>>, vector<1x8xf32>
    %267 = vector.shape_cast %266 : vector<1x8xf32> to vector<1x1x8xf32>
    %268 = vector.broadcast %267 : vector<1x1x8xf32> to vector<16x16x8xf32>
    %269 = arith.mulf %265, %268 : vector<16x16x8xf32>
    %270 = arith.addf %264, %269 : vector<16x16x8xf32>
    %c2_203 = arith.constant 2 : index
    %c3_204 = arith.constant 3 : index
    %c0_205 = arith.constant 0 : index
    %271 = vector.load %arg13[%c2_203, %c3_204, %c0_205] : memref<20x20x8xf32, #tpu.memory_space<vmem>>, vector<16x16x8xf32>
    %c13_206 = arith.constant 13 : index
    %c0_207 = arith.constant 0 : index
    %272 = vector.load %arg9[%c13_206, %c0_207] : memref<25x8xf32, #tpu.memory_space<vmem>>, vector<1x8xf32>
    %273 = vector.shape_cast %272 : vector<1x8xf32> to vector<1x1x8xf32>
    %274 = vector.broadcast %273 : vector<1x1x8xf32> to vector<16x16x8xf32>
    %275 = arith.mulf %271, %274 : vector<16x16x8xf32>
    %276 = arith.addf %270, %275 : vector<16x16x8xf32>
    %c2_208 = arith.constant 2 : index
    %c4_209 = arith.constant 4 : index
    %c0_210 = arith.constant 0 : index
    %277 = vector.load %arg13[%c2_208, %c4_209, %c0_210] : memref<20x20x8xf32, #tpu.memory_space<vmem>>, vector<16x16x8xf32>
    %c14_211 = arith.constant 14 : index
    %c0_212 = arith.constant 0 : index
    %278 = vector.load %arg9[%c14_211, %c0_212] : memref<25x8xf32, #tpu.memory_space<vmem>>, vector<1x8xf32>
    %279 = vector.shape_cast %278 : vector<1x8xf32> to vector<1x1x8xf32>
    %280 = vector.broadcast %279 : vector<1x1x8xf32> to vector<16x16x8xf32>
    %281 = arith.mulf %277, %280 : vector<16x16x8xf32>
    %282 = arith.addf %276, %281 : vector<16x16x8xf32>
    %c3_213 = arith.constant 3 : index
    %c0_214 = arith.constant 0 : index
    %c0_215 = arith.constant 0 : index
    %283 = vector.load %arg13[%c3_213, %c0_214, %c0_215] : memref<20x20x8xf32, #tpu.memory_space<vmem>>, vector<16x16x8xf32>
    %c15_216 = arith.constant 15 : index
    %c0_217 = arith.constant 0 : index
    %284 = vector.load %arg9[%c15_216, %c0_217] : memref<25x8xf32, #tpu.memory_space<vmem>>, vector<1x8xf32>
    %285 = vector.shape_cast %284 : vector<1x8xf32> to vector<1x1x8xf32>
    %286 = vector.broadcast %285 : vector<1x1x8xf32> to vector<16x16x8xf32>
    %287 = arith.mulf %283, %286 : vector<16x16x8xf32>
    %288 = arith.addf %282, %287 : vector<16x16x8xf32>
    %c3_218 = arith.constant 3 : index
    %c1_219 = arith.constant 1 : index
    %c0_220 = arith.constant 0 : index
    %289 = vector.load %arg13[%c3_218, %c1_219, %c0_220] : memref<20x20x8xf32, #tpu.memory_space<vmem>>, vector<16x16x8xf32>
    %c16_221 = arith.constant 16 : index
    %c0_222 = arith.constant 0 : index
    %290 = vector.load %arg9[%c16_221, %c0_222] : memref<25x8xf32, #tpu.memory_space<vmem>>, vector<1x8xf32>
    %291 = vector.shape_cast %290 : vector<1x8xf32> to vector<1x1x8xf32>
    %292 = vector.broadcast %291 : vector<1x1x8xf32> to vector<16x16x8xf32>
    %293 = arith.mulf %289, %292 : vector<16x16x8xf32>
    %294 = arith.addf %288, %293 : vector<16x16x8xf32>
    %c3_223 = arith.constant 3 : index
    %c2_224 = arith.constant 2 : index
    %c0_225 = arith.constant 0 : index
    %295 = vector.load %arg13[%c3_223, %c2_224, %c0_225] : memref<20x20x8xf32, #tpu.memory_space<vmem>>, vector<16x16x8xf32>
    %c17_226 = arith.constant 17 : index
    %c0_227 = arith.constant 0 : index
    %296 = vector.load %arg9[%c17_226, %c0_227] : memref<25x8xf32, #tpu.memory_space<vmem>>, vector<1x8xf32>
    %297 = vector.shape_cast %296 : vector<1x8xf32> to vector<1x1x8xf32>
    %298 = vector.broadcast %297 : vector<1x1x8xf32> to vector<16x16x8xf32>
    %299 = arith.mulf %295, %298 : vector<16x16x8xf32>
    %300 = arith.addf %294, %299 : vector<16x16x8xf32>
    %c3_228 = arith.constant 3 : index
    %c3_229 = arith.constant 3 : index
    %c0_230 = arith.constant 0 : index
    %301 = vector.load %arg13[%c3_228, %c3_229, %c0_230] : memref<20x20x8xf32, #tpu.memory_space<vmem>>, vector<16x16x8xf32>
    %c18_231 = arith.constant 18 : index
    %c0_232 = arith.constant 0 : index
    %302 = vector.load %arg9[%c18_231, %c0_232] : memref<25x8xf32, #tpu.memory_space<vmem>>, vector<1x8xf32>
    %303 = vector.shape_cast %302 : vector<1x8xf32> to vector<1x1x8xf32>
    %304 = vector.broadcast %303 : vector<1x1x8xf32> to vector<16x16x8xf32>
    %305 = arith.mulf %301, %304 : vector<16x16x8xf32>
    %306 = arith.addf %300, %305 : vector<16x16x8xf32>
    %c3_233 = arith.constant 3 : index
    %c4_234 = arith.constant 4 : index
    %c0_235 = arith.constant 0 : index
    %307 = vector.load %arg13[%c3_233, %c4_234, %c0_235] : memref<20x20x8xf32, #tpu.memory_space<vmem>>, vector<16x16x8xf32>
    %c19_236 = arith.constant 19 : index
    %c0_237 = arith.constant 0 : index
    %308 = vector.load %arg9[%c19_236, %c0_237] : memref<25x8xf32, #tpu.memory_space<vmem>>, vector<1x8xf32>
    %309 = vector.shape_cast %308 : vector<1x8xf32> to vector<1x1x8xf32>
    %310 = vector.broadcast %309 : vector<1x1x8xf32> to vector<16x16x8xf32>
    %311 = arith.mulf %307, %310 : vector<16x16x8xf32>
    %312 = arith.addf %306, %311 : vector<16x16x8xf32>
    %c4_238 = arith.constant 4 : index
    %c0_239 = arith.constant 0 : index
    %c0_240 = arith.constant 0 : index
    %313 = vector.load %arg13[%c4_238, %c0_239, %c0_240] : memref<20x20x8xf32, #tpu.memory_space<vmem>>, vector<16x16x8xf32>
    %c20_241 = arith.constant 20 : index
    %c0_242 = arith.constant 0 : index
    %314 = vector.load %arg9[%c20_241, %c0_242] : memref<25x8xf32, #tpu.memory_space<vmem>>, vector<1x8xf32>
    %315 = vector.shape_cast %314 : vector<1x8xf32> to vector<1x1x8xf32>
    %316 = vector.broadcast %315 : vector<1x1x8xf32> to vector<16x16x8xf32>
    %317 = arith.mulf %313, %316 : vector<16x16x8xf32>
    %318 = arith.addf %312, %317 : vector<16x16x8xf32>
    %c4_243 = arith.constant 4 : index
    %c1_244 = arith.constant 1 : index
    %c0_245 = arith.constant 0 : index
    %319 = vector.load %arg13[%c4_243, %c1_244, %c0_245] : memref<20x20x8xf32, #tpu.memory_space<vmem>>, vector<16x16x8xf32>
    %c21_246 = arith.constant 21 : index
    %c0_247 = arith.constant 0 : index
    %320 = vector.load %arg9[%c21_246, %c0_247] : memref<25x8xf32, #tpu.memory_space<vmem>>, vector<1x8xf32>
    %321 = vector.shape_cast %320 : vector<1x8xf32> to vector<1x1x8xf32>
    %322 = vector.broadcast %321 : vector<1x1x8xf32> to vector<16x16x8xf32>
    %323 = arith.mulf %319, %322 : vector<16x16x8xf32>
    %324 = arith.addf %318, %323 : vector<16x16x8xf32>
    %c4_248 = arith.constant 4 : index
    %c2_249 = arith.constant 2 : index
    %c0_250 = arith.constant 0 : index
    %325 = vector.load %arg13[%c4_248, %c2_249, %c0_250] : memref<20x20x8xf32, #tpu.memory_space<vmem>>, vector<16x16x8xf32>
    %c22_251 = arith.constant 22 : index
    %c0_252 = arith.constant 0 : index
    %326 = vector.load %arg9[%c22_251, %c0_252] : memref<25x8xf32, #tpu.memory_space<vmem>>, vector<1x8xf32>
    %327 = vector.shape_cast %326 : vector<1x8xf32> to vector<1x1x8xf32>
    %328 = vector.broadcast %327 : vector<1x1x8xf32> to vector<16x16x8xf32>
    %329 = arith.mulf %325, %328 : vector<16x16x8xf32>
    %330 = arith.addf %324, %329 : vector<16x16x8xf32>
    %c4_253 = arith.constant 4 : index
    %c3_254 = arith.constant 3 : index
    %c0_255 = arith.constant 0 : index
    %331 = vector.load %arg13[%c4_253, %c3_254, %c0_255] : memref<20x20x8xf32, #tpu.memory_space<vmem>>, vector<16x16x8xf32>
    %c23_256 = arith.constant 23 : index
    %c0_257 = arith.constant 0 : index
    %332 = vector.load %arg9[%c23_256, %c0_257] : memref<25x8xf32, #tpu.memory_space<vmem>>, vector<1x8xf32>
    %333 = vector.shape_cast %332 : vector<1x8xf32> to vector<1x1x8xf32>
    %334 = vector.broadcast %333 : vector<1x1x8xf32> to vector<16x16x8xf32>
    %335 = arith.mulf %331, %334 : vector<16x16x8xf32>
    %336 = arith.addf %330, %335 : vector<16x16x8xf32>
    %c4_258 = arith.constant 4 : index
    %c4_259 = arith.constant 4 : index
    %c0_260 = arith.constant 0 : index
    %337 = vector.load %arg13[%c4_258, %c4_259, %c0_260] : memref<20x20x8xf32, #tpu.memory_space<vmem>>, vector<16x16x8xf32>
    %c24_261 = arith.constant 24 : index
    %c0_262 = arith.constant 0 : index
    %338 = vector.load %arg9[%c24_261, %c0_262] : memref<25x8xf32, #tpu.memory_space<vmem>>, vector<1x8xf32>
    %339 = vector.shape_cast %338 : vector<1x8xf32> to vector<1x1x8xf32>
    %340 = vector.broadcast %339 : vector<1x1x8xf32> to vector<16x16x8xf32>
    %341 = arith.mulf %337, %340 : vector<16x16x8xf32>
    %342 = arith.addf %336, %341 : vector<16x16x8xf32>
    %c0_263 = arith.constant 0 : index
    %c0_264 = arith.constant 0 : index
    %343 = vector.load %arg10[%c0_263, %c0_264] : memref<1x8xf32, #tpu.memory_space<vmem>>, vector<1x8xf32>
    %344 = vector.shape_cast %343 : vector<1x8xf32> to vector<1x1x8xf32>
    %345 = vector.broadcast %344 : vector<1x1x8xf32> to vector<16x16x8xf32>
    %346 = arith.addf %342, %345 : vector<16x16x8xf32>
    %347 = vector.extract_strided_slice %1 {offsets = [0, 0, 0], sizes = [16, 16, 8], strides = [1, 1, 1]} : vector<16x16x16xf32> to vector<16x16x8xf32>
    %348 = arith.addf %190, %347 : vector<16x16x8xf32>
    %349 = vector.extract_strided_slice %1 {offsets = [0, 0, 8], sizes = [16, 16, 8], strides = [1, 1, 1]} : vector<16x16x16xf32> to vector<16x16x8xf32>
    %350 = arith.addf %346, %349 : vector<16x16x8xf32>
    %351 = tpu.concatenate %348, %350 in 2 : vector<16x16x8xf32>, vector<16x16x8xf32> -> vector<16x16x16xf32>
    %c0_265 = arith.constant 0 : index
    %c0_266 = arith.constant 0 : index
    %c0_267 = arith.constant 0 : index
    %c0_268 = arith.constant 0 : index
    %352 = vector.load %arg11[%c0_265, %c0_266, %c0_267, %c0_268] : memref<1x16x16x16xf32, #tpu.memory_space<vmem>>, vector<1x16x16x16xf32>
    %353 = vector.shape_cast %352 : vector<1x16x16x16xf32> to vector<16x16x16xf32>
    %354 = vector.shape_cast %351 : vector<16x16x16xf32> to vector<1x16x16x16xf32>
    tpu.vector_store %arg11[%c0_265, %c0_266, %c0_267, %c0_268], %354 {strides = array<i32>} : memref<1x16x16x16xf32, #tpu.memory_space<vmem>>, vector<1x16x16x16xf32>,
    return
  }
  func.func @transform_0(%arg0: i32) -> (i32, i32, i32, i32) {
    %c0_i32 = arith.constant 0 : i32
    %c0_i32_0 = arith.constant 0 : i32
    %c0_i32_1 = arith.constant 0 : i32
    %c0_i32_2 = arith.constant 0 : i32
    return %arg0, %c0_i32, %c0_i32_0, %c0_i32_1 : i32, i32, i32, i32
  }
  func.func @transform_1(%arg0: i32) -> (i32, i32) {
    %c0_i32 = arith.constant 0 : i32
    %c0_i32_0 = arith.constant 0 : i32
    %c0_i32_1 = arith.constant 0 : i32
    return %c0_i32, %c0_i32_0 : i32, i32
  }
  func.func @transform_2(%arg0: i32) -> (i32, i32) {
    %c0_i32 = arith.constant 0 : i32
    %c0_i32_0 = arith.constant 0 : i32
    %c0_i32_1 = arith.constant 0 : i32
    return %c0_i32, %c0_i32_0 : i32, i32
  }
  func.func @transform_3(%arg0: i32) -> (i32, i32) {
    %c0_i32 = arith.constant 0 : i32
    %c0_i32_0 = arith.constant 0 : i32
    %c0_i32_1 = arith.constant 0 : i32
    return %c0_i32, %c0_i32_0 : i32, i32
  }
  func.func @transform_4(%arg0: i32) -> (i32, i32) {
    %c0_i32 = arith.constant 0 : i32
    %c0_i32_0 = arith.constant 0 : i32
    %c0_i32_1 = arith.constant 0 : i32
    return %c0_i32, %c0_i32_0 : i32, i32
  }
  func.func @transform_5(%arg0: i32) -> (i32, i32) {
    %c0_i32 = arith.constant 0 : i32
    %c0_i32_0 = arith.constant 0 : i32
    %c0_i32_1 = arith.constant 0 : i32
    return %c0_i32, %c0_i32_0 : i32, i32
  }
  func.func @transform_6(%arg0: i32) -> (i32, i32) {
    %c0_i32 = arith.constant 0 : i32
    %c0_i32_0 = arith.constant 0 : i32
    %c0_i32_1 = arith.constant 0 : i32
    return %c0_i32, %c0_i32_0 : i32, i32
  }
  func.func @transform_7(%arg0: i32) -> (i32, i32) {
    %c0_i32 = arith.constant 0 : i32
    %c0_i32_0 = arith.constant 0 : i32
    %c0_i32_1 = arith.constant 0 : i32
    return %c0_i32, %c0_i32_0 : i32, i32
  }
  func.func @transform_8(%arg0: i32) -> (i32, i32) {
    %c0_i32 = arith.constant 0 : i32
    %c0_i32_0 = arith.constant 0 : i32
    %c0_i32_1 = arith.constant 0 : i32
    return %c0_i32, %c0_i32_0 : i32, i32
  }
  func.func @transform_9(%arg0: i32) -> (i32, i32) {
    %c0_i32 = arith.constant 0 : i32
    %c0_i32_0 = arith.constant 0 : i32
    %c0_i32_1 = arith.constant 0 : i32
    return %c0_i32, %c0_i32_0 : i32, i32
  }
  func.func @transform_10(%arg0: i32) -> (i32, i32, i32, i32) {
    %c0_i32 = arith.constant 0 : i32
    %c0_i32_0 = arith.constant 0 : i32
    %c0_i32_1 = arith.constant 0 : i32
    %c0_i32_2 = arith.constant 0 : i32
    return %arg0, %c0_i32, %c0_i32_0, %c0_i32_1 : i32, i32, i32, i32
  }
}

</mosaic_0001>

<llo_original>
// kernel: tpu_custom_call.1
$region0: #{tpu_custom_call.1}
  #allocation0 [shape = 'u32[]', space=smem, size = 0x4, offset = 0x4, fixed_abs, tag = 'smem constant byte address 0x4 - core index']
  #allocation1 [shape = 'u32[72,128]{1,0:T(1,128)}', space=vmem, size = 0x9000, scoped, tag = 'internal scratch']
  #allocation2 [shape = 'f32[20,20,4]{2,1,0:T(8,128)}', space=vmem, size = 0x3c000, scoped, tag = 'scratch operand']
  #allocation3 [shape = 'f32[20,20,8]{2,1,0:T(8,128)}', space=vmem, size = 0x3c000, scoped, tag = 'scratch operand']
  %s0 = inlined_call_operand.hbm [shape: f32[2,16,16,16], index: 0, kind: input, shape index: {}]
  %s1 = inlined_call_operand.vmem [shape: f32[16,4], index: 1, kind: input, shape index: {}]
  %s2 = inlined_call_operand.vmem [shape: f32[1,4], index: 2, kind: input, shape index: {}]
  %s3 = inlined_call_operand.vmem [shape: f32[25,4], index: 3, kind: input, shape index: {}]
  %s4 = inlined_call_operand.vmem [shape: f32[1,4], index: 4, kind: input, shape index: {}]
  %s5 = inlined_call_operand.vmem [shape: f32[4,8], index: 5, kind: input, shape index: {}]
  %s6 = inlined_call_operand.vmem [shape: f32[4,8], index: 6, kind: input, shape index: {}]
  %s7 = inlined_call_operand.vmem [shape: f32[1,8], index: 7, kind: input, shape index: {}]
  %s8 = inlined_call_operand.vmem [shape: f32[25,8], index: 8, kind: input, shape index: {}]
  %s9 = inlined_call_operand.vmem [shape: f32[1,8], index: 9, kind: input, shape index: {}]
  %s10 = inlined_call_operand.hbm [shape: f32[2,16,16,16], index: 10, kind: output, shape index: {}]
  %s11 = sld [smem:[#allocation0]]
  $region77: #{tpu_custom_call.1} parent=0
    _
  %s13 = ssub.s32 1, %s11
  %s14 = scalar_select 0, %s13, %s11
  $region1: #{tpu_custom_call.1} parent=0
    #allocation4 [shape = 'u8[262144]{0}', space=vmem, size = 0x40000, scoped, tag = 'input window, operand 0']
    #allocation5 [shape = 's32[2]{0}', space=sflag, size = 0x8, scoped, tag = 'scoped memory for tpu_custom_call.1']
    #allocation6 [shape = 's32[2]{0}', space=sflag, size = 0x8, scoped, tag = 'scoped memory for tpu_custom_call.1']
    #allocation7 [shape = 'u8[262144]{0}', space=vmem, size = 0x40000, scoped, tag = 'output window, operand 0']
    %15 = vsyncpa [#allocation5], 0
    %s16 = scalar_lea.sflag [#allocation5], 1
    %17 = vsyncpa %s16, 0
    %18 = vsyncpa [#allocation6], 0
    %s19 = scalar_lea.sflag [#allocation6], 1
    %20 = vsyncpa %s19, 0
    loop: start=0, step=1, limit=4
    $region2: #{tpu_custom_call.1} parent=1 // loop_pre_header
      _
    $region3: #{tpu_custom_call.1} parent=1 // loop_header
      %s22 = sphi 0, %s26
      %p23 = scmp.ge.s32.totalorder %s22, 4
      %s32 = sphi 0, %s34
      %s35 = sphi 0, %s32
      %s36 = sphi 0, %s35
      %s52 = sphi 0, %s36
      %s56 = sphi 0, %s56
      %s58 = sphi 0, %s56
      %s59 = sphi 0, %s58
      %s73 = sphi 0, %s59
      %s77 = sphi 0, %s77
      %s79 = sphi 0, %s77
      %s80 = sphi 0, %s79
      %s94 = sphi 0, %s80
      %s98 = sphi 0, %s98
      %s100 = sphi 0, %s98
      %s101 = sphi 0, %s100
      %s115 = sphi 0, %s101
      %s119 = sphi 0, %s119
      %s121 = sphi 0, %s119
      %s122 = sphi 0, %s121
      %s136 = sphi 0, %s122
      %s140 = sphi 0, %s140
      %s142 = sphi 0, %s140
      %s143 = sphi 0, %s142
      %s157 = sphi 0, %s143
      %s161 = sphi 0, %s161
      %s163 = sphi 0, %s161
      %s164 = sphi 0, %s163
      %s178 = sphi 0, %s164
      %s182 = sphi 0, %s182
      %s184 = sphi 0, %s182
      %s185 = sphi 0, %s184
      %s199 = sphi 0, %s185
      %s203 = sphi 0, %s203
      %s205 = sphi 0, %s203
      %s206 = sphi 0, %s205
      %s220 = sphi 0, %s206
      %s224 = sphi 0, %s224
      %s226 = sphi 0, %s224
      %s227 = sphi 0, %s226
      %s241 = sphi 0, %s227
      %s247 = sphi 0, %s249
      %s250 = sphi 0, %s247
      %s251 = sphi 0, %s250
      %s267 = sphi 0, %s251
    $region4: #{tpu_custom_call.1} parent=1 // loop_header_branch
      %25 = sbr.rel (%p23) target = $region8
    $region5: #{tpu_custom_call.1} parent=1 // loop_body
      %s27 = ssub.s32 %s22, 1
      %s28 = ssub.s32 %s22, 2
      %s29 = sadd.s32 %s22, 1
      %s30 = ssub.s32 %s22, %s29
      %p31 = scmp.eq.s32.totalorder %s30, 0
      %s33 = sadd.s32 %s32, 1
      %s34 = scalar_select %p31, %s32, %s33
      %p37 = pneg %p31
      %p38 = scmp.eq.s32.totalorder %s22, 1
      %p39 = por %p37, %p38
      %p40 = scmp.ne.s32.totalorder %s32, %s35
      %p41 = scmp.eq.s32.totalorder %s22, 0
      %p42 = por %p40, %p41
      %p43 = scmp.ne.s32.totalorder %s32, %s35
      %p44 = scmp.eq.s32.totalorder %s27, 1
      %p45 = por %p43, %p44
      %p46 = scmp.ne.s32.totalorder %s35, %s36
      %p47 = scmp.eq.s32.totalorder %s27, 0
      %p48 = por %p46, %p47
      %p49 = scmp.ne.s32.totalorder %s35, %s36
      %p50 = scmp.eq.s32.totalorder %s28, 1
      %p51 = por %p49, %p50
      %p53 = scmp.ne.s32.totalorder %s36, %s52
      %p54 = scmp.eq.s32.totalorder %s28, 0
      %p55 = por %p53, %p54
      %s57 = sadd.s32 %s56, 1
      %p60 = scmp.eq.s32.totalorder %s22, 1
      %p61 = scmp.ne.s32.totalorder %s56, %s58
      %p62 = scmp.eq.s32.totalorder %s22, 0
      %p63 = por %p61, %p62
      %p64 = scmp.ne.s32.totalorder %s56, %s58
      %p65 = scmp.eq.s32.totalorder %s27, 1
      %p66 = por %p64, %p65
      %p67 = scmp.ne.s32.totalorder %s58, %s59
      %p68 = scmp.eq.s32.totalorder %s27, 0
      %p69 = por %p67, %p68
      %p70 = scmp.ne.s32.totalorder %s58, %s59
      %p71 = scmp.eq.s32.totalorder %s28, 1
      %p72 = por %p70, %p71
      %p74 = scmp.ne.s32.totalorder %s59, %s73
      %p75 = scmp.eq.s32.totalorder %s28, 0
      %p76 = por %p74, %p75
      %s78 = sadd.s32 %s77, 1
      %p81 = scmp.eq.s32.totalorder %s22, 1
      %p82 = scmp.ne.s32.totalorder %s77, %s79
      %p83 = scmp.eq.s32.totalorder %s22, 0
      %p84 = por %p82, %p83
      %p85 = scmp.ne.s32.totalorder %s77, %s79
      %p86 = scmp.eq.s32.totalorder %s27, 1
      %p87 = por %p85, %p86
      %p88 = scmp.ne.s32.totalorder %s79, %s80
      %p89 = scmp.eq.s32.totalorder %s27, 0
      %p90 = por %p88, %p89
      %p91 = scmp.ne.s32.totalorder %s79, %s80
      %p92 = scmp.eq.s32.totalorder %s28, 1
      %p93 = por %p91, %p92
      %p95 = scmp.ne.s32.totalorder %s80, %s94
      %p96 = scmp.eq.s32.totalorder %s28, 0
      %p97 = por %p95, %p96
      %s99 = sadd.s32 %s98, 1
      %p102 = scmp.eq.s32.totalorder %s22, 1
      %p103 = scmp.ne.s32.totalorder %s98, %s100
      %p104 = scmp.eq.s32.totalorder %s22, 0
      %p105 = por %p103, %p104
      %p106 = scmp.ne.s32.totalorder %s98, %s100
      %p107 = scmp.eq.s32.totalorder %s27, 1
      %p108 = por %p106, %p107
      %p109 = scmp.ne.s32.totalorder %s100, %s101
      %p110 = scmp.eq.s32.totalorder %s27, 0
      %p111 = por %p109, %p110
      %p112 = scmp.ne.s32.totalorder %s100, %s101
      %p113 = scmp.eq.s32.totalorder %s28, 1
      %p114 = por %p112, %p113
      %p116 = scmp.ne.s32.totalorder %s101, %s115
      %p117 = scmp.eq.s32.totalorder %s28, 0
      %p118 = por %p116, %p117
      %s120 = sadd.s32 %s119, 1
      %p123 = scmp.eq.s32.totalorder %s22, 1
      %p124 = scmp.ne.s32.totalorder %s119, %s121
      %p125 = scmp.eq.s32.totalorder %s22, 0
      %p126 = por %p124, %p125
      %p127 = scmp.ne.s32.totalorder %s119, %s121
      %p128 = scmp.eq.s32.totalorder %s27, 1
      %p129 = por %p127, %p128
      %p130 = scmp.ne.s32.totalorder %s121, %s122
      %p131 = scmp.eq.s32.totalorder %s27, 0
      %p132 = por %p130, %p131
      %p133 = scmp.ne.s32.totalorder %s121, %s122
      %p134 = scmp.eq.s32.totalorder %s28, 1
      %p135 = por %p133, %p134
      %p137 = scmp.ne.s32.totalorder %s122, %s136
      %p138 = scmp.eq.s32.totalorder %s28, 0
      %p139 = por %p137, %p138
      %s141 = sadd.s32 %s140, 1
      %p144 = scmp.eq.s32.totalorder %s22, 1
      %p145 = scmp.ne.s32.totalorder %s140, %s142
      %p146 = scmp.eq.s32.totalorder %s22, 0
      %p147 = por %p145, %p146
      %p148 = scmp.ne.s32.totalorder %s140, %s142
      %p149 = scmp.eq.s32.totalorder %s27, 1
      %p150 = por %p148, %p149
      %p151 = scmp.ne.s32.totalorder %s142, %s143
      %p152 = scmp.eq.s32.totalorder %s27, 0
      %p153 = por %p151, %p152
      %p154 = scmp.ne.s32.totalorder %s142, %s143
      %p155 = scmp.eq.s32.totalorder %s28, 1
      %p156 = por %p154, %p155
      %p158 = scmp.ne.s32.totalorder %s143, %s157
      %p159 = scmp.eq.s32.totalorder %s28, 0
      %p160 = por %p158, %p159
      %s162 = sadd.s32 %s161, 1
      %p165 = scmp.eq.s32.totalorder %s22, 1
      %p166 = scmp.ne.s32.totalorder %s161, %s163
      %p167 = scmp.eq.s32.totalorder %s22, 0
      %p168 = por %p166, %p167
      %p169 = scmp.ne.s32.totalorder %s161, %s163
      %p170 = scmp.eq.s32.totalorder %s27, 1
      %p171 = por %p169, %p170
      %p172 = scmp.ne.s32.totalorder %s163, %s164
      %p173 = scmp.eq.s32.totalorder %s27, 0
      %p174 = por %p172, %p173
      %p175 = scmp.ne.s32.totalorder %s163, %s164
      %p176 = scmp.eq.s32.totalorder %s28, 1
      %p177 = por %p175, %p176
      %p179 = scmp.ne.s32.totalorder %s164, %s178
      %p180 = scmp.eq.s32.totalorder %s28, 0
      %p181 = por %p179, %p180
      %s183 = sadd.s32 %s182, 1
      %p186 = scmp.eq.s32.totalorder %s22, 1
      %p187 = scmp.ne.s32.totalorder %s182, %s184
      %p188 = scmp.eq.s32.totalorder %s22, 0
      %p189 = por %p187, %p188
      %p190 = scmp.ne.s32.totalorder %s182, %s184
      %p191 = scmp.eq.s32.totalorder %s27, 1
      %p192 = por %p190, %p191
      %p193 = scmp.ne.s32.totalorder %s184, %s185
      %p194 = scmp.eq.s32.totalorder %s27, 0
      %p195 = por %p193, %p194
      %p196 = scmp.ne.s32.totalorder %s184, %s185
      %p197 = scmp.eq.s32.totalorder %s28, 1
      %p198 = por %p196, %p197
      %p200 = scmp.ne.s32.totalorder %s185, %s199
      %p201 = scmp.eq.s32.totalorder %s28, 0
      %p202 = por %p200, %p201
      %s204 = sadd.s32 %s203, 1
      %p207 = scmp.eq.s32.totalorder %s22, 1
      %p208 = scmp.ne.s32.totalorder %s203, %s205
      %p209 = scmp.eq.s32.totalorder %s22, 0
      %p210 = por %p208, %p209
      %p211 = scmp.ne.s32.totalorder %s203, %s205
      %p212 = scmp.eq.s32.totalorder %s27, 1
      %p213 = por %p211, %p212
      %p214 = scmp.ne.s32.totalorder %s205, %s206
      %p215 = scmp.eq.s32.totalorder %s27, 0
      %p216 = por %p214, %p215
      %p217 = scmp.ne.s32.totalorder %s205, %s206
      %p218 = scmp.eq.s32.totalorder %s28, 1
      %p219 = por %p217, %p218
      %p221 = scmp.ne.s32.totalorder %s206, %s220
      %p222 = scmp.eq.s32.totalorder %s28, 0
      %p223 = por %p221, %p222
      %s225 = sadd.s32 %s224, 1
      %p228 = scmp.eq.s32.totalorder %s22, 1
      %p229 = scmp.ne.s32.totalorder %s224, %s226
      %p230 = scmp.eq.s32.totalorder %s22, 0
      %p231 = por %p229, %p230
      %p232 = scmp.ne.s32.totalorder %s224, %s226
      %p233 = scmp.eq.s32.totalorder %s27, 1
      %p234 = por %p232, %p233
      %p235 = scmp.ne.s32.totalorder %s226, %s227
      %p236 = scmp.eq.s32.totalorder %s27, 0
      %p237 = por %p235, %p236
      %p238 = scmp.ne.s32.totalorder %s226, %s227
      %p239 = scmp.eq.s32.totalorder %s28, 1
      %p240 = por %p238, %p239
      %p242 = scmp.ne.s32.totalorder %s227, %s241
      %p243 = scmp.eq.s32.totalorder %s28, 0
      %p244 = por %p242, %p243
      %s245 = ssub.s32 %s22, %s29
      %p246 = scmp.eq.s32.totalorder %s245, 0
      %s248 = sadd.s32 %s247, 1
      %s249 = scalar_select %p246, %s247, %s248
      %p252 = pneg %p246
      %p253 = scmp.eq.s32.totalorder %s22, 1
      %p254 = por %p252, %p253
      %p255 = scmp.ne.s32.totalorder %s247, %s250
      %p256 = scmp.eq.s32.totalorder %s22, 0
      %p257 = por %p255, %p256
      %p258 = scmp.ne.s32.totalorder %s247, %s250
      %p259 = scmp.eq.s32.totalorder %s27, 1
      %p260 = por %p258, %p259
      %p261 = scmp.ne.s32.totalorder %s250, %s251
      %p262 = scmp.eq.s32.totalorder %s27, 0
      %p263 = por %p261, %p262
      %p264 = scmp.ne.s32.totalorder %s250, %s251
      %p265 = scmp.eq.s32.totalorder %s28, 1
      %p266 = por %p264, %p265
      %p268 = scmp.ne.s32.totalorder %s251, %s267
      %p269 = scmp.eq.s32.totalorder %s28, 0
      %p270 = por %p268, %p269
      %p271 = scmp.le.s32.totalorder 1, %s22
      %p272 = scmp.lt.s32.totalorder %s22, 3
      %p273 = pnand %p271, %p272
      %p274 = pneg %p273
      // Predicated region
      $region9: #{tpu_custom_call.1} parent=5 // pred_check
        _
      $region10: #{tpu_custom_call.1} parent=5 // pred_check_branch
        %276 = sbr.rel (%p273) target = $region12
      $region11: #{tpu_custom_call.1} parent=5 // pred_region
        %s277 = ssub.s32 %s22, 1
        // Predicated region
        $region13: #{tpu_custom_call.1} parent=11 // pred_check
          %p278 = pneg %p69
        $region14: #{tpu_custom_call.1} parent=11 // pred_check_branch
          %280 = sbr.rel (%p278) target = $region16
        $region15: #{tpu_custom_call.1} parent=11 // pred_region
          _
        $region16: #{tpu_custom_call.1} parent=11 // pred_fallthru
          _
        // Predicated region
        $region17: #{tpu_custom_call.1} parent=11 // pred_check
          %p281 = pneg %p90
        $region18: #{tpu_custom_call.1} parent=11 // pred_check_branch
          %283 = sbr.rel (%p281) target = $region20
        $region19: #{tpu_custom_call.1} parent=11 // pred_region
          _
        $region20: #{tpu_custom_call.1} parent=11 // pred_fallthru
          _
        // Predicated region
        $region21: #{tpu_custom_call.1} parent=11 // pred_check
          %p284 = pneg %p111
        $region22: #{tpu_custom_call.1} parent=11 // pred_check_branch
          %286 = sbr.rel (%p284) target = $region24
        $region23: #{tpu_custom_call.1} parent=11 // pred_region
          _
        $region24: #{tpu_custom_call.1} parent=11 // pred_fallthru
          _
        // Predicated region
        $region25: #{tpu_custom_call.1} parent=11 // pred_check
          %p287 = pneg %p132
        $region26: #{tpu_custom_call.1} parent=11 // pred_check_branch
          %289 = sbr.rel (%p287) target = $region28
        $region27: #{tpu_custom_call.1} parent=11 // pred_region
          _
        $region28: #{tpu_custom_call.1} parent=11 // pred_fallthru
          _
        // Predicated region
        $region29: #{tpu_custom_call.1} parent=11 // pred_check
          %p290 = pneg %p153
        $region30: #{tpu_custom_call.1} parent=11 // pred_check_branch
          %292 = sbr.rel (%p290) target = $region32
        $region31: #{tpu_custom_call.1} parent=11 // pred_region
          _
        $region32: #{tpu_custom_call.1} parent=11 // pred_fallthru
          _
        // Predicated region
        $region33: #{tpu_custom_call.1} parent=11 // pred_check
          %p293 = pneg %p174
        $region34: #{tpu_custom_call.1} parent=11 // pred_check_branch
          %295 = sbr.rel (%p293) target = $region36
        $region35: #{tpu_custom_call.1} parent=11 // pred_region
          _
        $region36: #{tpu_custom_call.1} parent=11 // pred_fallthru
          _
        // Predicated region
        $region37: #{tpu_custom_call.1} parent=11 // pred_check
          %p296 = pneg %p195
        $region38: #{tpu_custom_call.1} parent=11 // pred_check_branch
          %298 = sbr.rel (%p296) target = $region40
        $region39: #{tpu_custom_call.1} parent=11 // pred_region
          _
        $region40: #{tpu_custom_call.1} parent=11 // pred_fallthru
          _
        // Predicated region
        $region41: #{tpu_custom_call.1} parent=11 // pred_check
          %p299 = pneg %p216
        $region42: #{tpu_custom_call.1} parent=11 // pred_check_branch
          %301 = sbr.rel (%p299) target = $region44
        $region43: #{tpu_custom_call.1} parent=11 // pred_region
          _
        $region44: #{tpu_custom_call.1} parent=11 // pred_fallthru
          _
        // Predicated region
        $region45: #{tpu_custom_call.1} parent=11 // pred_check
          %p302 = pneg %p237
        $region46: #{tpu_custom_call.1} parent=11 // pred_check_branch
          %304 = sbr.rel (%p302) target = $region48
        $region47: #{tpu_custom_call.1} parent=11 // pred_region
          _
        $region48: #{tpu_custom_call.1} parent=11 // pred_fallthru
          _
      $region12: #{tpu_custom_call.1} parent=5 // pred_fallthru
        _
      %p305 = scmp.lt.s32.totalorder %s22, 2
      // Predicated region
      $region49: #{tpu_custom_call.1} parent=5 // pred_check
        %p306 = pneg %p305
      $region50: #{tpu_custom_call.1} parent=5 // pred_check_branch
        %308 = sbr.rel (%p306) target = $region52
      $region51: #{tpu_custom_call.1} parent=5 // pred_region
        // Predicated region
        $region53: #{tpu_custom_call.1} parent=51 // pred_check
          %p309 = pneg %p42
        $region54: #{tpu_custom_call.1} parent=51 // pred_check_branch
          %311 = sbr.rel (%p309) target = $region56
        $region55: #{tpu_custom_call.1} parent=51 // pred_region
          %s312 = sand.u32 %s32, 1
          %s313 = scalar_lea.sflag [#allocation5], %s312
          %s314 = sand.u32 %s32, 1
          %s315 = smul.addr %s314, 256
          %s316 = scalar_lea.vmem [#allocation4], %s315
          %318 = vsyncadd %s313, 0
          %s319 = smul.addr %s22, 32
          %s320 = smul.addr %s319, 8
          %s321 = scalar_lea.hbm %s0, %s320
          %s322 = sshll.u32 %s321, 4
          %s323 = int_to_ptr.hbm [resolvable:$true] %s322
          %s324 = sshll.u32 %s316, 4
          %s325 = int_to_ptr.vmem [resolvable:$true] %s324
          %330 = dma.hbm_to_vmem [thread:$0]  %s323, 4096, %s325, %s313, 128, 128, 8
        $region56: #{tpu_custom_call.1} parent=51 // pred_fallthru
          _
      $region52: #{tpu_custom_call.1} parent=5 // pred_fallthru
        _
      %p331 = scmp.le.s32.totalorder 1, %s22
      %p332 = scmp.lt.s32.totalorder %s22, 3
      %p333 = pnand %p331, %p332
      %p334 = pneg %p333
      // Predicated region
      $region57: #{tpu_custom_call.1} parent=5 // pred_check
        _
      $region58: #{tpu_custom_call.1} parent=5 // pred_check_branch
        %336 = sbr.rel (%p333) target = $region60
      $region59: #{tpu_custom_call.1} parent=5 // pred_region
        %s337 = ssub.s32 %s22, 1
        %s338 = sand.u32 %s35, 1
        %s339 = scalar_lea.sflag [#allocation5], %s338
        %s340 = sand.u32 %s35, 1
        %s341 = smul.addr %s340, 256
        %s342 = scalar_lea.vmem [#allocation4], %s341
        // Predicated region
        $region61: #{tpu_custom_call.1} parent=59 // pred_check
          %p343 = pneg %p48
        $region62: #{tpu_custom_call.1} parent=59 // pred_check_branch
          %345 = sbr.rel (%p343) target = $region64
        $region63: #{tpu_custom_call.1} parent=59 // pred_region
          %347 = dma.done %s339, 4096
        $region64: #{tpu_custom_call.1} parent=59 // pred_fallthru
          _
        %s348 = sand.u32 %s35, 1
        %s349 = scalar_lea.sflag [#allocation5], %s348
        %s350 = sand.u32 %s35, 1
        %s351 = smul.addr %s350, 256
        %s352 = scalar_lea.vmem [#allocation4], %s351
        %p353 = pneg %p48
        %p354 = pneg %p45
        %p355 = pneg %p69
        %p356 = pneg %p66
        %p357 = pneg %p90
        %p358 = pneg %p87
        %p359 = pneg %p111
        %p360 = pneg %p108
        %p361 = pneg %p132
        %p362 = pneg %p129
        %p363 = pneg %p153
        %p364 = pneg %p150
        %p365 = pneg %p174
        %p366 = pneg %p171
        %p367 = pneg %p195
        %p368 = pneg %p192
        %p369 = pneg %p216
        %p370 = pneg %p213
        %p371 = pneg %p237
        %p372 = pneg %p234
        %p373 = pneg %p263
        %p374 = pneg %p260
        %s375 = sand.u32 %s250, 1
        %s376 = scalar_lea.sflag [#allocation6], %s375
        %s377 = sand.u32 %s250, 1
        %s378 = smul.addr %s377, 256
        %s379 = scalar_lea.vmem [#allocation7], %s378
        %v380 = vld [vmem:[%s342] sm:$0xff]
        %v381 = vld [vmem:[%s342 + $0x8] sm:$0xff]
        %v382 = vld [vmem:[%s342 + $0x10] sm:$0xff]
        %v383 = vld [vmem:[%s342 + $0x18] sm:$0xff]
        %v384 = vld [vmem:[%s342 + $0x20] sm:$0xff]
        %v385 = vld [vmem:[%s342 + $0x28] sm:$0xff]
        %v386 = vld [vmem:[%s342 + $0x30] sm:$0xff]
        %v387 = vld [vmem:[%s342 + $0x38] sm:$0xff]
        %v388 = vld [vmem:[%s342 + $0x40] sm:$0xff]
        %v389 = vld [vmem:[%s342 + $0x48] sm:$0xff]
        %v390 = vld [vmem:[%s342 + $0x50] sm:$0xff]
        %v391 = vld [vmem:[%s342 + $0x58] sm:$0xff]
        %v392 = vld [vmem:[%s342 + $0x60] sm:$0xff]
        %v393 = vld [vmem:[%s342 + $0x68] sm:$0xff]
        %v394 = vld [vmem:[%s342 + $0x70] sm:$0xff]
        %v395 = vld [vmem:[%s342 + $0x78] sm:$0xff]
        %v396 = vld [vmem:[%s342 + $0x80] sm:$0xff]
        %v397 = vld [vmem:[%s342 + $0x88] sm:$0xff]
        %v398 = vld [vmem:[%s342 + $0x90] sm:$0xff]
        %v399 = vld [vmem:[%s342 + $0x98] sm:$0xff]
        %v400 = vld [vmem:[%s342 + $0xa0] sm:$0xff]
        %v401 = vld [vmem:[%s342 + $0xa8] sm:$0xff]
        %v402 = vld [vmem:[%s342 + $0xb0] sm:$0xff]
        %v403 = vld [vmem:[%s342 + $0xb8] sm:$0xff]
        %v404 = vld [vmem:[%s342 + $0xc0] sm:$0xff]
        %v405 = vld [vmem:[%s342 + $0xc8] sm:$0xff]
        %v406 = vld [vmem:[%s342 + $0xd0] sm:$0xff]
        %v407 = vld [vmem:[%s342 + $0xd8] sm:$0xff]
        %v408 = vld [vmem:[%s342 + $0xe0] sm:$0xff]
        %v409 = vld [vmem:[%s342 + $0xe8] sm:$0xff]
        %v410 = vld [vmem:[%s342 + $0xf0] sm:$0xff]
        %v411 = vld [vmem:[%s342 + $0xf8] sm:$0xff]
        %v412 = vld [vmem:[%s1] sm:$0xff]
        %v413 = vld [vmem:[%s1 + $0x8] sm:$0xff]
        %v414 = vld [vmem:[%s2] sm:$0x1]
        %v416 = vperm.slane %v414, 0
        %vm418 = vcmask 130048
        %v420 = vsel %vm418, %v380, 0
        %v423 = vsel %vm418, %v381, 0
        %v426 = vsel %vm418, %v382, 0
        %v429 = vsel %vm418, %v383, 0
        %v432 = vsel %vm418, %v384, 0
        %v435 = vsel %vm418, %v385, 0
        %v438 = vsel %vm418, %v386, 0
        %v441 = vsel %vm418, %v387, 0
        %v444 = vsel %vm418, %v388, 0
        %v447 = vsel %vm418, %v389, 0
        %v450 = vsel %vm418, %v390, 0
        %v453 = vsel %vm418, %v391, 0
        %v456 = vsel %vm418, %v392, 0
        %v459 = vsel %vm418, %v393, 0
        %v462 = vsel %vm418, %v394, 0
        %v465 = vsel %vm418, %v395, 0
        %v468 = vsel %vm418, %v396, 0
        %v471 = vsel %vm418, %v397, 0
        %v474 = vsel %vm418, %v398, 0
        %v477 = vsel %vm418, %v399, 0
        %v480 = vsel %vm418, %v400, 0
        %v483 = vsel %vm418, %v401, 0
        %v486 = vsel %vm418, %v402, 0
        %v489 = vsel %vm418, %v403, 0
        %v492 = vsel %vm418, %v404, 0
        %v495 = vsel %vm418, %v405, 0
        %v498 = vsel %vm418, %v406, 0
        %v501 = vsel %vm418, %v407, 0
        %v504 = vsel %vm418, %v408, 0
        %v507 = vsel %vm418, %v409, 0
        %v510 = vsel %vm418, %v410, 0
        %v513 = vsel %vm418, %v411, 0
        %515 = vmatpush.msra.mxu0 0.0
        %516 = vmatpush.msra.mxu0 0.0
        %517 = vmatpush.msra.mxu0 0.0
        %518 = vmatpush.msra.mxu0 0.0
        %519 = vmatpush.msra.mxu0 0.0
        %520 = vmatpush.msra.mxu0 0.0
        %521 = vmatpush.msra.mxu0 0.0
        %522 = vmatpush.msra.mxu0 0.0
        %523 = vmatpush.msra.mxu0 0.0
        %524 = vmatpush.msra.mxu0 0.0
        %525 = vmatpush.msra.mxu0 0.0
        %526 = vmatpush.msra.mxu0 0.0
        %527 = vmatpush.msra.mxu0 0.0
        %528 = vmatpush.msra.mxu0 0.0
        %529 = vmatpush.msra.mxu0 %v413
        %530 = vmatpush.msra.mxu0 %v412
        %531 = vmatmul.f32.gmra.mxu0 %v420
        %v532 = vpop.f32.mrf.mxu0
        %v533 = vadd.f32 %v416, %v532
        %534 = vmatmul.f32.gmra.mxu0 %v423
        %v535 = vpop.f32.mrf.mxu0
        %v536 = vadd.f32 %v416, %v535
        %537 = vmatmul.f32.gmra.mxu0 %v426
        %v538 = vpop.f32.mrf.mxu0
        %v539 = vadd.f32 %v416, %v538
        %540 = vmatmul.f32.gmra.mxu0 %v429
        %v541 = vpop.f32.mrf.mxu0
        %v542 = vadd.f32 %v416, %v541
        %543 = vmatmul.f32.gmra.mxu0 %v432
        %v544 = vpop.f32.mrf.mxu0
        %v545 = vadd.f32 %v416, %v544
        %546 = vmatmul.f32.gmra.mxu0 %v435
        %v547 = vpop.f32.mrf.mxu0
        %v548 = vadd.f32 %v416, %v547
        %549 = vmatmul.f32.gmra.mxu0 %v438
        %v550 = vpop.f32.mrf.mxu0
        %v551 = vadd.f32 %v416, %v550
        %552 = vmatmul.f32.gmra.mxu0 %v441
        %v553 = vpop.f32.mrf.mxu0
        %v554 = vadd.f32 %v416, %v553
        %555 = vmatmul.f32.gmra.mxu0 %v444
        %v556 = vpop.f32.mrf.mxu0
        %v557 = vadd.f32 %v416, %v556
        %558 = vmatmul.f32.gmra.mxu0 %v447
        %v559 = vpop.f32.mrf.mxu0
        %v560 = vadd.f32 %v416, %v559
        %561 = vmatmul.f32.gmra.mxu0 %v450
        %v562 = vpop.f32.mrf.mxu0
        %v563 = vadd.f32 %v416, %v562
        %564 = vmatmul.f32.gmra.mxu0 %v453
        %v565 = vpop.f32.mrf.mxu0
        %v566 = vadd.f32 %v416, %v565
        %567 = vmatmul.f32.gmra.mxu0 %v456
        %v568 = vpop.f32.mrf.mxu0
        %v569 = vadd.f32 %v416, %v568
        %570 = vmatmul.f32.gmra.mxu0 %v459
        %v571 = vpop.f32.mrf.mxu0
        %v572 = vadd.f32 %v416, %v571
        %573 = vmatmul.f32.gmra.mxu0 %v462
        %v574 = vpop.f32.mrf.mxu0
        %v575 = vadd.f32 %v416, %v574
        %576 = vmatmul.f32.gmra.mxu0 %v465
        %v577 = vpop.f32.mrf.mxu0
        %v578 = vadd.f32 %v416, %v577
        %579 = vmatmul.f32.gmra.mxu0 %v468
        %v580 = vpop.f32.mrf.mxu0
        %v581 = vadd.f32 %v416, %v580
        %582 = vmatmul.f32.gmra.mxu0 %v471
        %v583 = vpop.f32.mrf.mxu0
        %v584 = vadd.f32 %v416, %v583
        %585 = vmatmul.f32.gmra.mxu0 %v474
        %v586 = vpop.f32.mrf.mxu0
        %v587 = vadd.f32 %v416, %v586
        %588 = vmatmul.f32.gmra.mxu0 %v477
        %v589 = vpop.f32.mrf.mxu0
        %v590 = vadd.f32 %v416, %v589
        %591 = vmatmul.f32.gmra.mxu0 %v480
        %v592 = vpop.f32.mrf.mxu0
        %v593 = vadd.f32 %v416, %v592
        %594 = vmatmul.f32.gmra.mxu0 %v483
        %v595 = vpop.f32.mrf.mxu0
        %v596 = vadd.f32 %v416, %v595
        %597 = vmatmul.f32.gmra.mxu0 %v486
        %v598 = vpop.f32.mrf.mxu0
        %v599 = vadd.f32 %v416, %v598
        %600 = vmatmul.f32.gmra.mxu0 %v489
        %v601 = vpop.f32.mrf.mxu0
        %v602 = vadd.f32 %v416, %v601
        %603 = vmatmul.f32.gmra.mxu0 %v492
        %v604 = vpop.f32.mrf.mxu0
        %v605 = vadd.f32 %v416, %v604
        %606 = vmatmul.f32.gmra.mxu0 %v495
        %v607 = vpop.f32.mrf.mxu0
        %v608 = vadd.f32 %v416, %v607
        %609 = vmatmul.f32.gmra.mxu0 %v498
        %v610 = vpop.f32.mrf.mxu0
        %v611 = vadd.f32 %v416, %v610
        %612 = vmatmul.f32.gmra.mxu0 %v501
        %v613 = vpop.f32.mrf.mxu0
        %v614 = vadd.f32 %v416, %v613
        %615 = vmatmul.f32.gmra.mxu0 %v504
        %v616 = vpop.f32.mrf.mxu0
        %v617 = vadd.f32 %v416, %v616
        %618 = vmatmul.f32.gmra.mxu0 %v507
        %v619 = vpop.f32.mrf.mxu0
        %v620 = vadd.f32 %v416, %v619
        %621 = vmatmul.f32.gmra.mxu0 %v510
        %v622 = vpop.f32.mrf.mxu0
        %v623 = vadd.f32 %v416, %v622
        %624 = vmatmul.f32.gmra.mxu0 %v513
        %v625 = vpop.f32.mrf.mxu0
        %v626 = vadd.f32 %v416, %v625
        %627 = vdwg.mxu0
        %v628 = vsub.f32 0.0, %v533
        %v629 = vsub.f32 0.0, %v536
        %v630 = vsub.f32 0.0, %v539
        %v631 = vsub.f32 0.0, %v542
        %v632 = vsub.f32 0.0, %v545
        %v633 = vsub.f32 0.0, %v548
        %v634 = vsub.f32 0.0, %v551
        %v635 = vsub.f32 0.0, %v554
        %v636 = vsub.f32 0.0, %v557
        %v637 = vsub.f32 0.0, %v560
        %v638 = vsub.f32 0.0, %v563
        %v639 = vsub.f32 0.0, %v566
        %v640 = vsub.f32 0.0, %v569
        %v641 = vsub.f32 0.0, %v572
        %v642 = vsub.f32 0.0, %v575
        %v643 = vsub.f32 0.0, %v578
        %v644 = vsub.f32 0.0, %v581
        %v645 = vsub.f32 0.0, %v584
        %v646 = vsub.f32 0.0, %v587
        %v647 = vsub.f32 0.0, %v590
        %v648 = vsub.f32 0.0, %v593
        %v649 = vsub.f32 0.0, %v596
        %v650 = vsub.f32 0.0, %v599
        %v651 = vsub.f32 0.0, %v602
        %v652 = vsub.f32 0.0, %v605
        %v653 = vsub.f32 0.0, %v608
        %v654 = vsub.f32 0.0, %v611
        %v655 = vsub.f32 0.0, %v614
        %v656 = vsub.f32 0.0, %v617
        %v657 = vsub.f32 0.0, %v620
        %v658 = vsub.f32 0.0, %v623
        %v659 = vsub.f32 0.0, %v626
        %v660 = vmul.f32 %v628, 1.442695
        %v661 = vpow.pop %v660
        %v662 = vmul.f32 %v629, 1.442695
        %v663 = vpow.pop %v662
        %v664 = vmul.f32 %v630, 1.442695
        %v665 = vpow.pop %v664
        %v666 = vmul.f32 %v631, 1.442695
        %v667 = vpow.pop %v666
        %v668 = vmul.f32 %v632, 1.442695
        %v669 = vpow.pop %v668
        %v670 = vmul.f32 %v633, 1.442695
        %v671 = vpow.pop %v670
        %v672 = vmul.f32 %v634, 1.442695
        %v673 = vpow.pop %v672
        %v674 = vmul.f32 %v635, 1.442695
        %v675 = vpow.pop %v674
        %v676 = vmul.f32 %v636, 1.442695
        %v677 = vpow.pop %v676
        %v678 = vmul.f32 %v637, 1.442695
        %v679 = vpow.pop %v678
        %v680 = vmul.f32 %v638, 1.442695
        %v681 = vpow.pop %v680
        %v682 = vmul.f32 %v639, 1.442695
        %v683 = vpow.pop %v682
        %v684 = vmul.f32 %v640, 1.442695
        %v685 = vpow.pop %v684
        %v686 = vmul.f32 %v641, 1.442695
        %v687 = vpow.pop %v686
        %v688 = vmul.f32 %v642, 1.442695
        %v689 = vpow.pop %v688
        %v690 = vmul.f32 %v643, 1.442695
        %v691 = vpow.pop %v690
        %v692 = vmul.f32 %v644, 1.442695
        %v693 = vpow.pop %v692
        %v694 = vmul.f32 %v645, 1.442695
        %v695 = vpow.pop %v694
        %v696 = vmul.f32 %v646, 1.442695
        %v697 = vpow.pop %v696
        %v698 = vmul.f32 %v647, 1.442695
        %v699 = vpow.pop %v698
        %v700 = vmul.f32 %v648, 1.442695
        %v701 = vpow.pop %v700
        %v702 = vmul.f32 %v649, 1.442695
        %v703 = vpow.pop %v702
        %v704 = vmul.f32 %v650, 1.442695
        %v705 = vpow.pop %v704
        %v706 = vmul.f32 %v651, 1.442695
        %v707 = vpow.pop %v706
        %v708 = vmul.f32 %v652, 1.442695
        %v709 = vpow.pop %v708
        %v710 = vmul.f32 %v653, 1.442695
        %v711 = vpow.pop %v710
        %v712 = vmul.f32 %v654, 1.442695
        %v713 = vpow.pop %v712
        %v714 = vmul.f32 %v655, 1.442695
        %v715 = vpow.pop %v714
        %v716 = vmul.f32 %v656, 1.442695
        %v717 = vpow.pop %v716
        %v718 = vmul.f32 %v657, 1.442695
        %v719 = vpow.pop %v718
        %v720 = vmul.f32 %v658, 1.442695
        %v721 = vpow.pop %v720
        %v722 = vmul.f32 %v659, 1.442695
        %v723 = vpow.pop %v722
        %v724 = vadd.f32 %v661, 1.0
        %v725 = vadd.f32 %v663, 1.0
        %v726 = vadd.f32 %v665, 1.0
        %v727 = vadd.f32 %v667, 1.0
        %v728 = vadd.f32 %v669, 1.0
        %v729 = vadd.f32 %v671, 1.0
        %v730 = vadd.f32 %v673, 1.0
        %v731 = vadd.f32 %v675, 1.0
        %v732 = vadd.f32 %v677, 1.0
        %v733 = vadd.f32 %v679, 1.0
        %v734 = vadd.f32 %v681, 1.0
        %v735 = vadd.f32 %v683, 1.0
        %v736 = vadd.f32 %v685, 1.0
        %v737 = vadd.f32 %v687, 1.0
        %v738 = vadd.f32 %v689, 1.0
        %v739 = vadd.f32 %v691, 1.0
        %v740 = vadd.f32 %v693, 1.0
        %v741 = vadd.f32 %v695, 1.0
        %v742 = vadd.f32 %v697, 1.0
        %v743 = vadd.f32 %v699, 1.0
        %v744 = vadd.f32 %v701, 1.0
        %v745 = vadd.f32 %v703, 1.0
        %v746 = vadd.f32 %v705, 1.0
        %v747 = vadd.f32 %v707, 1.0
        %v748 = vadd.f32 %v709, 1.0
        %v749 = vadd.f32 %v711, 1.0
        %v750 = vadd.f32 %v713, 1.0
        %v751 = vadd.f32 %v715, 1.0
        %v752 = vadd.f32 %v717, 1.0
        %v753 = vadd.f32 %v719, 1.0
        %v754 = vadd.f32 %v721, 1.0
        %v755 = vadd.f32 %v723, 1.0
        %v756 = vrcp.pop %v724
        %v757 = vmul.f32 %v724, %v756
        %v758 = vsub.f32 1.0, %v757
        %v759 = vmul.f32 %v756, %v758
        %v760 = vadd.f32 %v756, %v759
        %vm761 = vweird.f32 %v724
        %vm762 = vweird.f32 %v756
        %vm763 = vmor %vm761, %vm762
        %v764 = vsel %vm763, %v756, %v760
        %v765 = vand.u32 2147483647, %v724
        %vm766 = vcmp.eq.f32.partialorder %v765, 8.507059e+37
        %v767 = vand.u32 %v724, 2147483648
        %v768 = vor.u32 1.1754944e-38, %v767
        %v769 = vsel %vm766, %v768, %v764
        %v770 = vmul.f32 1.0, %v769
        %v771 = vrcp.pop %v725
        %v772 = vmul.f32 %v725, %v771
        %v773 = vsub.f32 1.0, %v772
        %v774 = vmul.f32 %v771, %v773
        %v775 = vadd.f32 %v771, %v774
        %vm776 = vweird.f32 %v725
        %vm777 = vweird.f32 %v771
        %vm778 = vmor %vm776, %vm777
        %v779 = vsel %vm778, %v771, %v775
        %v780 = vand.u32 2147483647, %v725
        %vm781 = vcmp.eq.f32.partialorder %v780, 8.507059e+37
        %v782 = vand.u32 %v725, 2147483648
        %v783 = vor.u32 1.1754944e-38, %v782
        %v784 = vsel %vm781, %v783, %v779
        %v785 = vmul.f32 1.0, %v784
        %v786 = vrcp.pop %v726
        %v787 = vmul.f32 %v726, %v786
        %v788 = vsub.f32 1.0, %v787
        %v789 = vmul.f32 %v786, %v788
        %v790 = vadd.f32 %v786, %v789
        %vm791 = vweird.f32 %v726
        %vm792 = vweird.f32 %v786
        %vm793 = vmor %vm791, %vm792
        %v794 = vsel %vm793, %v786, %v790
        %v795 = vand.u32 2147483647, %v726
        %vm796 = vcmp.eq.f32.partialorder %v795, 8.507059e+37
        %v797 = vand.u32 %v726, 2147483648
        %v798 = vor.u32 1.1754944e-38, %v797
        %v799 = vsel %vm796, %v798, %v794
        %v800 = vmul.f32 1.0, %v799
        %v801 = vrcp.pop %v727
        %v802 = vmul.f32 %v727, %v801
        %v803 = vsub.f32 1.0, %v802
        %v804 = vmul.f32 %v801, %v803
        %v805 = vadd.f32 %v801, %v804
        %vm806 = vweird.f32 %v727
        %vm807 = vweird.f32 %v801
        %vm808 = vmor %vm806, %vm807
        %v809 = vsel %vm808, %v801, %v805
        %v810 = vand.u32 2147483647, %v727
        %vm811 = vcmp.eq.f32.partialorder %v810, 8.507059e+37
        %v812 = vand.u32 %v727, 2147483648
        %v813 = vor.u32 1.1754944e-38, %v812
        %v814 = vsel %vm811, %v813, %v809
        %v815 = vmul.f32 1.0, %v814
        %v816 = vrcp.pop %v728
        %v817 = vmul.f32 %v728, %v816
        %v818 = vsub.f32 1.0, %v817
        %v819 = vmul.f32 %v816, %v818
        %v820 = vadd.f32 %v816, %v819
        %vm821 = vweird.f32 %v728
        %vm822 = vweird.f32 %v816
        %vm823 = vmor %vm821, %vm822
        %v824 = vsel %vm823, %v816, %v820
        %v825 = vand.u32 2147483647, %v728
        %vm826 = vcmp.eq.f32.partialorder %v825, 8.507059e+37
        %v827 = vand.u32 %v728, 2147483648
        %v828 = vor.u32 1.1754944e-38, %v827
        %v829 = vsel %vm826, %v828, %v824
        %v830 = vmul.f32 1.0, %v829
        %v831 = vrcp.pop %v729
        %v832 = vmul.f32 %v729, %v831
        %v833 = vsub.f32 1.0, %v832
        %v834 = vmul.f32 %v831, %v833
        %v835 = vadd.f32 %v831, %v834
        %vm836 = vweird.f32 %v729
        %vm837 = vweird.f32 %v831
        %vm838 = vmor %vm836, %vm837
        %v839 = vsel %vm838, %v831, %v835
        %v840 = vand.u32 2147483647, %v729
        %vm841 = vcmp.eq.f32.partialorder %v840, 8.507059e+37
        %v842 = vand.u32 %v729, 2147483648
        %v843 = vor.u32 1.1754944e-38, %v842
        %v844 = vsel %vm841, %v843, %v839
        %v845 = vmul.f32 1.0, %v844
        %v846 = vrcp.pop %v730
        %v847 = vmul.f32 %v730, %v846
        %v848 = vsub.f32 1.0, %v847
        %v849 = vmul.f32 %v846, %v848
        %v850 = vadd.f32 %v846, %v849
        %vm851 = vweird.f32 %v730
        %vm852 = vweird.f32 %v846
        %vm853 = vmor %vm851, %vm852
        %v854 = vsel %vm853, %v846, %v850
        %v855 = vand.u32 2147483647, %v730
        %vm856 = vcmp.eq.f32.partialorder %v855, 8.507059e+37
        %v857 = vand.u32 %v730, 2147483648
        %v858 = vor.u32 1.1754944e-38, %v857
        %v859 = vsel %vm856, %v858, %v854
        %v860 = vmul.f32 1.0, %v859
        %v861 = vrcp.pop %v731
        %v862 = vmul.f32 %v731, %v861
        %v863 = vsub.f32 1.0, %v862
        %v864 = vmul.f32 %v861, %v863
        %v865 = vadd.f32 %v861, %v864
        %vm866 = vweird.f32 %v731
        %vm867 = vweird.f32 %v861
        %vm868 = vmor %vm866, %vm867
        %v869 = vsel %vm868, %v861, %v865
        %v870 = vand.u32 2147483647, %v731
        %vm871 = vcmp.eq.f32.partialorder %v870, 8.507059e+37
        %v872 = vand.u32 %v731, 2147483648
        %v873 = vor.u32 1.1754944e-38, %v872
        %v874 = vsel %vm871, %v873, %v869
        %v875 = vmul.f32 1.0, %v874
        %v876 = vrcp.pop %v732
        %v877 = vmul.f32 %v732, %v876
        %v878 = vsub.f32 1.0, %v877
        %v879 = vmul.f32 %v876, %v878
        %v880 = vadd.f32 %v876, %v879
        %vm881 = vweird.f32 %v732
        %vm882 = vweird.f32 %v876
        %vm883 = vmor %vm881, %vm882
        %v884 = vsel %vm883, %v876, %v880
        %v885 = vand.u32 2147483647, %v732
        %vm886 = vcmp.eq.f32.partialorder %v885, 8.507059e+37
        %v887 = vand.u32 %v732, 2147483648
        %v888 = vor.u32 1.1754944e-38, %v887
        %v889 = vsel %vm886, %v888, %v884
        %v890 = vmul.f32 1.0, %v889
        %v891 = vrcp.pop %v733
        %v892 = vmul.f32 %v733, %v891
        %v893 = vsub.f32 1.0, %v892
        %v894 = vmul.f32 %v891, %v893
        %v895 = vadd.f32 %v891, %v894
        %vm896 = vweird.f32 %v733
        %vm897 = vweird.f32 %v891
        %vm898 = vmor %vm896, %vm897
        %v899 = vsel %vm898, %v891, %v895
        %v900 = vand.u32 2147483647, %v733
        %vm901 = vcmp.eq.f32.partialorder %v900, 8.507059e+37
        %v902 = vand.u32 %v733, 2147483648
        %v903 = vor.u32 1.1754944e-38, %v902
        %v904 = vsel %vm901, %v903, %v899
        %v905 = vmul.f32 1.0, %v904
        %v906 = vrcp.pop %v734
        %v907 = vmul.f32 %v734, %v906
        %v908 = vsub.f32 1.0, %v907
        %v909 = vmul.f32 %v906, %v908
        %v910 = vadd.f32 %v906, %v909
        %vm911 = vweird.f32 %v734
        %vm912 = vweird.f32 %v906
        %vm913 = vmor %vm911, %vm912
        %v914 = vsel %vm913, %v906, %v910
        %v915 = vand.u32 2147483647, %v734
        %vm916 = vcmp.eq.f32.partialorder %v915, 8.507059e+37
        %v917 = vand.u32 %v734, 2147483648
        %v918 = vor.u32 1.1754944e-38, %v917
        %v919 = vsel %vm916, %v918, %v914
        %v920 = vmul.f32 1.0, %v919
        %v921 = vrcp.pop %v735
        %v922 = vmul.f32 %v735, %v921
        %v923 = vsub.f32 1.0, %v922
        %v924 = vmul.f32 %v921, %v923
        %v925 = vadd.f32 %v921, %v924
        %vm926 = vweird.f32 %v735
        %vm927 = vweird.f32 %v921
        %vm928 = vmor %vm926, %vm927
        %v929 = vsel %vm928, %v921, %v925
        %v930 = vand.u32 2147483647, %v735
        %vm931 = vcmp.eq.f32.partialorder %v930, 8.507059e+37
        %v932 = vand.u32 %v735, 2147483648
        %v933 = vor.u32 1.1754944e-38, %v932
        %v934 = vsel %vm931, %v933, %v929
        %v935 = vmul.f32 1.0, %v934
        %v936 = vrcp.pop %v736
        %v937 = vmul.f32 %v736, %v936
        %v938 = vsub.f32 1.0, %v937
        %v939 = vmul.f32 %v936, %v938
        %v940 = vadd.f32 %v936, %v939
        %vm941 = vweird.f32 %v736
        %vm942 = vweird.f32 %v936
        %vm943 = vmor %vm941, %vm942
        %v944 = vsel %vm943, %v936, %v940
        %v945 = vand.u32 2147483647, %v736
        %vm946 = vcmp.eq.f32.partialorder %v945, 8.507059e+37
        %v947 = vand.u32 %v736, 2147483648
        %v948 = vor.u32 1.1754944e-38, %v947
        %v949 = vsel %vm946, %v948, %v944
        %v950 = vmul.f32 1.0, %v949
        %v951 = vrcp.pop %v737
        %v952 = vmul.f32 %v737, %v951
        %v953 = vsub.f32 1.0, %v952
        %v954 = vmul.f32 %v951, %v953
        %v955 = vadd.f32 %v951, %v954
        %vm956 = vweird.f32 %v737
        %vm957 = vweird.f32 %v951
        %vm958 = vmor %vm956, %vm957
        %v959 = vsel %vm958, %v951, %v955
        %v960 = vand.u32 2147483647, %v737
        %vm961 = vcmp.eq.f32.partialorder %v960, 8.507059e+37
        %v962 = vand.u32 %v737, 2147483648
        %v963 = vor.u32 1.1754944e-38, %v962
        %v964 = vsel %vm961, %v963, %v959
        %v965 = vmul.f32 1.0, %v964
        %v966 = vrcp.pop %v738
        %v967 = vmul.f32 %v738, %v966
        %v968 = vsub.f32 1.0, %v967
        %v969 = vmul.f32 %v966, %v968
        %v970 = vadd.f32 %v966, %v969
        %vm971 = vweird.f32 %v738
        %vm972 = vweird.f32 %v966
        %vm973 = vmor %vm971, %vm972
        %v974 = vsel %vm973, %v966, %v970
        %v975 = vand.u32 2147483647, %v738
        %vm976 = vcmp.eq.f32.partialorder %v975, 8.507059e+37
        %v977 = vand.u32 %v738, 2147483648
        %v978 = vor.u32 1.1754944e-38, %v977
        %v979 = vsel %vm976, %v978, %v974
        %v980 = vmul.f32 1.0, %v979
        %v981 = vrcp.pop %v739
        %v982 = vmul.f32 %v739, %v981
        %v983 = vsub.f32 1.0, %v982
        %v984 = vmul.f32 %v981, %v983
        %v985 = vadd.f32 %v981, %v984
        %vm986 = vweird.f32 %v739
        %vm987 = vweird.f32 %v981
        %vm988 = vmor %vm986, %vm987
        %v989 = vsel %vm988, %v981, %v985
        %v990 = vand.u32 2147483647, %v739
        %vm991 = vcmp.eq.f32.partialorder %v990, 8.507059e+37
        %v992 = vand.u32 %v739, 2147483648
        %v993 = vor.u32 1.1754944e-38, %v992
        %v994 = vsel %vm991, %v993, %v989
        %v995 = vmul.f32 1.0, %v994
        %v996 = vrcp.pop %v740
        %v997 = vmul.f32 %v740, %v996
        %v998 = vsub.f32 1.0, %v997
        %v999 = vmul.f32 %v996, %v998
        %v1000 = vadd.f32 %v996, %v999
        %vm1001 = vweird.f32 %v740
        %vm1002 = vweird.f32 %v996
        %vm1003 = vmor %vm1001, %vm1002
        %v1004 = vsel %vm1003, %v996, %v1000
        %v1005 = vand.u32 2147483647, %v740
        %vm1006 = vcmp.eq.f32.partialorder %v1005, 8.507059e+37
        %v1007 = vand.u32 %v740, 2147483648
        %v1008 = vor.u32 1.1754944e-38, %v1007
        %v1009 = vsel %vm1006, %v1008, %v1004
        %v1010 = vmul.f32 1.0, %v1009
        %v1011 = vrcp.pop %v741
        %v1012 = vmul.f32 %v741, %v1011
        %v1013 = vsub.f32 1.0, %v1012
        %v1014 = vmul.f32 %v1011, %v1013
        %v1015 = vadd.f32 %v1011, %v1014
        %vm1016 = vweird.f32 %v741
        %vm1017 = vweird.f32 %v1011
        %vm1018 = vmor %vm1016, %vm1017
        %v1019 = vsel %vm1018, %v1011, %v1015
        %v1020 = vand.u32 2147483647, %v741
        %vm1021 = vcmp.eq.f32.partialorder %v1020, 8.507059e+37
        %v1022 = vand.u32 %v741, 2147483648
        %v1023 = vor.u32 1.1754944e-38, %v1022
        %v1024 = vsel %vm1021, %v1023, %v1019
        %v1025 = vmul.f32 1.0, %v1024
        %v1026 = vrcp.pop %v742
        %v1027 = vmul.f32 %v742, %v1026
        %v1028 = vsub.f32 1.0, %v1027
        %v1029 = vmul.f32 %v1026, %v1028
        %v1030 = vadd.f32 %v1026, %v1029
        %vm1031 = vweird.f32 %v742
        %vm1032 = vweird.f32 %v1026
        %vm1033 = vmor %vm1031, %vm1032
        %v1034 = vsel %vm1033, %v1026, %v1030
        %v1035 = vand.u32 2147483647, %v742
        %vm1036 = vcmp.eq.f32.partialorder %v1035, 8.507059e+37
        %v1037 = vand.u32 %v742, 2147483648
        %v1038 = vor.u32 1.1754944e-38, %v1037
        %v1039 = vsel %vm1036, %v1038, %v1034
        %v1040 = vmul.f32 1.0, %v1039
        %v1041 = vrcp.pop %v743
        %v1042 = vmul.f32 %v743, %v1041
        %v1043 = vsub.f32 1.0, %v1042
        %v1044 = vmul.f32 %v1041, %v1043
        %v1045 = vadd.f32 %v1041, %v1044
        %vm1046 = vweird.f32 %v743
        %vm1047 = vweird.f32 %v1041
        %vm1048 = vmor %vm1046, %vm1047
        %v1049 = vsel %vm1048, %v1041, %v1045
        %v1050 = vand.u32 2147483647, %v743
        %vm1051 = vcmp.eq.f32.partialorder %v1050, 8.507059e+37
        %v1052 = vand.u32 %v743, 2147483648
        %v1053 = vor.u32 1.1754944e-38, %v1052
        %v1054 = vsel %vm1051, %v1053, %v1049
        %v1055 = vmul.f32 1.0, %v1054
        %v1056 = vrcp.pop %v744
        %v1057 = vmul.f32 %v744, %v1056
        %v1058 = vsub.f32 1.0, %v1057
        %v1059 = vmul.f32 %v1056, %v1058
        %v1060 = vadd.f32 %v1056, %v1059
        %vm1061 = vweird.f32 %v744
        %vm1062 = vweird.f32 %v1056
        %vm1063 = vmor %vm1061, %vm1062
        %v1064 = vsel %vm1063, %v1056, %v1060
        %v1065 = vand.u32 2147483647, %v744
        %vm1066 = vcmp.eq.f32.partialorder %v1065, 8.507059e+37
        %v1067 = vand.u32 %v744, 2147483648
        %v1068 = vor.u32 1.1754944e-38, %v1067
        %v1069 = vsel %vm1066, %v1068, %v1064
        %v1070 = vmul.f32 1.0, %v1069
        %v1071 = vrcp.pop %v745
        %v1072 = vmul.f32 %v745, %v1071
        %v1073 = vsub.f32 1.0, %v1072
        %v1074 = vmul.f32 %v1071, %v1073
        %v1075 = vadd.f32 %v1071, %v1074
        %vm1076 = vweird.f32 %v745
        %vm1077 = vweird.f32 %v1071
        %vm1078 = vmor %vm1076, %vm1077
        %v1079 = vsel %vm1078, %v1071, %v1075
        %v1080 = vand.u32 2147483647, %v745
        %vm1081 = vcmp.eq.f32.partialorder %v1080, 8.507059e+37
        %v1082 = vand.u32 %v745, 2147483648
        %v1083 = vor.u32 1.1754944e-38, %v1082
        %v1084 = vsel %vm1081, %v1083, %v1079
        %v1085 = vmul.f32 1.0, %v1084
        %v1086 = vrcp.pop %v746
        %v1087 = vmul.f32 %v746, %v1086
        %v1088 = vsub.f32 1.0, %v1087
        %v1089 = vmul.f32 %v1086, %v1088
        %v1090 = vadd.f32 %v1086, %v1089
        %vm1091 = vweird.f32 %v746
        %vm1092 = vweird.f32 %v1086
        %vm1093 = vmor %vm1091, %vm1092
        %v1094 = vsel %vm1093, %v1086, %v1090
        %v1095 = vand.u32 2147483647, %v746
        %vm1096 = vcmp.eq.f32.partialorder %v1095, 8.507059e+37
        %v1097 = vand.u32 %v746, 2147483648
        %v1098 = vor.u32 1.1754944e-38, %v1097
        %v1099 = vsel %vm1096, %v1098, %v1094
        %v1100 = vmul.f32 1.0, %v1099
        %v1101 = vrcp.pop %v747
        %v1102 = vmul.f32 %v747, %v1101
        %v1103 = vsub.f32 1.0, %v1102
        %v1104 = vmul.f32 %v1101, %v1103
        %v1105 = vadd.f32 %v1101, %v1104
        %vm1106 = vweird.f32 %v747
        %vm1107 = vweird.f32 %v1101
        %vm1108 = vmor %vm1106, %vm1107
        %v1109 = vsel %vm1108, %v1101, %v1105
        %v1110 = vand.u32 2147483647, %v747
        %vm1111 = vcmp.eq.f32.partialorder %v1110, 8.507059e+37
        %v1112 = vand.u32 %v747, 2147483648
        %v1113 = vor.u32 1.1754944e-38, %v1112
        %v1114 = vsel %vm1111, %v1113, %v1109
        %v1115 = vmul.f32 1.0, %v1114
        %v1116 = vrcp.pop %v748
        %v1117 = vmul.f32 %v748, %v1116
        %v1118 = vsub.f32 1.0, %v1117
        %v1119 = vmul.f32 %v1116, %v1118
        %v1120 = vadd.f32 %v1116, %v1119
        %vm1121 = vweird.f32 %v748
        %vm1122 = vweird.f32 %v1116
        %vm1123 = vmor %vm1121, %vm1122
        %v1124 = vsel %vm1123, %v1116, %v1120
        %v1125 = vand.u32 2147483647, %v748
        %vm1126 = vcmp.eq.f32.partialorder %v1125, 8.507059e+37
        %v1127 = vand.u32 %v748, 2147483648
        %v1128 = vor.u32 1.1754944e-38, %v1127
        %v1129 = vsel %vm1126, %v1128, %v1124
        %v1130 = vmul.f32 1.0, %v1129
        %v1131 = vrcp.pop %v749
        %v1132 = vmul.f32 %v749, %v1131
        %v1133 = vsub.f32 1.0, %v1132
        %v1134 = vmul.f32 %v1131, %v1133
        %v1135 = vadd.f32 %v1131, %v1134
        %vm1136 = vweird.f32 %v749
        %vm1137 = vweird.f32 %v1131
        %vm1138 = vmor %vm1136, %vm1137
        %v1139 = vsel %vm1138, %v1131, %v1135
        %v1140 = vand.u32 2147483647, %v749
        %vm1141 = vcmp.eq.f32.partialorder %v1140, 8.507059e+37
        %v1142 = vand.u32 %v749, 2147483648
        %v1143 = vor.u32 1.1754944e-38, %v1142
        %v1144 = vsel %vm1141, %v1143, %v1139
        %v1145 = vmul.f32 1.0, %v1144
        %v1146 = vrcp.pop %v750
        %v1147 = vmul.f32 %v750, %v1146
        %v1148 = vsub.f32 1.0, %v1147
        %v1149 = vmul.f32 %v1146, %v1148
        %v1150 = vadd.f32 %v1146, %v1149
        %vm1151 = vweird.f32 %v750
        %vm1152 = vweird.f32 %v1146
        %vm1153 = vmor %vm1151, %vm1152
        %v1154 = vsel %vm1153, %v1146, %v1150
        %v1155 = vand.u32 2147483647, %v750
        %vm1156 = vcmp.eq.f32.partialorder %v1155, 8.507059e+37
        %v1157 = vand.u32 %v750, 2147483648
        %v1158 = vor.u32 1.1754944e-38, %v1157
        %v1159 = vsel %vm1156, %v1158, %v1154
        %v1160 = vmul.f32 1.0, %v1159
        %v1161 = vrcp.pop %v751
        %v1162 = vmul.f32 %v751, %v1161
        %v1163 = vsub.f32 1.0, %v1162
        %v1164 = vmul.f32 %v1161, %v1163
        %v1165 = vadd.f32 %v1161, %v1164
        %vm1166 = vweird.f32 %v751
        %vm1167 = vweird.f32 %v1161
        %vm1168 = vmor %vm1166, %vm1167
        %v1169 = vsel %vm1168, %v1161, %v1165
        %v1170 = vand.u32 2147483647, %v751
        %vm1171 = vcmp.eq.f32.partialorder %v1170, 8.507059e+37
        %v1172 = vand.u32 %v751, 2147483648
        %v1173 = vor.u32 1.1754944e-38, %v1172
        %v1174 = vsel %vm1171, %v1173, %v1169
        %v1175 = vmul.f32 1.0, %v1174
        %v1176 = vrcp.pop %v752
        %v1177 = vmul.f32 %v752, %v1176
        %v1178 = vsub.f32 1.0, %v1177
        %v1179 = vmul.f32 %v1176, %v1178
        %v1180 = vadd.f32 %v1176, %v1179
        %vm1181 = vweird.f32 %v752
        %vm1182 = vweird.f32 %v1176
        %vm1183 = vmor %vm1181, %vm1182
        %v1184 = vsel %vm1183, %v1176, %v1180
        %v1185 = vand.u32 2147483647, %v752
        %vm1186 = vcmp.eq.f32.partialorder %v1185, 8.507059e+37
        %v1187 = vand.u32 %v752, 2147483648
        %v1188 = vor.u32 1.1754944e-38, %v1187
        %v1189 = vsel %vm1186, %v1188, %v1184
        %v1190 = vmul.f32 1.0, %v1189
        %v1191 = vrcp.pop %v753
        %v1192 = vmul.f32 %v753, %v1191
        %v1193 = vsub.f32 1.0, %v1192
        %v1194 = vmul.f32 %v1191, %v1193
        %v1195 = vadd.f32 %v1191, %v1194
        %vm1196 = vweird.f32 %v753
        %vm1197 = vweird.f32 %v1191
        %vm1198 = vmor %vm1196, %vm1197
        %v1199 = vsel %vm1198, %v1191, %v1195
        %v1200 = vand.u32 2147483647, %v753
        %vm1201 = vcmp.eq.f32.partialorder %v1200, 8.507059e+37
        %v1202 = vand.u32 %v753, 2147483648
        %v1203 = vor.u32 1.1754944e-38, %v1202
        %v1204 = vsel %vm1201, %v1203, %v1199
        %v1205 = vmul.f32 1.0, %v1204
        %v1206 = vrcp.pop %v754
        %v1207 = vmul.f32 %v754, %v1206
        %v1208 = vsub.f32 1.0, %v1207
        %v1209 = vmul.f32 %v1206, %v1208
        %v1210 = vadd.f32 %v1206, %v1209
        %vm1211 = vweird.f32 %v754
        %vm1212 = vweird.f32 %v1206
        %vm1213 = vmor %vm1211, %vm1212
        %v1214 = vsel %vm1213, %v1206, %v1210
        %v1215 = vand.u32 2147483647, %v754
        %vm1216 = vcmp.eq.f32.partialorder %v1215, 8.507059e+37
        %v1217 = vand.u32 %v754, 2147483648
        %v1218 = vor.u32 1.1754944e-38, %v1217
        %v1219 = vsel %vm1216, %v1218, %v1214
        %v1220 = vmul.f32 1.0, %v1219
        %v1221 = vrcp.pop %v755
        %v1222 = vmul.f32 %v755, %v1221
        %v1223 = vsub.f32 1.0, %v1222
        %v1224 = vmul.f32 %v1221, %v1223
        %v1225 = vadd.f32 %v1221, %v1224
        %vm1226 = vweird.f32 %v755
        %vm1227 = vweird.f32 %v1221
        %vm1228 = vmor %vm1226, %vm1227
        %v1229 = vsel %vm1228, %v1221, %v1225
        %v1230 = vand.u32 2147483647, %v755
        %vm1231 = vcmp.eq.f32.partialorder %v1230, 8.507059e+37
        %v1232 = vand.u32 %v755, 2147483648
        %v1233 = vor.u32 1.1754944e-38, %v1232
        %v1234 = vsel %vm1231, %v1233, %v1229
        %v1235 = vmul.f32 1.0, %v1234
        %v1236 = vmul.f32 %v533, %v770
        %v1237 = vmul.f32 %v536, %v785
        %v1238 = vmul.f32 %v539, %v800
        %v1239 = vmul.f32 %v542, %v815
        %v1240 = vmul.f32 %v545, %v830
        %v1241 = vmul.f32 %v548, %v845
        %v1242 = vmul.f32 %v551, %v860
        %v1243 = vmul.f32 %v554, %v875
        %v1244 = vmul.f32 %v557, %v890
        %v1245 = vmul.f32 %v560, %v905
        %v1246 = vmul.f32 %v563, %v920
        %v1247 = vmul.f32 %v566, %v935
        %v1248 = vmul.f32 %v569, %v950
        %v1249 = vmul.f32 %v572, %v965
        %v1250 = vmul.f32 %v575, %v980
        %v1251 = vmul.f32 %v578, %v995
        %v1252 = vmul.f32 %v581, %v1010
        %v1253 = vmul.f32 %v584, %v1025
        %v1254 = vmul.f32 %v587, %v1040
        %v1255 = vmul.f32 %v590, %v1055
        %v1256 = vmul.f32 %v593, %v1070
        %v1257 = vmul.f32 %v596, %v1085
        %v1258 = vmul.f32 %v599, %v1100
        %v1259 = vmul.f32 %v602, %v1115
        %v1260 = vmul.f32 %v605, %v1130
        %v1261 = vmul.f32 %v608, %v1145
        %v1262 = vmul.f32 %v611, %v1160
        %v1263 = vmul.f32 %v614, %v1175
        %v1264 = vmul.f32 %v617, %v1190
        %v1265 = vmul.f32 %v620, %v1205
        %v1266 = vmul.f32 %v623, %v1220
        %v1267 = vmul.f32 %v626, %v1235
        %vm1268 = vcmask 31744
        %1269 = vst.msk [vmem:[#allocation2] sm:$0xff] %vm1268, 0.0
        %1270 = vst.msk [vmem:[#allocation2 + $0x8] sm:$0xff] %vm1268, 0.0
        %vm1271 = vcmask 27648
        %1272 = vst.msk [vmem:[#allocation2 + $0x10] sm:$0xf] %vm1271, 0.0
        %1273 = vst.msk [vmem:[#allocation2 + $0x18] sm:$0xff] %vm1268, 0.0
        %1274 = vst.msk [vmem:[#allocation2 + $0x20] sm:$0xff] %vm1268, 0.0
        %1275 = vst.msk [vmem:[#allocation2 + $0x28] sm:$0xf] %vm1271, 0.0
        %1276 = vst.msk [vmem:[#allocation2 + $0x30] sm:$0xff] %vm1268, 0.0
        %1277 = vst.msk [vmem:[#allocation2 + $0x38] sm:$0xff] %vm1268, 0.0
        %1278 = vst.msk [vmem:[#allocation2 + $0x40] sm:$0xf] %vm1271, 0.0
        %1279 = vst.msk [vmem:[#allocation2 + $0x48] sm:$0xff] %vm1268, 0.0
        %1280 = vst.msk [vmem:[#allocation2 + $0x50] sm:$0xff] %vm1268, 0.0
        %1281 = vst.msk [vmem:[#allocation2 + $0x58] sm:$0xf] %vm1271, 0.0
        %1282 = vst.msk [vmem:[#allocation2 + $0x60] sm:$0xff] %vm1268, 0.0
        %1283 = vst.msk [vmem:[#allocation2 + $0x68] sm:$0xff] %vm1268, 0.0
        %1284 = vst.msk [vmem:[#allocation2 + $0x70] sm:$0xf] %vm1271, 0.0
        %1285 = vst.msk [vmem:[#allocation2 + $0x78] sm:$0xff] %vm1268, 0.0
        %1286 = vst.msk [vmem:[#allocation2 + $0x80] sm:$0xff] %vm1268, 0.0
        %1287 = vst.msk [vmem:[#allocation2 + $0x88] sm:$0xf] %vm1271, 0.0
        %1288 = vst.msk [vmem:[#allocation2 + $0x90] sm:$0xff] %vm1268, 0.0
        %1289 = vst.msk [vmem:[#allocation2 + $0x98] sm:$0xff] %vm1268, 0.0
        %1290 = vst.msk [vmem:[#allocation2 + $0xa0] sm:$0xf] %vm1271, 0.0
        %1291 = vst.msk [vmem:[#allocation2 + $0xa8] sm:$0xff] %vm1268, 0.0
        %1292 = vst.msk [vmem:[#allocation2 + $0xb0] sm:$0xff] %vm1268, 0.0
        %1293 = vst.msk [vmem:[#allocation2 + $0xb8] sm:$0xf] %vm1271, 0.0
        %1294 = vst.msk [vmem:[#allocation2 + $0xc0] sm:$0xff] %vm1268, 0.0
        %1295 = vst.msk [vmem:[#allocation2 + $0xc8] sm:$0xff] %vm1268, 0.0
        %1296 = vst.msk [vmem:[#allocation2 + $0xd0] sm:$0xf] %vm1271, 0.0
        %1297 = vst.msk [vmem:[#allocation2 + $0xd8] sm:$0xff] %vm1268, 0.0
        %1298 = vst.msk [vmem:[#allocation2 + $0xe0] sm:$0xff] %vm1268, 0.0
        %1299 = vst.msk [vmem:[#allocation2 + $0xe8] sm:$0xf] %vm1271, 0.0
        %1300 = vst.msk [vmem:[#allocation2 + $0xf0] sm:$0xff] %vm1268, 0.0
        %1301 = vst.msk [vmem:[#allocation2 + $0xf8] sm:$0xff] %vm1268, 0.0
        %1302 = vst.msk [vmem:[#allocation2 + $0x100] sm:$0xf] %vm1271, 0.0
        %1303 = vst.msk [vmem:[#allocation2 + $0x108] sm:$0xff] %vm1268, 0.0
        %1304 = vst.msk [vmem:[#allocation2 + $0x110] sm:$0xff] %vm1268, 0.0
        %1305 = vst.msk [vmem:[#allocation2 + $0x118] sm:$0xf] %vm1271, 0.0
        %1306 = vst.msk [vmem:[#allocation2 + $0x120] sm:$0xff] %vm1268, 0.0
        %1307 = vst.msk [vmem:[#allocation2 + $0x128] sm:$0xff] %vm1268, 0.0
        %1308 = vst.msk [vmem:[#allocation2 + $0x130] sm:$0xf] %vm1271, 0.0
        %1309 = vst.msk [vmem:[#allocation2 + $0x138] sm:$0xff] %vm1268, 0.0
        %1310 = vst.msk [vmem:[#allocation2 + $0x140] sm:$0xff] %vm1268, 0.0
        %1311 = vst.msk [vmem:[#allocation2 + $0x148] sm:$0xf] %vm1271, 0.0
        %1312 = vst.msk [vmem:[#allocation2 + $0x150] sm:$0xff] %vm1268, 0.0
        %1313 = vst.msk [vmem:[#allocation2 + $0x158] sm:$0xff] %vm1268, 0.0
        %1314 = vst.msk [vmem:[#allocation2 + $0x160] sm:$0xf] %vm1271, 0.0
        %1315 = vst.msk [vmem:[#allocation2 + $0x168] sm:$0xff] %vm1268, 0.0
        %1316 = vst.msk [vmem:[#allocation2 + $0x170] sm:$0xff] %vm1268, 0.0
        %1317 = vst.msk [vmem:[#allocation2 + $0x178] sm:$0xf] %vm1271, 0.0
        %1318 = vst.msk [vmem:[#allocation2 + $0x180] sm:$0xff] %vm1268, 0.0
        %1319 = vst.msk [vmem:[#allocation2 + $0x188] sm:$0xff] %vm1268, 0.0
        %1320 = vst.msk [vmem:[#allocation2 + $0x190] sm:$0xf] %vm1271, 0.0
        %1321 = vst.msk [vmem:[#allocation2 + $0x198] sm:$0xff] %vm1268, 0.0
        %1322 = vst.msk [vmem:[#allocation2 + $0x1a0] sm:$0xff] %vm1268, 0.0
        %1323 = vst.msk [vmem:[#allocation2 + $0x1a8] sm:$0xf] %vm1271, 0.0
        %1324 = vst.msk [vmem:[#allocation2 + $0x1b0] sm:$0xff] %vm1268, 0.0
        %1325 = vst.msk [vmem:[#allocation2 + $0x1b8] sm:$0xff] %vm1268, 0.0
        %1326 = vst.msk [vmem:[#allocation2 + $0x1c0] sm:$0xf] %vm1271, 0.0
        %1327 = vst.msk [vmem:[#allocation2 + $0x1c8] sm:$0xff] %vm1268, 0.0
        %1328 = vst.msk [vmem:[#allocation2 + $0x1d0] sm:$0xff] %vm1268, 0.0
        %1329 = vst.msk [vmem:[#allocation2 + $0x1d8] sm:$0xf] %vm1271, 0.0
        %s1330 = scalar_lea.vmem [#allocation2], 48
        %1331 = vst.msk [vmem:[%s1330 + $0x2] sm:$0xff] %vm1268, %v1236
        %1332 = vst.msk [vmem:[%s1330 + $0xa] sm:$0xff] %vm1268, %v1237
        %1333 = vst.msk [vmem:[%s1330 + $0x1a] sm:$0xff] %vm1268, %v1238
        %1334 = vst.msk [vmem:[%s1330 + $0x22] sm:$0xff] %vm1268, %v1239
        %1335 = vst.msk [vmem:[%s1330 + $0x32] sm:$0xff] %vm1268, %v1240
        %1336 = vst.msk [vmem:[%s1330 + $0x3a] sm:$0xff] %vm1268, %v1241
        %1337 = vst.msk [vmem:[%s1330 + $0x4a] sm:$0xff] %vm1268, %v1242
        %1338 = vst.msk [vmem:[%s1330 + $0x52] sm:$0xff] %vm1268, %v1243
        %1339 = vst.msk [vmem:[%s1330 + $0x62] sm:$0xff] %vm1268, %v1244
        %1340 = vst.msk [vmem:[%s1330 + $0x6a] sm:$0xff] %vm1268, %v1245
        %1341 = vst.msk [vmem:[%s1330 + $0x7a] sm:$0xff] %vm1268, %v1246
        %1342 = vst.msk [vmem:[%s1330 + $0x82] sm:$0xff] %vm1268, %v1247
        %1343 = vst.msk [vmem:[%s1330 + $0x92] sm:$0xff] %vm1268, %v1248
        %1344 = vst.msk [vmem:[%s1330 + $0x9a] sm:$0xff] %vm1268, %v1249
        %1345 = vst.msk [vmem:[%s1330 + $0xaa] sm:$0xff] %vm1268, %v1250
        %1346 = vst.msk [vmem:[%s1330 + $0xb2] sm:$0xff] %vm1268, %v1251
        %1347 = vst.msk [vmem:[%s1330 + $0xc2] sm:$0xff] %vm1268, %v1252
        %1348 = vst.msk [vmem:[%s1330 + $0xca] sm:$0xff] %vm1268, %v1253
        %1349 = vst.msk [vmem:[%s1330 + $0xda] sm:$0xff] %vm1268, %v1254
        %1350 = vst.msk [vmem:[%s1330 + $0xe2] sm:$0xff] %vm1268, %v1255
        %1351 = vst.msk [vmem:[%s1330 + $0xf2] sm:$0xff] %vm1268, %v1256
        %1352 = vst.msk [vmem:[%s1330 + $0xfa] sm:$0xff] %vm1268, %v1257
        %1353 = vst.msk [vmem:[%s1330 + $0x10a] sm:$0xff] %vm1268, %v1258
        %1354 = vst.msk [vmem:[%s1330 + $0x112] sm:$0xff] %vm1268, %v1259
        %1355 = vst.msk [vmem:[%s1330 + $0x122] sm:$0xff] %vm1268, %v1260
        %1356 = vst.msk [vmem:[%s1330 + $0x12a] sm:$0xff] %vm1268, %v1261
        %1357 = vst.msk [vmem:[%s1330 + $0x13a] sm:$0xff] %vm1268, %v1262
        %1358 = vst.msk [vmem:[%s1330 + $0x142] sm:$0xff] %vm1268, %v1263
        %1359 = vst.msk [vmem:[%s1330 + $0x152] sm:$0xff] %vm1268, %v1264
        %1360 = vst.msk [vmem:[%s1330 + $0x15a] sm:$0xff] %vm1268, %v1265
        %1361 = vst.msk [vmem:[%s1330 + $0x16a] sm:$0xff] %vm1268, %v1266
        %1362 = vst.msk [vmem:[%s1330 + $0x172] sm:$0xff] %vm1268, %v1267
        %v1363 = vld [vmem:[#allocation2] sm:$0xff]
        %v1364 = vld [vmem:[#allocation2 + $0x8] sm:$0xff]
        %v1365 = vld [vmem:[#allocation2 + $0x18] sm:$0xff]
        %v1366 = vld [vmem:[#allocation2 + $0x20] sm:$0xff]
        %v1367 = vld [vmem:[#allocation2 + $0x30] sm:$0xff]
        %v1368 = vld [vmem:[#allocation2 + $0x38] sm:$0xff]
        %v1369 = vld [vmem:[#allocation2 + $0x48] sm:$0xff]
        %v1370 = vld [vmem:[#allocation2 + $0x50] sm:$0xff]
        %v1371 = vld [vmem:[#allocation2 + $0x60] sm:$0xff]
        %v1372 = vld [vmem:[#allocation2 + $0x68] sm:$0xff]
        %v1373 = vld [vmem:[#allocation2 + $0x78] sm:$0xff]
        %v1374 = vld [vmem:[#allocation2 + $0x80] sm:$0xff]
        %v1375 = vld [vmem:[#allocation2 + $0x90] sm:$0xff]
        %v1376 = vld [vmem:[#allocation2 + $0x98] sm:$0xff]
        %v1377 = vld [vmem:[#allocation2 + $0xa8] sm:$0xff]
        %v1378 = vld [vmem:[#allocation2 + $0xb0] sm:$0xff]
        %v1379 = vld [vmem:[#allocation2 + $0xc0] sm:$0xff]
        %v1380 = vld [vmem:[#allocation2 + $0xc8] sm:$0xff]
        %v1381 = vld [vmem:[#allocation2 + $0xd8] sm:$0xff]
        %v1382 = vld [vmem:[#allocation2 + $0xe0] sm:$0xff]
        %v1383 = vld [vmem:[#allocation2 + $0xf0] sm:$0xff]
        %v1384 = vld [vmem:[#allocation2 + $0xf8] sm:$0xff]
        %v1385 = vld [vmem:[#allocation2 + $0x108] sm:$0xff]
        %v1386 = vld [vmem:[#allocation2 + $0x110] sm:$0xff]
        %v1387 = vld [vmem:[#allocation2 + $0x120] sm:$0xff]
        %v1388 = vld [vmem:[#allocation2 + $0x128] sm:$0xff]
        %v1389 = vld [vmem:[#allocation2 + $0x138] sm:$0xff]
        %v1390 = vld [vmem:[#allocation2 + $0x140] sm:$0xff]
        %v1391 = vld [vmem:[#allocation2 + $0x150] sm:$0xff]
        %v1392 = vld [vmem:[#allocation2 + $0x158] sm:$0xff]
        %v1393 = vld [vmem:[#allocation2 + $0x168] sm:$0xff]
        %v1394 = vld [vmem:[#allocation2 + $0x170] sm:$0xff]
        %v1395 = vld [vmem:[%s3] sm:$0x1]
        %v1396 = vperm.slane %v1395, 0
        %v1397 = vmul.f32 %v1363, %v1396
        %v1398 = vmul.f32 %v1364, %v1396
        %v1399 = vmul.f32 %v1365, %v1396
        %v1400 = vmul.f32 %v1366, %v1396
        %v1401 = vmul.f32 %v1367, %v1396
        %v1402 = vmul.f32 %v1368, %v1396
        %v1403 = vmul.f32 %v1369, %v1396
        %v1404 = vmul.f32 %v1370, %v1396
        %v1405 = vmul.f32 %v1371, %v1396
        %v1406 = vmul.f32 %v1372, %v1396
        %v1407 = vmul.f32 %v1373, %v1396
        %v1408 = vmul.f32 %v1374, %v1396
        %v1409 = vmul.f32 %v1375, %v1396
        %v1410 = vmul.f32 %v1376, %v1396
        %v1411 = vmul.f32 %v1377, %v1396
        %v1412 = vmul.f32 %v1378, %v1396
        %v1413 = vmul.f32 %v1379, %v1396
        %v1414 = vmul.f32 %v1380, %v1396
        %v1415 = vmul.f32 %v1381, %v1396
        %v1416 = vmul.f32 %v1382, %v1396
        %v1417 = vmul.f32 %v1383, %v1396
        %v1418 = vmul.f32 %v1384, %v1396
        %v1419 = vmul.f32 %v1385, %v1396
        %v1420 = vmul.f32 %v1386, %v1396
        %v1421 = vmul.f32 %v1387, %v1396
        %v1422 = vmul.f32 %v1388, %v1396
        %v1423 = vmul.f32 %v1389, %v1396
        %v1424 = vmul.f32 %v1390, %v1396
        %v1425 = vmul.f32 %v1391, %v1396
        %v1426 = vmul.f32 %v1392, %v1396
        %v1427 = vmul.f32 %v1393, %v1396
        %v1428 = vmul.f32 %v1394, %v1396
        %v1429 = vld [vmem:[#allocation2 + $0x1] sm:$0xff]
        %v1430 = vld [vmem:[#allocation2 + $0x9] sm:$0xff]
        %v1431 = vld [vmem:[#allocation2 + $0x19] sm:$0xff]
        %v1432 = vld [vmem:[#allocation2 + $0x21] sm:$0xff]
        %v1433 = vld [vmem:[#allocation2 + $0x31] sm:$0xff]
        %v1434 = vld [vmem:[#allocation2 + $0x39] sm:$0xff]
        %v1435 = vld [vmem:[#allocation2 + $0x49] sm:$0xff]
        %v1436 = vld [vmem:[#allocation2 + $0x51] sm:$0xff]
        %v1437 = vld [vmem:[#allocation2 + $0x61] sm:$0xff]
        %v1438 = vld [vmem:[#allocation2 + $0x69] sm:$0xff]
        %v1439 = vld [vmem:[#allocation2 + $0x79] sm:$0xff]
        %v1440 = vld [vmem:[#allocation2 + $0x81] sm:$0xff]
        %v1441 = vld [vmem:[#allocation2 + $0x91] sm:$0xff]
        %v1442 = vld [vmem:[#allocation2 + $0x99] sm:$0xff]
        %v1443 = vld [vmem:[#allocation2 + $0xa9] sm:$0xff]
        %v1444 = vld [vmem:[#allocation2 + $0xb1] sm:$0xff]
        %v1445 = vld [vmem:[#allocation2 + $0xc1] sm:$0xff]
        %v1446 = vld [vmem:[#allocation2 + $0xc9] sm:$0xff]
        %v1447 = vld [vmem:[#allocation2 + $0xd9] sm:$0xff]
        %v1448 = vld [vmem:[#allocation2 + $0xe1] sm:$0xff]
        %v1449 = vld [vmem:[#allocation2 + $0xf1] sm:$0xff]
        %v1450 = vld [vmem:[#allocation2 + $0xf9] sm:$0xff]
        %v1451 = vld [vmem:[#allocation2 + $0x109] sm:$0xff]
        %v1452 = vld [vmem:[#allocation2 + $0x111] sm:$0xff]
        %v1453 = vld [vmem:[#allocation2 + $0x121] sm:$0xff]
        %v1454 = vld [vmem:[#allocation2 + $0x129] sm:$0xff]
        %v1455 = vld [vmem:[#allocation2 + $0x139] sm:$0xff]
        %v1456 = vld [vmem:[#allocation2 + $0x141] sm:$0xff]
        %v1457 = vld [vmem:[#allocation2 + $0x151] sm:$0xff]
        %v1458 = vld [vmem:[#allocation2 + $0x159] sm:$0xff]
        %v1459 = vld [vmem:[#allocation2 + $0x169] sm:$0xff]
        %v1460 = vld [vmem:[#allocation2 + $0x171] sm:$0xff]
        %v1461 = vld [vmem:[%s3 + $0x1] sm:$0x1]
        %v1462 = vperm.slane %v1461, 0
        %v1463 = vmul.f32 %v1429, %v1462
        %v1464 = vmul.f32 %v1430, %v1462
        %v1465 = vmul.f32 %v1431, %v1462
        %v1466 = vmul.f32 %v1432, %v1462
        %v1467 = vmul.f32 %v1433, %v1462
        %v1468 = vmul.f32 %v1434, %v1462
        %v1469 = vmul.f32 %v1435, %v1462
        %v1470 = vmul.f32 %v1436, %v1462
        %v1471 = vmul.f32 %v1437, %v1462
        %v1472 = vmul.f32 %v1438, %v1462
        %v1473 = vmul.f32 %v1439, %v1462
        %v1474 = vmul.f32 %v1440, %v1462
        %v1475 = vmul.f32 %v1441, %v1462
        %v1476 = vmul.f32 %v1442, %v1462
        %v1477 = vmul.f32 %v1443, %v1462
        %v1478 = vmul.f32 %v1444, %v1462
        %v1479 = vmul.f32 %v1445, %v1462
        %v1480 = vmul.f32 %v1446, %v1462
        %v1481 = vmul.f32 %v1447, %v1462
        %v1482 = vmul.f32 %v1448, %v1462
        %v1483 = vmul.f32 %v1449, %v1462
        %v1484 = vmul.f32 %v1450, %v1462
        %v1485 = vmul.f32 %v1451, %v1462
        %v1486 = vmul.f32 %v1452, %v1462
        %v1487 = vmul.f32 %v1453, %v1462
        %v1488 = vmul.f32 %v1454, %v1462
        %v1489 = vmul.f32 %v1455, %v1462
        %v1490 = vmul.f32 %v1456, %v1462
        %v1491 = vmul.f32 %v1457, %v1462
        %v1492 = vmul.f32 %v1458, %v1462
        %v1493 = vmul.f32 %v1459, %v1462
        %v1494 = vmul.f32 %v1460, %v1462
        %v1495 = vadd.f32 %v1397, %v1463
        %v1496 = vadd.f32 %v1398, %v1464
        %v1497 = vadd.f32 %v1399, %v1465
        %v1498 = vadd.f32 %v1400, %v1466
        %v1499 = vadd.f32 %v1401, %v1467
        %v1500 = vadd.f32 %v1402, %v1468
        %v1501 = vadd.f32 %v1403, %v1469
        %v1502 = vadd.f32 %v1404, %v1470
        %v1503 = vadd.f32 %v1405, %v1471
        %v1504 = vadd.f32 %v1406, %v1472
        %v1505 = vadd.f32 %v1407, %v1473
        %v1506 = vadd.f32 %v1408, %v1474
        %v1507 = vadd.f32 %v1409, %v1475
        %v1508 = vadd.f32 %v1410, %v1476
        %v1509 = vadd.f32 %v1411, %v1477
        %v1510 = vadd.f32 %v1412, %v1478
        %v1511 = vadd.f32 %v1413, %v1479
        %v1512 = vadd.f32 %v1414, %v1480
        %v1513 = vadd.f32 %v1415, %v1481
        %v1514 = vadd.f32 %v1416, %v1482
        %v1515 = vadd.f32 %v1417, %v1483
        %v1516 = vadd.f32 %v1418, %v1484
        %v1517 = vadd.f32 %v1419, %v1485
        %v1518 = vadd.f32 %v1420, %v1486
        %v1519 = vadd.f32 %v1421, %v1487
        %v1520 = vadd.f32 %v1422, %v1488
        %v1521 = vadd.f32 %v1423, %v1489
        %v1522 = vadd.f32 %v1424, %v1490
        %v1523 = vadd.f32 %v1425, %v1491
        %v1524 = vadd.f32 %v1426, %v1492
        %v1525 = vadd.f32 %v1427, %v1493
        %v1526 = vadd.f32 %v1428, %v1494
        %v1527 = vld [vmem:[#allocation2 + $0x2] sm:$0xff]
        %v1528 = vld [vmem:[#allocation2 + $0xa] sm:$0xff]
        %v1529 = vld [vmem:[#allocation2 + $0x1a] sm:$0xff]
        %v1530 = vld [vmem:[#allocation2 + $0x22] sm:$0xff]
        %v1531 = vld [vmem:[#allocation2 + $0x32] sm:$0xff]
        %v1532 = vld [vmem:[#allocation2 + $0x3a] sm:$0xff]
        %v1533 = vld [vmem:[#allocation2 + $0x4a] sm:$0xff]
        %v1534 = vld [vmem:[#allocation2 + $0x52] sm:$0xff]
        %v1535 = vld [vmem:[#allocation2 + $0x62] sm:$0xff]
        %v1536 = vld [vmem:[#allocation2 + $0x6a] sm:$0xff]
        %v1537 = vld [vmem:[#allocation2 + $0x7a] sm:$0xff]
        %v1538 = vld [vmem:[#allocation2 + $0x82] sm:$0xff]
        %v1539 = vld [vmem:[#allocation2 + $0x92] sm:$0xff]
        %v1540 = vld [vmem:[#allocation2 + $0x9a] sm:$0xff]
        %v1541 = vld [vmem:[#allocation2 + $0xaa] sm:$0xff]
        %v1542 = vld [vmem:[#allocation2 + $0xb2] sm:$0xff]
        %v1543 = vld [vmem:[#allocation2 + $0xc2] sm:$0xff]
        %v1544 = vld [vmem:[#allocation2 + $0xca] sm:$0xff]
        %v1545 = vld [vmem:[#allocation2 + $0xda] sm:$0xff]
        %v1546 = vld [vmem:[#allocation2 + $0xe2] sm:$0xff]
        %v1547 = vld [vmem:[#allocation2 + $0xf2] sm:$0xff]
        %v1548 = vld [vmem:[#allocation2 + $0xfa] sm:$0xff]
        %v1549 = vld [vmem:[#allocation2 + $0x10a] sm:$0xff]
        %v1550 = vld [vmem:[#allocation2 + $0x112] sm:$0xff]
        %v1551 = vld [vmem:[#allocation2 + $0x122] sm:$0xff]
        %v1552 = vld [vmem:[#allocation2 + $0x12a] sm:$0xff]
        %v1553 = vld [vmem:[#allocation2 + $0x13a] sm:$0xff]
        %v1554 = vld [vmem:[#allocation2 + $0x142] sm:$0xff]
        %v1555 = vld [vmem:[#allocation2 + $0x152] sm:$0xff]
        %v1556 = vld [vmem:[#allocation2 + $0x15a] sm:$0xff]
        %v1557 = vld [vmem:[#allocation2 + $0x16a] sm:$0xff]
        %v1558 = vld [vmem:[#allocation2 + $0x172] sm:$0xff]
        %v1559 = vld [vmem:[%s3 + $0x2] sm:$0x1]
        %v1560 = vperm.slane %v1559, 0
        %v1561 = vmul.f32 %v1527, %v1560
        %v1562 = vmul.f32 %v1528, %v1560
        %v1563 = vmul.f32 %v1529, %v1560
        %v1564 = vmul.f32 %v1530, %v1560
        %v1565 = vmul.f32 %v1531, %v1560
        %v1566 = vmul.f32 %v1532, %v1560
        %v1567 = vmul.f32 %v1533, %v1560
        %v1568 = vmul.f32 %v1534, %v1560
        %v1569 = vmul.f32 %v1535, %v1560
        %v1570 = vmul.f32 %v1536, %v1560
        %v1571 = vmul.f32 %v1537, %v1560
        %v1572 = vmul.f32 %v1538, %v1560
        %v1573 = vmul.f32 %v1539, %v1560
        %v1574 = vmul.f32 %v1540, %v1560
        %v1575 = vmul.f32 %v1541, %v1560
        %v1576 = vmul.f32 %v1542, %v1560
        %v1577 = vmul.f32 %v1543, %v1560
        %v1578 = vmul.f32 %v1544, %v1560
        %v1579 = vmul.f32 %v1545, %v1560
        %v1580 = vmul.f32 %v1546, %v1560
        %v1581 = vmul.f32 %v1547, %v1560
        %v1582 = vmul.f32 %v1548, %v1560
        %v1583 = vmul.f32 %v1549, %v1560
        %v1584 = vmul.f32 %v1550, %v1560
        %v1585 = vmul.f32 %v1551, %v1560
        %v1586 = vmul.f32 %v1552, %v1560
        %v1587 = vmul.f32 %v1553, %v1560
        %v1588 = vmul.f32 %v1554, %v1560
        %v1589 = vmul.f32 %v1555, %v1560
        %v1590 = vmul.f32 %v1556, %v1560
        %v1591 = vmul.f32 %v1557, %v1560
        %v1592 = vmul.f32 %v1558, %v1560
        %v1593 = vadd.f32 %v1495, %v1561
        %v1594 = vadd.f32 %v1496, %v1562
        %v1595 = vadd.f32 %v1497, %v1563
        %v1596 = vadd.f32 %v1498, %v1564
        %v1597 = vadd.f32 %v1499, %v1565
        %v1598 = vadd.f32 %v1500, %v1566
        %v1599 = vadd.f32 %v1501, %v1567
        %v1600 = vadd.f32 %v1502, %v1568
        %v1601 = vadd.f32 %v1503, %v1569
        %v1602 = vadd.f32 %v1504, %v1570
        %v1603 = vadd.f32 %v1505, %v1571
        %v1604 = vadd.f32 %v1506, %v1572
        %v1605 = vadd.f32 %v1507, %v1573
        %v1606 = vadd.f32 %v1508, %v1574
        %v1607 = vadd.f32 %v1509, %v1575
        %v1608 = vadd.f32 %v1510, %v1576
        %v1609 = vadd.f32 %v1511, %v1577
        %v1610 = vadd.f32 %v1512, %v1578
        %v1611 = vadd.f32 %v1513, %v1579
        %v1612 = vadd.f32 %v1514, %v1580
        %v1613 = vadd.f32 %v1515, %v1581
        %v1614 = vadd.f32 %v1516, %v1582
        %v1615 = vadd.f32 %v1517, %v1583
        %v1616 = vadd.f32 %v1518, %v1584
        %v1617 = vadd.f32 %v1519, %v1585
        %v1618 = vadd.f32 %v1520, %v1586
        %v1619 = vadd.f32 %v1521, %v1587
        %v1620 = vadd.f32 %v1522, %v1588
        %v1621 = vadd.f32 %v1523, %v1589
        %v1622 = vadd.f32 %v1524, %v1590
        %v1623 = vadd.f32 %v1525, %v1591
        %v1624 = vadd.f32 %v1526, %v1592
        %v1625 = vld [vmem:[#allocation2 + $0x3] sm:$0xff]
        %v1626 = vld [vmem:[#allocation2 + $0xb] sm:$0xff]
        %v1627 = vld [vmem:[#allocation2 + $0x1b] sm:$0xff]
        %v1628 = vld [vmem:[#allocation2 + $0x23] sm:$0xff]
        %v1629 = vld [vmem:[#allocation2 + $0x33] sm:$0xff]
        %v1630 = vld [vmem:[#allocation2 + $0x3b] sm:$0xff]
        %v1631 = vld [vmem:[#allocation2 + $0x4b] sm:$0xff]
        %v1632 = vld [vmem:[#allocation2 + $0x53] sm:$0xff]
        %v1633 = vld [vmem:[#allocation2 + $0x63] sm:$0xff]
        %v1634 = vld [vmem:[#allocation2 + $0x6b] sm:$0xff]
        %v1635 = vld [vmem:[#allocation2 + $0x7b] sm:$0xff]
        %v1636 = vld [vmem:[#allocation2 + $0x83] sm:$0xff]
        %v1637 = vld [vmem:[#allocation2 + $0x93] sm:$0xff]
        %v1638 = vld [vmem:[#allocation2 + $0x9b] sm:$0xff]
        %v1639 = vld [vmem:[#allocation2 + $0xab] sm:$0xff]
        %v1640 = vld [vmem:[#allocation2 + $0xb3] sm:$0xff]
        %v1641 = vld [vmem:[#allocation2 + $0xc3] sm:$0xff]
        %v1642 = vld [vmem:[#allocation2 + $0xcb] sm:$0xff]
        %v1643 = vld [vmem:[#allocation2 + $0xdb] sm:$0xff]
        %v1644 = vld [vmem:[#allocation2 + $0xe3] sm:$0xff]
        %v1645 = vld [vmem:[#allocation2 + $0xf3] sm:$0xff]
        %v1646 = vld [vmem:[#allocation2 + $0xfb] sm:$0xff]
        %v1647 = vld [vmem:[#allocation2 + $0x10b] sm:$0xff]
        %v1648 = vld [vmem:[#allocation2 + $0x113] sm:$0xff]
        %v1649 = vld [vmem:[#allocation2 + $0x123] sm:$0xff]
        %v1650 = vld [vmem:[#allocation2 + $0x12b] sm:$0xff]
        %v1651 = vld [vmem:[#allocation2 + $0x13b] sm:$0xff]
        %v1652 = vld [vmem:[#allocation2 + $0x143] sm:$0xff]
        %v1653 = vld [vmem:[#allocation2 + $0x153] sm:$0xff]
        %v1654 = vld [vmem:[#allocation2 + $0x15b] sm:$0xff]
        %v1655 = vld [vmem:[#allocation2 + $0x16b] sm:$0xff]
        %v1656 = vld [vmem:[#allocation2 + $0x173] sm:$0xff]
        %v1657 = vld [vmem:[%s3 + $0x3] sm:$0x1]
        %v1658 = vperm.slane %v1657, 0
        %v1659 = vmul.f32 %v1625, %v1658
        %v1660 = vmul.f32 %v1626, %v1658
        %v1661 = vmul.f32 %v1627, %v1658
        %v1662 = vmul.f32 %v1628, %v1658
        %v1663 = vmul.f32 %v1629, %v1658
        %v1664 = vmul.f32 %v1630, %v1658
        %v1665 = vmul.f32 %v1631, %v1658
        %v1666 = vmul.f32 %v1632, %v1658
        %v1667 = vmul.f32 %v1633, %v1658
        %v1668 = vmul.f32 %v1634, %v1658
        %v1669 = vmul.f32 %v1635, %v1658
        %v1670 = vmul.f32 %v1636, %v1658
        %v1671 = vmul.f32 %v1637, %v1658
        %v1672 = vmul.f32 %v1638, %v1658
        %v1673 = vmul.f32 %v1639, %v1658
        %v1674 = vmul.f32 %v1640, %v1658
        %v1675 = vmul.f32 %v1641, %v1658
        %v1676 = vmul.f32 %v1642, %v1658
        %v1677 = vmul.f32 %v1643, %v1658
        %v1678 = vmul.f32 %v1644, %v1658
        %v1679 = vmul.f32 %v1645, %v1658
        %v1680 = vmul.f32 %v1646, %v1658
        %v1681 = vmul.f32 %v1647, %v1658
        %v1682 = vmul.f32 %v1648, %v1658
        %v1683 = vmul.f32 %v1649, %v1658
        %v1684 = vmul.f32 %v1650, %v1658
        %v1685 = vmul.f32 %v1651, %v1658
        %v1686 = vmul.f32 %v1652, %v1658
        %v1687 = vmul.f32 %v1653, %v1658
        %v1688 = vmul.f32 %v1654, %v1658
        %v1689 = vmul.f32 %v1655, %v1658
        %v1690 = vmul.f32 %v1656, %v1658
        %v1691 = vadd.f32 %v1593, %v1659
        %v1692 = vadd.f32 %v1594, %v1660
        %v1693 = vadd.f32 %v1595, %v1661
        %v1694 = vadd.f32 %v1596, %v1662
        %v1695 = vadd.f32 %v1597, %v1663
        %v1696 = vadd.f32 %v1598, %v1664
        %v1697 = vadd.f32 %v1599, %v1665
        %v1698 = vadd.f32 %v1600, %v1666
        %v1699 = vadd.f32 %v1601, %v1667
        %v1700 = vadd.f32 %v1602, %v1668
        %v1701 = vadd.f32 %v1603, %v1669
        %v1702 = vadd.f32 %v1604, %v1670
        %v1703 = vadd.f32 %v1605, %v1671
        %v1704 = vadd.f32 %v1606, %v1672
        %v1705 = vadd.f32 %v1607, %v1673
        %v1706 = vadd.f32 %v1608, %v1674
        %v1707 = vadd.f32 %v1609, %v1675
        %v1708 = vadd.f32 %v1610, %v1676
        %v1709 = vadd.f32 %v1611, %v1677
        %v1710 = vadd.f32 %v1612, %v1678
        %v1711 = vadd.f32 %v1613, %v1679
        %v1712 = vadd.f32 %v1614, %v1680
        %v1713 = vadd.f32 %v1615, %v1681
        %v1714 = vadd.f32 %v1616, %v1682
        %v1715 = vadd.f32 %v1617, %v1683
        %v1716 = vadd.f32 %v1618, %v1684
        %v1717 = vadd.f32 %v1619, %v1685
        %v1718 = vadd.f32 %v1620, %v1686
        %v1719 = vadd.f32 %v1621, %v1687
        %v1720 = vadd.f32 %v1622, %v1688
        %v1721 = vadd.f32 %v1623, %v1689
        %v1722 = vadd.f32 %v1624, %v1690
        %v1723 = vld [vmem:[#allocation2 + $0x4] sm:$0xff]
        %v1724 = vld [vmem:[#allocation2 + $0xc] sm:$0xff]
        %v1725 = vld [vmem:[#allocation2 + $0x1c] sm:$0xff]
        %v1726 = vld [vmem:[#allocation2 + $0x24] sm:$0xff]
        %v1727 = vld [vmem:[#allocation2 + $0x34] sm:$0xff]
        %v1728 = vld [vmem:[#allocation2 + $0x3c] sm:$0xff]
        %v1729 = vld [vmem:[#allocation2 + $0x4c] sm:$0xff]
        %v1730 = vld [vmem:[#allocation2 + $0x54] sm:$0xff]
        %v1731 = vld [vmem:[#allocation2 + $0x64] sm:$0xff]
        %v1732 = vld [vmem:[#allocation2 + $0x6c] sm:$0xff]
        %v1733 = vld [vmem:[#allocation2 + $0x7c] sm:$0xff]
        %v1734 = vld [vmem:[#allocation2 + $0x84] sm:$0xff]
        %v1735 = vld [vmem:[#allocation2 + $0x94] sm:$0xff]
        %v1736 = vld [vmem:[#allocation2 + $0x9c] sm:$0xff]
        %v1737 = vld [vmem:[#allocation2 + $0xac] sm:$0xff]
        %v1738 = vld [vmem:[#allocation2 + $0xb4] sm:$0xff]
        %v1739 = vld [vmem:[#allocation2 + $0xc4] sm:$0xff]
        %v1740 = vld [vmem:[#allocation2 + $0xcc] sm:$0xff]
        %v1741 = vld [vmem:[#allocation2 + $0xdc] sm:$0xff]
        %v1742 = vld [vmem:[#allocation2 + $0xe4] sm:$0xff]
        %v1743 = vld [vmem:[#allocation2 + $0xf4] sm:$0xff]
        %v1744 = vld [vmem:[#allocation2 + $0xfc] sm:$0xff]
        %v1745 = vld [vmem:[#allocation2 + $0x10c] sm:$0xff]
        %v1746 = vld [vmem:[#allocation2 + $0x114] sm:$0xff]
        %v1747 = vld [vmem:[#allocation2 + $0x124] sm:$0xff]
        %v1748 = vld [vmem:[#allocation2 + $0x12c] sm:$0xff]
        %v1749 = vld [vmem:[#allocation2 + $0x13c] sm:$0xff]
        %v1750 = vld [vmem:[#allocation2 + $0x144] sm:$0xff]
        %v1751 = vld [vmem:[#allocation2 + $0x154] sm:$0xff]
        %v1752 = vld [vmem:[#allocation2 + $0x15c] sm:$0xff]
        %v1753 = vld [vmem:[#allocation2 + $0x16c] sm:$0xff]
        %v1754 = vld [vmem:[#allocation2 + $0x174] sm:$0xff]
        %v1755 = vld [vmem:[%s3 + $0x4] sm:$0x1]
        %v1756 = vperm.slane %v1755, 0
        %v1757 = vmul.f32 %v1723, %v1756
        %v1758 = vmul.f32 %v1724, %v1756
        %v1759 = vmul.f32 %v1725, %v1756
        %v1760 = vmul.f32 %v1726, %v1756
        %v1761 = vmul.f32 %v1727, %v1756
        %v1762 = vmul.f32 %v1728, %v1756
        %v1763 = vmul.f32 %v1729, %v1756
        %v1764 = vmul.f32 %v1730, %v1756
        %v1765 = vmul.f32 %v1731, %v1756
        %v1766 = vmul.f32 %v1732, %v1756
        %v1767 = vmul.f32 %v1733, %v1756
        %v1768 = vmul.f32 %v1734, %v1756
        %v1769 = vmul.f32 %v1735, %v1756
        %v1770 = vmul.f32 %v1736, %v1756
        %v1771 = vmul.f32 %v1737, %v1756
        %v1772 = vmul.f32 %v1738, %v1756
        %v1773 = vmul.f32 %v1739, %v1756
        %v1774 = vmul.f32 %v1740, %v1756
        %v1775 = vmul.f32 %v1741, %v1756
        %v1776 = vmul.f32 %v1742, %v1756
        %v1777 = vmul.f32 %v1743, %v1756
        %v1778 = vmul.f32 %v1744, %v1756
        %v1779 = vmul.f32 %v1745, %v1756
        %v1780 = vmul.f32 %v1746, %v1756
        %v1781 = vmul.f32 %v1747, %v1756
        %v1782 = vmul.f32 %v1748, %v1756
        %v1783 = vmul.f32 %v1749, %v1756
        %v1784 = vmul.f32 %v1750, %v1756
        %v1785 = vmul.f32 %v1751, %v1756
        %v1786 = vmul.f32 %v1752, %v1756
        %v1787 = vmul.f32 %v1753, %v1756
        %v1788 = vmul.f32 %v1754, %v1756
        %v1789 = vadd.f32 %v1691, %v1757
        %v1790 = vadd.f32 %v1692, %v1758
        %v1791 = vadd.f32 %v1693, %v1759
        %v1792 = vadd.f32 %v1694, %v1760
        %v1793 = vadd.f32 %v1695, %v1761
        %v1794 = vadd.f32 %v1696, %v1762
        %v1795 = vadd.f32 %v1697, %v1763
        %v1796 = vadd.f32 %v1698, %v1764
        %v1797 = vadd.f32 %v1699, %v1765
        %v1798 = vadd.f32 %v1700, %v1766
        %v1799 = vadd.f32 %v1701, %v1767
        %v1800 = vadd.f32 %v1702, %v1768
        %v1801 = vadd.f32 %v1703, %v1769
        %v1802 = vadd.f32 %v1704, %v1770
        %v1803 = vadd.f32 %v1705, %v1771
        %v1804 = vadd.f32 %v1706, %v1772
        %v1805 = vadd.f32 %v1707, %v1773
        %v1806 = vadd.f32 %v1708, %v1774
        %v1807 = vadd.f32 %v1709, %v1775
        %v1808 = vadd.f32 %v1710, %v1776
        %v1809 = vadd.f32 %v1711, %v1777
        %v1810 = vadd.f32 %v1712, %v1778
        %v1811 = vadd.f32 %v1713, %v1779
        %v1812 = vadd.f32 %v1714, %v1780
        %v1813 = vadd.f32 %v1715, %v1781
        %v1814 = vadd.f32 %v1716, %v1782
        %v1815 = vadd.f32 %v1717, %v1783
        %v1816 = vadd.f32 %v1718, %v1784
        %v1817 = vadd.f32 %v1719, %v1785
        %v1818 = vadd.f32 %v1720, %v1786
        %v1819 = vadd.f32 %v1721, %v1787
        %v1820 = vadd.f32 %v1722, %v1788
        %s1821 = scalar_lea.vmem [#allocation2], 24
        %v1822 = vld [vmem:[%s1821] sm:$0xff]
        %v1823 = vld [vmem:[%s1821 + $0x8] sm:$0xff]
        %v1824 = vld [vmem:[%s1821 + $0x18] sm:$0xff]
        %v1825 = vld [vmem:[%s1821 + $0x20] sm:$0xff]
        %v1826 = vld [vmem:[%s1821 + $0x30] sm:$0xff]
        %v1827 = vld [vmem:[%s1821 + $0x38] sm:$0xff]
        %v1828 = vld [vmem:[%s1821 + $0x48] sm:$0xff]
        %v1829 = vld [vmem:[%s1821 + $0x50] sm:$0xff]
        %v1830 = vld [vmem:[%s1821 + $0x60] sm:$0xff]
        %v1831 = vld [vmem:[%s1821 + $0x68] sm:$0xff]
        %v1832 = vld [vmem:[%s1821 + $0x78] sm:$0xff]
        %v1833 = vld [vmem:[%s1821 + $0x80] sm:$0xff]
        %v1834 = vld [vmem:[%s1821 + $0x90] sm:$0xff]
        %v1835 = vld [vmem:[%s1821 + $0x98] sm:$0xff]
        %v1836 = vld [vmem:[%s1821 + $0xa8] sm:$0xff]
        %v1837 = vld [vmem:[%s1821 + $0xb0] sm:$0xff]
        %v1838 = vld [vmem:[%s1821 + $0xc0] sm:$0xff]
        %v1839 = vld [vmem:[%s1821 + $0xc8] sm:$0xff]
        %v1840 = vld [vmem:[%s1821 + $0xd8] sm:$0xff]
        %v1841 = vld [vmem:[%s1821 + $0xe0] sm:$0xff]
        %v1842 = vld [vmem:[%s1821 + $0xf0] sm:$0xff]
        %v1843 = vld [vmem:[%s1821 + $0xf8] sm:$0xff]
        %v1844 = vld [vmem:[%s1821 + $0x108] sm:$0xff]
        %v1845 = vld [vmem:[%s1821 + $0x110] sm:$0xff]
        %v1846 = vld [vmem:[%s1821 + $0x120] sm:$0xff]
        %v1847 = vld [vmem:[%s1821 + $0x128] sm:$0xff]
        %v1848 = vld [vmem:[%s1821 + $0x138] sm:$0xff]
        %v1849 = vld [vmem:[%s1821 + $0x140] sm:$0xff]
        %v1850 = vld [vmem:[%s1821 + $0x150] sm:$0xff]
        %v1851 = vld [vmem:[%s1821 + $0x158] sm:$0xff]
        %v1852 = vld [vmem:[%s1821 + $0x168] sm:$0xff]
        %v1853 = vld [vmem:[%s1821 + $0x170] sm:$0xff]
        %v1854 = vld [vmem:[%s3 + $0x5] sm:$0x1]
        %v1855 = vperm.slane %v1854, 0
        %v1856 = vmul.f32 %v1822, %v1855
        %v1857 = vmul.f32 %v1823, %v1855
        %v1858 = vmul.f32 %v1824, %v1855
        %v1859 = vmul.f32 %v1825, %v1855
        %v1860 = vmul.f32 %v1826, %v1855
        %v1861 = vmul.f32 %v1827, %v1855
        %v1862 = vmul.f32 %v1828, %v1855
        %v1863 = vmul.f32 %v1829, %v1855
        %v1864 = vmul.f32 %v1830, %v1855
        %v1865 = vmul.f32 %v1831, %v1855
        %v1866 = vmul.f32 %v1832, %v1855
        %v1867 = vmul.f32 %v1833, %v1855
        %v1868 = vmul.f32 %v1834, %v1855
        %v1869 = vmul.f32 %v1835, %v1855
        %v1870 = vmul.f32 %v1836, %v1855
        %v1871 = vmul.f32 %v1837, %v1855
        %v1872 = vmul.f32 %v1838, %v1855
        %v1873 = vmul.f32 %v1839, %v1855
        %v1874 = vmul.f32 %v1840, %v1855
        %v1875 = vmul.f32 %v1841, %v1855
        %v1876 = vmul.f32 %v1842, %v1855
        %v1877 = vmul.f32 %v1843, %v1855
        %v1878 = vmul.f32 %v1844, %v1855
        %v1879 = vmul.f32 %v1845, %v1855
        %v1880 = vmul.f32 %v1846, %v1855
        %v1881 = vmul.f32 %v1847, %v1855
        %v1882 = vmul.f32 %v1848, %v1855
        %v1883 = vmul.f32 %v1849, %v1855
        %v1884 = vmul.f32 %v1850, %v1855
        %v1885 = vmul.f32 %v1851, %v1855
        %v1886 = vmul.f32 %v1852, %v1855
        %v1887 = vmul.f32 %v1853, %v1855
        %v1888 = vadd.f32 %v1789, %v1856
        %v1889 = vadd.f32 %v1790, %v1857
        %v1890 = vadd.f32 %v1791, %v1858
        %v1891 = vadd.f32 %v1792, %v1859
        %v1892 = vadd.f32 %v1793, %v1860
        %v1893 = vadd.f32 %v1794, %v1861
        %v1894 = vadd.f32 %v1795, %v1862
        %v1895 = vadd.f32 %v1796, %v1863
        %v1896 = vadd.f32 %v1797, %v1864
        %v1897 = vadd.f32 %v1798, %v1865
        %v1898 = vadd.f32 %v1799, %v1866
        %v1899 = vadd.f32 %v1800, %v1867
        %v1900 = vadd.f32 %v1801, %v1868
        %v1901 = vadd.f32 %v1802, %v1869
        %v1902 = vadd.f32 %v1803, %v1870
        %v1903 = vadd.f32 %v1804, %v1871
        %v1904 = vadd.f32 %v1805, %v1872
        %v1905 = vadd.f32 %v1806, %v1873
        %v1906 = vadd.f32 %v1807, %v1874
        %v1907 = vadd.f32 %v1808, %v1875
        %v1908 = vadd.f32 %v1809, %v1876
        %v1909 = vadd.f32 %v1810, %v1877
        %v1910 = vadd.f32 %v1811, %v1878
        %v1911 = vadd.f32 %v1812, %v1879
        %v1912 = vadd.f32 %v1813, %v1880
        %v1913 = vadd.f32 %v1814, %v1881
        %v1914 = vadd.f32 %v1815, %v1882
        %v1915 = vadd.f32 %v1816, %v1883
        %v1916 = vadd.f32 %v1817, %v1884
        %v1917 = vadd.f32 %v1818, %v1885
        %v1918 = vadd.f32 %v1819, %v1886
        %v1919 = vadd.f32 %v1820, %v1887
        %v1920 = vld [vmem:[%s1821 + $0x1] sm:$0xff]
        %v1921 = vld [vmem:[%s1821 + $0x9] sm:$0xff]
        %v1922 = vld [vmem:[%s1821 + $0x19] sm:$0xff]
        %v1923 = vld [vmem:[%s1821 + $0x21] sm:$0xff]
        %v1924 = vld [vmem:[%s1821 + $0x31] sm:$0xff]
        %v1925 = vld [vmem:[%s1821 + $0x39] sm:$0xff]
        %v1926 = vld [vmem:[%s1821 + $0x49] sm:$0xff]
        %v1927 = vld [vmem:[%s1821 + $0x51] sm:$0xff]
        %v1928 = vld [vmem:[%s1821 + $0x61] sm:$0xff]
        %v1929 = vld [vmem:[%s1821 + $0x69] sm:$0xff]
        %v1930 = vld [vmem:[%s1821 + $0x79] sm:$0xff]
        %v1931 = vld [vmem:[%s1821 + $0x81] sm:$0xff]
        %v1932 = vld [vmem:[%s1821 + $0x91] sm:$0xff]
        %v1933 = vld [vmem:[%s1821 + $0x99] sm:$0xff]
        %v1934 = vld [vmem:[%s1821 + $0xa9] sm:$0xff]
        %v1935 = vld [vmem:[%s1821 + $0xb1] sm:$0xff]
        %v1936 = vld [vmem:[%s1821 + $0xc1] sm:$0xff]
        %v1937 = vld [vmem:[%s1821 + $0xc9] sm:$0xff]
        %v1938 = vld [vmem:[%s1821 + $0xd9] sm:$0xff]
        %v1939 = vld [vmem:[%s1821 + $0xe1] sm:$0xff]
        %v1940 = vld [vmem:[%s1821 + $0xf1] sm:$0xff]
        %v1941 = vld [vmem:[%s1821 + $0xf9] sm:$0xff]
        %v1942 = vld [vmem:[%s1821 + $0x109] sm:$0xff]
        %v1943 = vld [vmem:[%s1821 + $0x111] sm:$0xff]
        %v1944 = vld [vmem:[%s1821 + $0x121] sm:$0xff]
        %v1945 = vld [vmem:[%s1821 + $0x129] sm:$0xff]
        %v1946 = vld [vmem:[%s1821 + $0x139] sm:$0xff]
        %v1947 = vld [vmem:[%s1821 + $0x141] sm:$0xff]
        %v1948 = vld [vmem:[%s1821 + $0x151] sm:$0xff]
        %v1949 = vld [vmem:[%s1821 + $0x159] sm:$0xff]
        %v1950 = vld [vmem:[%s1821 + $0x169] sm:$0xff]
        %v1951 = vld [vmem:[%s1821 + $0x171] sm:$0xff]
        %v1952 = vld [vmem:[%s3 + $0x6] sm:$0x1]
        %v1953 = vperm.slane %v1952, 0
        %v1954 = vmul.f32 %v1920, %v1953
        %v1955 = vmul.f32 %v1921, %v1953
        %v1956 = vmul.f32 %v1922, %v1953
        %v1957 = vmul.f32 %v1923, %v1953
        %v1958 = vmul.f32 %v1924, %v1953
        %v1959 = vmul.f32 %v1925, %v1953
        %v1960 = vmul.f32 %v1926, %v1953
        %v1961 = vmul.f32 %v1927, %v1953
        %v1962 = vmul.f32 %v1928, %v1953
        %v1963 = vmul.f32 %v1929, %v1953
        %v1964 = vmul.f32 %v1930, %v1953
        %v1965 = vmul.f32 %v1931, %v1953
        %v1966 = vmul.f32 %v1932, %v1953
        %v1967 = vmul.f32 %v1933, %v1953
        %v1968 = vmul.f32 %v1934, %v1953
        %v1969 = vmul.f32 %v1935, %v1953
        %v1970 = vmul.f32 %v1936, %v1953
        %v1971 = vmul.f32 %v1937, %v1953
        %v1972 = vmul.f32 %v1938, %v1953
        %v1973 = vmul.f32 %v1939, %v1953
        %v1974 = vmul.f32 %v1940, %v1953
        %v1975 = vmul.f32 %v1941, %v1953
        %v1976 = vmul.f32 %v1942, %v1953
        %v1977 = vmul.f32 %v1943, %v1953
        %v1978 = vmul.f32 %v1944, %v1953
        %v1979 = vmul.f32 %v1945, %v1953
        %v1980 = vmul.f32 %v1946, %v1953
        %v1981 = vmul.f32 %v1947, %v1953
        %v1982 = vmul.f32 %v1948, %v1953
        %v1983 = vmul.f32 %v1949, %v1953
        %v1984 = vmul.f32 %v1950, %v1953
        %v1985 = vmul.f32 %v1951, %v1953
        %v1986 = vadd.f32 %v1888, %v1954
        %v1987 = vadd.f32 %v1889, %v1955
        %v1988 = vadd.f32 %v1890, %v1956
        %v1989 = vadd.f32 %v1891, %v1957
        %v1990 = vadd.f32 %v1892, %v1958
        %v1991 = vadd.f32 %v1893, %v1959
        %v1992 = vadd.f32 %v1894, %v1960
        %v1993 = vadd.f32 %v1895, %v1961
        %v1994 = vadd.f32 %v1896, %v1962
        %v1995 = vadd.f32 %v1897, %v1963
        %v1996 = vadd.f32 %v1898, %v1964
        %v1997 = vadd.f32 %v1899, %v1965
        %v1998 = vadd.f32 %v1900, %v1966
        %v1999 = vadd.f32 %v1901, %v1967
        %v2000 = vadd.f32 %v1902, %v1968
        %v2001 = vadd.f32 %v1903, %v1969
        %v2002 = vadd.f32 %v1904, %v1970
        %v2003 = vadd.f32 %v1905, %v1971
        %v2004 = vadd.f32 %v1906, %v1972
        %v2005 = vadd.f32 %v1907, %v1973
        %v2006 = vadd.f32 %v1908, %v1974
        %v2007 = vadd.f32 %v1909, %v1975
        %v2008 = vadd.f32 %v1910, %v1976
        %v2009 = vadd.f32 %v1911, %v1977
        %v2010 = vadd.f32 %v1912, %v1978
        %v2011 = vadd.f32 %v1913, %v1979
        %v2012 = vadd.f32 %v1914, %v1980
        %v2013 = vadd.f32 %v1915, %v1981
        %v2014 = vadd.f32 %v1916, %v1982
        %v2015 = vadd.f32 %v1917, %v1983
        %v2016 = vadd.f32 %v1918, %v1984
        %v2017 = vadd.f32 %v1919, %v1985
        %v2018 = vld [vmem:[%s1821 + $0x2] sm:$0xff]
        %v2019 = vld [vmem:[%s1821 + $0xa] sm:$0xff]
        %v2020 = vld [vmem:[%s1821 + $0x1a] sm:$0xff]
        %v2021 = vld [vmem:[%s1821 + $0x22] sm:$0xff]
        %v2022 = vld [vmem:[%s1821 + $0x32] sm:$0xff]
        %v2023 = vld [vmem:[%s1821 + $0x3a] sm:$0xff]
        %v2024 = vld [vmem:[%s1821 + $0x4a] sm:$0xff]
        %v2025 = vld [vmem:[%s1821 + $0x52] sm:$0xff]
        %v2026 = vld [vmem:[%s1821 + $0x62] sm:$0xff]
        %v2027 = vld [vmem:[%s1821 + $0x6a] sm:$0xff]
        %v2028 = vld [vmem:[%s1821 + $0x7a] sm:$0xff]
        %v2029 = vld [vmem:[%s1821 + $0x82] sm:$0xff]
        %v2030 = vld [vmem:[%s1821 + $0x92] sm:$0xff]
        %v2031 = vld [vmem:[%s1821 + $0x9a] sm:$0xff]
        %v2032 = vld [vmem:[%s1821 + $0xaa] sm:$0xff]
        %v2033 = vld [vmem:[%s1821 + $0xb2] sm:$0xff]
        %v2034 = vld [vmem:[%s1821 + $0xc2] sm:$0xff]
        %v2035 = vld [vmem:[%s1821 + $0xca] sm:$0xff]
        %v2036 = vld [vmem:[%s1821 + $0xda] sm:$0xff]
        %v2037 = vld [vmem:[%s1821 + $0xe2] sm:$0xff]
        %v2038 = vld [vmem:[%s1821 + $0xf2] sm:$0xff]
        %v2039 = vld [vmem:[%s1821 + $0xfa] sm:$0xff]
        %v2040 = vld [vmem:[%s1821 + $0x10a] sm:$0xff]
        %v2041 = vld [vmem:[%s1821 + $0x112] sm:$0xff]
        %v2042 = vld [vmem:[%s1821 + $0x122] sm:$0xff]
        %v2043 = vld [vmem:[%s1821 + $0x12a] sm:$0xff]
        %v2044 = vld [vmem:[%s1821 + $0x13a] sm:$0xff]
        %v2045 = vld [vmem:[%s1821 + $0x142] sm:$0xff]
        %v2046 = vld [vmem:[%s1821 + $0x152] sm:$0xff]
        %v2047 = vld [vmem:[%s1821 + $0x15a] sm:$0xff]
        %v2048 = vld [vmem:[%s1821 + $0x16a] sm:$0xff]
        %v2049 = vld [vmem:[%s1821 + $0x172] sm:$0xff]
        %v2050 = vld [vmem:[%s3 + $0x7] sm:$0x1]
        %v2051 = vperm.slane %v2050, 0
        %v2052 = vmul.f32 %v2018, %v2051
        %v2053 = vmul.f32 %v2019, %v2051
        %v2054 = vmul.f32 %v2020, %v2051
        %v2055 = vmul.f32 %v2021, %v2051
        %v2056 = vmul.f32 %v2022, %v2051
        %v2057 = vmul.f32 %v2023, %v2051
        %v2058 = vmul.f32 %v2024, %v2051
        %v2059 = vmul.f32 %v2025, %v2051
        %v2060 = vmul.f32 %v2026, %v2051
        %v2061 = vmul.f32 %v2027, %v2051
        %v2062 = vmul.f32 %v2028, %v2051
        %v2063 = vmul.f32 %v2029, %v2051
        %v2064 = vmul.f32 %v2030, %v2051
        %v2065 = vmul.f32 %v2031, %v2051
        %v2066 = vmul.f32 %v2032, %v2051
        %v2067 = vmul.f32 %v2033, %v2051
        %v2068 = vmul.f32 %v2034, %v2051
        %v2069 = vmul.f32 %v2035, %v2051
        %v2070 = vmul.f32 %v2036, %v2051
        %v2071 = vmul.f32 %v2037, %v2051
        %v2072 = vmul.f32 %v2038, %v2051
        %v2073 = vmul.f32 %v2039, %v2051
        %v2074 = vmul.f32 %v2040, %v2051
        %v2075 = vmul.f32 %v2041, %v2051
        %v2076 = vmul.f32 %v2042, %v2051
        %v2077 = vmul.f32 %v2043, %v2051
        %v2078 = vmul.f32 %v2044, %v2051
        %v2079 = vmul.f32 %v2045, %v2051
        %v2080 = vmul.f32 %v2046, %v2051
        %v2081 = vmul.f32 %v2047, %v2051
        %v2082 = vmul.f32 %v2048, %v2051
        %v2083 = vmul.f32 %v2049, %v2051
        %v2084 = vadd.f32 %v1986, %v2052
        %v2085 = vadd.f32 %v1987, %v2053
        %v2086 = vadd.f32 %v1988, %v2054
        %v2087 = vadd.f32 %v1989, %v2055
        %v2088 = vadd.f32 %v1990, %v2056
        %v2089 = vadd.f32 %v1991, %v2057
        %v2090 = vadd.f32 %v1992, %v2058
        %v2091 = vadd.f32 %v1993, %v2059
        %v2092 = vadd.f32 %v1994, %v2060
        %v2093 = vadd.f32 %v1995, %v2061
        %v2094 = vadd.f32 %v1996, %v2062
        %v2095 = vadd.f32 %v1997, %v2063
        %v2096 = vadd.f32 %v1998, %v2064
        %v2097 = vadd.f32 %v1999, %v2065
        %v2098 = vadd.f32 %v2000, %v2066
        %v2099 = vadd.f32 %v2001, %v2067
        %v2100 = vadd.f32 %v2002, %v2068
        %v2101 = vadd.f32 %v2003, %v2069
        %v2102 = vadd.f32 %v2004, %v2070
        %v2103 = vadd.f32 %v2005, %v2071
        %v2104 = vadd.f32 %v2006, %v2072
        %v2105 = vadd.f32 %v2007, %v2073
        %v2106 = vadd.f32 %v2008, %v2074
        %v2107 = vadd.f32 %v2009, %v2075
        %v2108 = vadd.f32 %v2010, %v2076
        %v2109 = vadd.f32 %v2011, %v2077
        %v2110 = vadd.f32 %v2012, %v2078
        %v2111 = vadd.f32 %v2013, %v2079
        %v2112 = vadd.f32 %v2014, %v2080
        %v2113 = vadd.f32 %v2015, %v2081
        %v2114 = vadd.f32 %v2016, %v2082
        %v2115 = vadd.f32 %v2017, %v2083
        %v2116 = vld [vmem:[%s1821 + $0x3] sm:$0xff]
        %v2117 = vld [vmem:[%s1821 + $0xb] sm:$0xff]
        %v2118 = vld [vmem:[%s1821 + $0x1b] sm:$0xff]
        %v2119 = vld [vmem:[%s1821 + $0x23] sm:$0xff]
        %v2120 = vld [vmem:[%s1821 + $0x33] sm:$0xff]
        %v2121 = vld [vmem:[%s1821 + $0x3b] sm:$0xff]
        %v2122 = vld [vmem:[%s1821 + $0x4b] sm:$0xff]
        %v2123 = vld [vmem:[%s1821 + $0x53] sm:$0xff]
        %v2124 = vld [vmem:[%s1821 + $0x63] sm:$0xff]
        %v2125 = vld [vmem:[%s1821 + $0x6b] sm:$0xff]
        %v2126 = vld [vmem:[%s1821 + $0x7b] sm:$0xff]
        %v2127 = vld [vmem:[%s1821 + $0x83] sm:$0xff]
        %v2128 = vld [vmem:[%s1821 + $0x93] sm:$0xff]
        %v2129 = vld [vmem:[%s1821 + $0x9b] sm:$0xff]
        %v2130 = vld [vmem:[%s1821 + $0xab] sm:$0xff]
        %v2131 = vld [vmem:[%s1821 + $0xb3] sm:$0xff]
        %v2132 = vld [vmem:[%s1821 + $0xc3] sm:$0xff]
        %v2133 = vld [vmem:[%s1821 + $0xcb] sm:$0xff]
        %v2134 = vld [vmem:[%s1821 + $0xdb] sm:$0xff]
        %v2135 = vld [vmem:[%s1821 + $0xe3] sm:$0xff]
        %v2136 = vld [vmem:[%s1821 + $0xf3] sm:$0xff]
        %v2137 = vld [vmem:[%s1821 + $0xfb] sm:$0xff]
        %v2138 = vld [vmem:[%s1821 + $0x10b] sm:$0xff]
        %v2139 = vld [vmem:[%s1821 + $0x113] sm:$0xff]
        %v2140 = vld [vmem:[%s1821 + $0x123] sm:$0xff]
        %v2141 = vld [vmem:[%s1821 + $0x12b] sm:$0xff]
        %v2142 = vld [vmem:[%s1821 + $0x13b] sm:$0xff]
        %v2143 = vld [vmem:[%s1821 + $0x143] sm:$0xff]
        %v2144 = vld [vmem:[%s1821 + $0x153] sm:$0xff]
        %v2145 = vld [vmem:[%s1821 + $0x15b] sm:$0xff]
        %v2146 = vld [vmem:[%s1821 + $0x16b] sm:$0xff]
        %v2147 = vld [vmem:[%s1821 + $0x173] sm:$0xff]
        %v2148 = vld [vmem:[%s3 + $0x8] sm:$0x1]
        %v2149 = vperm.slane %v2148, 0
        %v2150 = vmul.f32 %v2116, %v2149
        %v2151 = vmul.f32 %v2117, %v2149
        %v2152 = vmul.f32 %v2118, %v2149
        %v2153 = vmul.f32 %v2119, %v2149
        %v2154 = vmul.f32 %v2120, %v2149
        %v2155 = vmul.f32 %v2121, %v2149
        %v2156 = vmul.f32 %v2122, %v2149
        %v2157 = vmul.f32 %v2123, %v2149
        %v2158 = vmul.f32 %v2124, %v2149
        %v2159 = vmul.f32 %v2125, %v2149
        %v2160 = vmul.f32 %v2126, %v2149
        %v2161 = vmul.f32 %v2127, %v2149
        %v2162 = vmul.f32 %v2128, %v2149
        %v2163 = vmul.f32 %v2129, %v2149
        %v2164 = vmul.f32 %v2130, %v2149
        %v2165 = vmul.f32 %v2131, %v2149
        %v2166 = vmul.f32 %v2132, %v2149
        %v2167 = vmul.f32 %v2133, %v2149
        %v2168 = vmul.f32 %v2134, %v2149
        %v2169 = vmul.f32 %v2135, %v2149
        %v2170 = vmul.f32 %v2136, %v2149
        %v2171 = vmul.f32 %v2137, %v2149
        %v2172 = vmul.f32 %v2138, %v2149
        %v2173 = vmul.f32 %v2139, %v2149
        %v2174 = vmul.f32 %v2140, %v2149
        %v2175 = vmul.f32 %v2141, %v2149
        %v2176 = vmul.f32 %v2142, %v2149
        %v2177 = vmul.f32 %v2143, %v2149
        %v2178 = vmul.f32 %v2144, %v2149
        %v2179 = vmul.f32 %v2145, %v2149
        %v2180 = vmul.f32 %v2146, %v2149
        %v2181 = vmul.f32 %v2147, %v2149
        %v2182 = vadd.f32 %v2084, %v2150
        %v2183 = vadd.f32 %v2085, %v2151
        %v2184 = vadd.f32 %v2086, %v2152
        %v2185 = vadd.f32 %v2087, %v2153
        %v2186 = vadd.f32 %v2088, %v2154
        %v2187 = vadd.f32 %v2089, %v2155
        %v2188 = vadd.f32 %v2090, %v2156
        %v2189 = vadd.f32 %v2091, %v2157
        %v2190 = vadd.f32 %v2092, %v2158
        %v2191 = vadd.f32 %v2093, %v2159
        %v2192 = vadd.f32 %v2094, %v2160
        %v2193 = vadd.f32 %v2095, %v2161
        %v2194 = vadd.f32 %v2096, %v2162
        %v2195 = vadd.f32 %v2097, %v2163
        %v2196 = vadd.f32 %v2098, %v2164
        %v2197 = vadd.f32 %v2099, %v2165
        %v2198 = vadd.f32 %v2100, %v2166
        %v2199 = vadd.f32 %v2101, %v2167
        %v2200 = vadd.f32 %v2102, %v2168
        %v2201 = vadd.f32 %v2103, %v2169
        %v2202 = vadd.f32 %v2104, %v2170
        %v2203 = vadd.f32 %v2105, %v2171
        %v2204 = vadd.f32 %v2106, %v2172
        %v2205 = vadd.f32 %v2107, %v2173
        %v2206 = vadd.f32 %v2108, %v2174
        %v2207 = vadd.f32 %v2109, %v2175
        %v2208 = vadd.f32 %v2110, %v2176
        %v2209 = vadd.f32 %v2111, %v2177
        %v2210 = vadd.f32 %v2112, %v2178
        %v2211 = vadd.f32 %v2113, %v2179
        %v2212 = vadd.f32 %v2114, %v2180
        %v2213 = vadd.f32 %v2115, %v2181
        %v2214 = vld [vmem:[%s1821 + $0x4] sm:$0xff]
        %v2215 = vld [vmem:[%s1821 + $0xc] sm:$0xff]
        %v2216 = vld [vmem:[%s1821 + $0x1c] sm:$0xff]
        %v2217 = vld [vmem:[%s1821 + $0x24] sm:$0xff]
        %v2218 = vld [vmem:[%s1821 + $0x34] sm:$0xff]
        %v2219 = vld [vmem:[%s1821 + $0x3c] sm:$0xff]
        %v2220 = vld [vmem:[%s1821 + $0x4c] sm:$0xff]
        %v2221 = vld [vmem:[%s1821 + $0x54] sm:$0xff]
        %v2222 = vld [vmem:[%s1821 + $0x64] sm:$0xff]
        %v2223 = vld [vmem:[%s1821 + $0x6c] sm:$0xff]
        %v2224 = vld [vmem:[%s1821 + $0x7c] sm:$0xff]
        %v2225 = vld [vmem:[%s1821 + $0x84] sm:$0xff]
        %v2226 = vld [vmem:[%s1821 + $0x94] sm:$0xff]
        %v2227 = vld [vmem:[%s1821 + $0x9c] sm:$0xff]
        %v2228 = vld [vmem:[%s1821 + $0xac] sm:$0xff]
        %v2229 = vld [vmem:[%s1821 + $0xb4] sm:$0xff]
        %v2230 = vld [vmem:[%s1821 + $0xc4] sm:$0xff]
        %v2231 = vld [vmem:[%s1821 + $0xcc] sm:$0xff]
        %v2232 = vld [vmem:[%s1821 + $0xdc] sm:$0xff]
        %v2233 = vld [vmem:[%s1821 + $0xe4] sm:$0xff]
        %v2234 = vld [vmem:[%s1821 + $0xf4] sm:$0xff]
        %v2235 = vld [vmem:[%s1821 + $0xfc] sm:$0xff]
        %v2236 = vld [vmem:[%s1821 + $0x10c] sm:$0xff]
        %v2237 = vld [vmem:[%s1821 + $0x114] sm:$0xff]
        %v2238 = vld [vmem:[%s1821 + $0x124] sm:$0xff]
        %v2239 = vld [vmem:[%s1821 + $0x12c] sm:$0xff]
        %v2240 = vld [vmem:[%s1821 + $0x13c] sm:$0xff]
        %v2241 = vld [vmem:[%s1821 + $0x144] sm:$0xff]
        %v2242 = vld [vmem:[%s1821 + $0x154] sm:$0xff]
        %v2243 = vld [vmem:[%s1821 + $0x15c] sm:$0xff]
        %v2244 = vld [vmem:[%s1821 + $0x16c] sm:$0xff]
        %v2245 = vld [vmem:[%s1821 + $0x174] sm:$0xff]
        %v2246 = vld [vmem:[%s3 + $0x9] sm:$0x1]
        %v2247 = vperm.slane %v2246, 0
        %v2248 = vmul.f32 %v2214, %v2247
        %v2249 = vmul.f32 %v2215, %v2247
        %v2250 = vmul.f32 %v2216, %v2247
        %v2251 = vmul.f32 %v2217, %v2247
        %v2252 = vmul.f32 %v2218, %v2247
        %v2253 = vmul.f32 %v2219, %v2247
        %v2254 = vmul.f32 %v2220, %v2247
        %v2255 = vmul.f32 %v2221, %v2247
        %v2256 = vmul.f32 %v2222, %v2247
        %v2257 = vmul.f32 %v2223, %v2247
        %v2258 = vmul.f32 %v2224, %v2247
        %v2259 = vmul.f32 %v2225, %v2247
        %v2260 = vmul.f32 %v2226, %v2247
        %v2261 = vmul.f32 %v2227, %v2247
        %v2262 = vmul.f32 %v2228, %v2247
        %v2263 = vmul.f32 %v2229, %v2247
        %v2264 = vmul.f32 %v2230, %v2247
        %v2265 = vmul.f32 %v2231, %v2247
        %v2266 = vmul.f32 %v2232, %v2247
        %v2267 = vmul.f32 %v2233, %v2247
        %v2268 = vmul.f32 %v2234, %v2247
        %v2269 = vmul.f32 %v2235, %v2247
        %v2270 = vmul.f32 %v2236, %v2247
        %v2271 = vmul.f32 %v2237, %v2247
        %v2272 = vmul.f32 %v2238, %v2247
        %v2273 = vmul.f32 %v2239, %v2247
        %v2274 = vmul.f32 %v2240, %v2247
        %v2275 = vmul.f32 %v2241, %v2247
        %v2276 = vmul.f32 %v2242, %v2247
        %v2277 = vmul.f32 %v2243, %v2247
        %v2278 = vmul.f32 %v2244, %v2247
        %v2279 = vmul.f32 %v2245, %v2247
        %v2280 = vadd.f32 %v2182, %v2248
        %v2281 = vadd.f32 %v2183, %v2249
        %v2282 = vadd.f32 %v2184, %v2250
        %v2283 = vadd.f32 %v2185, %v2251
        %v2284 = vadd.f32 %v2186, %v2252
        %v2285 = vadd.f32 %v2187, %v2253
        %v2286 = vadd.f32 %v2188, %v2254
        %v2287 = vadd.f32 %v2189, %v2255
        %v2288 = vadd.f32 %v2190, %v2256
        %v2289 = vadd.f32 %v2191, %v2257
        %v2290 = vadd.f32 %v2192, %v2258
        %v2291 = vadd.f32 %v2193, %v2259
        %v2292 = vadd.f32 %v2194, %v2260
        %v2293 = vadd.f32 %v2195, %v2261
        %v2294 = vadd.f32 %v2196, %v2262
        %v2295 = vadd.f32 %v2197, %v2263
        %v2296 = vadd.f32 %v2198, %v2264
        %v2297 = vadd.f32 %v2199, %v2265
        %v2298 = vadd.f32 %v2200, %v2266
        %v2299 = vadd.f32 %v2201, %v2267
        %v2300 = vadd.f32 %v2202, %v2268
        %v2301 = vadd.f32 %v2203, %v2269
        %v2302 = vadd.f32 %v2204, %v2270
        %v2303 = vadd.f32 %v2205, %v2271
        %v2304 = vadd.f32 %v2206, %v2272
        %v2305 = vadd.f32 %v2207, %v2273
        %v2306 = vadd.f32 %v2208, %v2274
        %v2307 = vadd.f32 %v2209, %v2275
        %v2308 = vadd.f32 %v2210, %v2276
        %v2309 = vadd.f32 %v2211, %v2277
        %v2310 = vadd.f32 %v2212, %v2278
        %v2311 = vadd.f32 %v2213, %v2279
        %v2312 = vld [vmem:[%s1330] sm:$0xff]
        %v2313 = vld [vmem:[%s1330 + $0x8] sm:$0xff]
        %v2314 = vld [vmem:[%s1330 + $0x18] sm:$0xff]
        %v2315 = vld [vmem:[%s1330 + $0x20] sm:$0xff]
        %v2316 = vld [vmem:[%s1330 + $0x30] sm:$0xff]
        %v2317 = vld [vmem:[%s1330 + $0x38] sm:$0xff]
        %v2318 = vld [vmem:[%s1330 + $0x48] sm:$0xff]
        %v2319 = vld [vmem:[%s1330 + $0x50] sm:$0xff]
        %v2320 = vld [vmem:[%s1330 + $0x60] sm:$0xff]
        %v2321 = vld [vmem:[%s1330 + $0x68] sm:$0xff]
        %v2322 = vld [vmem:[%s1330 + $0x78] sm:$0xff]
        %v2323 = vld [vmem:[%s1330 + $0x80] sm:$0xff]
        %v2324 = vld [vmem:[%s1330 + $0x90] sm:$0xff]
        %v2325 = vld [vmem:[%s1330 + $0x98] sm:$0xff]
        %v2326 = vld [vmem:[%s1330 + $0xa8] sm:$0xff]
        %v2327 = vld [vmem:[%s1330 + $0xb0] sm:$0xff]
        %v2328 = vld [vmem:[%s1330 + $0xc0] sm:$0xff]
        %v2329 = vld [vmem:[%s1330 + $0xc8] sm:$0xff]
        %v2330 = vld [vmem:[%s1330 + $0xd8] sm:$0xff]
        %v2331 = vld [vmem:[%s1330 + $0xe0] sm:$0xff]
        %v2332 = vld [vmem:[%s1330 + $0xf0] sm:$0xff]
        %v2333 = vld [vmem:[%s1330 + $0xf8] sm:$0xff]
        %v2334 = vld [vmem:[%s1330 + $0x108] sm:$0xff]
        %v2335 = vld [vmem:[%s1330 + $0x110] sm:$0xff]
        %v2336 = vld [vmem:[%s1330 + $0x120] sm:$0xff]
        %v2337 = vld [vmem:[%s1330 + $0x128] sm:$0xff]
        %v2338 = vld [vmem:[%s1330 + $0x138] sm:$0xff]
        %v2339 = vld [vmem:[%s1330 + $0x140] sm:$0xff]
        %v2340 = vld [vmem:[%s1330 + $0x150] sm:$0xff]
        %v2341 = vld [vmem:[%s1330 + $0x158] sm:$0xff]
        %v2342 = vld [vmem:[%s1330 + $0x168] sm:$0xff]
        %v2343 = vld [vmem:[%s1330 + $0x170] sm:$0xff]
        %v2344 = vld [vmem:[%s3 + $0xa] sm:$0x1]
        %v2345 = vperm.slane %v2344, 0
        %v2346 = vmul.f32 %v2312, %v2345
        %v2347 = vmul.f32 %v2313, %v2345
        %v2348 = vmul.f32 %v2314, %v2345
        %v2349 = vmul.f32 %v2315, %v2345
        %v2350 = vmul.f32 %v2316, %v2345
        %v2351 = vmul.f32 %v2317, %v2345
        %v2352 = vmul.f32 %v2318, %v2345
        %v2353 = vmul.f32 %v2319, %v2345
        %v2354 = vmul.f32 %v2320, %v2345
        %v2355 = vmul.f32 %v2321, %v2345
        %v2356 = vmul.f32 %v2322, %v2345
        %v2357 = vmul.f32 %v2323, %v2345
        %v2358 = vmul.f32 %v2324, %v2345
        %v2359 = vmul.f32 %v2325, %v2345
        %v2360 = vmul.f32 %v2326, %v2345
        %v2361 = vmul.f32 %v2327, %v2345
        %v2362 = vmul.f32 %v2328, %v2345
        %v2363 = vmul.f32 %v2329, %v2345
        %v2364 = vmul.f32 %v2330, %v2345
        %v2365 = vmul.f32 %v2331, %v2345
        %v2366 = vmul.f32 %v2332, %v2345
        %v2367 = vmul.f32 %v2333, %v2345
        %v2368 = vmul.f32 %v2334, %v2345
        %v2369 = vmul.f32 %v2335, %v2345
        %v2370 = vmul.f32 %v2336, %v2345
        %v2371 = vmul.f32 %v2337, %v2345
        %v2372 = vmul.f32 %v2338, %v2345
        %v2373 = vmul.f32 %v2339, %v2345
        %v2374 = vmul.f32 %v2340, %v2345
        %v2375 = vmul.f32 %v2341, %v2345
        %v2376 = vmul.f32 %v2342, %v2345
        %v2377 = vmul.f32 %v2343, %v2345
        %v2378 = vadd.f32 %v2280, %v2346
        %v2379 = vadd.f32 %v2281, %v2347
        %v2380 = vadd.f32 %v2282, %v2348
        %v2381 = vadd.f32 %v2283, %v2349
        %v2382 = vadd.f32 %v2284, %v2350
        %v2383 = vadd.f32 %v2285, %v2351
        %v2384 = vadd.f32 %v2286, %v2352
        %v2385 = vadd.f32 %v2287, %v2353
        %v2386 = vadd.f32 %v2288, %v2354
        %v2387 = vadd.f32 %v2289, %v2355
        %v2388 = vadd.f32 %v2290, %v2356
        %v2389 = vadd.f32 %v2291, %v2357
        %v2390 = vadd.f32 %v2292, %v2358
        %v2391 = vadd.f32 %v2293, %v2359
        %v2392 = vadd.f32 %v2294, %v2360
        %v2393 = vadd.f32 %v2295, %v2361
        %v2394 = vadd.f32 %v2296, %v2362
        %v2395 = vadd.f32 %v2297, %v2363
        %v2396 = vadd.f32 %v2298, %v2364
        %v2397 = vadd.f32 %v2299, %v2365
        %v2398 = vadd.f32 %v2300, %v2366
        %v2399 = vadd.f32 %v2301, %v2367
        %v2400 = vadd.f32 %v2302, %v2368
        %v2401 = vadd.f32 %v2303, %v2369
        %v2402 = vadd.f32 %v2304, %v2370
        %v2403 = vadd.f32 %v2305, %v2371
        %v2404 = vadd.f32 %v2306, %v2372
        %v2405 = vadd.f32 %v2307, %v2373
        %v2406 = vadd.f32 %v2308, %v2374
        %v2407 = vadd.f32 %v2309, %v2375
        %v2408 = vadd.f32 %v2310, %v2376
        %v2409 = vadd.f32 %v2311, %v2377
        %v2410 = vld [vmem:[%s1330 + $0x1] sm:$0xff]
        %v2411 = vld [vmem:[%s1330 + $0x9] sm:$0xff]
        %v2412 = vld [vmem:[%s1330 + $0x19] sm:$0xff]
        %v2413 = vld [vmem:[%s1330 + $0x21] sm:$0xff]
        %v2414 = vld [vmem:[%s1330 + $0x31] sm:$0xff]
        %v2415 = vld [vmem:[%s1330 + $0x39] sm:$0xff]
        %v2416 = vld [vmem:[%s1330 + $0x49] sm:$0xff]
        %v2417 = vld [vmem:[%s1330 + $0x51] sm:$0xff]
        %v2418 = vld [vmem:[%s1330 + $0x61] sm:$0xff]
        %v2419 = vld [vmem:[%s1330 + $0x69] sm:$0xff]
        %v2420 = vld [vmem:[%s1330 + $0x79] sm:$0xff]
        %v2421 = vld [vmem:[%s1330 + $0x81] sm:$0xff]
        %v2422 = vld [vmem:[%s1330 + $0x91] sm:$0xff]
        %v2423 = vld [vmem:[%s1330 + $0x99] sm:$0xff]
        %v2424 = vld [vmem:[%s1330 + $0xa9] sm:$0xff]
        %v2425 = vld [vmem:[%s1330 + $0xb1] sm:$0xff]
        %v2426 = vld [vmem:[%s1330 + $0xc1] sm:$0xff]
        %v2427 = vld [vmem:[%s1330 + $0xc9] sm:$0xff]
        %v2428 = vld [vmem:[%s1330 + $0xd9] sm:$0xff]
        %v2429 = vld [vmem:[%s1330 + $0xe1] sm:$0xff]
        %v2430 = vld [vmem:[%s1330 + $0xf1] sm:$0xff]
        %v2431 = vld [vmem:[%s1330 + $0xf9] sm:$0xff]
        %v2432 = vld [vmem:[%s1330 + $0x109] sm:$0xff]
        %v2433 = vld [vmem:[%s1330 + $0x111] sm:$0xff]
        %v2434 = vld [vmem:[%s1330 + $0x121] sm:$0xff]
        %v2435 = vld [vmem:[%s1330 + $0x129] sm:$0xff]
        %v2436 = vld [vmem:[%s1330 + $0x139] sm:$0xff]
        %v2437 = vld [vmem:[%s1330 + $0x141] sm:$0xff]
        %v2438 = vld [vmem:[%s1330 + $0x151] sm:$0xff]
        %v2439 = vld [vmem:[%s1330 + $0x159] sm:$0xff]
        %v2440 = vld [vmem:[%s1330 + $0x169] sm:$0xff]
        %v2441 = vld [vmem:[%s1330 + $0x171] sm:$0xff]
        %v2442 = vld [vmem:[%s3 + $0xb] sm:$0x1]
        %v2443 = vperm.slane %v2442, 0
        %v2444 = vmul.f32 %v2410, %v2443
        %v2445 = vmul.f32 %v2411, %v2443
        %v2446 = vmul.f32 %v2412, %v2443
        %v2447 = vmul.f32 %v2413, %v2443
        %v2448 = vmul.f32 %v2414, %v2443
        %v2449 = vmul.f32 %v2415, %v2443
        %v2450 = vmul.f32 %v2416, %v2443
        %v2451 = vmul.f32 %v2417, %v2443
        %v2452 = vmul.f32 %v2418, %v2443
        %v2453 = vmul.f32 %v2419, %v2443
        %v2454 = vmul.f32 %v2420, %v2443
        %v2455 = vmul.f32 %v2421, %v2443
        %v2456 = vmul.f32 %v2422, %v2443
        %v2457 = vmul.f32 %v2423, %v2443
        %v2458 = vmul.f32 %v2424, %v2443
        %v2459 = vmul.f32 %v2425, %v2443
        %v2460 = vmul.f32 %v2426, %v2443
        %v2461 = vmul.f32 %v2427, %v2443
        %v2462 = vmul.f32 %v2428, %v2443
        %v2463 = vmul.f32 %v2429, %v2443
        %v2464 = vmul.f32 %v2430, %v2443
        %v2465 = vmul.f32 %v2431, %v2443
        %v2466 = vmul.f32 %v2432, %v2443
        %v2467 = vmul.f32 %v2433, %v2443
        %v2468 = vmul.f32 %v2434, %v2443
        %v2469 = vmul.f32 %v2435, %v2443
        %v2470 = vmul.f32 %v2436, %v2443
        %v2471 = vmul.f32 %v2437, %v2443
        %v2472 = vmul.f32 %v2438, %v2443
        %v2473 = vmul.f32 %v2439, %v2443
        %v2474 = vmul.f32 %v2440, %v2443
        %v2475 = vmul.f32 %v2441, %v2443
        %v2476 = vadd.f32 %v2378, %v2444
        %v2477 = vadd.f32 %v2379, %v2445
        %v2478 = vadd.f32 %v2380, %v2446
        %v2479 = vadd.f32 %v2381, %v2447
        %v2480 = vadd.f32 %v2382, %v2448
        %v2481 = vadd.f32 %v2383, %v2449
        %v2482 = vadd.f32 %v2384, %v2450
        %v2483 = vadd.f32 %v2385, %v2451
        %v2484 = vadd.f32 %v2386, %v2452
        %v2485 = vadd.f32 %v2387, %v2453
        %v2486 = vadd.f32 %v2388, %v2454
        %v2487 = vadd.f32 %v2389, %v2455
        %v2488 = vadd.f32 %v2390, %v2456
        %v2489 = vadd.f32 %v2391, %v2457
        %v2490 = vadd.f32 %v2392, %v2458
        %v2491 = vadd.f32 %v2393, %v2459
        %v2492 = vadd.f32 %v2394, %v2460
        %v2493 = vadd.f32 %v2395, %v2461
        %v2494 = vadd.f32 %v2396, %v2462
        %v2495 = vadd.f32 %v2397, %v2463
        %v2496 = vadd.f32 %v2398, %v2464
        %v2497 = vadd.f32 %v2399, %v2465
        %v2498 = vadd.f32 %v2400, %v2466
        %v2499 = vadd.f32 %v2401, %v2467
        %v2500 = vadd.f32 %v2402, %v2468
        %v2501 = vadd.f32 %v2403, %v2469
        %v2502 = vadd.f32 %v2404, %v2470
        %v2503 = vadd.f32 %v2405, %v2471
        %v2504 = vadd.f32 %v2406, %v2472
        %v2505 = vadd.f32 %v2407, %v2473
        %v2506 = vadd.f32 %v2408, %v2474
        %v2507 = vadd.f32 %v2409, %v2475
        %v2508 = vld [vmem:[%s1330 + $0x2] sm:$0xff]
        %v2509 = vld [vmem:[%s1330 + $0xa] sm:$0xff]
        %v2510 = vld [vmem:[%s1330 + $0x1a] sm:$0xff]
        %v2511 = vld [vmem:[%s1330 + $0x22] sm:$0xff]
        %v2512 = vld [vmem:[%s1330 + $0x32] sm:$0xff]
        %v2513 = vld [vmem:[%s1330 + $0x3a] sm:$0xff]
        %v2514 = vld [vmem:[%s1330 + $0x4a] sm:$0xff]
        %v2515 = vld [vmem:[%s1330 + $0x52] sm:$0xff]
        %v2516 = vld [vmem:[%s1330 + $0x62] sm:$0xff]
        %v2517 = vld [vmem:[%s1330 + $0x6a] sm:$0xff]
        %v2518 = vld [vmem:[%s1330 + $0x7a] sm:$0xff]
        %v2519 = vld [vmem:[%s1330 + $0x82] sm:$0xff]
        %v2520 = vld [vmem:[%s1330 + $0x92] sm:$0xff]
        %v2521 = vld [vmem:[%s1330 + $0x9a] sm:$0xff]
        %v2522 = vld [vmem:[%s1330 + $0xaa] sm:$0xff]
        %v2523 = vld [vmem:[%s1330 + $0xb2] sm:$0xff]
        %v2524 = vld [vmem:[%s1330 + $0xc2] sm:$0xff]
        %v2525 = vld [vmem:[%s1330 + $0xca] sm:$0xff]
        %v2526 = vld [vmem:[%s1330 + $0xda] sm:$0xff]
        %v2527 = vld [vmem:[%s1330 + $0xe2] sm:$0xff]
        %v2528 = vld [vmem:[%s1330 + $0xf2] sm:$0xff]
        %v2529 = vld [vmem:[%s1330 + $0xfa] sm:$0xff]
        %v2530 = vld [vmem:[%s1330 + $0x10a] sm:$0xff]
        %v2531 = vld [vmem:[%s1330 + $0x112] sm:$0xff]
        %v2532 = vld [vmem:[%s1330 + $0x122] sm:$0xff]
        %v2533 = vld [vmem:[%s1330 + $0x12a] sm:$0xff]
        %v2534 = vld [vmem:[%s1330 + $0x13a] sm:$0xff]
        %v2535 = vld [vmem:[%s1330 + $0x142] sm:$0xff]
        %v2536 = vld [vmem:[%s1330 + $0x152] sm:$0xff]
        %v2537 = vld [vmem:[%s1330 + $0x15a] sm:$0xff]
        %v2538 = vld [vmem:[%s1330 + $0x16a] sm:$0xff]
        %v2539 = vld [vmem:[%s1330 + $0x172] sm:$0xff]
        %v2540 = vld [vmem:[%s3 + $0xc] sm:$0x1]
        %v2541 = vperm.slane %v2540, 0
        %v2542 = vmul.f32 %v2508, %v2541
        %v2543 = vmul.f32 %v2509, %v2541
        %v2544 = vmul.f32 %v2510, %v2541
        %v2545 = vmul.f32 %v2511, %v2541
        %v2546 = vmul.f32 %v2512, %v2541
        %v2547 = vmul.f32 %v2513, %v2541
        %v2548 = vmul.f32 %v2514, %v2541
        %v2549 = vmul.f32 %v2515, %v2541
        %v2550 = vmul.f32 %v2516, %v2541
        %v2551 = vmul.f32 %v2517, %v2541
        %v2552 = vmul.f32 %v2518, %v2541
        %v2553 = vmul.f32 %v2519, %v2541
        %v2554 = vmul.f32 %v2520, %v2541
        %v2555 = vmul.f32 %v2521, %v2541
        %v2556 = vmul.f32 %v2522, %v2541
        %v2557 = vmul.f32 %v2523, %v2541
        %v2558 = vmul.f32 %v2524, %v2541
        %v2559 = vmul.f32 %v2525, %v2541
        %v2560 = vmul.f32 %v2526, %v2541
        %v2561 = vmul.f32 %v2527, %v2541
        %v2562 = vmul.f32 %v2528, %v2541
        %v2563 = vmul.f32 %v2529, %v2541
        %v2564 = vmul.f32 %v2530, %v2541
        %v2565 = vmul.f32 %v2531, %v2541
        %v2566 = vmul.f32 %v2532, %v2541
        %v2567 = vmul.f32 %v2533, %v2541
        %v2568 = vmul.f32 %v2534, %v2541
        %v2569 = vmul.f32 %v2535, %v2541
        %v2570 = vmul.f32 %v2536, %v2541
        %v2571 = vmul.f32 %v2537, %v2541
        %v2572 = vmul.f32 %v2538, %v2541
        %v2573 = vmul.f32 %v2539, %v2541
        %v2574 = vadd.f32 %v2476, %v2542
        %v2575 = vadd.f32 %v2477, %v2543
        %v2576 = vadd.f32 %v2478, %v2544
        %v2577 = vadd.f32 %v2479, %v2545
        %v2578 = vadd.f32 %v2480, %v2546
        %v2579 = vadd.f32 %v2481, %v2547
        %v2580 = vadd.f32 %v2482, %v2548
        %v2581 = vadd.f32 %v2483, %v2549
        %v2582 = vadd.f32 %v2484, %v2550
        %v2583 = vadd.f32 %v2485, %v2551
        %v2584 = vadd.f32 %v2486, %v2552
        %v2585 = vadd.f32 %v2487, %v2553
        %v2586 = vadd.f32 %v2488, %v2554
        %v2587 = vadd.f32 %v2489, %v2555
        %v2588 = vadd.f32 %v2490, %v2556
        %v2589 = vadd.f32 %v2491, %v2557
        %v2590 = vadd.f32 %v2492, %v2558
        %v2591 = vadd.f32 %v2493, %v2559
        %v2592 = vadd.f32 %v2494, %v2560
        %v2593 = vadd.f32 %v2495, %v2561
        %v2594 = vadd.f32 %v2496, %v2562
        %v2595 = vadd.f32 %v2497, %v2563
        %v2596 = vadd.f32 %v2498, %v2564
        %v2597 = vadd.f32 %v2499, %v2565
        %v2598 = vadd.f32 %v2500, %v2566
        %v2599 = vadd.f32 %v2501, %v2567
        %v2600 = vadd.f32 %v2502, %v2568
        %v2601 = vadd.f32 %v2503, %v2569
        %v2602 = vadd.f32 %v2504, %v2570
        %v2603 = vadd.f32 %v2505, %v2571
        %v2604 = vadd.f32 %v2506, %v2572
        %v2605 = vadd.f32 %v2507, %v2573
        %v2606 = vld [vmem:[%s1330 + $0x3] sm:$0xff]
        %v2607 = vld [vmem:[%s1330 + $0xb] sm:$0xff]
        %v2608 = vld [vmem:[%s1330 + $0x1b] sm:$0xff]
        %v2609 = vld [vmem:[%s1330 + $0x23] sm:$0xff]
        %v2610 = vld [vmem:[%s1330 + $0x33] sm:$0xff]
        %v2611 = vld [vmem:[%s1330 + $0x3b] sm:$0xff]
        %v2612 = vld [vmem:[%s1330 + $0x4b] sm:$0xff]
        %v2613 = vld [vmem:[%s1330 + $0x53] sm:$0xff]
        %v2614 = vld [vmem:[%s1330 + $0x63] sm:$0xff]
        %v2615 = vld [vmem:[%s1330 + $0x6b] sm:$0xff]
        %v2616 = vld [vmem:[%s1330 + $0x7b] sm:$0xff]
        %v2617 = vld [vmem:[%s1330 + $0x83] sm:$0xff]
        %v2618 = vld [vmem:[%s1330 + $0x93] sm:$0xff]
        %v2619 = vld [vmem:[%s1330 + $0x9b] sm:$0xff]
        %v2620 = vld [vmem:[%s1330 + $0xab] sm:$0xff]
        %v2621 = vld [vmem:[%s1330 + $0xb3] sm:$0xff]
        %v2622 = vld [vmem:[%s1330 + $0xc3] sm:$0xff]
        %v2623 = vld [vmem:[%s1330 + $0xcb] sm:$0xff]
        %v2624 = vld [vmem:[%s1330 + $0xdb] sm:$0xff]
        %v2625 = vld [vmem:[%s1330 + $0xe3] sm:$0xff]
        %v2626 = vld [vmem:[%s1330 + $0xf3] sm:$0xff]
        %v2627 = vld [vmem:[%s1330 + $0xfb] sm:$0xff]
        %v2628 = vld [vmem:[%s1330 + $0x10b] sm:$0xff]
        %v2629 = vld [vmem:[%s1330 + $0x113] sm:$0xff]
        %v2630 = vld [vmem:[%s1330 + $0x123] sm:$0xff]
        %v2631 = vld [vmem:[%s1330 + $0x12b] sm:$0xff]
        %v2632 = vld [vmem:[%s1330 + $0x13b] sm:$0xff]
        %v2633 = vld [vmem:[%s1330 + $0x143] sm:$0xff]
        %v2634 = vld [vmem:[%s1330 + $0x153] sm:$0xff]
        %v2635 = vld [vmem:[%s1330 + $0x15b] sm:$0xff]
        %v2636 = vld [vmem:[%s1330 + $0x16b] sm:$0xff]
        %v2637 = vld [vmem:[%s1330 + $0x173] sm:$0xff]
        %v2638 = vld [vmem:[%s3 + $0xd] sm:$0x1]
        %v2639 = vperm.slane %v2638, 0
        %v2640 = vmul.f32 %v2606, %v2639
        %v2641 = vmul.f32 %v2607, %v2639
        %v2642 = vmul.f32 %v2608, %v2639
        %v2643 = vmul.f32 %v2609, %v2639
        %v2644 = vmul.f32 %v2610, %v2639
        %v2645 = vmul.f32 %v2611, %v2639
        %v2646 = vmul.f32 %v2612, %v2639
        %v2647 = vmul.f32 %v2613, %v2639
        %v2648 = vmul.f32 %v2614, %v2639
        %v2649 = vmul.f32 %v2615, %v2639
        %v2650 = vmul.f32 %v2616, %v2639
        %v2651 = vmul.f32 %v2617, %v2639
        %v2652 = vmul.f32 %v2618, %v2639
        %v2653 = vmul.f32 %v2619, %v2639
        %v2654 = vmul.f32 %v2620, %v2639
        %v2655 = vmul.f32 %v2621, %v2639
        %v2656 = vmul.f32 %v2622, %v2639
        %v2657 = vmul.f32 %v2623, %v2639
        %v2658 = vmul.f32 %v2624, %v2639
        %v2659 = vmul.f32 %v2625, %v2639
        %v2660 = vmul.f32 %v2626, %v2639
        %v2661 = vmul.f32 %v2627, %v2639
        %v2662 = vmul.f32 %v2628, %v2639
        %v2663 = vmul.f32 %v2629, %v2639
        %v2664 = vmul.f32 %v2630, %v2639
        %v2665 = vmul.f32 %v2631, %v2639
        %v2666 = vmul.f32 %v2632, %v2639
        %v2667 = vmul.f32 %v2633, %v2639
        %v2668 = vmul.f32 %v2634, %v2639
        %v2669 = vmul.f32 %v2635, %v2639
        %v2670 = vmul.f32 %v2636, %v2639
        %v2671 = vmul.f32 %v2637, %v2639
        %v2672 = vadd.f32 %v2574, %v2640
        %v2673 = vadd.f32 %v2575, %v2641
        %v2674 = vadd.f32 %v2576, %v2642
        %v2675 = vadd.f32 %v2577, %v2643
        %v2676 = vadd.f32 %v2578, %v2644
        %v2677 = vadd.f32 %v2579, %v2645
        %v2678 = vadd.f32 %v2580, %v2646
        %v2679 = vadd.f32 %v2581, %v2647
        %v2680 = vadd.f32 %v2582, %v2648
        %v2681 = vadd.f32 %v2583, %v2649
        %v2682 = vadd.f32 %v2584, %v2650
        %v2683 = vadd.f32 %v2585, %v2651
        %v2684 = vadd.f32 %v2586, %v2652
        %v2685 = vadd.f32 %v2587, %v2653
        %v2686 = vadd.f32 %v2588, %v2654
        %v2687 = vadd.f32 %v2589, %v2655
        %v2688 = vadd.f32 %v2590, %v2656
        %v2689 = vadd.f32 %v2591, %v2657
        %v2690 = vadd.f32 %v2592, %v2658
        %v2691 = vadd.f32 %v2593, %v2659
        %v2692 = vadd.f32 %v2594, %v2660
        %v2693 = vadd.f32 %v2595, %v2661
        %v2694 = vadd.f32 %v2596, %v2662
        %v2695 = vadd.f32 %v2597, %v2663
        %v2696 = vadd.f32 %v2598, %v2664
        %v2697 = vadd.f32 %v2599, %v2665
        %v2698 = vadd.f32 %v2600, %v2666
        %v2699 = vadd.f32 %v2601, %v2667
        %v2700 = vadd.f32 %v2602, %v2668
        %v2701 = vadd.f32 %v2603, %v2669
        %v2702 = vadd.f32 %v2604, %v2670
        %v2703 = vadd.f32 %v2605, %v2671
        %v2704 = vld [vmem:[%s1330 + $0x4] sm:$0xff]
        %v2705 = vld [vmem:[%s1330 + $0xc] sm:$0xff]
        %v2706 = vld [vmem:[%s1330 + $0x1c] sm:$0xff]
        %v2707 = vld [vmem:[%s1330 + $0x24] sm:$0xff]
        %v2708 = vld [vmem:[%s1330 + $0x34] sm:$0xff]
        %v2709 = vld [vmem:[%s1330 + $0x3c] sm:$0xff]
        %v2710 = vld [vmem:[%s1330 + $0x4c] sm:$0xff]
        %v2711 = vld [vmem:[%s1330 + $0x54] sm:$0xff]
        %v2712 = vld [vmem:[%s1330 + $0x64] sm:$0xff]
        %v2713 = vld [vmem:[%s1330 + $0x6c] sm:$0xff]
        %v2714 = vld [vmem:[%s1330 + $0x7c] sm:$0xff]
        %v2715 = vld [vmem:[%s1330 + $0x84] sm:$0xff]
        %v2716 = vld [vmem:[%s1330 + $0x94] sm:$0xff]
        %v2717 = vld [vmem:[%s1330 + $0x9c] sm:$0xff]
        %v2718 = vld [vmem:[%s1330 + $0xac] sm:$0xff]
        %v2719 = vld [vmem:[%s1330 + $0xb4] sm:$0xff]
        %v2720 = vld [vmem:[%s1330 + $0xc4] sm:$0xff]
        %v2721 = vld [vmem:[%s1330 + $0xcc] sm:$0xff]
        %v2722 = vld [vmem:[%s1330 + $0xdc] sm:$0xff]
        %v2723 = vld [vmem:[%s1330 + $0xe4] sm:$0xff]
        %v2724 = vld [vmem:[%s1330 + $0xf4] sm:$0xff]
        %v2725 = vld [vmem:[%s1330 + $0xfc] sm:$0xff]
        %v2726 = vld [vmem:[%s1330 + $0x10c] sm:$0xff]
        %v2727 = vld [vmem:[%s1330 + $0x114] sm:$0xff]
        %v2728 = vld [vmem:[%s1330 + $0x124] sm:$0xff]
        %v2729 = vld [vmem:[%s1330 + $0x12c] sm:$0xff]
        %v2730 = vld [vmem:[%s1330 + $0x13c] sm:$0xff]
        %v2731 = vld [vmem:[%s1330 + $0x144] sm:$0xff]
        %v2732 = vld [vmem:[%s1330 + $0x154] sm:$0xff]
        %v2733 = vld [vmem:[%s1330 + $0x15c] sm:$0xff]
        %v2734 = vld [vmem:[%s1330 + $0x16c] sm:$0xff]
        %v2735 = vld [vmem:[%s1330 + $0x174] sm:$0xff]
        %v2736 = vld [vmem:[%s3 + $0xe] sm:$0x1]
        %v2737 = vperm.slane %v2736, 0
        %v2738 = vmul.f32 %v2704, %v2737
        %v2739 = vmul.f32 %v2705, %v2737
        %v2740 = vmul.f32 %v2706, %v2737
        %v2741 = vmul.f32 %v2707, %v2737
        %v2742 = vmul.f32 %v2708, %v2737
        %v2743 = vmul.f32 %v2709, %v2737
        %v2744 = vmul.f32 %v2710, %v2737
        %v2745 = vmul.f32 %v2711, %v2737
        %v2746 = vmul.f32 %v2712, %v2737
        %v2747 = vmul.f32 %v2713, %v2737
        %v2748 = vmul.f32 %v2714, %v2737
        %v2749 = vmul.f32 %v2715, %v2737
        %v2750 = vmul.f32 %v2716, %v2737
        %v2751 = vmul.f32 %v2717, %v2737
        %v2752 = vmul.f32 %v2718, %v2737
        %v2753 = vmul.f32 %v2719, %v2737
        %v2754 = vmul.f32 %v2720, %v2737
        %v2755 = vmul.f32 %v2721, %v2737
        %v2756 = vmul.f32 %v2722, %v2737
        %v2757 = vmul.f32 %v2723, %v2737
        %v2758 = vmul.f32 %v2724, %v2737
        %v2759 = vmul.f32 %v2725, %v2737
        %v2760 = vmul.f32 %v2726, %v2737
        %v2761 = vmul.f32 %v2727, %v2737
        %v2762 = vmul.f32 %v2728, %v2737
        %v2763 = vmul.f32 %v2729, %v2737
        %v2764 = vmul.f32 %v2730, %v2737
        %v2765 = vmul.f32 %v2731, %v2737
        %v2766 = vmul.f32 %v2732, %v2737
        %v2767 = vmul.f32 %v2733, %v2737
        %v2768 = vmul.f32 %v2734, %v2737
        %v2769 = vmul.f32 %v2735, %v2737
        %v2770 = vadd.f32 %v2672, %v2738
        %v2771 = vadd.f32 %v2673, %v2739
        %v2772 = vadd.f32 %v2674, %v2740
        %v2773 = vadd.f32 %v2675, %v2741
        %v2774 = vadd.f32 %v2676, %v2742
        %v2775 = vadd.f32 %v2677, %v2743
        %v2776 = vadd.f32 %v2678, %v2744
        %v2777 = vadd.f32 %v2679, %v2745
        %v2778 = vadd.f32 %v2680, %v2746
        %v2779 = vadd.f32 %v2681, %v2747
        %v2780 = vadd.f32 %v2682, %v2748
        %v2781 = vadd.f32 %v2683, %v2749
        %v2782 = vadd.f32 %v2684, %v2750
        %v2783 = vadd.f32 %v2685, %v2751
        %v2784 = vadd.f32 %v2686, %v2752
        %v2785 = vadd.f32 %v2687, %v2753
        %v2786 = vadd.f32 %v2688, %v2754
        %v2787 = vadd.f32 %v2689, %v2755
        %v2788 = vadd.f32 %v2690, %v2756
        %v2789 = vadd.f32 %v2691, %v2757
        %v2790 = vadd.f32 %v2692, %v2758
        %v2791 = vadd.f32 %v2693, %v2759
        %v2792 = vadd.f32 %v2694, %v2760
        %v2793 = vadd.f32 %v2695, %v2761
        %v2794 = vadd.f32 %v2696, %v2762
        %v2795 = vadd.f32 %v2697, %v2763
        %v2796 = vadd.f32 %v2698, %v2764
        %v2797 = vadd.f32 %v2699, %v2765
        %v2798 = vadd.f32 %v2700, %v2766
        %v2799 = vadd.f32 %v2701, %v2767
        %v2800 = vadd.f32 %v2702, %v2768
        %v2801 = vadd.f32 %v2703, %v2769
        %s2802 = scalar_lea.vmem [#allocation2], 72
        %v2803 = vld [vmem:[%s2802] sm:$0xff]
        %v2804 = vld [vmem:[%s2802 + $0x8] sm:$0xff]
        %v2805 = vld [vmem:[%s2802 + $0x18] sm:$0xff]
        %v2806 = vld [vmem:[%s2802 + $0x20] sm:$0xff]
        %v2807 = vld [vmem:[%s2802 + $0x30] sm:$0xff]
        %v2808 = vld [vmem:[%s2802 + $0x38] sm:$0xff]
        %v2809 = vld [vmem:[%s2802 + $0x48] sm:$0xff]
        %v2810 = vld [vmem:[%s2802 + $0x50] sm:$0xff]
        %v2811 = vld [vmem:[%s2802 + $0x60] sm:$0xff]
        %v2812 = vld [vmem:[%s2802 + $0x68] sm:$0xff]
        %v2813 = vld [vmem:[%s2802 + $0x78] sm:$0xff]
        %v2814 = vld [vmem:[%s2802 + $0x80] sm:$0xff]
        %v2815 = vld [vmem:[%s2802 + $0x90] sm:$0xff]
        %v2816 = vld [vmem:[%s2802 + $0x98] sm:$0xff]
        %v2817 = vld [vmem:[%s2802 + $0xa8] sm:$0xff]
        %v2818 = vld [vmem:[%s2802 + $0xb0] sm:$0xff]
        %v2819 = vld [vmem:[%s2802 + $0xc0] sm:$0xff]
        %v2820 = vld [vmem:[%s2802 + $0xc8] sm:$0xff]
        %v2821 = vld [vmem:[%s2802 + $0xd8] sm:$0xff]
        %v2822 = vld [vmem:[%s2802 + $0xe0] sm:$0xff]
        %v2823 = vld [vmem:[%s2802 + $0xf0] sm:$0xff]
        %v2824 = vld [vmem:[%s2802 + $0xf8] sm:$0xff]
        %v2825 = vld [vmem:[%s2802 + $0x108] sm:$0xff]
        %v2826 = vld [vmem:[%s2802 + $0x110] sm:$0xff]
        %v2827 = vld [vmem:[%s2802 + $0x120] sm:$0xff]
        %v2828 = vld [vmem:[%s2802 + $0x128] sm:$0xff]
        %v2829 = vld [vmem:[%s2802 + $0x138] sm:$0xff]
        %v2830 = vld [vmem:[%s2802 + $0x140] sm:$0xff]
        %v2831 = vld [vmem:[%s2802 + $0x150] sm:$0xff]
        %v2832 = vld [vmem:[%s2802 + $0x158] sm:$0xff]
        %v2833 = vld [vmem:[%s2802 + $0x168] sm:$0xff]
        %v2834 = vld [vmem:[%s2802 + $0x170] sm:$0xff]
        %v2835 = vld [vmem:[%s3 + $0xf] sm:$0x1]
        %v2836 = vperm.slane %v2835, 0
        %v2837 = vmul.f32 %v2803, %v2836
        %v2838 = vmul.f32 %v2804, %v2836
        %v2839 = vmul.f32 %v2805, %v2836
        %v2840 = vmul.f32 %v2806, %v2836
        %v2841 = vmul.f32 %v2807, %v2836
        %v2842 = vmul.f32 %v2808, %v2836
        %v2843 = vmul.f32 %v2809, %v2836
        %v2844 = vmul.f32 %v2810, %v2836
        %v2845 = vmul.f32 %v2811, %v2836
        %v2846 = vmul.f32 %v2812, %v2836
        %v2847 = vmul.f32 %v2813, %v2836
        %v2848 = vmul.f32 %v2814, %v2836
        %v2849 = vmul.f32 %v2815, %v2836
        %v2850 = vmul.f32 %v2816, %v2836
        %v2851 = vmul.f32 %v2817, %v2836
        %v2852 = vmul.f32 %v2818, %v2836
        %v2853 = vmul.f32 %v2819, %v2836
        %v2854 = vmul.f32 %v2820, %v2836
        %v2855 = vmul.f32 %v2821, %v2836
        %v2856 = vmul.f32 %v2822, %v2836
        %v2857 = vmul.f32 %v2823, %v2836
        %v2858 = vmul.f32 %v2824, %v2836
        %v2859 = vmul.f32 %v2825, %v2836
        %v2860 = vmul.f32 %v2826, %v2836
        %v2861 = vmul.f32 %v2827, %v2836
        %v2862 = vmul.f32 %v2828, %v2836
        %v2863 = vmul.f32 %v2829, %v2836
        %v2864 = vmul.f32 %v2830, %v2836
        %v2865 = vmul.f32 %v2831, %v2836
        %v2866 = vmul.f32 %v2832, %v2836
        %v2867 = vmul.f32 %v2833, %v2836
        %v2868 = vmul.f32 %v2834, %v2836
        %v2869 = vadd.f32 %v2770, %v2837
        %v2870 = vadd.f32 %v2771, %v2838
        %v2871 = vadd.f32 %v2772, %v2839
        %v2872 = vadd.f32 %v2773, %v2840
        %v2873 = vadd.f32 %v2774, %v2841
        %v2874 = vadd.f32 %v2775, %v2842
        %v2875 = vadd.f32 %v2776, %v2843
        %v2876 = vadd.f32 %v2777, %v2844
        %v2877 = vadd.f32 %v2778, %v2845
        %v2878 = vadd.f32 %v2779, %v2846
        %v2879 = vadd.f32 %v2780, %v2847
        %v2880 = vadd.f32 %v2781, %v2848
        %v2881 = vadd.f32 %v2782, %v2849
        %v2882 = vadd.f32 %v2783, %v2850
        %v2883 = vadd.f32 %v2784, %v2851
        %v2884 = vadd.f32 %v2785, %v2852
        %v2885 = vadd.f32 %v2786, %v2853
        %v2886 = vadd.f32 %v2787, %v2854
        %v2887 = vadd.f32 %v2788, %v2855
        %v2888 = vadd.f32 %v2789, %v2856
        %v2889 = vadd.f32 %v2790, %v2857
        %v2890 = vadd.f32 %v2791, %v2858
        %v2891 = vadd.f32 %v2792, %v2859
        %v2892 = vadd.f32 %v2793, %v2860
        %v2893 = vadd.f32 %v2794, %v2861
        %v2894 = vadd.f32 %v2795, %v2862
        %v2895 = vadd.f32 %v2796, %v2863
        %v2896 = vadd.f32 %v2797, %v2864
        %v2897 = vadd.f32 %v2798, %v2865
        %v2898 = vadd.f32 %v2799, %v2866
        %v2899 = vadd.f32 %v2800, %v2867
        %v2900 = vadd.f32 %v2801, %v2868
        %v2901 = vld [vmem:[%s2802 + $0x1] sm:$0xff]
        %v2902 = vld [vmem:[%s2802 + $0x9] sm:$0xff]
        %v2903 = vld [vmem:[%s2802 + $0x19] sm:$0xff]
        %v2904 = vld [vmem:[%s2802 + $0x21] sm:$0xff]
        %v2905 = vld [vmem:[%s2802 + $0x31] sm:$0xff]
        %v2906 = vld [vmem:[%s2802 + $0x39] sm:$0xff]
        %v2907 = vld [vmem:[%s2802 + $0x49] sm:$0xff]
        %v2908 = vld [vmem:[%s2802 + $0x51] sm:$0xff]
        %v2909 = vld [vmem:[%s2802 + $0x61] sm:$0xff]
        %v2910 = vld [vmem:[%s2802 + $0x69] sm:$0xff]
        %v2911 = vld [vmem:[%s2802 + $0x79] sm:$0xff]
        %v2912 = vld [vmem:[%s2802 + $0x81] sm:$0xff]
        %v2913 = vld [vmem:[%s2802 + $0x91] sm:$0xff]
        %v2914 = vld [vmem:[%s2802 + $0x99] sm:$0xff]
        %v2915 = vld [vmem:[%s2802 + $0xa9] sm:$0xff]
        %v2916 = vld [vmem:[%s2802 + $0xb1] sm:$0xff]
        %v2917 = vld [vmem:[%s2802 + $0xc1] sm:$0xff]
        %v2918 = vld [vmem:[%s2802 + $0xc9] sm:$0xff]
        %v2919 = vld [vmem:[%s2802 + $0xd9] sm:$0xff]
        %v2920 = vld [vmem:[%s2802 + $0xe1] sm:$0xff]
        %v2921 = vld [vmem:[%s2802 + $0xf1] sm:$0xff]
        %v2922 = vld [vmem:[%s2802 + $0xf9] sm:$0xff]
        %v2923 = vld [vmem:[%s2802 + $0x109] sm:$0xff]
        %v2924 = vld [vmem:[%s2802 + $0x111] sm:$0xff]
        %v2925 = vld [vmem:[%s2802 + $0x121] sm:$0xff]
        %v2926 = vld [vmem:[%s2802 + $0x129] sm:$0xff]
        %v2927 = vld [vmem:[%s2802 + $0x139] sm:$0xff]
        %v2928 = vld [vmem:[%s2802 + $0x141] sm:$0xff]
        %v2929 = vld [vmem:[%s2802 + $0x151] sm:$0xff]
        %v2930 = vld [vmem:[%s2802 + $0x159] sm:$0xff]
        %v2931 = vld [vmem:[%s2802 + $0x169] sm:$0xff]
        %v2932 = vld [vmem:[%s2802 + $0x171] sm:$0xff]
        %v2933 = vld [vmem:[%s3 + $0x10] sm:$0x1]
        %v2934 = vperm.slane %v2933, 0
        %v2935 = vmul.f32 %v2901, %v2934
        %v2936 = vmul.f32 %v2902, %v2934
        %v2937 = vmul.f32 %v2903, %v2934
        %v2938 = vmul.f32 %v2904, %v2934
        %v2939 = vmul.f32 %v2905, %v2934
        %v2940 = vmul.f32 %v2906, %v2934
        %v2941 = vmul.f32 %v2907, %v2934
        %v2942 = vmul.f32 %v2908, %v2934
        %v2943 = vmul.f32 %v2909, %v2934
        %v2944 = vmul.f32 %v2910, %v2934
        %v2945 = vmul.f32 %v2911, %v2934
        %v2946 = vmul.f32 %v2912, %v2934
        %v2947 = vmul.f32 %v2913, %v2934
        %v2948 = vmul.f32 %v2914, %v2934
        %v2949 = vmul.f32 %v2915, %v2934
        %v2950 = vmul.f32 %v2916, %v2934
        %v2951 = vmul.f32 %v2917, %v2934
        %v2952 = vmul.f32 %v2918, %v2934
        %v2953 = vmul.f32 %v2919, %v2934
        %v2954 = vmul.f32 %v2920, %v2934
        %v2955 = vmul.f32 %v2921, %v2934
        %v2956 = vmul.f32 %v2922, %v2934
        %v2957 = vmul.f32 %v2923, %v2934
        %v2958 = vmul.f32 %v2924, %v2934
        %v2959 = vmul.f32 %v2925, %v2934
        %v2960 = vmul.f32 %v2926, %v2934
        %v2961 = vmul.f32 %v2927, %v2934
        %v2962 = vmul.f32 %v2928, %v2934
        %v2963 = vmul.f32 %v2929, %v2934
        %v2964 = vmul.f32 %v2930, %v2934
        %v2965 = vmul.f32 %v2931, %v2934
        %v2966 = vmul.f32 %v2932, %v2934
        %v2967 = vadd.f32 %v2869, %v2935
        %v2968 = vadd.f32 %v2870, %v2936
        %v2969 = vadd.f32 %v2871, %v2937
        %v2970 = vadd.f32 %v2872, %v2938
        %v2971 = vadd.f32 %v2873, %v2939
        %v2972 = vadd.f32 %v2874, %v2940
        %v2973 = vadd.f32 %v2875, %v2941
        %v2974 = vadd.f32 %v2876, %v2942
        %v2975 = vadd.f32 %v2877, %v2943
        %v2976 = vadd.f32 %v2878, %v2944
        %v2977 = vadd.f32 %v2879, %v2945
        %v2978 = vadd.f32 %v2880, %v2946
        %v2979 = vadd.f32 %v2881, %v2947
        %v2980 = vadd.f32 %v2882, %v2948
        %v2981 = vadd.f32 %v2883, %v2949
        %v2982 = vadd.f32 %v2884, %v2950
        %v2983 = vadd.f32 %v2885, %v2951
        %v2984 = vadd.f32 %v2886, %v2952
        %v2985 = vadd.f32 %v2887, %v2953
        %v2986 = vadd.f32 %v2888, %v2954
        %v2987 = vadd.f32 %v2889, %v2955
        %v2988 = vadd.f32 %v2890, %v2956
        %v2989 = vadd.f32 %v2891, %v2957
        %v2990 = vadd.f32 %v2892, %v2958
        %v2991 = vadd.f32 %v2893, %v2959
        %v2992 = vadd.f32 %v2894, %v2960
        %v2993 = vadd.f32 %v2895, %v2961
        %v2994 = vadd.f32 %v2896, %v2962
        %v2995 = vadd.f32 %v2897, %v2963
        %v2996 = vadd.f32 %v2898, %v2964
        %v2997 = vadd.f32 %v2899, %v2965
        %v2998 = vadd.f32 %v2900, %v2966
        %v2999 = vld [vmem:[%s2802 + $0x2] sm:$0xff]
        %v3000 = vld [vmem:[%s2802 + $0xa] sm:$0xff]
        %v3001 = vld [vmem:[%s2802 + $0x1a] sm:$0xff]
        %v3002 = vld [vmem:[%s2802 + $0x22] sm:$0xff]
        %v3003 = vld [vmem:[%s2802 + $0x32] sm:$0xff]
        %v3004 = vld [vmem:[%s2802 + $0x3a] sm:$0xff]
        %v3005 = vld [vmem:[%s2802 + $0x4a] sm:$0xff]
        %v3006 = vld [vmem:[%s2802 + $0x52] sm:$0xff]
        %v3007 = vld [vmem:[%s2802 + $0x62] sm:$0xff]
        %v3008 = vld [vmem:[%s2802 + $0x6a] sm:$0xff]
        %v3009 = vld [vmem:[%s2802 + $0x7a] sm:$0xff]
        %v3010 = vld [vmem:[%s2802 + $0x82] sm:$0xff]
        %v3011 = vld [vmem:[%s2802 + $0x92] sm:$0xff]
        %v3012 = vld [vmem:[%s2802 + $0x9a] sm:$0xff]
        %v3013 = vld [vmem:[%s2802 + $0xaa] sm:$0xff]
        %v3014 = vld [vmem:[%s2802 + $0xb2] sm:$0xff]
        %v3015 = vld [vmem:[%s2802 + $0xc2] sm:$0xff]
        %v3016 = vld [vmem:[%s2802 + $0xca] sm:$0xff]
        %v3017 = vld [vmem:[%s2802 + $0xda] sm:$0xff]
        %v3018 = vld [vmem:[%s2802 + $0xe2] sm:$0xff]
        %v3019 = vld [vmem:[%s2802 + $0xf2] sm:$0xff]
        %v3020 = vld [vmem:[%s2802 + $0xfa] sm:$0xff]
        %v3021 = vld [vmem:[%s2802 + $0x10a] sm:$0xff]
        %v3022 = vld [vmem:[%s2802 + $0x112] sm:$0xff]
        %v3023 = vld [vmem:[%s2802 + $0x122] sm:$0xff]
        %v3024 = vld [vmem:[%s2802 + $0x12a] sm:$0xff]
        %v3025 = vld [vmem:[%s2802 + $0x13a] sm:$0xff]
        %v3026 = vld [vmem:[%s2802 + $0x142] sm:$0xff]
        %v3027 = vld [vmem:[%s2802 + $0x152] sm:$0xff]
        %v3028 = vld [vmem:[%s2802 + $0x15a] sm:$0xff]
        %v3029 = vld [vmem:[%s2802 + $0x16a] sm:$0xff]
        %v3030 = vld [vmem:[%s2802 + $0x172] sm:$0xff]
        %v3031 = vld [vmem:[%s3 + $0x11] sm:$0x1]
        %v3032 = vperm.slane %v3031, 0
        %v3033 = vmul.f32 %v2999, %v3032
        %v3034 = vmul.f32 %v3000, %v3032
        %v3035 = vmul.f32 %v3001, %v3032
        %v3036 = vmul.f32 %v3002, %v3032
        %v3037 = vmul.f32 %v3003, %v3032
        %v3038 = vmul.f32 %v3004, %v3032
        %v3039 = vmul.f32 %v3005, %v3032
        %v3040 = vmul.f32 %v3006, %v3032
        %v3041 = vmul.f32 %v3007, %v3032
        %v3042 = vmul.f32 %v3008, %v3032
        %v3043 = vmul.f32 %v3009, %v3032
        %v3044 = vmul.f32 %v3010, %v3032
        %v3045 = vmul.f32 %v3011, %v3032
        %v3046 = vmul.f32 %v3012, %v3032
        %v3047 = vmul.f32 %v3013, %v3032
        %v3048 = vmul.f32 %v3014, %v3032
        %v3049 = vmul.f32 %v3015, %v3032
        %v3050 = vmul.f32 %v3016, %v3032
        %v3051 = vmul.f32 %v3017, %v3032
        %v3052 = vmul.f32 %v3018, %v3032
        %v3053 = vmul.f32 %v3019, %v3032
        %v3054 = vmul.f32 %v3020, %v3032
        %v3055 = vmul.f32 %v3021, %v3032
        %v3056 = vmul.f32 %v3022, %v3032
        %v3057 = vmul.f32 %v3023, %v3032
        %v3058 = vmul.f32 %v3024, %v3032
        %v3059 = vmul.f32 %v3025, %v3032
        %v3060 = vmul.f32 %v3026, %v3032
        %v3061 = vmul.f32 %v3027, %v3032
        %v3062 = vmul.f32 %v3028, %v3032
        %v3063 = vmul.f32 %v3029, %v3032
        %v3064 = vmul.f32 %v3030, %v3032
        %v3065 = vadd.f32 %v2967, %v3033
        %v3066 = vadd.f32 %v2968, %v3034
        %v3067 = vadd.f32 %v2969, %v3035
        %v3068 = vadd.f32 %v2970, %v3036
        %v3069 = vadd.f32 %v2971, %v3037
        %v3070 = vadd.f32 %v2972, %v3038
        %v3071 = vadd.f32 %v2973, %v3039
        %v3072 = vadd.f32 %v2974, %v3040
        %v3073 = vadd.f32 %v2975, %v3041
        %v3074 = vadd.f32 %v2976, %v3042
        %v3075 = vadd.f32 %v2977, %v3043
        %v3076 = vadd.f32 %v2978, %v3044
        %v3077 = vadd.f32 %v2979, %v3045
        %v3078 = vadd.f32 %v2980, %v3046
        %v3079 = vadd.f32 %v2981, %v3047
        %v3080 = vadd.f32 %v2982, %v3048
        %v3081 = vadd.f32 %v2983, %v3049
        %v3082 = vadd.f32 %v2984, %v3050
        %v3083 = vadd.f32 %v2985, %v3051
        %v3084 = vadd.f32 %v2986, %v3052
        %v3085 = vadd.f32 %v2987, %v3053
        %v3086 = vadd.f32 %v2988, %v3054
        %v3087 = vadd.f32 %v2989, %v3055
        %v3088 = vadd.f32 %v2990, %v3056
        %v3089 = vadd.f32 %v2991, %v3057
        %v3090 = vadd.f32 %v2992, %v3058
        %v3091 = vadd.f32 %v2993, %v3059
        %v3092 = vadd.f32 %v2994, %v3060
        %v3093 = vadd.f32 %v2995, %v3061
        %v3094 = vadd.f32 %v2996, %v3062
        %v3095 = vadd.f32 %v2997, %v3063
        %v3096 = vadd.f32 %v2998, %v3064
        %v3097 = vld [vmem:[%s2802 + $0x3] sm:$0xff]
        %v3098 = vld [vmem:[%s2802 + $0xb] sm:$0xff]
        %v3099 = vld [vmem:[%s2802 + $0x1b] sm:$0xff]
        %v3100 = vld [vmem:[%s2802 + $0x23] sm:$0xff]
        %v3101 = vld [vmem:[%s2802 + $0x33] sm:$0xff]
        %v3102 = vld [vmem:[%s2802 + $0x3b] sm:$0xff]
        %v3103 = vld [vmem:[%s2802 + $0x4b] sm:$0xff]
        %v3104 = vld [vmem:[%s2802 + $0x53] sm:$0xff]
        %v3105 = vld [vmem:[%s2802 + $0x63] sm:$0xff]
        %v3106 = vld [vmem:[%s2802 + $0x6b] sm:$0xff]
        %v3107 = vld [vmem:[%s2802 + $0x7b] sm:$0xff]
        %v3108 = vld [vmem:[%s2802 + $0x83] sm:$0xff]
        %v3109 = vld [vmem:[%s2802 + $0x93] sm:$0xff]
        %v3110 = vld [vmem:[%s2802 + $0x9b] sm:$0xff]
        %v3111 = vld [vmem:[%s2802 + $0xab] sm:$0xff]
        %v3112 = vld [vmem:[%s2802 + $0xb3] sm:$0xff]
        %v3113 = vld [vmem:[%s2802 + $0xc3] sm:$0xff]
        %v3114 = vld [vmem:[%s2802 + $0xcb] sm:$0xff]
        %v3115 = vld [vmem:[%s2802 + $0xdb] sm:$0xff]
        %v3116 = vld [vmem:[%s2802 + $0xe3] sm:$0xff]
        %v3117 = vld [vmem:[%s2802 + $0xf3] sm:$0xff]
        %v3118 = vld [vmem:[%s2802 + $0xfb] sm:$0xff]
        %v3119 = vld [vmem:[%s2802 + $0x10b] sm:$0xff]
        %v3120 = vld [vmem:[%s2802 + $0x113] sm:$0xff]
        %v3121 = vld [vmem:[%s2802 + $0x123] sm:$0xff]
        %v3122 = vld [vmem:[%s2802 + $0x12b] sm:$0xff]
        %v3123 = vld [vmem:[%s2802 + $0x13b] sm:$0xff]
        %v3124 = vld [vmem:[%s2802 + $0x143] sm:$0xff]
        %v3125 = vld [vmem:[%s2802 + $0x153] sm:$0xff]
        %v3126 = vld [vmem:[%s2802 + $0x15b] sm:$0xff]
        %v3127 = vld [vmem:[%s2802 + $0x16b] sm:$0xff]
        %v3128 = vld [vmem:[%s2802 + $0x173] sm:$0xff]
        %v3129 = vld [vmem:[%s3 + $0x12] sm:$0x1]
        %v3130 = vperm.slane %v3129, 0
        %v3131 = vmul.f32 %v3097, %v3130
        %v3132 = vmul.f32 %v3098, %v3130
        %v3133 = vmul.f32 %v3099, %v3130
        %v3134 = vmul.f32 %v3100, %v3130
        %v3135 = vmul.f32 %v3101, %v3130
        %v3136 = vmul.f32 %v3102, %v3130
        %v3137 = vmul.f32 %v3103, %v3130
        %v3138 = vmul.f32 %v3104, %v3130
        %v3139 = vmul.f32 %v3105, %v3130
        %v3140 = vmul.f32 %v3106, %v3130
        %v3141 = vmul.f32 %v3107, %v3130
        %v3142 = vmul.f32 %v3108, %v3130
        %v3143 = vmul.f32 %v3109, %v3130
        %v3144 = vmul.f32 %v3110, %v3130
        %v3145 = vmul.f32 %v3111, %v3130
        %v3146 = vmul.f32 %v3112, %v3130
        %v3147 = vmul.f32 %v3113, %v3130
        %v3148 = vmul.f32 %v3114, %v3130
        %v3149 = vmul.f32 %v3115, %v3130
        %v3150 = vmul.f32 %v3116, %v3130
        %v3151 = vmul.f32 %v3117, %v3130
        %v3152 = vmul.f32 %v3118, %v3130
        %v3153 = vmul.f32 %v3119, %v3130
        %v3154 = vmul.f32 %v3120, %v3130
        %v3155 = vmul.f32 %v3121, %v3130
        %v3156 = vmul.f32 %v3122, %v3130
        %v3157 = vmul.f32 %v3123, %v3130
        %v3158 = vmul.f32 %v3124, %v3130
        %v3159 = vmul.f32 %v3125, %v3130
        %v3160 = vmul.f32 %v3126, %v3130
        %v3161 = vmul.f32 %v3127, %v3130
        %v3162 = vmul.f32 %v3128, %v3130
        %v3163 = vadd.f32 %v3065, %v3131
        %v3164 = vadd.f32 %v3066, %v3132
        %v3165 = vadd.f32 %v3067, %v3133
        %v3166 = vadd.f32 %v3068, %v3134
        %v3167 = vadd.f32 %v3069, %v3135
        %v3168 = vadd.f32 %v3070, %v3136
        %v3169 = vadd.f32 %v3071, %v3137
        %v3170 = vadd.f32 %v3072, %v3138
        %v3171 = vadd.f32 %v3073, %v3139
        %v3172 = vadd.f32 %v3074, %v3140
        %v3173 = vadd.f32 %v3075, %v3141
        %v3174 = vadd.f32 %v3076, %v3142
        %v3175 = vadd.f32 %v3077, %v3143
        %v3176 = vadd.f32 %v3078, %v3144
        %v3177 = vadd.f32 %v3079, %v3145
        %v3178 = vadd.f32 %v3080, %v3146
        %v3179 = vadd.f32 %v3081, %v3147
        %v3180 = vadd.f32 %v3082, %v3148
        %v3181 = vadd.f32 %v3083, %v3149
        %v3182 = vadd.f32 %v3084, %v3150
        %v3183 = vadd.f32 %v3085, %v3151
        %v3184 = vadd.f32 %v3086, %v3152
        %v3185 = vadd.f32 %v3087, %v3153
        %v3186 = vadd.f32 %v3088, %v3154
        %v3187 = vadd.f32 %v3089, %v3155
        %v3188 = vadd.f32 %v3090, %v3156
        %v3189 = vadd.f32 %v3091, %v3157
        %v3190 = vadd.f32 %v3092, %v3158
        %v3191 = vadd.f32 %v3093, %v3159
        %v3192 = vadd.f32 %v3094, %v3160
        %v3193 = vadd.f32 %v3095, %v3161
        %v3194 = vadd.f32 %v3096, %v3162
        %v3195 = vld [vmem:[%s2802 + $0x4] sm:$0xff]
        %v3196 = vld [vmem:[%s2802 + $0xc] sm:$0xff]
        %v3197 = vld [vmem:[%s2802 + $0x1c] sm:$0xff]
        %v3198 = vld [vmem:[%s2802 + $0x24] sm:$0xff]
        %v3199 = vld [vmem:[%s2802 + $0x34] sm:$0xff]
        %v3200 = vld [vmem:[%s2802 + $0x3c] sm:$0xff]
        %v3201 = vld [vmem:[%s2802 + $0x4c] sm:$0xff]
        %v3202 = vld [vmem:[%s2802 + $0x54] sm:$0xff]
        %v3203 = vld [vmem:[%s2802 + $0x64] sm:$0xff]
        %v3204 = vld [vmem:[%s2802 + $0x6c] sm:$0xff]
        %v3205 = vld [vmem:[%s2802 + $0x7c] sm:$0xff]
        %v3206 = vld [vmem:[%s2802 + $0x84] sm:$0xff]
        %v3207 = vld [vmem:[%s2802 + $0x94] sm:$0xff]
        %v3208 = vld [vmem:[%s2802 + $0x9c] sm:$0xff]
        %v3209 = vld [vmem:[%s2802 + $0xac] sm:$0xff]
        %v3210 = vld [vmem:[%s2802 + $0xb4] sm:$0xff]
        %v3211 = vld [vmem:[%s2802 + $0xc4] sm:$0xff]
        %v3212 = vld [vmem:[%s2802 + $0xcc] sm:$0xff]
        %v3213 = vld [vmem:[%s2802 + $0xdc] sm:$0xff]
        %v3214 = vld [vmem:[%s2802 + $0xe4] sm:$0xff]
        %v3215 = vld [vmem:[%s2802 + $0xf4] sm:$0xff]
        %v3216 = vld [vmem:[%s2802 + $0xfc] sm:$0xff]
        %v3217 = vld [vmem:[%s2802 + $0x10c] sm:$0xff]
        %v3218 = vld [vmem:[%s2802 + $0x114] sm:$0xff]
        %v3219 = vld [vmem:[%s2802 + $0x124] sm:$0xff]
        %v3220 = vld [vmem:[%s2802 + $0x12c] sm:$0xff]
        %v3221 = vld [vmem:[%s2802 + $0x13c] sm:$0xff]
        %v3222 = vld [vmem:[%s2802 + $0x144] sm:$0xff]
        %v3223 = vld [vmem:[%s2802 + $0x154] sm:$0xff]
        %v3224 = vld [vmem:[%s2802 + $0x15c] sm:$0xff]
        %v3225 = vld [vmem:[%s2802 + $0x16c] sm:$0xff]
        %v3226 = vld [vmem:[%s2802 + $0x174] sm:$0xff]
        %v3227 = vld [vmem:[%s3 + $0x13] sm:$0x1]
        %v3228 = vperm.slane %v3227, 0
        %v3229 = vmul.f32 %v3195, %v3228
        %v3230 = vmul.f32 %v3196, %v3228
        %v3231 = vmul.f32 %v3197, %v3228
        %v3232 = vmul.f32 %v3198, %v3228
        %v3233 = vmul.f32 %v3199, %v3228
        %v3234 = vmul.f32 %v3200, %v3228
        %v3235 = vmul.f32 %v3201, %v3228
        %v3236 = vmul.f32 %v3202, %v3228
        %v3237 = vmul.f32 %v3203, %v3228
        %v3238 = vmul.f32 %v3204, %v3228
        %v3239 = vmul.f32 %v3205, %v3228
        %v3240 = vmul.f32 %v3206, %v3228
        %v3241 = vmul.f32 %v3207, %v3228
        %v3242 = vmul.f32 %v3208, %v3228
        %v3243 = vmul.f32 %v3209, %v3228
        %v3244 = vmul.f32 %v3210, %v3228
        %v3245 = vmul.f32 %v3211, %v3228
        %v3246 = vmul.f32 %v3212, %v3228
        %v3247 = vmul.f32 %v3213, %v3228
        %v3248 = vmul.f32 %v3214, %v3228
        %v3249 = vmul.f32 %v3215, %v3228
        %v3250 = vmul.f32 %v3216, %v3228
        %v3251 = vmul.f32 %v3217, %v3228
        %v3252 = vmul.f32 %v3218, %v3228
        %v3253 = vmul.f32 %v3219, %v3228
        %v3254 = vmul.f32 %v3220, %v3228
        %v3255 = vmul.f32 %v3221, %v3228
        %v3256 = vmul.f32 %v3222, %v3228
        %v3257 = vmul.f32 %v3223, %v3228
        %v3258 = vmul.f32 %v3224, %v3228
        %v3259 = vmul.f32 %v3225, %v3228
        %v3260 = vmul.f32 %v3226, %v3228
        %v3261 = vadd.f32 %v3163, %v3229
        %v3262 = vadd.f32 %v3164, %v3230
        %v3263 = vadd.f32 %v3165, %v3231
        %v3264 = vadd.f32 %v3166, %v3232
        %v3265 = vadd.f32 %v3167, %v3233
        %v3266 = vadd.f32 %v3168, %v3234
        %v3267 = vadd.f32 %v3169, %v3235
        %v3268 = vadd.f32 %v3170, %v3236
        %v3269 = vadd.f32 %v3171, %v3237
        %v3270 = vadd.f32 %v3172, %v3238
        %v3271 = vadd.f32 %v3173, %v3239
        %v3272 = vadd.f32 %v3174, %v3240
        %v3273 = vadd.f32 %v3175, %v3241
        %v3274 = vadd.f32 %v3176, %v3242
        %v3275 = vadd.f32 %v3177, %v3243
        %v3276 = vadd.f32 %v3178, %v3244
        %v3277 = vadd.f32 %v3179, %v3245
        %v3278 = vadd.f32 %v3180, %v3246
        %v3279 = vadd.f32 %v3181, %v3247
        %v3280 = vadd.f32 %v3182, %v3248
        %v3281 = vadd.f32 %v3183, %v3249
        %v3282 = vadd.f32 %v3184, %v3250
        %v3283 = vadd.f32 %v3185, %v3251
        %v3284 = vadd.f32 %v3186, %v3252
        %v3285 = vadd.f32 %v3187, %v3253
        %v3286 = vadd.f32 %v3188, %v3254
        %v3287 = vadd.f32 %v3189, %v3255
        %v3288 = vadd.f32 %v3190, %v3256
        %v3289 = vadd.f32 %v3191, %v3257
        %v3290 = vadd.f32 %v3192, %v3258
        %v3291 = vadd.f32 %v3193, %v3259
        %v3292 = vadd.f32 %v3194, %v3260
        %s3293 = scalar_lea.vmem [#allocation2], 96
        %v3294 = vld [vmem:[%s3293] sm:$0xff]
        %v3295 = vld [vmem:[%s3293 + $0x8] sm:$0xff]
        %v3296 = vld [vmem:[%s3293 + $0x18] sm:$0xff]
        %v3297 = vld [vmem:[%s3293 + $0x20] sm:$0xff]
        %v3298 = vld [vmem:[%s3293 + $0x30] sm:$0xff]
        %v3299 = vld [vmem:[%s3293 + $0x38] sm:$0xff]
        %v3300 = vld [vmem:[%s3293 + $0x48] sm:$0xff]
        %v3301 = vld [vmem:[%s3293 + $0x50] sm:$0xff]
        %v3302 = vld [vmem:[%s3293 + $0x60] sm:$0xff]
        %v3303 = vld [vmem:[%s3293 + $0x68] sm:$0xff]
        %v3304 = vld [vmem:[%s3293 + $0x78] sm:$0xff]
        %v3305 = vld [vmem:[%s3293 + $0x80] sm:$0xff]
        %v3306 = vld [vmem:[%s3293 + $0x90] sm:$0xff]
        %v3307 = vld [vmem:[%s3293 + $0x98] sm:$0xff]
        %v3308 = vld [vmem:[%s3293 + $0xa8] sm:$0xff]
        %v3309 = vld [vmem:[%s3293 + $0xb0] sm:$0xff]
        %v3310 = vld [vmem:[%s3293 + $0xc0] sm:$0xff]
        %v3311 = vld [vmem:[%s3293 + $0xc8] sm:$0xff]
        %v3312 = vld [vmem:[%s3293 + $0xd8] sm:$0xff]
        %v3313 = vld [vmem:[%s3293 + $0xe0] sm:$0xff]
        %v3314 = vld [vmem:[%s3293 + $0xf0] sm:$0xff]
        %v3315 = vld [vmem:[%s3293 + $0xf8] sm:$0xff]
        %v3316 = vld [vmem:[%s3293 + $0x108] sm:$0xff]
        %v3317 = vld [vmem:[%s3293 + $0x110] sm:$0xff]
        %v3318 = vld [vmem:[%s3293 + $0x120] sm:$0xff]
        %v3319 = vld [vmem:[%s3293 + $0x128] sm:$0xff]
        %v3320 = vld [vmem:[%s3293 + $0x138] sm:$0xff]
        %v3321 = vld [vmem:[%s3293 + $0x140] sm:$0xff]
        %v3322 = vld [vmem:[%s3293 + $0x150] sm:$0xff]
        %v3323 = vld [vmem:[%s3293 + $0x158] sm:$0xff]
        %v3324 = vld [vmem:[%s3293 + $0x168] sm:$0xff]
        %v3325 = vld [vmem:[%s3293 + $0x170] sm:$0xff]
        %v3326 = vld [vmem:[%s3 + $0x14] sm:$0x1]
        %v3327 = vperm.slane %v3326, 0
        %v3328 = vmul.f32 %v3294, %v3327
        %v3329 = vmul.f32 %v3295, %v3327
        %v3330 = vmul.f32 %v3296, %v3327
        %v3331 = vmul.f32 %v3297, %v3327
        %v3332 = vmul.f32 %v3298, %v3327
        %v3333 = vmul.f32 %v3299, %v3327
        %v3334 = vmul.f32 %v3300, %v3327
        %v3335 = vmul.f32 %v3301, %v3327
        %v3336 = vmul.f32 %v3302, %v3327
        %v3337 = vmul.f32 %v3303, %v3327
        %v3338 = vmul.f32 %v3304, %v3327
        %v3339 = vmul.f32 %v3305, %v3327
        %v3340 = vmul.f32 %v3306, %v3327
        %v3341 = vmul.f32 %v3307, %v3327
        %v3342 = vmul.f32 %v3308, %v3327
        %v3343 = vmul.f32 %v3309, %v3327
        %v3344 = vmul.f32 %v3310, %v3327
        %v3345 = vmul.f32 %v3311, %v3327
        %v3346 = vmul.f32 %v3312, %v3327
        %v3347 = vmul.f32 %v3313, %v3327
        %v3348 = vmul.f32 %v3314, %v3327
        %v3349 = vmul.f32 %v3315, %v3327
        %v3350 = vmul.f32 %v3316, %v3327
        %v3351 = vmul.f32 %v3317, %v3327
        %v3352 = vmul.f32 %v3318, %v3327
        %v3353 = vmul.f32 %v3319, %v3327
        %v3354 = vmul.f32 %v3320, %v3327
        %v3355 = vmul.f32 %v3321, %v3327
        %v3356 = vmul.f32 %v3322, %v3327
        %v3357 = vmul.f32 %v3323, %v3327
        %v3358 = vmul.f32 %v3324, %v3327
        %v3359 = vmul.f32 %v3325, %v3327
        %v3360 = vadd.f32 %v3261, %v3328
        %v3361 = vadd.f32 %v3262, %v3329
        %v3362 = vadd.f32 %v3263, %v3330
        %v3363 = vadd.f32 %v3264, %v3331
        %v3364 = vadd.f32 %v3265, %v3332
        %v3365 = vadd.f32 %v3266, %v3333
        %v3366 = vadd.f32 %v3267, %v3334
        %v3367 = vadd.f32 %v3268, %v3335
        %v3368 = vadd.f32 %v3269, %v3336
        %v3369 = vadd.f32 %v3270, %v3337
        %v3370 = vadd.f32 %v3271, %v3338
        %v3371 = vadd.f32 %v3272, %v3339
        %v3372 = vadd.f32 %v3273, %v3340
        %v3373 = vadd.f32 %v3274, %v3341
        %v3374 = vadd.f32 %v3275, %v3342
        %v3375 = vadd.f32 %v3276, %v3343
        %v3376 = vadd.f32 %v3277, %v3344
        %v3377 = vadd.f32 %v3278, %v3345
        %v3378 = vadd.f32 %v3279, %v3346
        %v3379 = vadd.f32 %v3280, %v3347
        %v3380 = vadd.f32 %v3281, %v3348
        %v3381 = vadd.f32 %v3282, %v3349
        %v3382 = vadd.f32 %v3283, %v3350
        %v3383 = vadd.f32 %v3284, %v3351
        %v3384 = vadd.f32 %v3285, %v3352
        %v3385 = vadd.f32 %v3286, %v3353
        %v3386 = vadd.f32 %v3287, %v3354
        %v3387 = vadd.f32 %v3288, %v3355
        %v3388 = vadd.f32 %v3289, %v3356
        %v3389 = vadd.f32 %v3290, %v3357
        %v3390 = vadd.f32 %v3291, %v3358
        %v3391 = vadd.f32 %v3292, %v3359
        %v3392 = vld [vmem:[%s3293 + $0x1] sm:$0xff]
        %v3393 = vld [vmem:[%s3293 + $0x9] sm:$0xff]
        %v3394 = vld [vmem:[%s3293 + $0x19] sm:$0xff]
        %v3395 = vld [vmem:[%s3293 + $0x21] sm:$0xff]
        %v3396 = vld [vmem:[%s3293 + $0x31] sm:$0xff]
        %v3397 = vld [vmem:[%s3293 + $0x39] sm:$0xff]
        %v3398 = vld [vmem:[%s3293 + $0x49] sm:$0xff]
        %v3399 = vld [vmem:[%s3293 + $0x51] sm:$0xff]
        %v3400 = vld [vmem:[%s3293 + $0x61] sm:$0xff]
        %v3401 = vld [vmem:[%s3293 + $0x69] sm:$0xff]
        %v3402 = vld [vmem:[%s3293 + $0x79] sm:$0xff]
        %v3403 = vld [vmem:[%s3293 + $0x81] sm:$0xff]
        %v3404 = vld [vmem:[%s3293 + $0x91] sm:$0xff]
        %v3405 = vld [vmem:[%s3293 + $0x99] sm:$0xff]
        %v3406 = vld [vmem:[%s3293 + $0xa9] sm:$0xff]
        %v3407 = vld [vmem:[%s3293 + $0xb1] sm:$0xff]
        %v3408 = vld [vmem:[%s3293 + $0xc1] sm:$0xff]
        %v3409 = vld [vmem:[%s3293 + $0xc9] sm:$0xff]
        %v3410 = vld [vmem:[%s3293 + $0xd9] sm:$0xff]
        %v3411 = vld [vmem:[%s3293 + $0xe1] sm:$0xff]
        %v3412 = vld [vmem:[%s3293 + $0xf1] sm:$0xff]
        %v3413 = vld [vmem:[%s3293 + $0xf9] sm:$0xff]
        %v3414 = vld [vmem:[%s3293 + $0x109] sm:$0xff]
        %v3415 = vld [vmem:[%s3293 + $0x111] sm:$0xff]
        %v3416 = vld [vmem:[%s3293 + $0x121] sm:$0xff]
        %v3417 = vld [vmem:[%s3293 + $0x129] sm:$0xff]
        %v3418 = vld [vmem:[%s3293 + $0x139] sm:$0xff]
        %v3419 = vld [vmem:[%s3293 + $0x141] sm:$0xff]
        %v3420 = vld [vmem:[%s3293 + $0x151] sm:$0xff]
        %v3421 = vld [vmem:[%s3293 + $0x159] sm:$0xff]
        %v3422 = vld [vmem:[%s3293 + $0x169] sm:$0xff]
        %v3423 = vld [vmem:[%s3293 + $0x171] sm:$0xff]
        %v3424 = vld [vmem:[%s3 + $0x15] sm:$0x1]
        %v3425 = vperm.slane %v3424, 0
        %v3426 = vmul.f32 %v3392, %v3425
        %v3427 = vmul.f32 %v3393, %v3425
        %v3428 = vmul.f32 %v3394, %v3425
        %v3429 = vmul.f32 %v3395, %v3425
        %v3430 = vmul.f32 %v3396, %v3425
        %v3431 = vmul.f32 %v3397, %v3425
        %v3432 = vmul.f32 %v3398, %v3425
        %v3433 = vmul.f32 %v3399, %v3425
        %v3434 = vmul.f32 %v3400, %v3425
        %v3435 = vmul.f32 %v3401, %v3425
        %v3436 = vmul.f32 %v3402, %v3425
        %v3437 = vmul.f32 %v3403, %v3425
        %v3438 = vmul.f32 %v3404, %v3425
        %v3439 = vmul.f32 %v3405, %v3425
        %v3440 = vmul.f32 %v3406, %v3425
        %v3441 = vmul.f32 %v3407, %v3425
        %v3442 = vmul.f32 %v3408, %v3425
        %v3443 = vmul.f32 %v3409, %v3425
        %v3444 = vmul.f32 %v3410, %v3425
        %v3445 = vmul.f32 %v3411, %v3425
        %v3446 = vmul.f32 %v3412, %v3425
        %v3447 = vmul.f32 %v3413, %v3425
        %v3448 = vmul.f32 %v3414, %v3425
        %v3449 = vmul.f32 %v3415, %v3425
        %v3450 = vmul.f32 %v3416, %v3425
        %v3451 = vmul.f32 %v3417, %v3425
        %v3452 = vmul.f32 %v3418, %v3425
        %v3453 = vmul.f32 %v3419, %v3425
        %v3454 = vmul.f32 %v3420, %v3425
        %v3455 = vmul.f32 %v3421, %v3425
        %v3456 = vmul.f32 %v3422, %v3425
        %v3457 = vmul.f32 %v3423, %v3425
        %v3458 = vadd.f32 %v3360, %v3426
        %v3459 = vadd.f32 %v3361, %v3427
        %v3460 = vadd.f32 %v3362, %v3428
        %v3461 = vadd.f32 %v3363, %v3429
        %v3462 = vadd.f32 %v3364, %v3430
        %v3463 = vadd.f32 %v3365, %v3431
        %v3464 = vadd.f32 %v3366, %v3432
        %v3465 = vadd.f32 %v3367, %v3433
        %v3466 = vadd.f32 %v3368, %v3434
        %v3467 = vadd.f32 %v3369, %v3435
        %v3468 = vadd.f32 %v3370, %v3436
        %v3469 = vadd.f32 %v3371, %v3437
        %v3470 = vadd.f32 %v3372, %v3438
        %v3471 = vadd.f32 %v3373, %v3439
        %v3472 = vadd.f32 %v3374, %v3440
        %v3473 = vadd.f32 %v3375, %v3441
        %v3474 = vadd.f32 %v3376, %v3442
        %v3475 = vadd.f32 %v3377, %v3443
        %v3476 = vadd.f32 %v3378, %v3444
        %v3477 = vadd.f32 %v3379, %v3445
        %v3478 = vadd.f32 %v3380, %v3446
        %v3479 = vadd.f32 %v3381, %v3447
        %v3480 = vadd.f32 %v3382, %v3448
        %v3481 = vadd.f32 %v3383, %v3449
        %v3482 = vadd.f32 %v3384, %v3450
        %v3483 = vadd.f32 %v3385, %v3451
        %v3484 = vadd.f32 %v3386, %v3452
        %v3485 = vadd.f32 %v3387, %v3453
        %v3486 = vadd.f32 %v3388, %v3454
        %v3487 = vadd.f32 %v3389, %v3455
        %v3488 = vadd.f32 %v3390, %v3456
        %v3489 = vadd.f32 %v3391, %v3457
        %v3490 = vld [vmem:[%s3293 + $0x2] sm:$0xff]
        %v3491 = vld [vmem:[%s3293 + $0xa] sm:$0xff]
        %v3492 = vld [vmem:[%s3293 + $0x1a] sm:$0xff]
        %v3493 = vld [vmem:[%s3293 + $0x22] sm:$0xff]
        %v3494 = vld [vmem:[%s3293 + $0x32] sm:$0xff]
        %v3495 = vld [vmem:[%s3293 + $0x3a] sm:$0xff]
        %v3496 = vld [vmem:[%s3293 + $0x4a] sm:$0xff]
        %v3497 = vld [vmem:[%s3293 + $0x52] sm:$0xff]
        %v3498 = vld [vmem:[%s3293 + $0x62] sm:$0xff]
        %v3499 = vld [vmem:[%s3293 + $0x6a] sm:$0xff]
        %v3500 = vld [vmem:[%s3293 + $0x7a] sm:$0xff]
        %v3501 = vld [vmem:[%s3293 + $0x82] sm:$0xff]
        %v3502 = vld [vmem:[%s3293 + $0x92] sm:$0xff]
        %v3503 = vld [vmem:[%s3293 + $0x9a] sm:$0xff]
        %v3504 = vld [vmem:[%s3293 + $0xaa] sm:$0xff]
        %v3505 = vld [vmem:[%s3293 + $0xb2] sm:$0xff]
        %v3506 = vld [vmem:[%s3293 + $0xc2] sm:$0xff]
        %v3507 = vld [vmem:[%s3293 + $0xca] sm:$0xff]
        %v3508 = vld [vmem:[%s3293 + $0xda] sm:$0xff]
        %v3509 = vld [vmem:[%s3293 + $0xe2] sm:$0xff]
        %v3510 = vld [vmem:[%s3293 + $0xf2] sm:$0xff]
        %v3511 = vld [vmem:[%s3293 + $0xfa] sm:$0xff]
        %v3512 = vld [vmem:[%s3293 + $0x10a] sm:$0xff]
        %v3513 = vld [vmem:[%s3293 + $0x112] sm:$0xff]
        %v3514 = vld [vmem:[%s3293 + $0x122] sm:$0xff]
        %v3515 = vld [vmem:[%s3293 + $0x12a] sm:$0xff]
        %v3516 = vld [vmem:[%s3293 + $0x13a] sm:$0xff]
        %v3517 = vld [vmem:[%s3293 + $0x142] sm:$0xff]
        %v3518 = vld [vmem:[%s3293 + $0x152] sm:$0xff]
        %v3519 = vld [vmem:[%s3293 + $0x15a] sm:$0xff]
        %v3520 = vld [vmem:[%s3293 + $0x16a] sm:$0xff]
        %v3521 = vld [vmem:[%s3293 + $0x172] sm:$0xff]
        %v3522 = vld [vmem:[%s3 + $0x16] sm:$0x1]
        %v3523 = vperm.slane %v3522, 0
        %v3524 = vmul.f32 %v3490, %v3523
        %v3525 = vmul.f32 %v3491, %v3523
        %v3526 = vmul.f32 %v3492, %v3523
        %v3527 = vmul.f32 %v3493, %v3523
        %v3528 = vmul.f32 %v3494, %v3523
        %v3529 = vmul.f32 %v3495, %v3523
        %v3530 = vmul.f32 %v3496, %v3523
        %v3531 = vmul.f32 %v3497, %v3523
        %v3532 = vmul.f32 %v3498, %v3523
        %v3533 = vmul.f32 %v3499, %v3523
        %v3534 = vmul.f32 %v3500, %v3523
        %v3535 = vmul.f32 %v3501, %v3523
        %v3536 = vmul.f32 %v3502, %v3523
        %v3537 = vmul.f32 %v3503, %v3523
        %v3538 = vmul.f32 %v3504, %v3523
        %v3539 = vmul.f32 %v3505, %v3523
        %v3540 = vmul.f32 %v3506, %v3523
        %v3541 = vmul.f32 %v3507, %v3523
        %v3542 = vmul.f32 %v3508, %v3523
        %v3543 = vmul.f32 %v3509, %v3523
        %v3544 = vmul.f32 %v3510, %v3523
        %v3545 = vmul.f32 %v3511, %v3523
        %v3546 = vmul.f32 %v3512, %v3523
        %v3547 = vmul.f32 %v3513, %v3523
        %v3548 = vmul.f32 %v3514, %v3523
        %v3549 = vmul.f32 %v3515, %v3523
        %v3550 = vmul.f32 %v3516, %v3523
        %v3551 = vmul.f32 %v3517, %v3523
        %v3552 = vmul.f32 %v3518, %v3523
        %v3553 = vmul.f32 %v3519, %v3523
        %v3554 = vmul.f32 %v3520, %v3523
        %v3555 = vmul.f32 %v3521, %v3523
        %v3556 = vadd.f32 %v3458, %v3524
        %v3557 = vadd.f32 %v3459, %v3525
        %v3558 = vadd.f32 %v3460, %v3526
        %v3559 = vadd.f32 %v3461, %v3527
        %v3560 = vadd.f32 %v3462, %v3528
        %v3561 = vadd.f32 %v3463, %v3529
        %v3562 = vadd.f32 %v3464, %v3530
        %v3563 = vadd.f32 %v3465, %v3531
        %v3564 = vadd.f32 %v3466, %v3532
        %v3565 = vadd.f32 %v3467, %v3533
        %v3566 = vadd.f32 %v3468, %v3534
        %v3567 = vadd.f32 %v3469, %v3535
        %v3568 = vadd.f32 %v3470, %v3536
        %v3569 = vadd.f32 %v3471, %v3537
        %v3570 = vadd.f32 %v3472, %v3538
        %v3571 = vadd.f32 %v3473, %v3539
        %v3572 = vadd.f32 %v3474, %v3540
        %v3573 = vadd.f32 %v3475, %v3541
        %v3574 = vadd.f32 %v3476, %v3542
        %v3575 = vadd.f32 %v3477, %v3543
        %v3576 = vadd.f32 %v3478, %v3544
        %v3577 = vadd.f32 %v3479, %v3545
        %v3578 = vadd.f32 %v3480, %v3546
        %v3579 = vadd.f32 %v3481, %v3547
        %v3580 = vadd.f32 %v3482, %v3548
        %v3581 = vadd.f32 %v3483, %v3549
        %v3582 = vadd.f32 %v3484, %v3550
        %v3583 = vadd.f32 %v3485, %v3551
        %v3584 = vadd.f32 %v3486, %v3552
        %v3585 = vadd.f32 %v3487, %v3553
        %v3586 = vadd.f32 %v3488, %v3554
        %v3587 = vadd.f32 %v3489, %v3555
        %v3588 = vld [vmem:[%s3293 + $0x3] sm:$0xff]
        %v3589 = vld [vmem:[%s3293 + $0xb] sm:$0xff]
        %v3590 = vld [vmem:[%s3293 + $0x1b] sm:$0xff]
        %v3591 = vld [vmem:[%s3293 + $0x23] sm:$0xff]
        %v3592 = vld [vmem:[%s3293 + $0x33] sm:$0xff]
        %v3593 = vld [vmem:[%s3293 + $0x3b] sm:$0xff]
        %v3594 = vld [vmem:[%s3293 + $0x4b] sm:$0xff]
        %v3595 = vld [vmem:[%s3293 + $0x53] sm:$0xff]
        %v3596 = vld [vmem:[%s3293 + $0x63] sm:$0xff]
        %v3597 = vld [vmem:[%s3293 + $0x6b] sm:$0xff]
        %v3598 = vld [vmem:[%s3293 + $0x7b] sm:$0xff]
        %v3599 = vld [vmem:[%s3293 + $0x83] sm:$0xff]
        %v3600 = vld [vmem:[%s3293 + $0x93] sm:$0xff]
        %v3601 = vld [vmem:[%s3293 + $0x9b] sm:$0xff]
        %v3602 = vld [vmem:[%s3293 + $0xab] sm:$0xff]
        %v3603 = vld [vmem:[%s3293 + $0xb3] sm:$0xff]
        %v3604 = vld [vmem:[%s3293 + $0xc3] sm:$0xff]
        %v3605 = vld [vmem:[%s3293 + $0xcb] sm:$0xff]
        %v3606 = vld [vmem:[%s3293 + $0xdb] sm:$0xff]
        %v3607 = vld [vmem:[%s3293 + $0xe3] sm:$0xff]
        %v3608 = vld [vmem:[%s3293 + $0xf3] sm:$0xff]
        %v3609 = vld [vmem:[%s3293 + $0xfb] sm:$0xff]
        %v3610 = vld [vmem:[%s3293 + $0x10b] sm:$0xff]
        %v3611 = vld [vmem:[%s3293 + $0x113] sm:$0xff]
        %v3612 = vld [vmem:[%s3293 + $0x123] sm:$0xff]
        %v3613 = vld [vmem:[%s3293 + $0x12b] sm:$0xff]
        %v3614 = vld [vmem:[%s3293 + $0x13b] sm:$0xff]
        %v3615 = vld [vmem:[%s3293 + $0x143] sm:$0xff]
        %v3616 = vld [vmem:[%s3293 + $0x153] sm:$0xff]
        %v3617 = vld [vmem:[%s3293 + $0x15b] sm:$0xff]
        %v3618 = vld [vmem:[%s3293 + $0x16b] sm:$0xff]
        %v3619 = vld [vmem:[%s3293 + $0x173] sm:$0xff]
        %v3620 = vld [vmem:[%s3 + $0x17] sm:$0x1]
        %v3621 = vperm.slane %v3620, 0
        %v3622 = vmul.f32 %v3588, %v3621
        %v3623 = vmul.f32 %v3589, %v3621
        %v3624 = vmul.f32 %v3590, %v3621
        %v3625 = vmul.f32 %v3591, %v3621
        %v3626 = vmul.f32 %v3592, %v3621
        %v3627 = vmul.f32 %v3593, %v3621
        %v3628 = vmul.f32 %v3594, %v3621
        %v3629 = vmul.f32 %v3595, %v3621
        %v3630 = vmul.f32 %v3596, %v3621
        %v3631 = vmul.f32 %v3597, %v3621
        %v3632 = vmul.f32 %v3598, %v3621
        %v3633 = vmul.f32 %v3599, %v3621
        %v3634 = vmul.f32 %v3600, %v3621
        %v3635 = vmul.f32 %v3601, %v3621
        %v3636 = vmul.f32 %v3602, %v3621
        %v3637 = vmul.f32 %v3603, %v3621
        %v3638 = vmul.f32 %v3604, %v3621
        %v3639 = vmul.f32 %v3605, %v3621
        %v3640 = vmul.f32 %v3606, %v3621
        %v3641 = vmul.f32 %v3607, %v3621
        %v3642 = vmul.f32 %v3608, %v3621
        %v3643 = vmul.f32 %v3609, %v3621
        %v3644 = vmul.f32 %v3610, %v3621
        %v3645 = vmul.f32 %v3611, %v3621
        %v3646 = vmul.f32 %v3612, %v3621
        %v3647 = vmul.f32 %v3613, %v3621
        %v3648 = vmul.f32 %v3614, %v3621
        %v3649 = vmul.f32 %v3615, %v3621
        %v3650 = vmul.f32 %v3616, %v3621
        %v3651 = vmul.f32 %v3617, %v3621
        %v3652 = vmul.f32 %v3618, %v3621
        %v3653 = vmul.f32 %v3619, %v3621
        %v3654 = vadd.f32 %v3556, %v3622
        %v3655 = vadd.f32 %v3557, %v3623
        %v3656 = vadd.f32 %v3558, %v3624
        %v3657 = vadd.f32 %v3559, %v3625
        %v3658 = vadd.f32 %v3560, %v3626
        %v3659 = vadd.f32 %v3561, %v3627
        %v3660 = vadd.f32 %v3562, %v3628
        %v3661 = vadd.f32 %v3563, %v3629
        %v3662 = vadd.f32 %v3564, %v3630
        %v3663 = vadd.f32 %v3565, %v3631
        %v3664 = vadd.f32 %v3566, %v3632
        %v3665 = vadd.f32 %v3567, %v3633
        %v3666 = vadd.f32 %v3568, %v3634
        %v3667 = vadd.f32 %v3569, %v3635
        %v3668 = vadd.f32 %v3570, %v3636
        %v3669 = vadd.f32 %v3571, %v3637
        %v3670 = vadd.f32 %v3572, %v3638
        %v3671 = vadd.f32 %v3573, %v3639
        %v3672 = vadd.f32 %v3574, %v3640
        %v3673 = vadd.f32 %v3575, %v3641
        %v3674 = vadd.f32 %v3576, %v3642
        %v3675 = vadd.f32 %v3577, %v3643
        %v3676 = vadd.f32 %v3578, %v3644
        %v3677 = vadd.f32 %v3579, %v3645
        %v3678 = vadd.f32 %v3580, %v3646
        %v3679 = vadd.f32 %v3581, %v3647
        %v3680 = vadd.f32 %v3582, %v3648
        %v3681 = vadd.f32 %v3583, %v3649
        %v3682 = vadd.f32 %v3584, %v3650
        %v3683 = vadd.f32 %v3585, %v3651
        %v3684 = vadd.f32 %v3586, %v3652
        %v3685 = vadd.f32 %v3587, %v3653
        %v3686 = vld [vmem:[%s3293 + $0x4] sm:$0xff]
        %v3687 = vld [vmem:[%s3293 + $0xc] sm:$0xff]
        %v3688 = vld [vmem:[%s3293 + $0x1c] sm:$0xff]
        %v3689 = vld [vmem:[%s3293 + $0x24] sm:$0xff]
        %v3690 = vld [vmem:[%s3293 + $0x34] sm:$0xff]
        %v3691 = vld [vmem:[%s3293 + $0x3c] sm:$0xff]
        %v3692 = vld [vmem:[%s3293 + $0x4c] sm:$0xff]
        %v3693 = vld [vmem:[%s3293 + $0x54] sm:$0xff]
        %v3694 = vld [vmem:[%s3293 + $0x64] sm:$0xff]
        %v3695 = vld [vmem:[%s3293 + $0x6c] sm:$0xff]
        %v3696 = vld [vmem:[%s3293 + $0x7c] sm:$0xff]
        %v3697 = vld [vmem:[%s3293 + $0x84] sm:$0xff]
        %v3698 = vld [vmem:[%s3293 + $0x94] sm:$0xff]
        %v3699 = vld [vmem:[%s3293 + $0x9c] sm:$0xff]
        %v3700 = vld [vmem:[%s3293 + $0xac] sm:$0xff]
        %v3701 = vld [vmem:[%s3293 + $0xb4] sm:$0xff]
        %v3702 = vld [vmem:[%s3293 + $0xc4] sm:$0xff]
        %v3703 = vld [vmem:[%s3293 + $0xcc] sm:$0xff]
        %v3704 = vld [vmem:[%s3293 + $0xdc] sm:$0xff]
        %v3705 = vld [vmem:[%s3293 + $0xe4] sm:$0xff]
        %v3706 = vld [vmem:[%s3293 + $0xf4] sm:$0xff]
        %v3707 = vld [vmem:[%s3293 + $0xfc] sm:$0xff]
        %v3708 = vld [vmem:[%s3293 + $0x10c] sm:$0xff]
        %v3709 = vld [vmem:[%s3293 + $0x114] sm:$0xff]
        %v3710 = vld [vmem:[%s3293 + $0x124] sm:$0xff]
        %v3711 = vld [vmem:[%s3293 + $0x12c] sm:$0xff]
        %v3712 = vld [vmem:[%s3293 + $0x13c] sm:$0xff]
        %v3713 = vld [vmem:[%s3293 + $0x144] sm:$0xff]
        %v3714 = vld [vmem:[%s3293 + $0x154] sm:$0xff]
        %v3715 = vld [vmem:[%s3293 + $0x15c] sm:$0xff]
        %v3716 = vld [vmem:[%s3293 + $0x16c] sm:$0xff]
        %v3717 = vld [vmem:[%s3293 + $0x174] sm:$0xff]
        %v3718 = vld [vmem:[%s3 + $0x18] sm:$0x1]
        %v3719 = vperm.slane %v3718, 0
        %v3720 = vmul.f32 %v3686, %v3719
        %v3721 = vmul.f32 %v3687, %v3719
        %v3722 = vmul.f32 %v3688, %v3719
        %v3723 = vmul.f32 %v3689, %v3719
        %v3724 = vmul.f32 %v3690, %v3719
        %v3725 = vmul.f32 %v3691, %v3719
        %v3726 = vmul.f32 %v3692, %v3719
        %v3727 = vmul.f32 %v3693, %v3719
        %v3728 = vmul.f32 %v3694, %v3719
        %v3729 = vmul.f32 %v3695, %v3719
        %v3730 = vmul.f32 %v3696, %v3719
        %v3731 = vmul.f32 %v3697, %v3719
        %v3732 = vmul.f32 %v3698, %v3719
        %v3733 = vmul.f32 %v3699, %v3719
        %v3734 = vmul.f32 %v3700, %v3719
        %v3735 = vmul.f32 %v3701, %v3719
        %v3736 = vmul.f32 %v3702, %v3719
        %v3737 = vmul.f32 %v3703, %v3719
        %v3738 = vmul.f32 %v3704, %v3719
        %v3739 = vmul.f32 %v3705, %v3719
        %v3740 = vmul.f32 %v3706, %v3719
        %v3741 = vmul.f32 %v3707, %v3719
        %v3742 = vmul.f32 %v3708, %v3719
        %v3743 = vmul.f32 %v3709, %v3719
        %v3744 = vmul.f32 %v3710, %v3719
        %v3745 = vmul.f32 %v3711, %v3719
        %v3746 = vmul.f32 %v3712, %v3719
        %v3747 = vmul.f32 %v3713, %v3719
        %v3748 = vmul.f32 %v3714, %v3719
        %v3749 = vmul.f32 %v3715, %v3719
        %v3750 = vmul.f32 %v3716, %v3719
        %v3751 = vmul.f32 %v3717, %v3719
        %v3752 = vadd.f32 %v3654, %v3720
        %v3753 = vadd.f32 %v3655, %v3721
        %v3754 = vadd.f32 %v3656, %v3722
        %v3755 = vadd.f32 %v3657, %v3723
        %v3756 = vadd.f32 %v3658, %v3724
        %v3757 = vadd.f32 %v3659, %v3725
        %v3758 = vadd.f32 %v3660, %v3726
        %v3759 = vadd.f32 %v3661, %v3727
        %v3760 = vadd.f32 %v3662, %v3728
        %v3761 = vadd.f32 %v3663, %v3729
        %v3762 = vadd.f32 %v3664, %v3730
        %v3763 = vadd.f32 %v3665, %v3731
        %v3764 = vadd.f32 %v3666, %v3732
        %v3765 = vadd.f32 %v3667, %v3733
        %v3766 = vadd.f32 %v3668, %v3734
        %v3767 = vadd.f32 %v3669, %v3735
        %v3768 = vadd.f32 %v3670, %v3736
        %v3769 = vadd.f32 %v3671, %v3737
        %v3770 = vadd.f32 %v3672, %v3738
        %v3771 = vadd.f32 %v3673, %v3739
        %v3772 = vadd.f32 %v3674, %v3740
        %v3773 = vadd.f32 %v3675, %v3741
        %v3774 = vadd.f32 %v3676, %v3742
        %v3775 = vadd.f32 %v3677, %v3743
        %v3776 = vadd.f32 %v3678, %v3744
        %v3777 = vadd.f32 %v3679, %v3745
        %v3778 = vadd.f32 %v3680, %v3746
        %v3779 = vadd.f32 %v3681, %v3747
        %v3780 = vadd.f32 %v3682, %v3748
        %v3781 = vadd.f32 %v3683, %v3749
        %v3782 = vadd.f32 %v3684, %v3750
        %v3783 = vadd.f32 %v3685, %v3751
        %v3784 = vld [vmem:[%s4] sm:$0x1]
        %v3786 = vperm.slane %v3784, 0
        %v3788 = vadd.f32 %v3752, %v3786
        %v3789 = vadd.f32 %v3753, %v3786
        %v3790 = vadd.f32 %v3754, %v3786
        %v3791 = vadd.f32 %v3755, %v3786
        %v3792 = vadd.f32 %v3756, %v3786
        %v3793 = vadd.f32 %v3757, %v3786
        %v3794 = vadd.f32 %v3758, %v3786
        %v3795 = vadd.f32 %v3759, %v3786
        %v3796 = vadd.f32 %v3760, %v3786
        %v3797 = vadd.f32 %v3761, %v3786
        %v3798 = vadd.f32 %v3762, %v3786
        %v3799 = vadd.f32 %v3763, %v3786
        %v3800 = vadd.f32 %v3764, %v3786
        %v3801 = vadd.f32 %v3765, %v3786
        %v3802 = vadd.f32 %v3766, %v3786
        %v3803 = vadd.f32 %v3767, %v3786
        %v3804 = vadd.f32 %v3768, %v3786
        %v3805 = vadd.f32 %v3769, %v3786
        %v3806 = vadd.f32 %v3770, %v3786
        %v3807 = vadd.f32 %v3771, %v3786
        %v3808 = vadd.f32 %v3772, %v3786
        %v3809 = vadd.f32 %v3773, %v3786
        %v3810 = vadd.f32 %v3774, %v3786
        %v3811 = vadd.f32 %v3775, %v3786
        %v3812 = vadd.f32 %v3776, %v3786
        %v3813 = vadd.f32 %v3777, %v3786
        %v3814 = vadd.f32 %v3778, %v3786
        %v3815 = vadd.f32 %v3779, %v3786
        %v3816 = vadd.f32 %v3780, %v3786
        %v3817 = vadd.f32 %v3781, %v3786
        %v3818 = vadd.f32 %v3782, %v3786
        %v3819 = vadd.f32 %v3783, %v3786
        %v3820 = vsub.f32 0.0, %v3788
        %v3821 = vsub.f32 0.0, %v3789
        %v3822 = vsub.f32 0.0, %v3790
        %v3823 = vsub.f32 0.0, %v3791
        %v3824 = vsub.f32 0.0, %v3792
        %v3825 = vsub.f32 0.0, %v3793
        %v3826 = vsub.f32 0.0, %v3794
        %v3827 = vsub.f32 0.0, %v3795
        %v3828 = vsub.f32 0.0, %v3796
        %v3829 = vsub.f32 0.0, %v3797
        %v3830 = vsub.f32 0.0, %v3798
        %v3831 = vsub.f32 0.0, %v3799
        %v3832 = vsub.f32 0.0, %v3800
        %v3833 = vsub.f32 0.0, %v3801
        %v3834 = vsub.f32 0.0, %v3802
        %v3835 = vsub.f32 0.0, %v3803
        %v3836 = vsub.f32 0.0, %v3804
        %v3837 = vsub.f32 0.0, %v3805
        %v3838 = vsub.f32 0.0, %v3806
        %v3839 = vsub.f32 0.0, %v3807
        %v3840 = vsub.f32 0.0, %v3808
        %v3841 = vsub.f32 0.0, %v3809
        %v3842 = vsub.f32 0.0, %v3810
        %v3843 = vsub.f32 0.0, %v3811
        %v3844 = vsub.f32 0.0, %v3812
        %v3845 = vsub.f32 0.0, %v3813
        %v3846 = vsub.f32 0.0, %v3814
        %v3847 = vsub.f32 0.0, %v3815
        %v3848 = vsub.f32 0.0, %v3816
        %v3849 = vsub.f32 0.0, %v3817
        %v3850 = vsub.f32 0.0, %v3818
        %v3851 = vsub.f32 0.0, %v3819
        %v3852 = vmul.f32 %v3820, 1.442695
        %v3853 = vpow.pop %v3852
        %v3854 = vmul.f32 %v3821, 1.442695
        %v3855 = vpow.pop %v3854
        %v3856 = vmul.f32 %v3822, 1.442695
        %v3857 = vpow.pop %v3856
        %v3858 = vmul.f32 %v3823, 1.442695
        %v3859 = vpow.pop %v3858
        %v3860 = vmul.f32 %v3824, 1.442695
        %v3861 = vpow.pop %v3860
        %v3862 = vmul.f32 %v3825, 1.442695
        %v3863 = vpow.pop %v3862
        %v3864 = vmul.f32 %v3826, 1.442695
        %v3865 = vpow.pop %v3864
        %v3866 = vmul.f32 %v3827, 1.442695
        %v3867 = vpow.pop %v3866
        %v3868 = vmul.f32 %v3828, 1.442695
        %v3869 = vpow.pop %v3868
        %v3870 = vmul.f32 %v3829, 1.442695
        %v3871 = vpow.pop %v3870
        %v3872 = vmul.f32 %v3830, 1.442695
        %v3873 = vpow.pop %v3872
        %v3874 = vmul.f32 %v3831, 1.442695
        %v3875 = vpow.pop %v3874
        %v3876 = vmul.f32 %v3832, 1.442695
        %v3877 = vpow.pop %v3876
        %v3878 = vmul.f32 %v3833, 1.442695
        %v3879 = vpow.pop %v3878
        %v3880 = vmul.f32 %v3834, 1.442695
        %v3881 = vpow.pop %v3880
        %v3882 = vmul.f32 %v3835, 1.442695
        %v3883 = vpow.pop %v3882
        %v3884 = vmul.f32 %v3836, 1.442695
        %v3885 = vpow.pop %v3884
        %v3886 = vmul.f32 %v3837, 1.442695
        %v3887 = vpow.pop %v3886
        %v3888 = vmul.f32 %v3838, 1.442695
        %v3889 = vpow.pop %v3888
        %v3890 = vmul.f32 %v3839, 1.442695
        %v3891 = vpow.pop %v3890
        %v3892 = vmul.f32 %v3840, 1.442695
        %v3893 = vpow.pop %v3892
        %v3894 = vmul.f32 %v3841, 1.442695
        %v3895 = vpow.pop %v3894
        %v3896 = vmul.f32 %v3842, 1.442695
        %v3897 = vpow.pop %v3896
        %v3898 = vmul.f32 %v3843, 1.442695
        %v3899 = vpow.pop %v3898
        %v3900 = vmul.f32 %v3844, 1.442695
        %v3901 = vpow.pop %v3900
        %v3902 = vmul.f32 %v3845, 1.442695
        %v3903 = vpow.pop %v3902
        %v3904 = vmul.f32 %v3846, 1.442695
        %v3905 = vpow.pop %v3904
        %v3906 = vmul.f32 %v3847, 1.442695
        %v3907 = vpow.pop %v3906
        %v3908 = vmul.f32 %v3848, 1.442695
        %v3909 = vpow.pop %v3908
        %v3910 = vmul.f32 %v3849, 1.442695
        %v3911 = vpow.pop %v3910
        %v3912 = vmul.f32 %v3850, 1.442695
        %v3913 = vpow.pop %v3912
        %v3914 = vmul.f32 %v3851, 1.442695
        %v3915 = vpow.pop %v3914
        %v3916 = vadd.f32 %v3853, 1.0
        %v3917 = vadd.f32 %v3855, 1.0
        %v3918 = vadd.f32 %v3857, 1.0
        %v3919 = vadd.f32 %v3859, 1.0
        %v3920 = vadd.f32 %v3861, 1.0
        %v3921 = vadd.f32 %v3863, 1.0
        %v3922 = vadd.f32 %v3865, 1.0
        %v3923 = vadd.f32 %v3867, 1.0
        %v3924 = vadd.f32 %v3869, 1.0
        %v3925 = vadd.f32 %v3871, 1.0
        %v3926 = vadd.f32 %v3873, 1.0
        %v3927 = vadd.f32 %v3875, 1.0
        %v3928 = vadd.f32 %v3877, 1.0
        %v3929 = vadd.f32 %v3879, 1.0
        %v3930 = vadd.f32 %v3881, 1.0
        %v3931 = vadd.f32 %v3883, 1.0
        %v3932 = vadd.f32 %v3885, 1.0
        %v3933 = vadd.f32 %v3887, 1.0
        %v3934 = vadd.f32 %v3889, 1.0
        %v3935 = vadd.f32 %v3891, 1.0
        %v3936 = vadd.f32 %v3893, 1.0
        %v3937 = vadd.f32 %v3895, 1.0
        %v3938 = vadd.f32 %v3897, 1.0
        %v3939 = vadd.f32 %v3899, 1.0
        %v3940 = vadd.f32 %v3901, 1.0
        %v3941 = vadd.f32 %v3903, 1.0
        %v3942 = vadd.f32 %v3905, 1.0
        %v3943 = vadd.f32 %v3907, 1.0
        %v3944 = vadd.f32 %v3909, 1.0
        %v3945 = vadd.f32 %v3911, 1.0
        %v3946 = vadd.f32 %v3913, 1.0
        %v3947 = vadd.f32 %v3915, 1.0
        %v3948 = vrcp.pop %v3916
        %v3949 = vmul.f32 %v3916, %v3948
        %v3950 = vsub.f32 1.0, %v3949
        %v3951 = vmul.f32 %v3948, %v3950
        %v3952 = vadd.f32 %v3948, %v3951
        %vm3953 = vweird.f32 %v3916
        %vm3954 = vweird.f32 %v3948
        %vm3955 = vmor %vm3953, %vm3954
        %v3956 = vsel %vm3955, %v3948, %v3952
        %v3957 = vand.u32 2147483647, %v3916
        %vm3958 = vcmp.eq.f32.partialorder %v3957, 8.507059e+37
        %v3959 = vand.u32 %v3916, 2147483648
        %v3960 = vor.u32 1.1754944e-38, %v3959
        %v3961 = vsel %vm3958, %v3960, %v3956
        %v3962 = vmul.f32 1.0, %v3961
        %v3963 = vrcp.pop %v3917
        %v3964 = vmul.f32 %v3917, %v3963
        %v3965 = vsub.f32 1.0, %v3964
        %v3966 = vmul.f32 %v3963, %v3965
        %v3967 = vadd.f32 %v3963, %v3966
        %vm3968 = vweird.f32 %v3917
        %vm3969 = vweird.f32 %v3963
        %vm3970 = vmor %vm3968, %vm3969
        %v3971 = vsel %vm3970, %v3963, %v3967
        %v3972 = vand.u32 2147483647, %v3917
        %vm3973 = vcmp.eq.f32.partialorder %v3972, 8.507059e+37
        %v3974 = vand.u32 %v3917, 2147483648
        %v3975 = vor.u32 1.1754944e-38, %v3974
        %v3976 = vsel %vm3973, %v3975, %v3971
        %v3977 = vmul.f32 1.0, %v3976
        %v3978 = vrcp.pop %v3918
        %v3979 = vmul.f32 %v3918, %v3978
        %v3980 = vsub.f32 1.0, %v3979
        %v3981 = vmul.f32 %v3978, %v3980
        %v3982 = vadd.f32 %v3978, %v3981
        %vm3983 = vweird.f32 %v3918
        %vm3984 = vweird.f32 %v3978
        %vm3985 = vmor %vm3983, %vm3984
        %v3986 = vsel %vm3985, %v3978, %v3982
        %v3987 = vand.u32 2147483647, %v3918
        %vm3988 = vcmp.eq.f32.partialorder %v3987, 8.507059e+37
        %v3989 = vand.u32 %v3918, 2147483648
        %v3990 = vor.u32 1.1754944e-38, %v3989
        %v3991 = vsel %vm3988, %v3990, %v3986
        %v3992 = vmul.f32 1.0, %v3991
        %v3993 = vrcp.pop %v3919
        %v3994 = vmul.f32 %v3919, %v3993
        %v3995 = vsub.f32 1.0, %v3994
        %v3996 = vmul.f32 %v3993, %v3995
        %v3997 = vadd.f32 %v3993, %v3996
        %vm3998 = vweird.f32 %v3919
        %vm3999 = vweird.f32 %v3993
        %vm4000 = vmor %vm3998, %vm3999
        %v4001 = vsel %vm4000, %v3993, %v3997
        %v4002 = vand.u32 2147483647, %v3919
        %vm4003 = vcmp.eq.f32.partialorder %v4002, 8.507059e+37
        %v4004 = vand.u32 %v3919, 2147483648
        %v4005 = vor.u32 1.1754944e-38, %v4004
        %v4006 = vsel %vm4003, %v4005, %v4001
        %v4007 = vmul.f32 1.0, %v4006
        %v4008 = vrcp.pop %v3920
        %v4009 = vmul.f32 %v3920, %v4008
        %v4010 = vsub.f32 1.0, %v4009
        %v4011 = vmul.f32 %v4008, %v4010
        %v4012 = vadd.f32 %v4008, %v4011
        %vm4013 = vweird.f32 %v3920
        %vm4014 = vweird.f32 %v4008
        %vm4015 = vmor %vm4013, %vm4014
        %v4016 = vsel %vm4015, %v4008, %v4012
        %v4017 = vand.u32 2147483647, %v3920
        %vm4018 = vcmp.eq.f32.partialorder %v4017, 8.507059e+37
        %v4019 = vand.u32 %v3920, 2147483648
        %v4020 = vor.u32 1.1754944e-38, %v4019
        %v4021 = vsel %vm4018, %v4020, %v4016
        %v4022 = vmul.f32 1.0, %v4021
        %v4023 = vrcp.pop %v3921
        %v4024 = vmul.f32 %v3921, %v4023
        %v4025 = vsub.f32 1.0, %v4024
        %v4026 = vmul.f32 %v4023, %v4025
        %v4027 = vadd.f32 %v4023, %v4026
        %vm4028 = vweird.f32 %v3921
        %vm4029 = vweird.f32 %v4023
        %vm4030 = vmor %vm4028, %vm4029
        %v4031 = vsel %vm4030, %v4023, %v4027
        %v4032 = vand.u32 2147483647, %v3921
        %vm4033 = vcmp.eq.f32.partialorder %v4032, 8.507059e+37
        %v4034 = vand.u32 %v3921, 2147483648
        %v4035 = vor.u32 1.1754944e-38, %v4034
        %v4036 = vsel %vm4033, %v4035, %v4031
        %v4037 = vmul.f32 1.0, %v4036
        %v4038 = vrcp.pop %v3922
        %v4039 = vmul.f32 %v3922, %v4038
        %v4040 = vsub.f32 1.0, %v4039
        %v4041 = vmul.f32 %v4038, %v4040
        %v4042 = vadd.f32 %v4038, %v4041
        %vm4043 = vweird.f32 %v3922
        %vm4044 = vweird.f32 %v4038
        %vm4045 = vmor %vm4043, %vm4044
        %v4046 = vsel %vm4045, %v4038, %v4042
        %v4047 = vand.u32 2147483647, %v3922
        %vm4048 = vcmp.eq.f32.partialorder %v4047, 8.507059e+37
        %v4049 = vand.u32 %v3922, 2147483648
        %v4050 = vor.u32 1.1754944e-38, %v4049
        %v4051 = vsel %vm4048, %v4050, %v4046
        %v4052 = vmul.f32 1.0, %v4051
        %v4053 = vrcp.pop %v3923
        %v4054 = vmul.f32 %v3923, %v4053
        %v4055 = vsub.f32 1.0, %v4054
        %v4056 = vmul.f32 %v4053, %v4055
        %v4057 = vadd.f32 %v4053, %v4056
        %vm4058 = vweird.f32 %v3923
        %vm4059 = vweird.f32 %v4053
        %vm4060 = vmor %vm4058, %vm4059
        %v4061 = vsel %vm4060, %v4053, %v4057
        %v4062 = vand.u32 2147483647, %v3923
        %vm4063 = vcmp.eq.f32.partialorder %v4062, 8.507059e+37
        %v4064 = vand.u32 %v3923, 2147483648
        %v4065 = vor.u32 1.1754944e-38, %v4064
        %v4066 = vsel %vm4063, %v4065, %v4061
        %v4067 = vmul.f32 1.0, %v4066
        %v4068 = vrcp.pop %v3924
        %v4069 = vmul.f32 %v3924, %v4068
        %v4070 = vsub.f32 1.0, %v4069
        %v4071 = vmul.f32 %v4068, %v4070
        %v4072 = vadd.f32 %v4068, %v4071
        %vm4073 = vweird.f32 %v3924
        %vm4074 = vweird.f32 %v4068
        %vm4075 = vmor %vm4073, %vm4074
        %v4076 = vsel %vm4075, %v4068, %v4072
        %v4077 = vand.u32 2147483647, %v3924
        %vm4078 = vcmp.eq.f32.partialorder %v4077, 8.507059e+37
        %v4079 = vand.u32 %v3924, 2147483648
        %v4080 = vor.u32 1.1754944e-38, %v4079
        %v4081 = vsel %vm4078, %v4080, %v4076
        %v4082 = vmul.f32 1.0, %v4081
        %v4083 = vrcp.pop %v3925
        %v4084 = vmul.f32 %v3925, %v4083
        %v4085 = vsub.f32 1.0, %v4084
        %v4086 = vmul.f32 %v4083, %v4085
        %v4087 = vadd.f32 %v4083, %v4086
        %vm4088 = vweird.f32 %v3925
        %vm4089 = vweird.f32 %v4083
        %vm4090 = vmor %vm4088, %vm4089
        %v4091 = vsel %vm4090, %v4083, %v4087
        %v4092 = vand.u32 2147483647, %v3925
        %vm4093 = vcmp.eq.f32.partialorder %v4092, 8.507059e+37
        %v4094 = vand.u32 %v3925, 2147483648
        %v4095 = vor.u32 1.1754944e-38, %v4094
        %v4096 = vsel %vm4093, %v4095, %v4091
        %v4097 = vmul.f32 1.0, %v4096
        %v4098 = vrcp.pop %v3926
        %v4099 = vmul.f32 %v3926, %v4098
        %v4100 = vsub.f32 1.0, %v4099
        %v4101 = vmul.f32 %v4098, %v4100
        %v4102 = vadd.f32 %v4098, %v4101
        %vm4103 = vweird.f32 %v3926
        %vm4104 = vweird.f32 %v4098
        %vm4105 = vmor %vm4103, %vm4104
        %v4106 = vsel %vm4105, %v4098, %v4102
        %v4107 = vand.u32 2147483647, %v3926
        %vm4108 = vcmp.eq.f32.partialorder %v4107, 8.507059e+37
        %v4109 = vand.u32 %v3926, 2147483648
        %v4110 = vor.u32 1.1754944e-38, %v4109
        %v4111 = vsel %vm4108, %v4110, %v4106
        %v4112 = vmul.f32 1.0, %v4111
        %v4113 = vrcp.pop %v3927
        %v4114 = vmul.f32 %v3927, %v4113
        %v4115 = vsub.f32 1.0, %v4114
        %v4116 = vmul.f32 %v4113, %v4115
        %v4117 = vadd.f32 %v4113, %v4116
        %vm4118 = vweird.f32 %v3927
        %vm4119 = vweird.f32 %v4113
        %vm4120 = vmor %vm4118, %vm4119
        %v4121 = vsel %vm4120, %v4113, %v4117
        %v4122 = vand.u32 2147483647, %v3927
        %vm4123 = vcmp.eq.f32.partialorder %v4122, 8.507059e+37
        %v4124 = vand.u32 %v3927, 2147483648
        %v4125 = vor.u32 1.1754944e-38, %v4124
        %v4126 = vsel %vm4123, %v4125, %v4121
        %v4127 = vmul.f32 1.0, %v4126
        %v4128 = vrcp.pop %v3928
        %v4129 = vmul.f32 %v3928, %v4128
        %v4130 = vsub.f32 1.0, %v4129
        %v4131 = vmul.f32 %v4128, %v4130
        %v4132 = vadd.f32 %v4128, %v4131
        %vm4133 = vweird.f32 %v3928
        %vm4134 = vweird.f32 %v4128
        %vm4135 = vmor %vm4133, %vm4134
        %v4136 = vsel %vm4135, %v4128, %v4132
        %v4137 = vand.u32 2147483647, %v3928
        %vm4138 = vcmp.eq.f32.partialorder %v4137, 8.507059e+37
        %v4139 = vand.u32 %v3928, 2147483648
        %v4140 = vor.u32 1.1754944e-38, %v4139
        %v4141 = vsel %vm4138, %v4140, %v4136
        %v4142 = vmul.f32 1.0, %v4141
        %v4143 = vrcp.pop %v3929
        %v4144 = vmul.f32 %v3929, %v4143
        %v4145 = vsub.f32 1.0, %v4144
        %v4146 = vmul.f32 %v4143, %v4145
        %v4147 = vadd.f32 %v4143, %v4146
        %vm4148 = vweird.f32 %v3929
        %vm4149 = vweird.f32 %v4143
        %vm4150 = vmor %vm4148, %vm4149
        %v4151 = vsel %vm4150, %v4143, %v4147
        %v4152 = vand.u32 2147483647, %v3929
        %vm4153 = vcmp.eq.f32.partialorder %v4152, 8.507059e+37
        %v4154 = vand.u32 %v3929, 2147483648
        %v4155 = vor.u32 1.1754944e-38, %v4154
        %v4156 = vsel %vm4153, %v4155, %v4151
        %v4157 = vmul.f32 1.0, %v4156
        %v4158 = vrcp.pop %v3930
        %v4159 = vmul.f32 %v3930, %v4158
        %v4160 = vsub.f32 1.0, %v4159
        %v4161 = vmul.f32 %v4158, %v4160
        %v4162 = vadd.f32 %v4158, %v4161
        %vm4163 = vweird.f32 %v3930
        %vm4164 = vweird.f32 %v4158
        %vm4165 = vmor %vm4163, %vm4164
        %v4166 = vsel %vm4165, %v4158, %v4162
        %v4167 = vand.u32 2147483647, %v3930
        %vm4168 = vcmp.eq.f32.partialorder %v4167, 8.507059e+37
        %v4169 = vand.u32 %v3930, 2147483648
        %v4170 = vor.u32 1.1754944e-38, %v4169
        %v4171 = vsel %vm4168, %v4170, %v4166
        %v4172 = vmul.f32 1.0, %v4171
        %v4173 = vrcp.pop %v3931
        %v4174 = vmul.f32 %v3931, %v4173
        %v4175 = vsub.f32 1.0, %v4174
        %v4176 = vmul.f32 %v4173, %v4175
        %v4177 = vadd.f32 %v4173, %v4176
        %vm4178 = vweird.f32 %v3931
        %vm4179 = vweird.f32 %v4173
        %vm4180 = vmor %vm4178, %vm4179
        %v4181 = vsel %vm4180, %v4173, %v4177
        %v4182 = vand.u32 2147483647, %v3931
        %vm4183 = vcmp.eq.f32.partialorder %v4182, 8.507059e+37
        %v4184 = vand.u32 %v3931, 2147483648
        %v4185 = vor.u32 1.1754944e-38, %v4184
        %v4186 = vsel %vm4183, %v4185, %v4181
        %v4187 = vmul.f32 1.0, %v4186
        %v4188 = vrcp.pop %v3932
        %v4189 = vmul.f32 %v3932, %v4188
        %v4190 = vsub.f32 1.0, %v4189
        %v4191 = vmul.f32 %v4188, %v4190
        %v4192 = vadd.f32 %v4188, %v4191
        %vm4193 = vweird.f32 %v3932
        %vm4194 = vweird.f32 %v4188
        %vm4195 = vmor %vm4193, %vm4194
        %v4196 = vsel %vm4195, %v4188, %v4192
        %v4197 = vand.u32 2147483647, %v3932
        %vm4198 = vcmp.eq.f32.partialorder %v4197, 8.507059e+37
        %v4199 = vand.u32 %v3932, 2147483648
        %v4200 = vor.u32 1.1754944e-38, %v4199
        %v4201 = vsel %vm4198, %v4200, %v4196
        %v4202 = vmul.f32 1.0, %v4201
        %v4203 = vrcp.pop %v3933
        %v4204 = vmul.f32 %v3933, %v4203
        %v4205 = vsub.f32 1.0, %v4204
        %v4206 = vmul.f32 %v4203, %v4205
        %v4207 = vadd.f32 %v4203, %v4206
        %vm4208 = vweird.f32 %v3933
        %vm4209 = vweird.f32 %v4203
        %vm4210 = vmor %vm4208, %vm4209
        %v4211 = vsel %vm4210, %v4203, %v4207
        %v4212 = vand.u32 2147483647, %v3933
        %vm4213 = vcmp.eq.f32.partialorder %v4212, 8.507059e+37
        %v4214 = vand.u32 %v3933, 2147483648
        %v4215 = vor.u32 1.1754944e-38, %v4214
        %v4216 = vsel %vm4213, %v4215, %v4211
        %v4217 = vmul.f32 1.0, %v4216
        %v4218 = vrcp.pop %v3934
        %v4219 = vmul.f32 %v3934, %v4218
        %v4220 = vsub.f32 1.0, %v4219
        %v4221 = vmul.f32 %v4218, %v4220
        %v4222 = vadd.f32 %v4218, %v4221
        %vm4223 = vweird.f32 %v3934
        %vm4224 = vweird.f32 %v4218
        %vm4225 = vmor %vm4223, %vm4224
        %v4226 = vsel %vm4225, %v4218, %v4222
        %v4227 = vand.u32 2147483647, %v3934
        %vm4228 = vcmp.eq.f32.partialorder %v4227, 8.507059e+37
        %v4229 = vand.u32 %v3934, 2147483648
        %v4230 = vor.u32 1.1754944e-38, %v4229
        %v4231 = vsel %vm4228, %v4230, %v4226
        %v4232 = vmul.f32 1.0, %v4231
        %v4233 = vrcp.pop %v3935
        %v4234 = vmul.f32 %v3935, %v4233
        %v4235 = vsub.f32 1.0, %v4234
        %v4236 = vmul.f32 %v4233, %v4235
        %v4237 = vadd.f32 %v4233, %v4236
        %vm4238 = vweird.f32 %v3935
        %vm4239 = vweird.f32 %v4233
        %vm4240 = vmor %vm4238, %vm4239
        %v4241 = vsel %vm4240, %v4233, %v4237
        %v4242 = vand.u32 2147483647, %v3935
        %vm4243 = vcmp.eq.f32.partialorder %v4242, 8.507059e+37
        %v4244 = vand.u32 %v3935, 2147483648
        %v4245 = vor.u32 1.1754944e-38, %v4244
        %v4246 = vsel %vm4243, %v4245, %v4241
        %v4247 = vmul.f32 1.0, %v4246
        %v4248 = vrcp.pop %v3936
        %v4249 = vmul.f32 %v3936, %v4248
        %v4250 = vsub.f32 1.0, %v4249
        %v4251 = vmul.f32 %v4248, %v4250
        %v4252 = vadd.f32 %v4248, %v4251
        %vm4253 = vweird.f32 %v3936
        %vm4254 = vweird.f32 %v4248
        %vm4255 = vmor %vm4253, %vm4254
        %v4256 = vsel %vm4255, %v4248, %v4252
        %v4257 = vand.u32 2147483647, %v3936
        %vm4258 = vcmp.eq.f32.partialorder %v4257, 8.507059e+37
        %v4259 = vand.u32 %v3936, 2147483648
        %v4260 = vor.u32 1.1754944e-38, %v4259
        %v4261 = vsel %vm4258, %v4260, %v4256
        %v4262 = vmul.f32 1.0, %v4261
        %v4263 = vrcp.pop %v3937
        %v4264 = vmul.f32 %v3937, %v4263
        %v4265 = vsub.f32 1.0, %v4264
        %v4266 = vmul.f32 %v4263, %v4265
        %v4267 = vadd.f32 %v4263, %v4266
        %vm4268 = vweird.f32 %v3937
        %vm4269 = vweird.f32 %v4263
        %vm4270 = vmor %vm4268, %vm4269
        %v4271 = vsel %vm4270, %v4263, %v4267
        %v4272 = vand.u32 2147483647, %v3937
        %vm4273 = vcmp.eq.f32.partialorder %v4272, 8.507059e+37
        %v4274 = vand.u32 %v3937, 2147483648
        %v4275 = vor.u32 1.1754944e-38, %v4274
        %v4276 = vsel %vm4273, %v4275, %v4271
        %v4277 = vmul.f32 1.0, %v4276
        %v4278 = vrcp.pop %v3938
        %v4279 = vmul.f32 %v3938, %v4278
        %v4280 = vsub.f32 1.0, %v4279
        %v4281 = vmul.f32 %v4278, %v4280
        %v4282 = vadd.f32 %v4278, %v4281
        %vm4283 = vweird.f32 %v3938
        %vm4284 = vweird.f32 %v4278
        %vm4285 = vmor %vm4283, %vm4284
        %v4286 = vsel %vm4285, %v4278, %v4282
        %v4287 = vand.u32 2147483647, %v3938
        %vm4288 = vcmp.eq.f32.partialorder %v4287, 8.507059e+37
        %v4289 = vand.u32 %v3938, 2147483648
        %v4290 = vor.u32 1.1754944e-38, %v4289
        %v4291 = vsel %vm4288, %v4290, %v4286
        %v4292 = vmul.f32 1.0, %v4291
        %v4293 = vrcp.pop %v3939
        %v4294 = vmul.f32 %v3939, %v4293
        %v4295 = vsub.f32 1.0, %v4294
        %v4296 = vmul.f32 %v4293, %v4295
        %v4297 = vadd.f32 %v4293, %v4296
        %vm4298 = vweird.f32 %v3939
        %vm4299 = vweird.f32 %v4293
        %vm4300 = vmor %vm4298, %vm4299
        %v4301 = vsel %vm4300, %v4293, %v4297
        %v4302 = vand.u32 2147483647, %v3939
        %vm4303 = vcmp.eq.f32.partialorder %v4302, 8.507059e+37
        %v4304 = vand.u32 %v3939, 2147483648
        %v4305 = vor.u32 1.1754944e-38, %v4304
        %v4306 = vsel %vm4303, %v4305, %v4301
        %v4307 = vmul.f32 1.0, %v4306
        %v4308 = vrcp.pop %v3940
        %v4309 = vmul.f32 %v3940, %v4308
        %v4310 = vsub.f32 1.0, %v4309
        %v4311 = vmul.f32 %v4308, %v4310
        %v4312 = vadd.f32 %v4308, %v4311
        %vm4313 = vweird.f32 %v3940
        %vm4314 = vweird.f32 %v4308
        %vm4315 = vmor %vm4313, %vm4314
        %v4316 = vsel %vm4315, %v4308, %v4312
        %v4317 = vand.u32 2147483647, %v3940
        %vm4318 = vcmp.eq.f32.partialorder %v4317, 8.507059e+37
        %v4319 = vand.u32 %v3940, 2147483648
        %v4320 = vor.u32 1.1754944e-38, %v4319
        %v4321 = vsel %vm4318, %v4320, %v4316
        %v4322 = vmul.f32 1.0, %v4321
        %v4323 = vrcp.pop %v3941
        %v4324 = vmul.f32 %v3941, %v4323
        %v4325 = vsub.f32 1.0, %v4324
        %v4326 = vmul.f32 %v4323, %v4325
        %v4327 = vadd.f32 %v4323, %v4326
        %vm4328 = vweird.f32 %v3941
        %vm4329 = vweird.f32 %v4323
        %vm4330 = vmor %vm4328, %vm4329
        %v4331 = vsel %vm4330, %v4323, %v4327
        %v4332 = vand.u32 2147483647, %v3941
        %vm4333 = vcmp.eq.f32.partialorder %v4332, 8.507059e+37
        %v4334 = vand.u32 %v3941, 2147483648
        %v4335 = vor.u32 1.1754944e-38, %v4334
        %v4336 = vsel %vm4333, %v4335, %v4331
        %v4337 = vmul.f32 1.0, %v4336
        %v4338 = vrcp.pop %v3942
        %v4339 = vmul.f32 %v3942, %v4338
        %v4340 = vsub.f32 1.0, %v4339
        %v4341 = vmul.f32 %v4338, %v4340
        %v4342 = vadd.f32 %v4338, %v4341
        %vm4343 = vweird.f32 %v3942
        %vm4344 = vweird.f32 %v4338
        %vm4345 = vmor %vm4343, %vm4344
        %v4346 = vsel %vm4345, %v4338, %v4342
        %v4347 = vand.u32 2147483647, %v3942
        %vm4348 = vcmp.eq.f32.partialorder %v4347, 8.507059e+37
        %v4349 = vand.u32 %v3942, 2147483648
        %v4350 = vor.u32 1.1754944e-38, %v4349
        %v4351 = vsel %vm4348, %v4350, %v4346
        %v4352 = vmul.f32 1.0, %v4351
        %v4353 = vrcp.pop %v3943
        %v4354 = vmul.f32 %v3943, %v4353
        %v4355 = vsub.f32 1.0, %v4354
        %v4356 = vmul.f32 %v4353, %v4355
        %v4357 = vadd.f32 %v4353, %v4356
        %vm4358 = vweird.f32 %v3943
        %vm4359 = vweird.f32 %v4353
        %vm4360 = vmor %vm4358, %vm4359
        %v4361 = vsel %vm4360, %v4353, %v4357
        %v4362 = vand.u32 2147483647, %v3943
        %vm4363 = vcmp.eq.f32.partialorder %v4362, 8.507059e+37
        %v4364 = vand.u32 %v3943, 2147483648
        %v4365 = vor.u32 1.1754944e-38, %v4364
        %v4366 = vsel %vm4363, %v4365, %v4361
        %v4367 = vmul.f32 1.0, %v4366
        %v4368 = vrcp.pop %v3944
        %v4369 = vmul.f32 %v3944, %v4368
        %v4370 = vsub.f32 1.0, %v4369
        %v4371 = vmul.f32 %v4368, %v4370
        %v4372 = vadd.f32 %v4368, %v4371
        %vm4373 = vweird.f32 %v3944
        %vm4374 = vweird.f32 %v4368
        %vm4375 = vmor %vm4373, %vm4374
        %v4376 = vsel %vm4375, %v4368, %v4372
        %v4377 = vand.u32 2147483647, %v3944
        %vm4378 = vcmp.eq.f32.partialorder %v4377, 8.507059e+37
        %v4379 = vand.u32 %v3944, 2147483648
        %v4380 = vor.u32 1.1754944e-38, %v4379
        %v4381 = vsel %vm4378, %v4380, %v4376
        %v4382 = vmul.f32 1.0, %v4381
        %v4383 = vrcp.pop %v3945
        %v4384 = vmul.f32 %v3945, %v4383
        %v4385 = vsub.f32 1.0, %v4384
        %v4386 = vmul.f32 %v4383, %v4385
        %v4387 = vadd.f32 %v4383, %v4386
        %vm4388 = vweird.f32 %v3945
        %vm4389 = vweird.f32 %v4383
        %vm4390 = vmor %vm4388, %vm4389
        %v4391 = vsel %vm4390, %v4383, %v4387
        %v4392 = vand.u32 2147483647, %v3945
        %vm4393 = vcmp.eq.f32.partialorder %v4392, 8.507059e+37
        %v4394 = vand.u32 %v3945, 2147483648
        %v4395 = vor.u32 1.1754944e-38, %v4394
        %v4396 = vsel %vm4393, %v4395, %v4391
        %v4397 = vmul.f32 1.0, %v4396
        %v4398 = vrcp.pop %v3946
        %v4399 = vmul.f32 %v3946, %v4398
        %v4400 = vsub.f32 1.0, %v4399
        %v4401 = vmul.f32 %v4398, %v4400
        %v4402 = vadd.f32 %v4398, %v4401
        %vm4403 = vweird.f32 %v3946
        %vm4404 = vweird.f32 %v4398
        %vm4405 = vmor %vm4403, %vm4404
        %v4406 = vsel %vm4405, %v4398, %v4402
        %v4407 = vand.u32 2147483647, %v3946
        %vm4408 = vcmp.eq.f32.partialorder %v4407, 8.507059e+37
        %v4409 = vand.u32 %v3946, 2147483648
        %v4410 = vor.u32 1.1754944e-38, %v4409
        %v4411 = vsel %vm4408, %v4410, %v4406
        %v4412 = vmul.f32 1.0, %v4411
        %v4413 = vrcp.pop %v3947
        %v4414 = vmul.f32 %v3947, %v4413
        %v4415 = vsub.f32 1.0, %v4414
        %v4416 = vmul.f32 %v4413, %v4415
        %v4417 = vadd.f32 %v4413, %v4416
        %vm4418 = vweird.f32 %v3947
        %vm4419 = vweird.f32 %v4413
        %vm4420 = vmor %vm4418, %vm4419
        %v4421 = vsel %vm4420, %v4413, %v4417
        %v4422 = vand.u32 2147483647, %v3947
        %vm4423 = vcmp.eq.f32.partialorder %v4422, 8.507059e+37
        %v4424 = vand.u32 %v3947, 2147483648
        %v4425 = vor.u32 1.1754944e-38, %v4424
        %v4426 = vsel %vm4423, %v4425, %v4421
        %v4427 = vmul.f32 1.0, %v4426
        %v4428 = vmul.f32 %v3788, %v3962
        %v4429 = vmul.f32 %v3789, %v3977
        %v4430 = vmul.f32 %v3790, %v3992
        %v4431 = vmul.f32 %v3791, %v4007
        %v4432 = vmul.f32 %v3792, %v4022
        %v4433 = vmul.f32 %v3793, %v4037
        %v4434 = vmul.f32 %v3794, %v4052
        %v4435 = vmul.f32 %v3795, %v4067
        %v4436 = vmul.f32 %v3796, %v4082
        %v4437 = vmul.f32 %v3797, %v4097
        %v4438 = vmul.f32 %v3798, %v4112
        %v4439 = vmul.f32 %v3799, %v4127
        %v4440 = vmul.f32 %v3800, %v4142
        %v4441 = vmul.f32 %v3801, %v4157
        %v4442 = vmul.f32 %v3802, %v4172
        %v4443 = vmul.f32 %v3803, %v4187
        %v4444 = vmul.f32 %v3804, %v4202
        %v4445 = vmul.f32 %v3805, %v4217
        %v4446 = vmul.f32 %v3806, %v4232
        %v4447 = vmul.f32 %v3807, %v4247
        %v4448 = vmul.f32 %v3808, %v4262
        %v4449 = vmul.f32 %v3809, %v4277
        %v4450 = vmul.f32 %v3810, %v4292
        %v4451 = vmul.f32 %v3811, %v4307
        %v4452 = vmul.f32 %v3812, %v4322
        %v4453 = vmul.f32 %v3813, %v4337
        %v4454 = vmul.f32 %v3814, %v4352
        %v4455 = vmul.f32 %v3815, %v4367
        %v4456 = vmul.f32 %v3816, %v4382
        %v4457 = vmul.f32 %v3817, %v4397
        %v4458 = vmul.f32 %v3818, %v4412
        %v4459 = vmul.f32 %v3819, %v4427
        %v4460 = vld [vmem:[%s5] sm:$0xf]
        %v4461 = vld [vmem:[%s6] sm:$0xf]
        %v4463 = vsel %vm1268, %v4428, 0
        %v4466 = vsel %vm1268, %v4429, 0
        %v4469 = vsel %vm1268, %v4430, 0
        %v4472 = vsel %vm1268, %v4431, 0
        %v4475 = vsel %vm1268, %v4432, 0
        %v4478 = vsel %vm1268, %v4433, 0
        %v4481 = vsel %vm1268, %v4434, 0
        %v4484 = vsel %vm1268, %v4435, 0
        %v4487 = vsel %vm1268, %v4436, 0
        %v4490 = vsel %vm1268, %v4437, 0
        %v4493 = vsel %vm1268, %v4438, 0
        %v4496 = vsel %vm1268, %v4439, 0
        %v4499 = vsel %vm1268, %v4440, 0
        %v4502 = vsel %vm1268, %v4441, 0
        %v4505 = vsel %vm1268, %v4442, 0
        %v4508 = vsel %vm1268, %v4443, 0
        %v4511 = vsel %vm1268, %v4444, 0
        %v4514 = vsel %vm1268, %v4445, 0
        %v4517 = vsel %vm1268, %v4446, 0
        %v4520 = vsel %vm1268, %v4447, 0
        %v4523 = vsel %vm1268, %v4448, 0
        %v4526 = vsel %vm1268, %v4449, 0
        %v4529 = vsel %vm1268, %v4450, 0
        %v4532 = vsel %vm1268, %v4451, 0
        %v4535 = vsel %vm1268, %v4452, 0
        %v4538 = vsel %vm1268, %v4453, 0
        %v4541 = vsel %vm1268, %v4454, 0
        %v4544 = vsel %vm1268, %v4455, 0
        %v4547 = vsel %vm1268, %v4456, 0
        %v4550 = vsel %vm1268, %v4457, 0
        %v4553 = vsel %vm1268, %v4458, 0
        %v4556 = vsel %vm1268, %v4459, 0
        %vm4558 = vcmask 1043456
        %v4560 = vsel %vm4558, %v4461, 0
        %4562 = vmatpush.msra.mxu0 0.0
        %4563 = vmatpush.msra.mxu0 0.0
        %4564 = vmatpush.msra.mxu0 0.0
        %4565 = vmatpush.msra.mxu0 0.0
        %4566 = vmatpush.msra.mxu0 0.0
        %4567 = vmatpush.msra.mxu0 0.0
        %4568 = vmatpush.msra.mxu0 0.0
        %4569 = vmatpush.msra.mxu0 0.0
        %4570 = vmatpush.msra.mxu0 0.0
        %4571 = vmatpush.msra.mxu0 0.0
        %4572 = vmatpush.msra.mxu0 0.0
        %4573 = vmatpush.msra.mxu0 0.0
        %4574 = vmatpush.msra.mxu0 0.0
        %4575 = vmatpush.msra.mxu0 0.0
        %4576 = vmatpush.msra.mxu0 0.0
        %4577 = vmatpush.msra.mxu0 %v4560
        %4578 = vmatmul.f32.gmra.mxu0 %v4463
        %v4579 = vpop.f32.mrf.mxu0
        %v4580 = vadd.f32 0.0, %v4579
        %4581 = vmatmul.f32.gmra.mxu0 %v4466
        %v4582 = vpop.f32.mrf.mxu0
        %v4583 = vadd.f32 0.0, %v4582
        %4584 = vmatmul.f32.gmra.mxu0 %v4469
        %v4585 = vpop.f32.mrf.mxu0
        %v4586 = vadd.f32 0.0, %v4585
        %4587 = vmatmul.f32.gmra.mxu0 %v4472
        %v4588 = vpop.f32.mrf.mxu0
        %v4589 = vadd.f32 0.0, %v4588
        %4590 = vmatmul.f32.gmra.mxu0 %v4475
        %v4591 = vpop.f32.mrf.mxu0
        %v4592 = vadd.f32 0.0, %v4591
        %4593 = vmatmul.f32.gmra.mxu0 %v4478
        %v4594 = vpop.f32.mrf.mxu0
        %v4595 = vadd.f32 0.0, %v4594
        %4596 = vmatmul.f32.gmra.mxu0 %v4481
        %v4597 = vpop.f32.mrf.mxu0
        %v4598 = vadd.f32 0.0, %v4597
        %4599 = vmatmul.f32.gmra.mxu0 %v4484
        %v4600 = vpop.f32.mrf.mxu0
        %v4601 = vadd.f32 0.0, %v4600
        %4602 = vmatmul.f32.gmra.mxu0 %v4487
        %v4603 = vpop.f32.mrf.mxu0
        %v4604 = vadd.f32 0.0, %v4603
        %4605 = vmatmul.f32.gmra.mxu0 %v4490
        %v4606 = vpop.f32.mrf.mxu0
        %v4607 = vadd.f32 0.0, %v4606
        %4608 = vmatmul.f32.gmra.mxu0 %v4493
        %v4609 = vpop.f32.mrf.mxu0
        %v4610 = vadd.f32 0.0, %v4609
        %4611 = vmatmul.f32.gmra.mxu0 %v4496
        %v4612 = vpop.f32.mrf.mxu0
        %v4613 = vadd.f32 0.0, %v4612
        %4614 = vmatmul.f32.gmra.mxu0 %v4499
        %v4615 = vpop.f32.mrf.mxu0
        %v4616 = vadd.f32 0.0, %v4615
        %4617 = vmatmul.f32.gmra.mxu0 %v4502
        %v4618 = vpop.f32.mrf.mxu0
        %v4619 = vadd.f32 0.0, %v4618
        %4620 = vmatmul.f32.gmra.mxu0 %v4505
        %v4621 = vpop.f32.mrf.mxu0
        %v4622 = vadd.f32 0.0, %v4621
        %4623 = vmatmul.f32.gmra.mxu0 %v4508
        %v4624 = vpop.f32.mrf.mxu0
        %v4625 = vadd.f32 0.0, %v4624
        %4626 = vmatmul.f32.gmra.mxu0 %v4511
        %v4627 = vpop.f32.mrf.mxu0
        %v4628 = vadd.f32 0.0, %v4627
        %4629 = vmatmul.f32.gmra.mxu0 %v4514
        %v4630 = vpop.f32.mrf.mxu0
        %v4631 = vadd.f32 0.0, %v4630
        %4632 = vmatmul.f32.gmra.mxu0 %v4517
        %v4633 = vpop.f32.mrf.mxu0
        %v4634 = vadd.f32 0.0, %v4633
        %4635 = vmatmul.f32.gmra.mxu0 %v4520
        %v4636 = vpop.f32.mrf.mxu0
        %v4637 = vadd.f32 0.0, %v4636
        %4638 = vmatmul.f32.gmra.mxu0 %v4523
        %v4639 = vpop.f32.mrf.mxu0
        %v4640 = vadd.f32 0.0, %v4639
        %4641 = vmatmul.f32.gmra.mxu0 %v4526
        %v4642 = vpop.f32.mrf.mxu0
        %v4643 = vadd.f32 0.0, %v4642
        %4644 = vmatmul.f32.gmra.mxu0 %v4529
        %v4645 = vpop.f32.mrf.mxu0
        %v4646 = vadd.f32 0.0, %v4645
        %4647 = vmatmul.f32.gmra.mxu0 %v4532
        %v4648 = vpop.f32.mrf.mxu0
        %v4649 = vadd.f32 0.0, %v4648
        %4650 = vmatmul.f32.gmra.mxu0 %v4535
        %v4651 = vpop.f32.mrf.mxu0
        %v4652 = vadd.f32 0.0, %v4651
        %4653 = vmatmul.f32.gmra.mxu0 %v4538
        %v4654 = vpop.f32.mrf.mxu0
        %v4655 = vadd.f32 0.0, %v4654
        %4656 = vmatmul.f32.gmra.mxu0 %v4541
        %v4657 = vpop.f32.mrf.mxu0
        %v4658 = vadd.f32 0.0, %v4657
        %4659 = vmatmul.f32.gmra.mxu0 %v4544
        %v4660 = vpop.f32.mrf.mxu0
        %v4661 = vadd.f32 0.0, %v4660
        %4662 = vmatmul.f32.gmra.mxu0 %v4547
        %v4663 = vpop.f32.mrf.mxu0
        %v4664 = vadd.f32 0.0, %v4663
        %4665 = vmatmul.f32.gmra.mxu0 %v4550
        %v4666 = vpop.f32.mrf.mxu0
        %v4667 = vadd.f32 0.0, %v4666
        %4668 = vmatmul.f32.gmra.mxu0 %v4553
        %v4669 = vpop.f32.mrf.mxu0
        %v4670 = vadd.f32 0.0, %v4669
        %4671 = vmatmul.f32.gmra.mxu0 %v4556
        %v4672 = vpop.f32.mrf.mxu0
        %v4673 = vadd.f32 0.0, %v4672
        %4674 = vdwg.mxu0
        %v4676 = vsel %vm1268, %v1236, 0
        %v4679 = vsel %vm1268, %v1237, 0
        %v4682 = vsel %vm1268, %v1238, 0
        %v4685 = vsel %vm1268, %v1239, 0
        %v4688 = vsel %vm1268, %v1240, 0
        %v4691 = vsel %vm1268, %v1241, 0
        %v4694 = vsel %vm1268, %v1242, 0
        %v4697 = vsel %vm1268, %v1243, 0
        %v4700 = vsel %vm1268, %v1244, 0
        %v4703 = vsel %vm1268, %v1245, 0
        %v4706 = vsel %vm1268, %v1246, 0
        %v4709 = vsel %vm1268, %v1247, 0
        %v4712 = vsel %vm1268, %v1248, 0
        %v4715 = vsel %vm1268, %v1249, 0
        %v4718 = vsel %vm1268, %v1250, 0
        %v4721 = vsel %vm1268, %v1251, 0
        %v4724 = vsel %vm1268, %v1252, 0
        %v4727 = vsel %vm1268, %v1253, 0
        %v4730 = vsel %vm1268, %v1254, 0
        %v4733 = vsel %vm1268, %v1255, 0
        %v4736 = vsel %vm1268, %v1256, 0
        %v4739 = vsel %vm1268, %v1257, 0
        %v4742 = vsel %vm1268, %v1258, 0
        %v4745 = vsel %vm1268, %v1259, 0
        %v4748 = vsel %vm1268, %v1260, 0
        %v4751 = vsel %vm1268, %v1261, 0
        %v4754 = vsel %vm1268, %v1262, 0
        %v4757 = vsel %vm1268, %v1263, 0
        %v4760 = vsel %vm1268, %v1264, 0
        %v4763 = vsel %vm1268, %v1265, 0
        %v4766 = vsel %vm1268, %v1266, 0
        %v4769 = vsel %vm1268, %v1267, 0
        %v4772 = vsel %vm4558, %v4460, 0
        %4774 = vmatpush.msra.mxu0 0.0
        %4775 = vmatpush.msra.mxu0 0.0
        %4776 = vmatpush.msra.mxu0 0.0
        %4777 = vmatpush.msra.mxu0 0.0
        %4778 = vmatpush.msra.mxu0 0.0
        %4779 = vmatpush.msra.mxu0 0.0
        %4780 = vmatpush.msra.mxu0 0.0
        %4781 = vmatpush.msra.mxu0 0.0
        %4782 = vmatpush.msra.mxu0 0.0
        %4783 = vmatpush.msra.mxu0 0.0
        %4784 = vmatpush.msra.mxu0 0.0
        %4785 = vmatpush.msra.mxu0 0.0
        %4786 = vmatpush.msra.mxu0 0.0
        %4787 = vmatpush.msra.mxu0 0.0
        %4788 = vmatpush.msra.mxu0 0.0
        %4789 = vmatpush.msra.mxu0 %v4772
        %4790 = vmatmul.f32.gmra.mxu0 %v4676
        %v4791 = vpop.f32.mrf.mxu0
        %v4792 = vadd.f32 %v4580, %v4791
        %4793 = vmatmul.f32.gmra.mxu0 %v4679
        %v4794 = vpop.f32.mrf.mxu0
        %v4795 = vadd.f32 %v4583, %v4794
        %4796 = vmatmul.f32.gmra.mxu0 %v4682
        %v4797 = vpop.f32.mrf.mxu0
        %v4798 = vadd.f32 %v4586, %v4797
        %4799 = vmatmul.f32.gmra.mxu0 %v4685
        %v4800 = vpop.f32.mrf.mxu0
        %v4801 = vadd.f32 %v4589, %v4800
        %4802 = vmatmul.f32.gmra.mxu0 %v4688
        %v4803 = vpop.f32.mrf.mxu0
        %v4804 = vadd.f32 %v4592, %v4803
        %4805 = vmatmul.f32.gmra.mxu0 %v4691
        %v4806 = vpop.f32.mrf.mxu0
        %v4807 = vadd.f32 %v4595, %v4806
        %4808 = vmatmul.f32.gmra.mxu0 %v4694
        %v4809 = vpop.f32.mrf.mxu0
        %v4810 = vadd.f32 %v4598, %v4809
        %4811 = vmatmul.f32.gmra.mxu0 %v4697
        %v4812 = vpop.f32.mrf.mxu0
        %v4813 = vadd.f32 %v4601, %v4812
        %4814 = vmatmul.f32.gmra.mxu0 %v4700
        %v4815 = vpop.f32.mrf.mxu0
        %v4816 = vadd.f32 %v4604, %v4815
        %4817 = vmatmul.f32.gmra.mxu0 %v4703
        %v4818 = vpop.f32.mrf.mxu0
        %v4819 = vadd.f32 %v4607, %v4818
        %4820 = vmatmul.f32.gmra.mxu0 %v4706
        %v4821 = vpop.f32.mrf.mxu0
        %v4822 = vadd.f32 %v4610, %v4821
        %4823 = vmatmul.f32.gmra.mxu0 %v4709
        %v4824 = vpop.f32.mrf.mxu0
        %v4825 = vadd.f32 %v4613, %v4824
        %4826 = vmatmul.f32.gmra.mxu0 %v4712
        %v4827 = vpop.f32.mrf.mxu0
        %v4828 = vadd.f32 %v4616, %v4827
        %4829 = vmatmul.f32.gmra.mxu0 %v4715
        %v4830 = vpop.f32.mrf.mxu0
        %v4831 = vadd.f32 %v4619, %v4830
        %4832 = vmatmul.f32.gmra.mxu0 %v4718
        %v4833 = vpop.f32.mrf.mxu0
        %v4834 = vadd.f32 %v4622, %v4833
        %4835 = vmatmul.f32.gmra.mxu0 %v4721
        %v4836 = vpop.f32.mrf.mxu0
        %v4837 = vadd.f32 %v4625, %v4836
        %4838 = vmatmul.f32.gmra.mxu0 %v4724
        %v4839 = vpop.f32.mrf.mxu0
        %v4840 = vadd.f32 %v4628, %v4839
        %4841 = vmatmul.f32.gmra.mxu0 %v4727
        %v4842 = vpop.f32.mrf.mxu0
        %v4843 = vadd.f32 %v4631, %v4842
        %4844 = vmatmul.f32.gmra.mxu0 %v4730
        %v4845 = vpop.f32.mrf.mxu0
        %v4846 = vadd.f32 %v4634, %v4845
        %4847 = vmatmul.f32.gmra.mxu0 %v4733
        %v4848 = vpop.f32.mrf.mxu0
        %v4849 = vadd.f32 %v4637, %v4848
        %4850 = vmatmul.f32.gmra.mxu0 %v4736
        %v4851 = vpop.f32.mrf.mxu0
        %v4852 = vadd.f32 %v4640, %v4851
        %4853 = vmatmul.f32.gmra.mxu0 %v4739
        %v4854 = vpop.f32.mrf.mxu0
        %v4855 = vadd.f32 %v4643, %v4854
        %4856 = vmatmul.f32.gmra.mxu0 %v4742
        %v4857 = vpop.f32.mrf.mxu0
        %v4858 = vadd.f32 %v4646, %v4857
        %4859 = vmatmul.f32.gmra.mxu0 %v4745
        %v4860 = vpop.f32.mrf.mxu0
        %v4861 = vadd.f32 %v4649, %v4860
        %4862 = vmatmul.f32.gmra.mxu0 %v4748
        %v4863 = vpop.f32.mrf.mxu0
        %v4864 = vadd.f32 %v4652, %v4863
        %4865 = vmatmul.f32.gmra.mxu0 %v4751
        %v4866 = vpop.f32.mrf.mxu0
        %v4867 = vadd.f32 %v4655, %v4866
        %4868 = vmatmul.f32.gmra.mxu0 %v4754
        %v4869 = vpop.f32.mrf.mxu0
        %v4870 = vadd.f32 %v4658, %v4869
        %4871 = vmatmul.f32.gmra.mxu0 %v4757
        %v4872 = vpop.f32.mrf.mxu0
        %v4873 = vadd.f32 %v4661, %v4872
        %4874 = vmatmul.f32.gmra.mxu0 %v4760
        %v4875 = vpop.f32.mrf.mxu0
        %v4876 = vadd.f32 %v4664, %v4875
        %4877 = vmatmul.f32.gmra.mxu0 %v4763
        %v4878 = vpop.f32.mrf.mxu0
        %v4879 = vadd.f32 %v4667, %v4878
        %4880 = vmatmul.f32.gmra.mxu0 %v4766
        %v4881 = vpop.f32.mrf.mxu0
        %v4882 = vadd.f32 %v4670, %v4881
        %4883 = vmatmul.f32.gmra.mxu0 %v4769
        %v4884 = vpop.f32.mrf.mxu0
        %v4885 = vadd.f32 %v4673, %v4884
        %4886 = vdwg.mxu0
        %v4887 = vld [vmem:[%s7] sm:$0x1]
        %v4889 = vperm.slane %v4887, 0
        %v4891 = vadd.f32 %v4792, %v4889
        %v4892 = vadd.f32 %v4795, %v4889
        %v4893 = vadd.f32 %v4798, %v4889
        %v4894 = vadd.f32 %v4801, %v4889
        %v4895 = vadd.f32 %v4804, %v4889
        %v4896 = vadd.f32 %v4807, %v4889
        %v4897 = vadd.f32 %v4810, %v4889
        %v4898 = vadd.f32 %v4813, %v4889
        %v4899 = vadd.f32 %v4816, %v4889
        %v4900 = vadd.f32 %v4819, %v4889
        %v4901 = vadd.f32 %v4822, %v4889
        %v4902 = vadd.f32 %v4825, %v4889
        %v4903 = vadd.f32 %v4828, %v4889
        %v4904 = vadd.f32 %v4831, %v4889
        %v4905 = vadd.f32 %v4834, %v4889
        %v4906 = vadd.f32 %v4837, %v4889
        %v4907 = vadd.f32 %v4840, %v4889
        %v4908 = vadd.f32 %v4843, %v4889
        %v4909 = vadd.f32 %v4846, %v4889
        %v4910 = vadd.f32 %v4849, %v4889
        %v4911 = vadd.f32 %v4852, %v4889
        %v4912 = vadd.f32 %v4855, %v4889
        %v4913 = vadd.f32 %v4858, %v4889
        %v4914 = vadd.f32 %v4861, %v4889
        %v4915 = vadd.f32 %v4864, %v4889
        %v4916 = vadd.f32 %v4867, %v4889
        %v4917 = vadd.f32 %v4870, %v4889
        %v4918 = vadd.f32 %v4873, %v4889
        %v4919 = vadd.f32 %v4876, %v4889
        %v4920 = vadd.f32 %v4879, %v4889
        %v4921 = vadd.f32 %v4882, %v4889
        %v4922 = vadd.f32 %v4885, %v4889
        %vm4923 = vcmask 64512
        %4924 = vst.msk [vmem:[#allocation3] sm:$0xff] %vm4923, 0.0
        %4925 = vst.msk [vmem:[#allocation3 + $0x8] sm:$0xff] %vm4923, 0.0
        %vm4926 = vcmask 60416
        %4927 = vst.msk [vmem:[#allocation3 + $0x10] sm:$0xf] %vm4926, 0.0
        %4928 = vst.msk [vmem:[#allocation3 + $0x18] sm:$0xff] %vm4923, 0.0
        %4929 = vst.msk [vmem:[#allocation3 + $0x20] sm:$0xff] %vm4923, 0.0
        %4930 = vst.msk [vmem:[#allocation3 + $0x28] sm:$0xf] %vm4926, 0.0
        %4931 = vst.msk [vmem:[#allocation3 + $0x30] sm:$0xff] %vm4923, 0.0
        %4932 = vst.msk [vmem:[#allocation3 + $0x38] sm:$0xff] %vm4923, 0.0
        %4933 = vst.msk [vmem:[#allocation3 + $0x40] sm:$0xf] %vm4926, 0.0
        %4934 = vst.msk [vmem:[#allocation3 + $0x48] sm:$0xff] %vm4923, 0.0
        %4935 = vst.msk [vmem:[#allocation3 + $0x50] sm:$0xff] %vm4923, 0.0
        %4936 = vst.msk [vmem:[#allocation3 + $0x58] sm:$0xf] %vm4926, 0.0
        %4937 = vst.msk [vmem:[#allocation3 + $0x60] sm:$0xff] %vm4923, 0.0
        %4938 = vst.msk [vmem:[#allocation3 + $0x68] sm:$0xff] %vm4923, 0.0
        %4939 = vst.msk [vmem:[#allocation3 + $0x70] sm:$0xf] %vm4926, 0.0
        %4940 = vst.msk [vmem:[#allocation3 + $0x78] sm:$0xff] %vm4923, 0.0
        %4941 = vst.msk [vmem:[#allocation3 + $0x80] sm:$0xff] %vm4923, 0.0
        %4942 = vst.msk [vmem:[#allocation3 + $0x88] sm:$0xf] %vm4926, 0.0
        %4943 = vst.msk [vmem:[#allocation3 + $0x90] sm:$0xff] %vm4923, 0.0
        %4944 = vst.msk [vmem:[#allocation3 + $0x98] sm:$0xff] %vm4923, 0.0
        %4945 = vst.msk [vmem:[#allocation3 + $0xa0] sm:$0xf] %vm4926, 0.0
        %4946 = vst.msk [vmem:[#allocation3 + $0xa8] sm:$0xff] %vm4923, 0.0
        %4947 = vst.msk [vmem:[#allocation3 + $0xb0] sm:$0xff] %vm4923, 0.0
        %4948 = vst.msk [vmem:[#allocation3 + $0xb8] sm:$0xf] %vm4926, 0.0
        %4949 = vst.msk [vmem:[#allocation3 + $0xc0] sm:$0xff] %vm4923, 0.0
        %4950 = vst.msk [vmem:[#allocation3 + $0xc8] sm:$0xff] %vm4923, 0.0
        %4951 = vst.msk [vmem:[#allocation3 + $0xd0] sm:$0xf] %vm4926, 0.0
        %4952 = vst.msk [vmem:[#allocation3 + $0xd8] sm:$0xff] %vm4923, 0.0
        %4953 = vst.msk [vmem:[#allocation3 + $0xe0] sm:$0xff] %vm4923, 0.0
        %4954 = vst.msk [vmem:[#allocation3 + $0xe8] sm:$0xf] %vm4926, 0.0
        %4955 = vst.msk [vmem:[#allocation3 + $0xf0] sm:$0xff] %vm4923, 0.0
        %4956 = vst.msk [vmem:[#allocation3 + $0xf8] sm:$0xff] %vm4923, 0.0
        %4957 = vst.msk [vmem:[#allocation3 + $0x100] sm:$0xf] %vm4926, 0.0
        %4958 = vst.msk [vmem:[#allocation3 + $0x108] sm:$0xff] %vm4923, 0.0
        %4959 = vst.msk [vmem:[#allocation3 + $0x110] sm:$0xff] %vm4923, 0.0
        %4960 = vst.msk [vmem:[#allocation3 + $0x118] sm:$0xf] %vm4926, 0.0
        %4961 = vst.msk [vmem:[#allocation3 + $0x120] sm:$0xff] %vm4923, 0.0
        %4962 = vst.msk [vmem:[#allocation3 + $0x128] sm:$0xff] %vm4923, 0.0
        %4963 = vst.msk [vmem:[#allocation3 + $0x130] sm:$0xf] %vm4926, 0.0
        %4964 = vst.msk [vmem:[#allocation3 + $0x138] sm:$0xff] %vm4923, 0.0
        %4965 = vst.msk [vmem:[#allocation3 + $0x140] sm:$0xff] %vm4923, 0.0
        %4966 = vst.msk [vmem:[#allocation3 + $0x148] sm:$0xf] %vm4926, 0.0
        %4967 = vst.msk [vmem:[#allocation3 + $0x150] sm:$0xff] %vm4923, 0.0
        %4968 = vst.msk [vmem:[#allocation3 + $0x158] sm:$0xff] %vm4923, 0.0
        %4969 = vst.msk [vmem:[#allocation3 + $0x160] sm:$0xf] %vm4926, 0.0
        %4970 = vst.msk [vmem:[#allocation3 + $0x168] sm:$0xff] %vm4923, 0.0
        %4971 = vst.msk [vmem:[#allocation3 + $0x170] sm:$0xff] %vm4923, 0.0
        %4972 = vst.msk [vmem:[#allocation3 + $0x178] sm:$0xf] %vm4926, 0.0
        %4973 = vst.msk [vmem:[#allocation3 + $0x180] sm:$0xff] %vm4923, 0.0
        %4974 = vst.msk [vmem:[#allocation3 + $0x188] sm:$0xff] %vm4923, 0.0
        %4975 = vst.msk [vmem:[#allocation3 + $0x190] sm:$0xf] %vm4926, 0.0
        %4976 = vst.msk [vmem:[#allocation3 + $0x198] sm:$0xff] %vm4923, 0.0
        %4977 = vst.msk [vmem:[#allocation3 + $0x1a0] sm:$0xff] %vm4923, 0.0
        %4978 = vst.msk [vmem:[#allocation3 + $0x1a8] sm:$0xf] %vm4926, 0.0
        %4979 = vst.msk [vmem:[#allocation3 + $0x1b0] sm:$0xff] %vm4923, 0.0
        %4980 = vst.msk [vmem:[#allocation3 + $0x1b8] sm:$0xff] %vm4923, 0.0
        %4981 = vst.msk [vmem:[#allocation3 + $0x1c0] sm:$0xf] %vm4926, 0.0
        %4982 = vst.msk [vmem:[#allocation3 + $0x1c8] sm:$0xff] %vm4923, 0.0
        %4983 = vst.msk [vmem:[#allocation3 + $0x1d0] sm:$0xff] %vm4923, 0.0
        %4984 = vst.msk [vmem:[#allocation3 + $0x1d8] sm:$0xf] %vm4926, 0.0
        %s4985 = scalar_lea.vmem [#allocation3], 48
        %4986 = vst.msk [vmem:[%s4985 + $0x2] sm:$0xff] %vm4923, %v4891
        %4987 = vst.msk [vmem:[%s4985 + $0xa] sm:$0xff] %vm4923, %v4892
        %4988 = vst.msk [vmem:[%s4985 + $0x1a] sm:$0xff] %vm4923, %v4893
        %4989 = vst.msk [vmem:[%s4985 + $0x22] sm:$0xff] %vm4923, %v4894
        %4990 = vst.msk [vmem:[%s4985 + $0x32] sm:$0xff] %vm4923, %v4895
        %4991 = vst.msk [vmem:[%s4985 + $0x3a] sm:$0xff] %vm4923, %v4896
        %4992 = vst.msk [vmem:[%s4985 + $0x4a] sm:$0xff] %vm4923, %v4897
        %4993 = vst.msk [vmem:[%s4985 + $0x52] sm:$0xff] %vm4923, %v4898
        %4994 = vst.msk [vmem:[%s4985 + $0x62] sm:$0xff] %vm4923, %v4899
        %4995 = vst.msk [vmem:[%s4985 + $0x6a] sm:$0xff] %vm4923, %v4900
        %4996 = vst.msk [vmem:[%s4985 + $0x7a] sm:$0xff] %vm4923, %v4901
        %4997 = vst.msk [vmem:[%s4985 + $0x82] sm:$0xff] %vm4923, %v4902
        %4998 = vst.msk [vmem:[%s4985 + $0x92] sm:$0xff] %vm4923, %v4903
        %4999 = vst.msk [vmem:[%s4985 + $0x9a] sm:$0xff] %vm4923, %v4904
        %5000 = vst.msk [vmem:[%s4985 + $0xaa] sm:$0xff] %vm4923, %v4905
        %5001 = vst.msk [vmem:[%s4985 + $0xb2] sm:$0xff] %vm4923, %v4906
        %5002 = vst.msk [vmem:[%s4985 + $0xc2] sm:$0xff] %vm4923, %v4907
        %5003 = vst.msk [vmem:[%s4985 + $0xca] sm:$0xff] %vm4923, %v4908
        %5004 = vst.msk [vmem:[%s4985 + $0xda] sm:$0xff] %vm4923, %v4909
        %5005 = vst.msk [vmem:[%s4985 + $0xe2] sm:$0xff] %vm4923, %v4910
        %5006 = vst.msk [vmem:[%s4985 + $0xf2] sm:$0xff] %vm4923, %v4911
        %5007 = vst.msk [vmem:[%s4985 + $0xfa] sm:$0xff] %vm4923, %v4912
        %5008 = vst.msk [vmem:[%s4985 + $0x10a] sm:$0xff] %vm4923, %v4913
        %5009 = vst.msk [vmem:[%s4985 + $0x112] sm:$0xff] %vm4923, %v4914
        %5010 = vst.msk [vmem:[%s4985 + $0x122] sm:$0xff] %vm4923, %v4915
        %5011 = vst.msk [vmem:[%s4985 + $0x12a] sm:$0xff] %vm4923, %v4916
        %5012 = vst.msk [vmem:[%s4985 + $0x13a] sm:$0xff] %vm4923, %v4917
        %5013 = vst.msk [vmem:[%s4985 + $0x142] sm:$0xff] %vm4923, %v4918
        %5014 = vst.msk [vmem:[%s4985 + $0x152] sm:$0xff] %vm4923, %v4919
        %5015 = vst.msk [vmem:[%s4985 + $0x15a] sm:$0xff] %vm4923, %v4920
        %5016 = vst.msk [vmem:[%s4985 + $0x16a] sm:$0xff] %vm4923, %v4921
        %5017 = vst.msk [vmem:[%s4985 + $0x172] sm:$0xff] %vm4923, %v4922
        %v5018 = vld [vmem:[#allocation3] sm:$0xff]
        %v5019 = vld [vmem:[#allocation3 + $0x8] sm:$0xff]
        %v5020 = vld [vmem:[#allocation3 + $0x18] sm:$0xff]
        %v5021 = vld [vmem:[#allocation3 + $0x20] sm:$0xff]
        %v5022 = vld [vmem:[#allocation3 + $0x30] sm:$0xff]
        %v5023 = vld [vmem:[#allocation3 + $0x38] sm:$0xff]
        %v5024 = vld [vmem:[#allocation3 + $0x48] sm:$0xff]
        %v5025 = vld [vmem:[#allocation3 + $0x50] sm:$0xff]
        %v5026 = vld [vmem:[#allocation3 + $0x60] sm:$0xff]
        %v5027 = vld [vmem:[#allocation3 + $0x68] sm:$0xff]
        %v5028 = vld [vmem:[#allocation3 + $0x78] sm:$0xff]
        %v5029 = vld [vmem:[#allocation3 + $0x80] sm:$0xff]
        %v5030 = vld [vmem:[#allocation3 + $0x90] sm:$0xff]
        %v5031 = vld [vmem:[#allocation3 + $0x98] sm:$0xff]
        %v5032 = vld [vmem:[#allocation3 + $0xa8] sm:$0xff]
        %v5033 = vld [vmem:[#allocation3 + $0xb0] sm:$0xff]
        %v5034 = vld [vmem:[#allocation3 + $0xc0] sm:$0xff]
        %v5035 = vld [vmem:[#allocation3 + $0xc8] sm:$0xff]
        %v5036 = vld [vmem:[#allocation3 + $0xd8] sm:$0xff]
        %v5037 = vld [vmem:[#allocation3 + $0xe0] sm:$0xff]
        %v5038 = vld [vmem:[#allocation3 + $0xf0] sm:$0xff]
        %v5039 = vld [vmem:[#allocation3 + $0xf8] sm:$0xff]
        %v5040 = vld [vmem:[#allocation3 + $0x108] sm:$0xff]
        %v5041 = vld [vmem:[#allocation3 + $0x110] sm:$0xff]
        %v5042 = vld [vmem:[#allocation3 + $0x120] sm:$0xff]
        %v5043 = vld [vmem:[#allocation3 + $0x128] sm:$0xff]
        %v5044 = vld [vmem:[#allocation3 + $0x138] sm:$0xff]
        %v5045 = vld [vmem:[#allocation3 + $0x140] sm:$0xff]
        %v5046 = vld [vmem:[#allocation3 + $0x150] sm:$0xff]
        %v5047 = vld [vmem:[#allocation3 + $0x158] sm:$0xff]
        %v5048 = vld [vmem:[#allocation3 + $0x168] sm:$0xff]
        %v5049 = vld [vmem:[#allocation3 + $0x170] sm:$0xff]
        %v5050 = vld [vmem:[%s8] sm:$0x1]
        %v5051 = vperm.slane %v5050, 0
        %v5052 = vmul.f32 %v5018, %v5051
        %v5053 = vmul.f32 %v5019, %v5051
        %v5054 = vmul.f32 %v5020, %v5051
        %v5055 = vmul.f32 %v5021, %v5051
        %v5056 = vmul.f32 %v5022, %v5051
        %v5057 = vmul.f32 %v5023, %v5051
        %v5058 = vmul.f32 %v5024, %v5051
        %v5059 = vmul.f32 %v5025, %v5051
        %v5060 = vmul.f32 %v5026, %v5051
        %v5061 = vmul.f32 %v5027, %v5051
        %v5062 = vmul.f32 %v5028, %v5051
        %v5063 = vmul.f32 %v5029, %v5051
        %v5064 = vmul.f32 %v5030, %v5051
        %v5065 = vmul.f32 %v5031, %v5051
        %v5066 = vmul.f32 %v5032, %v5051
        %v5067 = vmul.f32 %v5033, %v5051
        %v5068 = vmul.f32 %v5034, %v5051
        %v5069 = vmul.f32 %v5035, %v5051
        %v5070 = vmul.f32 %v5036, %v5051
        %v5071 = vmul.f32 %v5037, %v5051
        %v5072 = vmul.f32 %v5038, %v5051
        %v5073 = vmul.f32 %v5039, %v5051
        %v5074 = vmul.f32 %v5040, %v5051
        %v5075 = vmul.f32 %v5041, %v5051
        %v5076 = vmul.f32 %v5042, %v5051
        %v5077 = vmul.f32 %v5043, %v5051
        %v5078 = vmul.f32 %v5044, %v5051
        %v5079 = vmul.f32 %v5045, %v5051
        %v5080 = vmul.f32 %v5046, %v5051
        %v5081 = vmul.f32 %v5047, %v5051
        %v5082 = vmul.f32 %v5048, %v5051
        %v5083 = vmul.f32 %v5049, %v5051
        %v5084 = vld [vmem:[#allocation3 + $0x1] sm:$0xff]
        %v5085 = vld [vmem:[#allocation3 + $0x9] sm:$0xff]
        %v5086 = vld [vmem:[#allocation3 + $0x19] sm:$0xff]
        %v5087 = vld [vmem:[#allocation3 + $0x21] sm:$0xff]
        %v5088 = vld [vmem:[#allocation3 + $0x31] sm:$0xff]
        %v5089 = vld [vmem:[#allocation3 + $0x39] sm:$0xff]
        %v5090 = vld [vmem:[#allocation3 + $0x49] sm:$0xff]
        %v5091 = vld [vmem:[#allocation3 + $0x51] sm:$0xff]
        %v5092 = vld [vmem:[#allocation3 + $0x61] sm:$0xff]
        %v5093 = vld [vmem:[#allocation3 + $0x69] sm:$0xff]
        %v5094 = vld [vmem:[#allocation3 + $0x79] sm:$0xff]
        %v5095 = vld [vmem:[#allocation3 + $0x81] sm:$0xff]
        %v5096 = vld [vmem:[#allocation3 + $0x91] sm:$0xff]
        %v5097 = vld [vmem:[#allocation3 + $0x99] sm:$0xff]
        %v5098 = vld [vmem:[#allocation3 + $0xa9] sm:$0xff]
        %v5099 = vld [vmem:[#allocation3 + $0xb1] sm:$0xff]
        %v5100 = vld [vmem:[#allocation3 + $0xc1] sm:$0xff]
        %v5101 = vld [vmem:[#allocation3 + $0xc9] sm:$0xff]
        %v5102 = vld [vmem:[#allocation3 + $0xd9] sm:$0xff]
        %v5103 = vld [vmem:[#allocation3 + $0xe1] sm:$0xff]
        %v5104 = vld [vmem:[#allocation3 + $0xf1] sm:$0xff]
        %v5105 = vld [vmem:[#allocation3 + $0xf9] sm:$0xff]
        %v5106 = vld [vmem:[#allocation3 + $0x109] sm:$0xff]
        %v5107 = vld [vmem:[#allocation3 + $0x111] sm:$0xff]
        %v5108 = vld [vmem:[#allocation3 + $0x121] sm:$0xff]
        %v5109 = vld [vmem:[#allocation3 + $0x129] sm:$0xff]
        %v5110 = vld [vmem:[#allocation3 + $0x139] sm:$0xff]
        %v5111 = vld [vmem:[#allocation3 + $0x141] sm:$0xff]
        %v5112 = vld [vmem:[#allocation3 + $0x151] sm:$0xff]
        %v5113 = vld [vmem:[#allocation3 + $0x159] sm:$0xff]
        %v5114 = vld [vmem:[#allocation3 + $0x169] sm:$0xff]
        %v5115 = vld [vmem:[#allocation3 + $0x171] sm:$0xff]
        %v5116 = vld [vmem:[%s8 + $0x1] sm:$0x1]
        %v5117 = vperm.slane %v5116, 0
        %v5118 = vmul.f32 %v5084, %v5117
        %v5119 = vmul.f32 %v5085, %v5117
        %v5120 = vmul.f32 %v5086, %v5117
        %v5121 = vmul.f32 %v5087, %v5117
        %v5122 = vmul.f32 %v5088, %v5117
        %v5123 = vmul.f32 %v5089, %v5117
        %v5124 = vmul.f32 %v5090, %v5117
        %v5125 = vmul.f32 %v5091, %v5117
        %v5126 = vmul.f32 %v5092, %v5117
        %v5127 = vmul.f32 %v5093, %v5117
        %v5128 = vmul.f32 %v5094, %v5117
        %v5129 = vmul.f32 %v5095, %v5117
        %v5130 = vmul.f32 %v5096, %v5117
        %v5131 = vmul.f32 %v5097, %v5117
        %v5132 = vmul.f32 %v5098, %v5117
        %v5133 = vmul.f32 %v5099, %v5117
        %v5134 = vmul.f32 %v5100, %v5117
        %v5135 = vmul.f32 %v5101, %v5117
        %v5136 = vmul.f32 %v5102, %v5117
        %v5137 = vmul.f32 %v5103, %v5117
        %v5138 = vmul.f32 %v5104, %v5117
        %v5139 = vmul.f32 %v5105, %v5117
        %v5140 = vmul.f32 %v5106, %v5117
        %v5141 = vmul.f32 %v5107, %v5117
        %v5142 = vmul.f32 %v5108, %v5117
        %v5143 = vmul.f32 %v5109, %v5117
        %v5144 = vmul.f32 %v5110, %v5117
        %v5145 = vmul.f32 %v5111, %v5117
        %v5146 = vmul.f32 %v5112, %v5117
        %v5147 = vmul.f32 %v5113, %v5117
        %v5148 = vmul.f32 %v5114, %v5117
        %v5149 = vmul.f32 %v5115, %v5117
        %v5150 = vadd.f32 %v5052, %v5118
        %v5151 = vadd.f32 %v5053, %v5119
        %v5152 = vadd.f32 %v5054, %v5120
        %v5153 = vadd.f32 %v5055, %v5121
        %v5154 = vadd.f32 %v5056, %v5122
        %v5155 = vadd.f32 %v5057, %v5123
        %v5156 = vadd.f32 %v5058, %v5124
        %v5157 = vadd.f32 %v5059, %v5125
        %v5158 = vadd.f32 %v5060, %v5126
        %v5159 = vadd.f32 %v5061, %v5127
        %v5160 = vadd.f32 %v5062, %v5128
        %v5161 = vadd.f32 %v5063, %v5129
        %v5162 = vadd.f32 %v5064, %v5130
        %v5163 = vadd.f32 %v5065, %v5131
        %v5164 = vadd.f32 %v5066, %v5132
        %v5165 = vadd.f32 %v5067, %v5133
        %v5166 = vadd.f32 %v5068, %v5134
        %v5167 = vadd.f32 %v5069, %v5135
        %v5168 = vadd.f32 %v5070, %v5136
        %v5169 = vadd.f32 %v5071, %v5137
        %v5170 = vadd.f32 %v5072, %v5138
        %v5171 = vadd.f32 %v5073, %v5139
        %v5172 = vadd.f32 %v5074, %v5140
        %v5173 = vadd.f32 %v5075, %v5141
        %v5174 = vadd.f32 %v5076, %v5142
        %v5175 = vadd.f32 %v5077, %v5143
        %v5176 = vadd.f32 %v5078, %v5144
        %v5177 = vadd.f32 %v5079, %v5145
        %v5178 = vadd.f32 %v5080, %v5146
        %v5179 = vadd.f32 %v5081, %v5147
        %v5180 = vadd.f32 %v5082, %v5148
        %v5181 = vadd.f32 %v5083, %v5149
        %v5182 = vld [vmem:[#allocation3 + $0x2] sm:$0xff]
        %v5183 = vld [vmem:[#allocation3 + $0xa] sm:$0xff]
        %v5184 = vld [vmem:[#allocation3 + $0x1a] sm:$0xff]
        %v5185 = vld [vmem:[#allocation3 + $0x22] sm:$0xff]
        %v5186 = vld [vmem:[#allocation3 + $0x32] sm:$0xff]
        %v5187 = vld [vmem:[#allocation3 + $0x3a] sm:$0xff]
        %v5188 = vld [vmem:[#allocation3 + $0x4a] sm:$0xff]
        %v5189 = vld [vmem:[#allocation3 + $0x52] sm:$0xff]
        %v5190 = vld [vmem:[#allocation3 + $0x62] sm:$0xff]
        %v5191 = vld [vmem:[#allocation3 + $0x6a] sm:$0xff]
        %v5192 = vld [vmem:[#allocation3 + $0x7a] sm:$0xff]
        %v5193 = vld [vmem:[#allocation3 + $0x82] sm:$0xff]
        %v5194 = vld [vmem:[#allocation3 + $0x92] sm:$0xff]
        %v5195 = vld [vmem:[#allocation3 + $0x9a] sm:$0xff]
        %v5196 = vld [vmem:[#allocation3 + $0xaa] sm:$0xff]
        %v5197 = vld [vmem:[#allocation3 + $0xb2] sm:$0xff]
        %v5198 = vld [vmem:[#allocation3 + $0xc2] sm:$0xff]
        %v5199 = vld [vmem:[#allocation3 + $0xca] sm:$0xff]
        %v5200 = vld [vmem:[#allocation3 + $0xda] sm:$0xff]
        %v5201 = vld [vmem:[#allocation3 + $0xe2] sm:$0xff]
        %v5202 = vld [vmem:[#allocation3 + $0xf2] sm:$0xff]
        %v5203 = vld [vmem:[#allocation3 + $0xfa] sm:$0xff]
        %v5204 = vld [vmem:[#allocation3 + $0x10a] sm:$0xff]
        %v5205 = vld [vmem:[#allocation3 + $0x112] sm:$0xff]
        %v5206 = vld [vmem:[#allocation3 + $0x122] sm:$0xff]
        %v5207 = vld [vmem:[#allocation3 + $0x12a] sm:$0xff]
        %v5208 = vld [vmem:[#allocation3 + $0x13a] sm:$0xff]
        %v5209 = vld [vmem:[#allocation3 + $0x142] sm:$0xff]
        %v5210 = vld [vmem:[#allocation3 + $0x152] sm:$0xff]
        %v5211 = vld [vmem:[#allocation3 + $0x15a] sm:$0xff]
        %v5212 = vld [vmem:[#allocation3 + $0x16a] sm:$0xff]
        %v5213 = vld [vmem:[#allocation3 + $0x172] sm:$0xff]
        %v5214 = vld [vmem:[%s8 + $0x2] sm:$0x1]
        %v5215 = vperm.slane %v5214, 0
        %v5216 = vmul.f32 %v5182, %v5215
        %v5217 = vmul.f32 %v5183, %v5215
        %v5218 = vmul.f32 %v5184, %v5215
        %v5219 = vmul.f32 %v5185, %v5215
        %v5220 = vmul.f32 %v5186, %v5215
        %v5221 = vmul.f32 %v5187, %v5215
        %v5222 = vmul.f32 %v5188, %v5215
        %v5223 = vmul.f32 %v5189, %v5215
        %v5224 = vmul.f32 %v5190, %v5215
        %v5225 = vmul.f32 %v5191, %v5215
        %v5226 = vmul.f32 %v5192, %v5215
        %v5227 = vmul.f32 %v5193, %v5215
        %v5228 = vmul.f32 %v5194, %v5215
        %v5229 = vmul.f32 %v5195, %v5215
        %v5230 = vmul.f32 %v5196, %v5215
        %v5231 = vmul.f32 %v5197, %v5215
        %v5232 = vmul.f32 %v5198, %v5215
        %v5233 = vmul.f32 %v5199, %v5215
        %v5234 = vmul.f32 %v5200, %v5215
        %v5235 = vmul.f32 %v5201, %v5215
        %v5236 = vmul.f32 %v5202, %v5215
        %v5237 = vmul.f32 %v5203, %v5215
        %v5238 = vmul.f32 %v5204, %v5215
        %v5239 = vmul.f32 %v5205, %v5215
        %v5240 = vmul.f32 %v5206, %v5215
        %v5241 = vmul.f32 %v5207, %v5215
        %v5242 = vmul.f32 %v5208, %v5215
        %v5243 = vmul.f32 %v5209, %v5215
        %v5244 = vmul.f32 %v5210, %v5215
        %v5245 = vmul.f32 %v5211, %v5215
        %v5246 = vmul.f32 %v5212, %v5215
        %v5247 = vmul.f32 %v5213, %v5215
        %v5248 = vadd.f32 %v5150, %v5216
        %v5249 = vadd.f32 %v5151, %v5217
        %v5250 = vadd.f32 %v5152, %v5218
        %v5251 = vadd.f32 %v5153, %v5219
        %v5252 = vadd.f32 %v5154, %v5220
        %v5253 = vadd.f32 %v5155, %v5221
        %v5254 = vadd.f32 %v5156, %v5222
        %v5255 = vadd.f32 %v5157, %v5223
        %v5256 = vadd.f32 %v5158, %v5224
        %v5257 = vadd.f32 %v5159, %v5225
        %v5258 = vadd.f32 %v5160, %v5226
        %v5259 = vadd.f32 %v5161, %v5227
        %v5260 = vadd.f32 %v5162, %v5228
        %v5261 = vadd.f32 %v5163, %v5229
        %v5262 = vadd.f32 %v5164, %v5230
        %v5263 = vadd.f32 %v5165, %v5231
        %v5264 = vadd.f32 %v5166, %v5232
        %v5265 = vadd.f32 %v5167, %v5233
        %v5266 = vadd.f32 %v5168, %v5234
        %v5267 = vadd.f32 %v5169, %v5235
        %v5268 = vadd.f32 %v5170, %v5236
        %v5269 = vadd.f32 %v5171, %v5237
        %v5270 = vadd.f32 %v5172, %v5238
        %v5271 = vadd.f32 %v5173, %v5239
        %v5272 = vadd.f32 %v5174, %v5240
        %v5273 = vadd.f32 %v5175, %v5241
        %v5274 = vadd.f32 %v5176, %v5242
        %v5275 = vadd.f32 %v5177, %v5243
        %v5276 = vadd.f32 %v5178, %v5244
        %v5277 = vadd.f32 %v5179, %v5245
        %v5278 = vadd.f32 %v5180, %v5246
        %v5279 = vadd.f32 %v5181, %v5247
        %v5280 = vld [vmem:[#allocation3 + $0x3] sm:$0xff]
        %v5281 = vld [vmem:[#allocation3 + $0xb] sm:$0xff]
        %v5282 = vld [vmem:[#allocation3 + $0x1b] sm:$0xff]
        %v5283 = vld [vmem:[#allocation3 + $0x23] sm:$0xff]
        %v5284 = vld [vmem:[#allocation3 + $0x33] sm:$0xff]
        %v5285 = vld [vmem:[#allocation3 + $0x3b] sm:$0xff]
        %v5286 = vld [vmem:[#allocation3 + $0x4b] sm:$0xff]
        %v5287 = vld [vmem:[#allocation3 + $0x53] sm:$0xff]
        %v5288 = vld [vmem:[#allocation3 + $0x63] sm:$0xff]
        %v5289 = vld [vmem:[#allocation3 + $0x6b] sm:$0xff]
        %v5290 = vld [vmem:[#allocation3 + $0x7b] sm:$0xff]
        %v5291 = vld [vmem:[#allocation3 + $0x83] sm:$0xff]
        %v5292 = vld [vmem:[#allocation3 + $0x93] sm:$0xff]
        %v5293 = vld [vmem:[#allocation3 + $0x9b] sm:$0xff]
        %v5294 = vld [vmem:[#allocation3 + $0xab] sm:$0xff]
        %v5295 = vld [vmem:[#allocation3 + $0xb3] sm:$0xff]
        %v5296 = vld [vmem:[#allocation3 + $0xc3] sm:$0xff]
        %v5297 = vld [vmem:[#allocation3 + $0xcb] sm:$0xff]
        %v5298 = vld [vmem:[#allocation3 + $0xdb] sm:$0xff]
        %v5299 = vld [vmem:[#allocation3 + $0xe3] sm:$0xff]
        %v5300 = vld [vmem:[#allocation3 + $0xf3] sm:$0xff]
        %v5301 = vld [vmem:[#allocation3 + $0xfb] sm:$0xff]
        %v5302 = vld [vmem:[#allocation3 + $0x10b] sm:$0xff]
        %v5303 = vld [vmem:[#allocation3 + $0x113] sm:$0xff]
        %v5304 = vld [vmem:[#allocation3 + $0x123] sm:$0xff]
        %v5305 = vld [vmem:[#allocation3 + $0x12b] sm:$0xff]
        %v5306 = vld [vmem:[#allocation3 + $0x13b] sm:$0xff]
        %v5307 = vld [vmem:[#allocation3 + $0x143] sm:$0xff]
        %v5308 = vld [vmem:[#allocation3 + $0x153] sm:$0xff]
        %v5309 = vld [vmem:[#allocation3 + $0x15b] sm:$0xff]
        %v5310 = vld [vmem:[#allocation3 + $0x16b] sm:$0xff]
        %v5311 = vld [vmem:[#allocation3 + $0x173] sm:$0xff]
        %v5312 = vld [vmem:[%s8 + $0x3] sm:$0x1]
        %v5313 = vperm.slane %v5312, 0
        %v5314 = vmul.f32 %v5280, %v5313
        %v5315 = vmul.f32 %v5281, %v5313
        %v5316 = vmul.f32 %v5282, %v5313
        %v5317 = vmul.f32 %v5283, %v5313
        %v5318 = vmul.f32 %v5284, %v5313
        %v5319 = vmul.f32 %v5285, %v5313
        %v5320 = vmul.f32 %v5286, %v5313
        %v5321 = vmul.f32 %v5287, %v5313
        %v5322 = vmul.f32 %v5288, %v5313
        %v5323 = vmul.f32 %v5289, %v5313
        %v5324 = vmul.f32 %v5290, %v5313
        %v5325 = vmul.f32 %v5291, %v5313
        %v5326 = vmul.f32 %v5292, %v5313
        %v5327 = vmul.f32 %v5293, %v5313
        %v5328 = vmul.f32 %v5294, %v5313
        %v5329 = vmul.f32 %v5295, %v5313
        %v5330 = vmul.f32 %v5296, %v5313
        %v5331 = vmul.f32 %v5297, %v5313
        %v5332 = vmul.f32 %v5298, %v5313
        %v5333 = vmul.f32 %v5299, %v5313
        %v5334 = vmul.f32 %v5300, %v5313
        %v5335 = vmul.f32 %v5301, %v5313
        %v5336 = vmul.f32 %v5302, %v5313
        %v5337 = vmul.f32 %v5303, %v5313
        %v5338 = vmul.f32 %v5304, %v5313
        %v5339 = vmul.f32 %v5305, %v5313
        %v5340 = vmul.f32 %v5306, %v5313
        %v5341 = vmul.f32 %v5307, %v5313
        %v5342 = vmul.f32 %v5308, %v5313
        %v5343 = vmul.f32 %v5309, %v5313
        %v5344 = vmul.f32 %v5310, %v5313
        %v5345 = vmul.f32 %v5311, %v5313
        %v5346 = vadd.f32 %v5248, %v5314
        %v5347 = vadd.f32 %v5249, %v5315
        %v5348 = vadd.f32 %v5250, %v5316
        %v5349 = vadd.f32 %v5251, %v5317
        %v5350 = vadd.f32 %v5252, %v5318
        %v5351 = vadd.f32 %v5253, %v5319
        %v5352 = vadd.f32 %v5254, %v5320
        %v5353 = vadd.f32 %v5255, %v5321
        %v5354 = vadd.f32 %v5256, %v5322
        %v5355 = vadd.f32 %v5257, %v5323
        %v5356 = vadd.f32 %v5258, %v5324
        %v5357 = vadd.f32 %v5259, %v5325
        %v5358 = vadd.f32 %v5260, %v5326
        %v5359 = vadd.f32 %v5261, %v5327
        %v5360 = vadd.f32 %v5262, %v5328
        %v5361 = vadd.f32 %v5263, %v5329
        %v5362 = vadd.f32 %v5264, %v5330
        %v5363 = vadd.f32 %v5265, %v5331
        %v5364 = vadd.f32 %v5266, %v5332
        %v5365 = vadd.f32 %v5267, %v5333
        %v5366 = vadd.f32 %v5268, %v5334
        %v5367 = vadd.f32 %v5269, %v5335
        %v5368 = vadd.f32 %v5270, %v5336
        %v5369 = vadd.f32 %v5271, %v5337
        %v5370 = vadd.f32 %v5272, %v5338
        %v5371 = vadd.f32 %v5273, %v5339
        %v5372 = vadd.f32 %v5274, %v5340
        %v5373 = vadd.f32 %v5275, %v5341
        %v5374 = vadd.f32 %v5276, %v5342
        %v5375 = vadd.f32 %v5277, %v5343
        %v5376 = vadd.f32 %v5278, %v5344
        %v5377 = vadd.f32 %v5279, %v5345
        %v5378 = vld [vmem:[#allocation3 + $0x4] sm:$0xff]
        %v5379 = vld [vmem:[#allocation3 + $0xc] sm:$0xff]
        %v5380 = vld [vmem:[#allocation3 + $0x1c] sm:$0xff]
        %v5381 = vld [vmem:[#allocation3 + $0x24] sm:$0xff]
        %v5382 = vld [vmem:[#allocation3 + $0x34] sm:$0xff]
        %v5383 = vld [vmem:[#allocation3 + $0x3c] sm:$0xff]
        %v5384 = vld [vmem:[#allocation3 + $0x4c] sm:$0xff]
        %v5385 = vld [vmem:[#allocation3 + $0x54] sm:$0xff]
        %v5386 = vld [vmem:[#allocation3 + $0x64] sm:$0xff]
        %v5387 = vld [vmem:[#allocation3 + $0x6c] sm:$0xff]
        %v5388 = vld [vmem:[#allocation3 + $0x7c] sm:$0xff]
        %v5389 = vld [vmem:[#allocation3 + $0x84] sm:$0xff]
        %v5390 = vld [vmem:[#allocation3 + $0x94] sm:$0xff]
        %v5391 = vld [vmem:[#allocation3 + $0x9c] sm:$0xff]
        %v5392 = vld [vmem:[#allocation3 + $0xac] sm:$0xff]
        %v5393 = vld [vmem:[#allocation3 + $0xb4] sm:$0xff]
        %v5394 = vld [vmem:[#allocation3 + $0xc4] sm:$0xff]
        %v5395 = vld [vmem:[#allocation3 + $0xcc] sm:$0xff]
        %v5396 = vld [vmem:[#allocation3 + $0xdc] sm:$0xff]
        %v5397 = vld [vmem:[#allocation3 + $0xe4] sm:$0xff]
        %v5398 = vld [vmem:[#allocation3 + $0xf4] sm:$0xff]
        %v5399 = vld [vmem:[#allocation3 + $0xfc] sm:$0xff]
        %v5400 = vld [vmem:[#allocation3 + $0x10c] sm:$0xff]
        %v5401 = vld [vmem:[#allocation3 + $0x114] sm:$0xff]
        %v5402 = vld [vmem:[#allocation3 + $0x124] sm:$0xff]
        %v5403 = vld [vmem:[#allocation3 + $0x12c] sm:$0xff]
        %v5404 = vld [vmem:[#allocation3 + $0x13c] sm:$0xff]
        %v5405 = vld [vmem:[#allocation3 + $0x144] sm:$0xff]
        %v5406 = vld [vmem:[#allocation3 + $0x154] sm:$0xff]
        %v5407 = vld [vmem:[#allocation3 + $0x15c] sm:$0xff]
        %v5408 = vld [vmem:[#allocation3 + $0x16c] sm:$0xff]
        %v5409 = vld [vmem:[#allocation3 + $0x174] sm:$0xff]
        %v5410 = vld [vmem:[%s8 + $0x4] sm:$0x1]
        %v5411 = vperm.slane %v5410, 0
        %v5412 = vmul.f32 %v5378, %v5411
        %v5413 = vmul.f32 %v5379, %v5411
        %v5414 = vmul.f32 %v5380, %v5411
        %v5415 = vmul.f32 %v5381, %v5411
        %v5416 = vmul.f32 %v5382, %v5411
        %v5417 = vmul.f32 %v5383, %v5411
        %v5418 = vmul.f32 %v5384, %v5411
        %v5419 = vmul.f32 %v5385, %v5411
        %v5420 = vmul.f32 %v5386, %v5411
        %v5421 = vmul.f32 %v5387, %v5411
        %v5422 = vmul.f32 %v5388, %v5411
        %v5423 = vmul.f32 %v5389, %v5411
        %v5424 = vmul.f32 %v5390, %v5411
        %v5425 = vmul.f32 %v5391, %v5411
        %v5426 = vmul.f32 %v5392, %v5411
        %v5427 = vmul.f32 %v5393, %v5411
        %v5428 = vmul.f32 %v5394, %v5411
        %v5429 = vmul.f32 %v5395, %v5411
        %v5430 = vmul.f32 %v5396, %v5411
        %v5431 = vmul.f32 %v5397, %v5411
        %v5432 = vmul.f32 %v5398, %v5411
        %v5433 = vmul.f32 %v5399, %v5411
        %v5434 = vmul.f32 %v5400, %v5411
        %v5435 = vmul.f32 %v5401, %v5411
        %v5436 = vmul.f32 %v5402, %v5411
        %v5437 = vmul.f32 %v5403, %v5411
        %v5438 = vmul.f32 %v5404, %v5411
        %v5439 = vmul.f32 %v5405, %v5411
        %v5440 = vmul.f32 %v5406, %v5411
        %v5441 = vmul.f32 %v5407, %v5411
        %v5442 = vmul.f32 %v5408, %v5411
        %v5443 = vmul.f32 %v5409, %v5411
        %v5444 = vadd.f32 %v5346, %v5412
        %v5445 = vadd.f32 %v5347, %v5413
        %v5446 = vadd.f32 %v5348, %v5414
        %v5447 = vadd.f32 %v5349, %v5415
        %v5448 = vadd.f32 %v5350, %v5416
        %v5449 = vadd.f32 %v5351, %v5417
        %v5450 = vadd.f32 %v5352, %v5418
        %v5451 = vadd.f32 %v5353, %v5419
        %v5452 = vadd.f32 %v5354, %v5420
        %v5453 = vadd.f32 %v5355, %v5421
        %v5454 = vadd.f32 %v5356, %v5422
        %v5455 = vadd.f32 %v5357, %v5423
        %v5456 = vadd.f32 %v5358, %v5424
        %v5457 = vadd.f32 %v5359, %v5425
        %v5458 = vadd.f32 %v5360, %v5426
        %v5459 = vadd.f32 %v5361, %v5427
        %v5460 = vadd.f32 %v5362, %v5428
        %v5461 = vadd.f32 %v5363, %v5429
        %v5462 = vadd.f32 %v5364, %v5430
        %v5463 = vadd.f32 %v5365, %v5431
        %v5464 = vadd.f32 %v5366, %v5432
        %v5465 = vadd.f32 %v5367, %v5433
        %v5466 = vadd.f32 %v5368, %v5434
        %v5467 = vadd.f32 %v5369, %v5435
        %v5468 = vadd.f32 %v5370, %v5436
        %v5469 = vadd.f32 %v5371, %v5437
        %v5470 = vadd.f32 %v5372, %v5438
        %v5471 = vadd.f32 %v5373, %v5439
        %v5472 = vadd.f32 %v5374, %v5440
        %v5473 = vadd.f32 %v5375, %v5441
        %v5474 = vadd.f32 %v5376, %v5442
        %v5475 = vadd.f32 %v5377, %v5443
        %s5476 = scalar_lea.vmem [#allocation3], 24
        %v5477 = vld [vmem:[%s5476] sm:$0xff]
        %v5478 = vld [vmem:[%s5476 + $0x8] sm:$0xff]
        %v5479 = vld [vmem:[%s5476 + $0x18] sm:$0xff]
        %v5480 = vld [vmem:[%s5476 + $0x20] sm:$0xff]
        %v5481 = vld [vmem:[%s5476 + $0x30] sm:$0xff]
        %v5482 = vld [vmem:[%s5476 + $0x38] sm:$0xff]
        %v5483 = vld [vmem:[%s5476 + $0x48] sm:$0xff]
        %v5484 = vld [vmem:[%s5476 + $0x50] sm:$0xff]
        %v5485 = vld [vmem:[%s5476 + $0x60] sm:$0xff]
        %v5486 = vld [vmem:[%s5476 + $0x68] sm:$0xff]
        %v5487 = vld [vmem:[%s5476 + $0x78] sm:$0xff]
        %v5488 = vld [vmem:[%s5476 + $0x80] sm:$0xff]
        %v5489 = vld [vmem:[%s5476 + $0x90] sm:$0xff]
        %v5490 = vld [vmem:[%s5476 + $0x98] sm:$0xff]
        %v5491 = vld [vmem:[%s5476 + $0xa8] sm:$0xff]
        %v5492 = vld [vmem:[%s5476 + $0xb0] sm:$0xff]
        %v5493 = vld [vmem:[%s5476 + $0xc0] sm:$0xff]
        %v5494 = vld [vmem:[%s5476 + $0xc8] sm:$0xff]
        %v5495 = vld [vmem:[%s5476 + $0xd8] sm:$0xff]
        %v5496 = vld [vmem:[%s5476 + $0xe0] sm:$0xff]
        %v5497 = vld [vmem:[%s5476 + $0xf0] sm:$0xff]
        %v5498 = vld [vmem:[%s5476 + $0xf8] sm:$0xff]
        %v5499 = vld [vmem:[%s5476 + $0x108] sm:$0xff]
        %v5500 = vld [vmem:[%s5476 + $0x110] sm:$0xff]
        %v5501 = vld [vmem:[%s5476 + $0x120] sm:$0xff]
        %v5502 = vld [vmem:[%s5476 + $0x128] sm:$0xff]
        %v5503 = vld [vmem:[%s5476 + $0x138] sm:$0xff]
        %v5504 = vld [vmem:[%s5476 + $0x140] sm:$0xff]
        %v5505 = vld [vmem:[%s5476 + $0x150] sm:$0xff]
        %v5506 = vld [vmem:[%s5476 + $0x158] sm:$0xff]
        %v5507 = vld [vmem:[%s5476 + $0x168] sm:$0xff]
        %v5508 = vld [vmem:[%s5476 + $0x170] sm:$0xff]
        %v5509 = vld [vmem:[%s8 + $0x5] sm:$0x1]
        %v5510 = vperm.slane %v5509, 0
        %v5511 = vmul.f32 %v5477, %v5510
        %v5512 = vmul.f32 %v5478, %v5510
        %v5513 = vmul.f32 %v5479, %v5510
        %v5514 = vmul.f32 %v5480, %v5510
        %v5515 = vmul.f32 %v5481, %v5510
        %v5516 = vmul.f32 %v5482, %v5510
        %v5517 = vmul.f32 %v5483, %v5510
        %v5518 = vmul.f32 %v5484, %v5510
        %v5519 = vmul.f32 %v5485, %v5510
        %v5520 = vmul.f32 %v5486, %v5510
        %v5521 = vmul.f32 %v5487, %v5510
        %v5522 = vmul.f32 %v5488, %v5510
        %v5523 = vmul.f32 %v5489, %v5510
        %v5524 = vmul.f32 %v5490, %v5510
        %v5525 = vmul.f32 %v5491, %v5510
        %v5526 = vmul.f32 %v5492, %v5510
        %v5527 = vmul.f32 %v5493, %v5510
        %v5528 = vmul.f32 %v5494, %v5510
        %v5529 = vmul.f32 %v5495, %v5510
        %v5530 = vmul.f32 %v5496, %v5510
        %v5531 = vmul.f32 %v5497, %v5510
        %v5532 = vmul.f32 %v5498, %v5510
        %v5533 = vmul.f32 %v5499, %v5510
        %v5534 = vmul.f32 %v5500, %v5510
        %v5535 = vmul.f32 %v5501, %v5510
        %v5536 = vmul.f32 %v5502, %v5510
        %v5537 = vmul.f32 %v5503, %v5510
        %v5538 = vmul.f32 %v5504, %v5510
        %v5539 = vmul.f32 %v5505, %v5510
        %v5540 = vmul.f32 %v5506, %v5510
        %v5541 = vmul.f32 %v5507, %v5510
        %v5542 = vmul.f32 %v5508, %v5510
        %v5543 = vadd.f32 %v5444, %v5511
        %v5544 = vadd.f32 %v5445, %v5512
        %v5545 = vadd.f32 %v5446, %v5513
        %v5546 = vadd.f32 %v5447, %v5514
        %v5547 = vadd.f32 %v5448, %v5515
        %v5548 = vadd.f32 %v5449, %v5516
        %v5549 = vadd.f32 %v5450, %v5517
        %v5550 = vadd.f32 %v5451, %v5518
        %v5551 = vadd.f32 %v5452, %v5519
        %v5552 = vadd.f32 %v5453, %v5520
        %v5553 = vadd.f32 %v5454, %v5521
        %v5554 = vadd.f32 %v5455, %v5522
        %v5555 = vadd.f32 %v5456, %v5523
        %v5556 = vadd.f32 %v5457, %v5524
        %v5557 = vadd.f32 %v5458, %v5525
        %v5558 = vadd.f32 %v5459, %v5526
        %v5559 = vadd.f32 %v5460, %v5527
        %v5560 = vadd.f32 %v5461, %v5528
        %v5561 = vadd.f32 %v5462, %v5529
        %v5562 = vadd.f32 %v5463, %v5530
        %v5563 = vadd.f32 %v5464, %v5531
        %v5564 = vadd.f32 %v5465, %v5532
        %v5565 = vadd.f32 %v5466, %v5533
        %v5566 = vadd.f32 %v5467, %v5534
        %v5567 = vadd.f32 %v5468, %v5535
        %v5568 = vadd.f32 %v5469, %v5536
        %v5569 = vadd.f32 %v5470, %v5537
        %v5570 = vadd.f32 %v5471, %v5538
        %v5571 = vadd.f32 %v5472, %v5539
        %v5572 = vadd.f32 %v5473, %v5540
        %v5573 = vadd.f32 %v5474, %v5541
        %v5574 = vadd.f32 %v5475, %v5542
        %v5575 = vld [vmem:[%s5476 + $0x1] sm:$0xff]
        %v5576 = vld [vmem:[%s5476 + $0x9] sm:$0xff]
        %v5577 = vld [vmem:[%s5476 + $0x19] sm:$0xff]
        %v5578 = vld [vmem:[%s5476 + $0x21] sm:$0xff]
        %v5579 = vld [vmem:[%s5476 + $0x31] sm:$0xff]
        %v5580 = vld [vmem:[%s5476 + $0x39] sm:$0xff]
        %v5581 = vld [vmem:[%s5476 + $0x49] sm:$0xff]
        %v5582 = vld [vmem:[%s5476 + $0x51] sm:$0xff]
        %v5583 = vld [vmem:[%s5476 + $0x61] sm:$0xff]
        %v5584 = vld [vmem:[%s5476 + $0x69] sm:$0xff]
        %v5585 = vld [vmem:[%s5476 + $0x79] sm:$0xff]
        %v5586 = vld [vmem:[%s5476 + $0x81] sm:$0xff]
        %v5587 = vld [vmem:[%s5476 + $0x91] sm:$0xff]
        %v5588 = vld [vmem:[%s5476 + $0x99] sm:$0xff]
        %v5589 = vld [vmem:[%s5476 + $0xa9] sm:$0xff]
        %v5590 = vld [vmem:[%s5476 + $0xb1] sm:$0xff]
        %v5591 = vld [vmem:[%s5476 + $0xc1] sm:$0xff]
        %v5592 = vld [vmem:[%s5476 + $0xc9] sm:$0xff]
        %v5593 = vld [vmem:[%s5476 + $0xd9] sm:$0xff]
        %v5594 = vld [vmem:[%s5476 + $0xe1] sm:$0xff]
        %v5595 = vld [vmem:[%s5476 + $0xf1] sm:$0xff]
        %v5596 = vld [vmem:[%s5476 + $0xf9] sm:$0xff]
        %v5597 = vld [vmem:[%s5476 + $0x109] sm:$0xff]
        %v5598 = vld [vmem:[%s5476 + $0x111] sm:$0xff]
        %v5599 = vld [vmem:[%s5476 + $0x121] sm:$0xff]
        %v5600 = vld [vmem:[%s5476 + $0x129] sm:$0xff]
        %v5601 = vld [vmem:[%s5476 + $0x139] sm:$0xff]
        %v5602 = vld [vmem:[%s5476 + $0x141] sm:$0xff]
        %v5603 = vld [vmem:[%s5476 + $0x151] sm:$0xff]
        %v5604 = vld [vmem:[%s5476 + $0x159] sm:$0xff]
        %v5605 = vld [vmem:[%s5476 + $0x169] sm:$0xff]
        %v5606 = vld [vmem:[%s5476 + $0x171] sm:$0xff]
        %v5607 = vld [vmem:[%s8 + $0x6] sm:$0x1]
        %v5608 = vperm.slane %v5607, 0
        %v5609 = vmul.f32 %v5575, %v5608
        %v5610 = vmul.f32 %v5576, %v5608
        %v5611 = vmul.f32 %v5577, %v5608
        %v5612 = vmul.f32 %v5578, %v5608
        %v5613 = vmul.f32 %v5579, %v5608
        %v5614 = vmul.f32 %v5580, %v5608
        %v5615 = vmul.f32 %v5581, %v5608
        %v5616 = vmul.f32 %v5582, %v5608
        %v5617 = vmul.f32 %v5583, %v5608
        %v5618 = vmul.f32 %v5584, %v5608
        %v5619 = vmul.f32 %v5585, %v5608
        %v5620 = vmul.f32 %v5586, %v5608
        %v5621 = vmul.f32 %v5587, %v5608
        %v5622 = vmul.f32 %v5588, %v5608
        %v5623 = vmul.f32 %v5589, %v5608
        %v5624 = vmul.f32 %v5590, %v5608
        %v5625 = vmul.f32 %v5591, %v5608
        %v5626 = vmul.f32 %v5592, %v5608
        %v5627 = vmul.f32 %v5593, %v5608
        %v5628 = vmul.f32 %v5594, %v5608
        %v5629 = vmul.f32 %v5595, %v5608
        %v5630 = vmul.f32 %v5596, %v5608
        %v5631 = vmul.f32 %v5597, %v5608
        %v5632 = vmul.f32 %v5598, %v5608
        %v5633 = vmul.f32 %v5599, %v5608
        %v5634 = vmul.f32 %v5600, %v5608
        %v5635 = vmul.f32 %v5601, %v5608
        %v5636 = vmul.f32 %v5602, %v5608
        %v5637 = vmul.f32 %v5603, %v5608
        %v5638 = vmul.f32 %v5604, %v5608
        %v5639 = vmul.f32 %v5605, %v5608
        %v5640 = vmul.f32 %v5606, %v5608
        %v5641 = vadd.f32 %v5543, %v5609
        %v5642 = vadd.f32 %v5544, %v5610
        %v5643 = vadd.f32 %v5545, %v5611
        %v5644 = vadd.f32 %v5546, %v5612
        %v5645 = vadd.f32 %v5547, %v5613
        %v5646 = vadd.f32 %v5548, %v5614
        %v5647 = vadd.f32 %v5549, %v5615
        %v5648 = vadd.f32 %v5550, %v5616
        %v5649 = vadd.f32 %v5551, %v5617
        %v5650 = vadd.f32 %v5552, %v5618
        %v5651 = vadd.f32 %v5553, %v5619
        %v5652 = vadd.f32 %v5554, %v5620
        %v5653 = vadd.f32 %v5555, %v5621
        %v5654 = vadd.f32 %v5556, %v5622
        %v5655 = vadd.f32 %v5557, %v5623
        %v5656 = vadd.f32 %v5558, %v5624
        %v5657 = vadd.f32 %v5559, %v5625
        %v5658 = vadd.f32 %v5560, %v5626
        %v5659 = vadd.f32 %v5561, %v5627
        %v5660 = vadd.f32 %v5562, %v5628
        %v5661 = vadd.f32 %v5563, %v5629
        %v5662 = vadd.f32 %v5564, %v5630
        %v5663 = vadd.f32 %v5565, %v5631
        %v5664 = vadd.f32 %v5566, %v5632
        %v5665 = vadd.f32 %v5567, %v5633
        %v5666 = vadd.f32 %v5568, %v5634
        %v5667 = vadd.f32 %v5569, %v5635
        %v5668 = vadd.f32 %v5570, %v5636
        %v5669 = vadd.f32 %v5571, %v5637
        %v5670 = vadd.f32 %v5572, %v5638
        %v5671 = vadd.f32 %v5573, %v5639
        %v5672 = vadd.f32 %v5574, %v5640
        %v5673 = vld [vmem:[%s5476 + $0x2] sm:$0xff]
        %v5674 = vld [vmem:[%s5476 + $0xa] sm:$0xff]
        %v5675 = vld [vmem:[%s5476 + $0x1a] sm:$0xff]
        %v5676 = vld [vmem:[%s5476 + $0x22] sm:$0xff]
        %v5677 = vld [vmem:[%s5476 + $0x32] sm:$0xff]
        %v5678 = vld [vmem:[%s5476 + $0x3a] sm:$0xff]
        %v5679 = vld [vmem:[%s5476 + $0x4a] sm:$0xff]
        %v5680 = vld [vmem:[%s5476 + $0x52] sm:$0xff]
        %v5681 = vld [vmem:[%s5476 + $0x62] sm:$0xff]
        %v5682 = vld [vmem:[%s5476 + $0x6a] sm:$0xff]
        %v5683 = vld [vmem:[%s5476 + $0x7a] sm:$0xff]
        %v5684 = vld [vmem:[%s5476 + $0x82] sm:$0xff]
        %v5685 = vld [vmem:[%s5476 + $0x92] sm:$0xff]
        %v5686 = vld [vmem:[%s5476 + $0x9a] sm:$0xff]
        %v5687 = vld [vmem:[%s5476 + $0xaa] sm:$0xff]
        %v5688 = vld [vmem:[%s5476 + $0xb2] sm:$0xff]
        %v5689 = vld [vmem:[%s5476 + $0xc2] sm:$0xff]
        %v5690 = vld [vmem:[%s5476 + $0xca] sm:$0xff]
        %v5691 = vld [vmem:[%s5476 + $0xda] sm:$0xff]
        %v5692 = vld [vmem:[%s5476 + $0xe2] sm:$0xff]
        %v5693 = vld [vmem:[%s5476 + $0xf2] sm:$0xff]
        %v5694 = vld [vmem:[%s5476 + $0xfa] sm:$0xff]
        %v5695 = vld [vmem:[%s5476 + $0x10a] sm:$0xff]
        %v5696 = vld [vmem:[%s5476 + $0x112] sm:$0xff]
        %v5697 = vld [vmem:[%s5476 + $0x122] sm:$0xff]
        %v5698 = vld [vmem:[%s5476 + $0x12a] sm:$0xff]
        %v5699 = vld [vmem:[%s5476 + $0x13a] sm:$0xff]
        %v5700 = vld [vmem:[%s5476 + $0x142] sm:$0xff]
        %v5701 = vld [vmem:[%s5476 + $0x152] sm:$0xff]
        %v5702 = vld [vmem:[%s5476 + $0x15a] sm:$0xff]
        %v5703 = vld [vmem:[%s5476 + $0x16a] sm:$0xff]
        %v5704 = vld [vmem:[%s5476 + $0x172] sm:$0xff]
        %v5705 = vld [vmem:[%s8 + $0x7] sm:$0x1]
        %v5706 = vperm.slane %v5705, 0
        %v5707 = vmul.f32 %v5673, %v5706
        %v5708 = vmul.f32 %v5674, %v5706
        %v5709 = vmul.f32 %v5675, %v5706
        %v5710 = vmul.f32 %v5676, %v5706
        %v5711 = vmul.f32 %v5677, %v5706
        %v5712 = vmul.f32 %v5678, %v5706
        %v5713 = vmul.f32 %v5679, %v5706
        %v5714 = vmul.f32 %v5680, %v5706
        %v5715 = vmul.f32 %v5681, %v5706
        %v5716 = vmul.f32 %v5682, %v5706
        %v5717 = vmul.f32 %v5683, %v5706
        %v5718 = vmul.f32 %v5684, %v5706
        %v5719 = vmul.f32 %v5685, %v5706
        %v5720 = vmul.f32 %v5686, %v5706
        %v5721 = vmul.f32 %v5687, %v5706
        %v5722 = vmul.f32 %v5688, %v5706
        %v5723 = vmul.f32 %v5689, %v5706
        %v5724 = vmul.f32 %v5690, %v5706
        %v5725 = vmul.f32 %v5691, %v5706
        %v5726 = vmul.f32 %v5692, %v5706
        %v5727 = vmul.f32 %v5693, %v5706
        %v5728 = vmul.f32 %v5694, %v5706
        %v5729 = vmul.f32 %v5695, %v5706
        %v5730 = vmul.f32 %v5696, %v5706
        %v5731 = vmul.f32 %v5697, %v5706
        %v5732 = vmul.f32 %v5698, %v5706
        %v5733 = vmul.f32 %v5699, %v5706
        %v5734 = vmul.f32 %v5700, %v5706
        %v5735 = vmul.f32 %v5701, %v5706
        %v5736 = vmul.f32 %v5702, %v5706
        %v5737 = vmul.f32 %v5703, %v5706
        %v5738 = vmul.f32 %v5704, %v5706
        %v5739 = vadd.f32 %v5641, %v5707
        %v5740 = vadd.f32 %v5642, %v5708
        %v5741 = vadd.f32 %v5643, %v5709
        %v5742 = vadd.f32 %v5644, %v5710
        %v5743 = vadd.f32 %v5645, %v5711
        %v5744 = vadd.f32 %v5646, %v5712
        %v5745 = vadd.f32 %v5647, %v5713
        %v5746 = vadd.f32 %v5648, %v5714
        %v5747 = vadd.f32 %v5649, %v5715
        %v5748 = vadd.f32 %v5650, %v5716
        %v5749 = vadd.f32 %v5651, %v5717
        %v5750 = vadd.f32 %v5652, %v5718
        %v5751 = vadd.f32 %v5653, %v5719
        %v5752 = vadd.f32 %v5654, %v5720
        %v5753 = vadd.f32 %v5655, %v5721
        %v5754 = vadd.f32 %v5656, %v5722
        %v5755 = vadd.f32 %v5657, %v5723
        %v5756 = vadd.f32 %v5658, %v5724
        %v5757 = vadd.f32 %v5659, %v5725
        %v5758 = vadd.f32 %v5660, %v5726
        %v5759 = vadd.f32 %v5661, %v5727
        %v5760 = vadd.f32 %v5662, %v5728
        %v5761 = vadd.f32 %v5663, %v5729
        %v5762 = vadd.f32 %v5664, %v5730
        %v5763 = vadd.f32 %v5665, %v5731
        %v5764 = vadd.f32 %v5666, %v5732
        %v5765 = vadd.f32 %v5667, %v5733
        %v5766 = vadd.f32 %v5668, %v5734
        %v5767 = vadd.f32 %v5669, %v5735
        %v5768 = vadd.f32 %v5670, %v5736
        %v5769 = vadd.f32 %v5671, %v5737
        %v5770 = vadd.f32 %v5672, %v5738
        %v5771 = vld [vmem:[%s5476 + $0x3] sm:$0xff]
        %v5772 = vld [vmem:[%s5476 + $0xb] sm:$0xff]
        %v5773 = vld [vmem:[%s5476 + $0x1b] sm:$0xff]
        %v5774 = vld [vmem:[%s5476 + $0x23] sm:$0xff]
        %v5775 = vld [vmem:[%s5476 + $0x33] sm:$0xff]
        %v5776 = vld [vmem:[%s5476 + $0x3b] sm:$0xff]
        %v5777 = vld [vmem:[%s5476 + $0x4b] sm:$0xff]
        %v5778 = vld [vmem:[%s5476 + $0x53] sm:$0xff]
        %v5779 = vld [vmem:[%s5476 + $0x63] sm:$0xff]
        %v5780 = vld [vmem:[%s5476 + $0x6b] sm:$0xff]
        %v5781 = vld [vmem:[%s5476 + $0x7b] sm:$0xff]
        %v5782 = vld [vmem:[%s5476 + $0x83] sm:$0xff]
        %v5783 = vld [vmem:[%s5476 + $0x93] sm:$0xff]
        %v5784 = vld [vmem:[%s5476 + $0x9b] sm:$0xff]
        %v5785 = vld [vmem:[%s5476 + $0xab] sm:$0xff]
        %v5786 = vld [vmem:[%s5476 + $0xb3] sm:$0xff]
        %v5787 = vld [vmem:[%s5476 + $0xc3] sm:$0xff]
        %v5788 = vld [vmem:[%s5476 + $0xcb] sm:$0xff]
        %v5789 = vld [vmem:[%s5476 + $0xdb] sm:$0xff]
        %v5790 = vld [vmem:[%s5476 + $0xe3] sm:$0xff]
        %v5791 = vld [vmem:[%s5476 + $0xf3] sm:$0xff]
        %v5792 = vld [vmem:[%s5476 + $0xfb] sm:$0xff]
        %v5793 = vld [vmem:[%s5476 + $0x10b] sm:$0xff]
        %v5794 = vld [vmem:[%s5476 + $0x113] sm:$0xff]
        %v5795 = vld [vmem:[%s5476 + $0x123] sm:$0xff]
        %v5796 = vld [vmem:[%s5476 + $0x12b] sm:$0xff]
        %v5797 = vld [vmem:[%s5476 + $0x13b] sm:$0xff]
        %v5798 = vld [vmem:[%s5476 + $0x143] sm:$0xff]
        %v5799 = vld [vmem:[%s5476 + $0x153] sm:$0xff]
        %v5800 = vld [vmem:[%s5476 + $0x15b] sm:$0xff]
        %v5801 = vld [vmem:[%s5476 + $0x16b] sm:$0xff]
        %v5802 = vld [vmem:[%s5476 + $0x173] sm:$0xff]
        %v5803 = vld [vmem:[%s8 + $0x8] sm:$0x1]
        %v5804 = vperm.slane %v5803, 0
        %v5805 = vmul.f32 %v5771, %v5804
        %v5806 = vmul.f32 %v5772, %v5804
        %v5807 = vmul.f32 %v5773, %v5804
        %v5808 = vmul.f32 %v5774, %v5804
        %v5809 = vmul.f32 %v5775, %v5804
        %v5810 = vmul.f32 %v5776, %v5804
        %v5811 = vmul.f32 %v5777, %v5804
        %v5812 = vmul.f32 %v5778, %v5804
        %v5813 = vmul.f32 %v5779, %v5804
        %v5814 = vmul.f32 %v5780, %v5804
        %v5815 = vmul.f32 %v5781, %v5804
        %v5816 = vmul.f32 %v5782, %v5804
        %v5817 = vmul.f32 %v5783, %v5804
        %v5818 = vmul.f32 %v5784, %v5804
        %v5819 = vmul.f32 %v5785, %v5804
        %v5820 = vmul.f32 %v5786, %v5804
        %v5821 = vmul.f32 %v5787, %v5804
        %v5822 = vmul.f32 %v5788, %v5804
        %v5823 = vmul.f32 %v5789, %v5804
        %v5824 = vmul.f32 %v5790, %v5804
        %v5825 = vmul.f32 %v5791, %v5804
        %v5826 = vmul.f32 %v5792, %v5804
        %v5827 = vmul.f32 %v5793, %v5804
        %v5828 = vmul.f32 %v5794, %v5804
        %v5829 = vmul.f32 %v5795, %v5804
        %v5830 = vmul.f32 %v5796, %v5804
        %v5831 = vmul.f32 %v5797, %v5804
        %v5832 = vmul.f32 %v5798, %v5804
        %v5833 = vmul.f32 %v5799, %v5804
        %v5834 = vmul.f32 %v5800, %v5804
        %v5835 = vmul.f32 %v5801, %v5804
        %v5836 = vmul.f32 %v5802, %v5804
        %v5837 = vadd.f32 %v5739, %v5805
        %v5838 = vadd.f32 %v5740, %v5806
        %v5839 = vadd.f32 %v5741, %v5807
        %v5840 = vadd.f32 %v5742, %v5808
        %v5841 = vadd.f32 %v5743, %v5809
        %v5842 = vadd.f32 %v5744, %v5810
        %v5843 = vadd.f32 %v5745, %v5811
        %v5844 = vadd.f32 %v5746, %v5812
        %v5845 = vadd.f32 %v5747, %v5813
        %v5846 = vadd.f32 %v5748, %v5814
        %v5847 = vadd.f32 %v5749, %v5815
        %v5848 = vadd.f32 %v5750, %v5816
        %v5849 = vadd.f32 %v5751, %v5817
        %v5850 = vadd.f32 %v5752, %v5818
        %v5851 = vadd.f32 %v5753, %v5819
        %v5852 = vadd.f32 %v5754, %v5820
        %v5853 = vadd.f32 %v5755, %v5821
        %v5854 = vadd.f32 %v5756, %v5822
        %v5855 = vadd.f32 %v5757, %v5823
        %v5856 = vadd.f32 %v5758, %v5824
        %v5857 = vadd.f32 %v5759, %v5825
        %v5858 = vadd.f32 %v5760, %v5826
        %v5859 = vadd.f32 %v5761, %v5827
        %v5860 = vadd.f32 %v5762, %v5828
        %v5861 = vadd.f32 %v5763, %v5829
        %v5862 = vadd.f32 %v5764, %v5830
        %v5863 = vadd.f32 %v5765, %v5831
        %v5864 = vadd.f32 %v5766, %v5832
        %v5865 = vadd.f32 %v5767, %v5833
        %v5866 = vadd.f32 %v5768, %v5834
        %v5867 = vadd.f32 %v5769, %v5835
        %v5868 = vadd.f32 %v5770, %v5836
        %v5869 = vld [vmem:[%s5476 + $0x4] sm:$0xff]
        %v5870 = vld [vmem:[%s5476 + $0xc] sm:$0xff]
        %v5871 = vld [vmem:[%s5476 + $0x1c] sm:$0xff]
        %v5872 = vld [vmem:[%s5476 + $0x24] sm:$0xff]
        %v5873 = vld [vmem:[%s5476 + $0x34] sm:$0xff]
        %v5874 = vld [vmem:[%s5476 + $0x3c] sm:$0xff]
        %v5875 = vld [vmem:[%s5476 + $0x4c] sm:$0xff]
        %v5876 = vld [vmem:[%s5476 + $0x54] sm:$0xff]
        %v5877 = vld [vmem:[%s5476 + $0x64] sm:$0xff]
        %v5878 = vld [vmem:[%s5476 + $0x6c] sm:$0xff]
        %v5879 = vld [vmem:[%s5476 + $0x7c] sm:$0xff]
        %v5880 = vld [vmem:[%s5476 + $0x84] sm:$0xff]
        %v5881 = vld [vmem:[%s5476 + $0x94] sm:$0xff]
        %v5882 = vld [vmem:[%s5476 + $0x9c] sm:$0xff]
        %v5883 = vld [vmem:[%s5476 + $0xac] sm:$0xff]
        %v5884 = vld [vmem:[%s5476 + $0xb4] sm:$0xff]
        %v5885 = vld [vmem:[%s5476 + $0xc4] sm:$0xff]
        %v5886 = vld [vmem:[%s5476 + $0xcc] sm:$0xff]
        %v5887 = vld [vmem:[%s5476 + $0xdc] sm:$0xff]
        %v5888 = vld [vmem:[%s5476 + $0xe4] sm:$0xff]
        %v5889 = vld [vmem:[%s5476 + $0xf4] sm:$0xff]
        %v5890 = vld [vmem:[%s5476 + $0xfc] sm:$0xff]
        %v5891 = vld [vmem:[%s5476 + $0x10c] sm:$0xff]
        %v5892 = vld [vmem:[%s5476 + $0x114] sm:$0xff]
        %v5893 = vld [vmem:[%s5476 + $0x124] sm:$0xff]
        %v5894 = vld [vmem:[%s5476 + $0x12c] sm:$0xff]
        %v5895 = vld [vmem:[%s5476 + $0x13c] sm:$0xff]
        %v5896 = vld [vmem:[%s5476 + $0x144] sm:$0xff]
        %v5897 = vld [vmem:[%s5476 + $0x154] sm:$0xff]
        %v5898 = vld [vmem:[%s5476 + $0x15c] sm:$0xff]
        %v5899 = vld [vmem:[%s5476 + $0x16c] sm:$0xff]
        %v5900 = vld [vmem:[%s5476 + $0x174] sm:$0xff]
        %v5901 = vld [vmem:[%s8 + $0x9] sm:$0x1]
        %v5902 = vperm.slane %v5901, 0
        %v5903 = vmul.f32 %v5869, %v5902
        %v5904 = vmul.f32 %v5870, %v5902
        %v5905 = vmul.f32 %v5871, %v5902
        %v5906 = vmul.f32 %v5872, %v5902
        %v5907 = vmul.f32 %v5873, %v5902
        %v5908 = vmul.f32 %v5874, %v5902
        %v5909 = vmul.f32 %v5875, %v5902
        %v5910 = vmul.f32 %v5876, %v5902
        %v5911 = vmul.f32 %v5877, %v5902
        %v5912 = vmul.f32 %v5878, %v5902
        %v5913 = vmul.f32 %v5879, %v5902
        %v5914 = vmul.f32 %v5880, %v5902
        %v5915 = vmul.f32 %v5881, %v5902
        %v5916 = vmul.f32 %v5882, %v5902
        %v5917 = vmul.f32 %v5883, %v5902
        %v5918 = vmul.f32 %v5884, %v5902
        %v5919 = vmul.f32 %v5885, %v5902
        %v5920 = vmul.f32 %v5886, %v5902
        %v5921 = vmul.f32 %v5887, %v5902
        %v5922 = vmul.f32 %v5888, %v5902
        %v5923 = vmul.f32 %v5889, %v5902
        %v5924 = vmul.f32 %v5890, %v5902
        %v5925 = vmul.f32 %v5891, %v5902
        %v5926 = vmul.f32 %v5892, %v5902
        %v5927 = vmul.f32 %v5893, %v5902
        %v5928 = vmul.f32 %v5894, %v5902
        %v5929 = vmul.f32 %v5895, %v5902
        %v5930 = vmul.f32 %v5896, %v5902
        %v5931 = vmul.f32 %v5897, %v5902
        %v5932 = vmul.f32 %v5898, %v5902
        %v5933 = vmul.f32 %v5899, %v5902
        %v5934 = vmul.f32 %v5900, %v5902
        %v5935 = vadd.f32 %v5837, %v5903
        %v5936 = vadd.f32 %v5838, %v5904
        %v5937 = vadd.f32 %v5839, %v5905
        %v5938 = vadd.f32 %v5840, %v5906
        %v5939 = vadd.f32 %v5841, %v5907
        %v5940 = vadd.f32 %v5842, %v5908
        %v5941 = vadd.f32 %v5843, %v5909
        %v5942 = vadd.f32 %v5844, %v5910
        %v5943 = vadd.f32 %v5845, %v5911
        %v5944 = vadd.f32 %v5846, %v5912
        %v5945 = vadd.f32 %v5847, %v5913
        %v5946 = vadd.f32 %v5848, %v5914
        %v5947 = vadd.f32 %v5849, %v5915
        %v5948 = vadd.f32 %v5850, %v5916
        %v5949 = vadd.f32 %v5851, %v5917
        %v5950 = vadd.f32 %v5852, %v5918
        %v5951 = vadd.f32 %v5853, %v5919
        %v5952 = vadd.f32 %v5854, %v5920
        %v5953 = vadd.f32 %v5855, %v5921
        %v5954 = vadd.f32 %v5856, %v5922
        %v5955 = vadd.f32 %v5857, %v5923
        %v5956 = vadd.f32 %v5858, %v5924
        %v5957 = vadd.f32 %v5859, %v5925
        %v5958 = vadd.f32 %v5860, %v5926
        %v5959 = vadd.f32 %v5861, %v5927
        %v5960 = vadd.f32 %v5862, %v5928
        %v5961 = vadd.f32 %v5863, %v5929
        %v5962 = vadd.f32 %v5864, %v5930
        %v5963 = vadd.f32 %v5865, %v5931
        %v5964 = vadd.f32 %v5866, %v5932
        %v5965 = vadd.f32 %v5867, %v5933
        %v5966 = vadd.f32 %v5868, %v5934
        %v5967 = vld [vmem:[%s4985] sm:$0xff]
        %v5968 = vld [vmem:[%s4985 + $0x8] sm:$0xff]
        %v5969 = vld [vmem:[%s4985 + $0x18] sm:$0xff]
        %v5970 = vld [vmem:[%s4985 + $0x20] sm:$0xff]
        %v5971 = vld [vmem:[%s4985 + $0x30] sm:$0xff]
        %v5972 = vld [vmem:[%s4985 + $0x38] sm:$0xff]
        %v5973 = vld [vmem:[%s4985 + $0x48] sm:$0xff]
        %v5974 = vld [vmem:[%s4985 + $0x50] sm:$0xff]
        %v5975 = vld [vmem:[%s4985 + $0x60] sm:$0xff]
        %v5976 = vld [vmem:[%s4985 + $0x68] sm:$0xff]
        %v5977 = vld [vmem:[%s4985 + $0x78] sm:$0xff]
        %v5978 = vld [vmem:[%s4985 + $0x80] sm:$0xff]
        %v5979 = vld [vmem:[%s4985 + $0x90] sm:$0xff]
        %v5980 = vld [vmem:[%s4985 + $0x98] sm:$0xff]
        %v5981 = vld [vmem:[%s4985 + $0xa8] sm:$0xff]
        %v5982 = vld [vmem:[%s4985 + $0xb0] sm:$0xff]
        %v5983 = vld [vmem:[%s4985 + $0xc0] sm:$0xff]
        %v5984 = vld [vmem:[%s4985 + $0xc8] sm:$0xff]
        %v5985 = vld [vmem:[%s4985 + $0xd8] sm:$0xff]
        %v5986 = vld [vmem:[%s4985 + $0xe0] sm:$0xff]
        %v5987 = vld [vmem:[%s4985 + $0xf0] sm:$0xff]
        %v5988 = vld [vmem:[%s4985 + $0xf8] sm:$0xff]
        %v5989 = vld [vmem:[%s4985 + $0x108] sm:$0xff]
        %v5990 = vld [vmem:[%s4985 + $0x110] sm:$0xff]
        %v5991 = vld [vmem:[%s4985 + $0x120] sm:$0xff]
        %v5992 = vld [vmem:[%s4985 + $0x128] sm:$0xff]
        %v5993 = vld [vmem:[%s4985 + $0x138] sm:$0xff]
        %v5994 = vld [vmem:[%s4985 + $0x140] sm:$0xff]
        %v5995 = vld [vmem:[%s4985 + $0x150] sm:$0xff]
        %v5996 = vld [vmem:[%s4985 + $0x158] sm:$0xff]
        %v5997 = vld [vmem:[%s4985 + $0x168] sm:$0xff]
        %v5998 = vld [vmem:[%s4985 + $0x170] sm:$0xff]
        %v5999 = vld [vmem:[%s8 + $0xa] sm:$0x1]
        %v6000 = vperm.slane %v5999, 0
        %v6001 = vmul.f32 %v5967, %v6000
        %v6002 = vmul.f32 %v5968, %v6000
        %v6003 = vmul.f32 %v5969, %v6000
        %v6004 = vmul.f32 %v5970, %v6000
        %v6005 = vmul.f32 %v5971, %v6000
        %v6006 = vmul.f32 %v5972, %v6000
        %v6007 = vmul.f32 %v5973, %v6000
        %v6008 = vmul.f32 %v5974, %v6000
        %v6009 = vmul.f32 %v5975, %v6000
        %v6010 = vmul.f32 %v5976, %v6000
        %v6011 = vmul.f32 %v5977, %v6000
        %v6012 = vmul.f32 %v5978, %v6000
        %v6013 = vmul.f32 %v5979, %v6000
        %v6014 = vmul.f32 %v5980, %v6000
        %v6015 = vmul.f32 %v5981, %v6000
        %v6016 = vmul.f32 %v5982, %v6000
        %v6017 = vmul.f32 %v5983, %v6000
        %v6018 = vmul.f32 %v5984, %v6000
        %v6019 = vmul.f32 %v5985, %v6000
        %v6020 = vmul.f32 %v5986, %v6000
        %v6021 = vmul.f32 %v5987, %v6000
        %v6022 = vmul.f32 %v5988, %v6000
        %v6023 = vmul.f32 %v5989, %v6000
        %v6024 = vmul.f32 %v5990, %v6000
        %v6025 = vmul.f32 %v5991, %v6000
        %v6026 = vmul.f32 %v5992, %v6000
        %v6027 = vmul.f32 %v5993, %v6000
        %v6028 = vmul.f32 %v5994, %v6000
        %v6029 = vmul.f32 %v5995, %v6000
        %v6030 = vmul.f32 %v5996, %v6000
        %v6031 = vmul.f32 %v5997, %v6000
        %v6032 = vmul.f32 %v5998, %v6000
        %v6033 = vadd.f32 %v5935, %v6001
        %v6034 = vadd.f32 %v5936, %v6002
        %v6035 = vadd.f32 %v5937, %v6003
        %v6036 = vadd.f32 %v5938, %v6004
        %v6037 = vadd.f32 %v5939, %v6005
        %v6038 = vadd.f32 %v5940, %v6006
        %v6039 = vadd.f32 %v5941, %v6007
        %v6040 = vadd.f32 %v5942, %v6008
        %v6041 = vadd.f32 %v5943, %v6009
        %v6042 = vadd.f32 %v5944, %v6010
        %v6043 = vadd.f32 %v5945, %v6011
        %v6044 = vadd.f32 %v5946, %v6012
        %v6045 = vadd.f32 %v5947, %v6013
        %v6046 = vadd.f32 %v5948, %v6014
        %v6047 = vadd.f32 %v5949, %v6015
        %v6048 = vadd.f32 %v5950, %v6016
        %v6049 = vadd.f32 %v5951, %v6017
        %v6050 = vadd.f32 %v5952, %v6018
        %v6051 = vadd.f32 %v5953, %v6019
        %v6052 = vadd.f32 %v5954, %v6020
        %v6053 = vadd.f32 %v5955, %v6021
        %v6054 = vadd.f32 %v5956, %v6022
        %v6055 = vadd.f32 %v5957, %v6023
        %v6056 = vadd.f32 %v5958, %v6024
        %v6057 = vadd.f32 %v5959, %v6025
        %v6058 = vadd.f32 %v5960, %v6026
        %v6059 = vadd.f32 %v5961, %v6027
        %v6060 = vadd.f32 %v5962, %v6028
        %v6061 = vadd.f32 %v5963, %v6029
        %v6062 = vadd.f32 %v5964, %v6030
        %v6063 = vadd.f32 %v5965, %v6031
        %v6064 = vadd.f32 %v5966, %v6032
        %v6065 = vld [vmem:[%s4985 + $0x1] sm:$0xff]
        %v6066 = vld [vmem:[%s4985 + $0x9] sm:$0xff]
        %v6067 = vld [vmem:[%s4985 + $0x19] sm:$0xff]
        %v6068 = vld [vmem:[%s4985 + $0x21] sm:$0xff]
        %v6069 = vld [vmem:[%s4985 + $0x31] sm:$0xff]
        %v6070 = vld [vmem:[%s4985 + $0x39] sm:$0xff]
        %v6071 = vld [vmem:[%s4985 + $0x49] sm:$0xff]
        %v6072 = vld [vmem:[%s4985 + $0x51] sm:$0xff]
        %v6073 = vld [vmem:[%s4985 + $0x61] sm:$0xff]
        %v6074 = vld [vmem:[%s4985 + $0x69] sm:$0xff]
        %v6075 = vld [vmem:[%s4985 + $0x79] sm:$0xff]
        %v6076 = vld [vmem:[%s4985 + $0x81] sm:$0xff]
        %v6077 = vld [vmem:[%s4985 + $0x91] sm:$0xff]
        %v6078 = vld [vmem:[%s4985 + $0x99] sm:$0xff]
        %v6079 = vld [vmem:[%s4985 + $0xa9] sm:$0xff]
        %v6080 = vld [vmem:[%s4985 + $0xb1] sm:$0xff]
        %v6081 = vld [vmem:[%s4985 + $0xc1] sm:$0xff]
        %v6082 = vld [vmem:[%s4985 + $0xc9] sm:$0xff]
        %v6083 = vld [vmem:[%s4985 + $0xd9] sm:$0xff]
        %v6084 = vld [vmem:[%s4985 + $0xe1] sm:$0xff]
        %v6085 = vld [vmem:[%s4985 + $0xf1] sm:$0xff]
        %v6086 = vld [vmem:[%s4985 + $0xf9] sm:$0xff]
        %v6087 = vld [vmem:[%s4985 + $0x109] sm:$0xff]
        %v6088 = vld [vmem:[%s4985 + $0x111] sm:$0xff]
        %v6089 = vld [vmem:[%s4985 + $0x121] sm:$0xff]
        %v6090 = vld [vmem:[%s4985 + $0x129] sm:$0xff]
        %v6091 = vld [vmem:[%s4985 + $0x139] sm:$0xff]
        %v6092 = vld [vmem:[%s4985 + $0x141] sm:$0xff]
        %v6093 = vld [vmem:[%s4985 + $0x151] sm:$0xff]
        %v6094 = vld [vmem:[%s4985 + $0x159] sm:$0xff]
        %v6095 = vld [vmem:[%s4985 + $0x169] sm:$0xff]
        %v6096 = vld [vmem:[%s4985 + $0x171] sm:$0xff]
        %v6097 = vld [vmem:[%s8 + $0xb] sm:$0x1]
        %v6098 = vperm.slane %v6097, 0
        %v6099 = vmul.f32 %v6065, %v6098
        %v6100 = vmul.f32 %v6066, %v6098
        %v6101 = vmul.f32 %v6067, %v6098
        %v6102 = vmul.f32 %v6068, %v6098
        %v6103 = vmul.f32 %v6069, %v6098
        %v6104 = vmul.f32 %v6070, %v6098
        %v6105 = vmul.f32 %v6071, %v6098
        %v6106 = vmul.f32 %v6072, %v6098
        %v6107 = vmul.f32 %v6073, %v6098
        %v6108 = vmul.f32 %v6074, %v6098
        %v6109 = vmul.f32 %v6075, %v6098
        %v6110 = vmul.f32 %v6076, %v6098
        %v6111 = vmul.f32 %v6077, %v6098
        %v6112 = vmul.f32 %v6078, %v6098
        %v6113 = vmul.f32 %v6079, %v6098
        %v6114 = vmul.f32 %v6080, %v6098
        %v6115 = vmul.f32 %v6081, %v6098
        %v6116 = vmul.f32 %v6082, %v6098
        %v6117 = vmul.f32 %v6083, %v6098
        %v6118 = vmul.f32 %v6084, %v6098
        %v6119 = vmul.f32 %v6085, %v6098
        %v6120 = vmul.f32 %v6086, %v6098
        %v6121 = vmul.f32 %v6087, %v6098
        %v6122 = vmul.f32 %v6088, %v6098
        %v6123 = vmul.f32 %v6089, %v6098
        %v6124 = vmul.f32 %v6090, %v6098
        %v6125 = vmul.f32 %v6091, %v6098
        %v6126 = vmul.f32 %v6092, %v6098
        %v6127 = vmul.f32 %v6093, %v6098
        %v6128 = vmul.f32 %v6094, %v6098
        %v6129 = vmul.f32 %v6095, %v6098
        %v6130 = vmul.f32 %v6096, %v6098
        %v6131 = vadd.f32 %v6033, %v6099
        %v6132 = vadd.f32 %v6034, %v6100
        %v6133 = vadd.f32 %v6035, %v6101
        %v6134 = vadd.f32 %v6036, %v6102
        %v6135 = vadd.f32 %v6037, %v6103
        %v6136 = vadd.f32 %v6038, %v6104
        %v6137 = vadd.f32 %v6039, %v6105
        %v6138 = vadd.f32 %v6040, %v6106
        %v6139 = vadd.f32 %v6041, %v6107
        %v6140 = vadd.f32 %v6042, %v6108
        %v6141 = vadd.f32 %v6043, %v6109
        %v6142 = vadd.f32 %v6044, %v6110
        %v6143 = vadd.f32 %v6045, %v6111
        %v6144 = vadd.f32 %v6046, %v6112
        %v6145 = vadd.f32 %v6047, %v6113
        %v6146 = vadd.f32 %v6048, %v6114
        %v6147 = vadd.f32 %v6049, %v6115
        %v6148 = vadd.f32 %v6050, %v6116
        %v6149 = vadd.f32 %v6051, %v6117
        %v6150 = vadd.f32 %v6052, %v6118
        %v6151 = vadd.f32 %v6053, %v6119
        %v6152 = vadd.f32 %v6054, %v6120
        %v6153 = vadd.f32 %v6055, %v6121
        %v6154 = vadd.f32 %v6056, %v6122
        %v6155 = vadd.f32 %v6057, %v6123
        %v6156 = vadd.f32 %v6058, %v6124
        %v6157 = vadd.f32 %v6059, %v6125
        %v6158 = vadd.f32 %v6060, %v6126
        %v6159 = vadd.f32 %v6061, %v6127
        %v6160 = vadd.f32 %v6062, %v6128
        %v6161 = vadd.f32 %v6063, %v6129
        %v6162 = vadd.f32 %v6064, %v6130
        %v6163 = vld [vmem:[%s4985 + $0x2] sm:$0xff]
        %v6164 = vld [vmem:[%s4985 + $0xa] sm:$0xff]
        %v6165 = vld [vmem:[%s4985 + $0x1a] sm:$0xff]
        %v6166 = vld [vmem:[%s4985 + $0x22] sm:$0xff]
        %v6167 = vld [vmem:[%s4985 + $0x32] sm:$0xff]
        %v6168 = vld [vmem:[%s4985 + $0x3a] sm:$0xff]
        %v6169 = vld [vmem:[%s4985 + $0x4a] sm:$0xff]
        %v6170 = vld [vmem:[%s4985 + $0x52] sm:$0xff]
        %v6171 = vld [vmem:[%s4985 + $0x62] sm:$0xff]
        %v6172 = vld [vmem:[%s4985 + $0x6a] sm:$0xff]
        %v6173 = vld [vmem:[%s4985 + $0x7a] sm:$0xff]
        %v6174 = vld [vmem:[%s4985 + $0x82] sm:$0xff]
        %v6175 = vld [vmem:[%s4985 + $0x92] sm:$0xff]
        %v6176 = vld [vmem:[%s4985 + $0x9a] sm:$0xff]
        %v6177 = vld [vmem:[%s4985 + $0xaa] sm:$0xff]
        %v6178 = vld [vmem:[%s4985 + $0xb2] sm:$0xff]
        %v6179 = vld [vmem:[%s4985 + $0xc2] sm:$0xff]
        %v6180 = vld [vmem:[%s4985 + $0xca] sm:$0xff]
        %v6181 = vld [vmem:[%s4985 + $0xda] sm:$0xff]
        %v6182 = vld [vmem:[%s4985 + $0xe2] sm:$0xff]
        %v6183 = vld [vmem:[%s4985 + $0xf2] sm:$0xff]
        %v6184 = vld [vmem:[%s4985 + $0xfa] sm:$0xff]
        %v6185 = vld [vmem:[%s4985 + $0x10a] sm:$0xff]
        %v6186 = vld [vmem:[%s4985 + $0x112] sm:$0xff]
        %v6187 = vld [vmem:[%s4985 + $0x122] sm:$0xff]
        %v6188 = vld [vmem:[%s4985 + $0x12a] sm:$0xff]
        %v6189 = vld [vmem:[%s4985 + $0x13a] sm:$0xff]
        %v6190 = vld [vmem:[%s4985 + $0x142] sm:$0xff]
        %v6191 = vld [vmem:[%s4985 + $0x152] sm:$0xff]
        %v6192 = vld [vmem:[%s4985 + $0x15a] sm:$0xff]
        %v6193 = vld [vmem:[%s4985 + $0x16a] sm:$0xff]
        %v6194 = vld [vmem:[%s4985 + $0x172] sm:$0xff]
        %v6195 = vld [vmem:[%s8 + $0xc] sm:$0x1]
        %v6196 = vperm.slane %v6195, 0
        %v6197 = vmul.f32 %v6163, %v6196
        %v6198 = vmul.f32 %v6164, %v6196
        %v6199 = vmul.f32 %v6165, %v6196
        %v6200 = vmul.f32 %v6166, %v6196
        %v6201 = vmul.f32 %v6167, %v6196
        %v6202 = vmul.f32 %v6168, %v6196
        %v6203 = vmul.f32 %v6169, %v6196
        %v6204 = vmul.f32 %v6170, %v6196
        %v6205 = vmul.f32 %v6171, %v6196
        %v6206 = vmul.f32 %v6172, %v6196
        %v6207 = vmul.f32 %v6173, %v6196
        %v6208 = vmul.f32 %v6174, %v6196
        %v6209 = vmul.f32 %v6175, %v6196
        %v6210 = vmul.f32 %v6176, %v6196
        %v6211 = vmul.f32 %v6177, %v6196
        %v6212 = vmul.f32 %v6178, %v6196
        %v6213 = vmul.f32 %v6179, %v6196
        %v6214 = vmul.f32 %v6180, %v6196
        %v6215 = vmul.f32 %v6181, %v6196
        %v6216 = vmul.f32 %v6182, %v6196
        %v6217 = vmul.f32 %v6183, %v6196
        %v6218 = vmul.f32 %v6184, %v6196
        %v6219 = vmul.f32 %v6185, %v6196
        %v6220 = vmul.f32 %v6186, %v6196
        %v6221 = vmul.f32 %v6187, %v6196
        %v6222 = vmul.f32 %v6188, %v6196
        %v6223 = vmul.f32 %v6189, %v6196
        %v6224 = vmul.f32 %v6190, %v6196
        %v6225 = vmul.f32 %v6191, %v6196
        %v6226 = vmul.f32 %v6192, %v6196
        %v6227 = vmul.f32 %v6193, %v6196
        %v6228 = vmul.f32 %v6194, %v6196
        %v6229 = vadd.f32 %v6131, %v6197
        %v6230 = vadd.f32 %v6132, %v6198
        %v6231 = vadd.f32 %v6133, %v6199
        %v6232 = vadd.f32 %v6134, %v6200
        %v6233 = vadd.f32 %v6135, %v6201
        %v6234 = vadd.f32 %v6136, %v6202
        %v6235 = vadd.f32 %v6137, %v6203
        %v6236 = vadd.f32 %v6138, %v6204
        %v6237 = vadd.f32 %v6139, %v6205
        %v6238 = vadd.f32 %v6140, %v6206
        %v6239 = vadd.f32 %v6141, %v6207
        %v6240 = vadd.f32 %v6142, %v6208
        %v6241 = vadd.f32 %v6143, %v6209
        %v6242 = vadd.f32 %v6144, %v6210
        %v6243 = vadd.f32 %v6145, %v6211
        %v6244 = vadd.f32 %v6146, %v6212
        %v6245 = vadd.f32 %v6147, %v6213
        %v6246 = vadd.f32 %v6148, %v6214
        %v6247 = vadd.f32 %v6149, %v6215
        %v6248 = vadd.f32 %v6150, %v6216
        %v6249 = vadd.f32 %v6151, %v6217
        %v6250 = vadd.f32 %v6152, %v6218
        %v6251 = vadd.f32 %v6153, %v6219
        %v6252 = vadd.f32 %v6154, %v6220
        %v6253 = vadd.f32 %v6155, %v6221
        %v6254 = vadd.f32 %v6156, %v6222
        %v6255 = vadd.f32 %v6157, %v6223
        %v6256 = vadd.f32 %v6158, %v6224
        %v6257 = vadd.f32 %v6159, %v6225
        %v6258 = vadd.f32 %v6160, %v6226
        %v6259 = vadd.f32 %v6161, %v6227
        %v6260 = vadd.f32 %v6162, %v6228
        %v6261 = vld [vmem:[%s4985 + $0x3] sm:$0xff]
        %v6262 = vld [vmem:[%s4985 + $0xb] sm:$0xff]
        %v6263 = vld [vmem:[%s4985 + $0x1b] sm:$0xff]
        %v6264 = vld [vmem:[%s4985 + $0x23] sm:$0xff]
        %v6265 = vld [vmem:[%s4985 + $0x33] sm:$0xff]
        %v6266 = vld [vmem:[%s4985 + $0x3b] sm:$0xff]
        %v6267 = vld [vmem:[%s4985 + $0x4b] sm:$0xff]
        %v6268 = vld [vmem:[%s4985 + $0x53] sm:$0xff]
        %v6269 = vld [vmem:[%s4985 + $0x63] sm:$0xff]
        %v6270 = vld [vmem:[%s4985 + $0x6b] sm:$0xff]
        %v6271 = vld [vmem:[%s4985 + $0x7b] sm:$0xff]
        %v6272 = vld [vmem:[%s4985 + $0x83] sm:$0xff]
        %v6273 = vld [vmem:[%s4985 + $0x93] sm:$0xff]
        %v6274 = vld [vmem:[%s4985 + $0x9b] sm:$0xff]
        %v6275 = vld [vmem:[%s4985 + $0xab] sm:$0xff]
        %v6276 = vld [vmem:[%s4985 + $0xb3] sm:$0xff]
        %v6277 = vld [vmem:[%s4985 + $0xc3] sm:$0xff]
        %v6278 = vld [vmem:[%s4985 + $0xcb] sm:$0xff]
        %v6279 = vld [vmem:[%s4985 + $0xdb] sm:$0xff]
        %v6280 = vld [vmem:[%s4985 + $0xe3] sm:$0xff]
        %v6281 = vld [vmem:[%s4985 + $0xf3] sm:$0xff]
        %v6282 = vld [vmem:[%s4985 + $0xfb] sm:$0xff]
        %v6283 = vld [vmem:[%s4985 + $0x10b] sm:$0xff]
        %v6284 = vld [vmem:[%s4985 + $0x113] sm:$0xff]
        %v6285 = vld [vmem:[%s4985 + $0x123] sm:$0xff]
        %v6286 = vld [vmem:[%s4985 + $0x12b] sm:$0xff]
        %v6287 = vld [vmem:[%s4985 + $0x13b] sm:$0xff]
        %v6288 = vld [vmem:[%s4985 + $0x143] sm:$0xff]
        %v6289 = vld [vmem:[%s4985 + $0x153] sm:$0xff]
        %v6290 = vld [vmem:[%s4985 + $0x15b] sm:$0xff]
        %v6291 = vld [vmem:[%s4985 + $0x16b] sm:$0xff]
        %v6292 = vld [vmem:[%s4985 + $0x173] sm:$0xff]
        %v6293 = vld [vmem:[%s8 + $0xd] sm:$0x1]
        %v6294 = vperm.slane %v6293, 0
        %v6295 = vmul.f32 %v6261, %v6294
        %v6296 = vmul.f32 %v6262, %v6294
        %v6297 = vmul.f32 %v6263, %v6294
        %v6298 = vmul.f32 %v6264, %v6294
        %v6299 = vmul.f32 %v6265, %v6294
        %v6300 = vmul.f32 %v6266, %v6294
        %v6301 = vmul.f32 %v6267, %v6294
        %v6302 = vmul.f32 %v6268, %v6294
        %v6303 = vmul.f32 %v6269, %v6294
        %v6304 = vmul.f32 %v6270, %v6294
        %v6305 = vmul.f32 %v6271, %v6294
        %v6306 = vmul.f32 %v6272, %v6294
        %v6307 = vmul.f32 %v6273, %v6294
        %v6308 = vmul.f32 %v6274, %v6294
        %v6309 = vmul.f32 %v6275, %v6294
        %v6310 = vmul.f32 %v6276, %v6294
        %v6311 = vmul.f32 %v6277, %v6294
        %v6312 = vmul.f32 %v6278, %v6294
        %v6313 = vmul.f32 %v6279, %v6294
        %v6314 = vmul.f32 %v6280, %v6294
        %v6315 = vmul.f32 %v6281, %v6294
        %v6316 = vmul.f32 %v6282, %v6294
        %v6317 = vmul.f32 %v6283, %v6294
        %v6318 = vmul.f32 %v6284, %v6294
        %v6319 = vmul.f32 %v6285, %v6294
        %v6320 = vmul.f32 %v6286, %v6294
        %v6321 = vmul.f32 %v6287, %v6294
        %v6322 = vmul.f32 %v6288, %v6294
        %v6323 = vmul.f32 %v6289, %v6294
        %v6324 = vmul.f32 %v6290, %v6294
        %v6325 = vmul.f32 %v6291, %v6294
        %v6326 = vmul.f32 %v6292, %v6294
        %v6327 = vadd.f32 %v6229, %v6295
        %v6328 = vadd.f32 %v6230, %v6296
        %v6329 = vadd.f32 %v6231, %v6297
        %v6330 = vadd.f32 %v6232, %v6298
        %v6331 = vadd.f32 %v6233, %v6299
        %v6332 = vadd.f32 %v6234, %v6300
        %v6333 = vadd.f32 %v6235, %v6301
        %v6334 = vadd.f32 %v6236, %v6302
        %v6335 = vadd.f32 %v6237, %v6303
        %v6336 = vadd.f32 %v6238, %v6304
        %v6337 = vadd.f32 %v6239, %v6305
        %v6338 = vadd.f32 %v6240, %v6306
        %v6339 = vadd.f32 %v6241, %v6307
        %v6340 = vadd.f32 %v6242, %v6308
        %v6341 = vadd.f32 %v6243, %v6309
        %v6342 = vadd.f32 %v6244, %v6310
        %v6343 = vadd.f32 %v6245, %v6311
        %v6344 = vadd.f32 %v6246, %v6312
        %v6345 = vadd.f32 %v6247, %v6313
        %v6346 = vadd.f32 %v6248, %v6314
        %v6347 = vadd.f32 %v6249, %v6315
        %v6348 = vadd.f32 %v6250, %v6316
        %v6349 = vadd.f32 %v6251, %v6317
        %v6350 = vadd.f32 %v6252, %v6318
        %v6351 = vadd.f32 %v6253, %v6319
        %v6352 = vadd.f32 %v6254, %v6320
        %v6353 = vadd.f32 %v6255, %v6321
        %v6354 = vadd.f32 %v6256, %v6322
        %v6355 = vadd.f32 %v6257, %v6323
        %v6356 = vadd.f32 %v6258, %v6324
        %v6357 = vadd.f32 %v6259, %v6325
        %v6358 = vadd.f32 %v6260, %v6326
        %v6359 = vld [vmem:[%s4985 + $0x4] sm:$0xff]
        %v6360 = vld [vmem:[%s4985 + $0xc] sm:$0xff]
        %v6361 = vld [vmem:[%s4985 + $0x1c] sm:$0xff]
        %v6362 = vld [vmem:[%s4985 + $0x24] sm:$0xff]
        %v6363 = vld [vmem:[%s4985 + $0x34] sm:$0xff]
        %v6364 = vld [vmem:[%s4985 + $0x3c] sm:$0xff]
        %v6365 = vld [vmem:[%s4985 + $0x4c] sm:$0xff]
        %v6366 = vld [vmem:[%s4985 + $0x54] sm:$0xff]
        %v6367 = vld [vmem:[%s4985 + $0x64] sm:$0xff]
        %v6368 = vld [vmem:[%s4985 + $0x6c] sm:$0xff]
        %v6369 = vld [vmem:[%s4985 + $0x7c] sm:$0xff]
        %v6370 = vld [vmem:[%s4985 + $0x84] sm:$0xff]
        %v6371 = vld [vmem:[%s4985 + $0x94] sm:$0xff]
        %v6372 = vld [vmem:[%s4985 + $0x9c] sm:$0xff]
        %v6373 = vld [vmem:[%s4985 + $0xac] sm:$0xff]
        %v6374 = vld [vmem:[%s4985 + $0xb4] sm:$0xff]
        %v6375 = vld [vmem:[%s4985 + $0xc4] sm:$0xff]
        %v6376 = vld [vmem:[%s4985 + $0xcc] sm:$0xff]
        %v6377 = vld [vmem:[%s4985 + $0xdc] sm:$0xff]
        %v6378 = vld [vmem:[%s4985 + $0xe4] sm:$0xff]
        %v6379 = vld [vmem:[%s4985 + $0xf4] sm:$0xff]
        %v6380 = vld [vmem:[%s4985 + $0xfc] sm:$0xff]
        %v6381 = vld [vmem:[%s4985 + $0x10c] sm:$0xff]
        %v6382 = vld [vmem:[%s4985 + $0x114] sm:$0xff]
        %v6383 = vld [vmem:[%s4985 + $0x124] sm:$0xff]
        %v6384 = vld [vmem:[%s4985 + $0x12c] sm:$0xff]
        %v6385 = vld [vmem:[%s4985 + $0x13c] sm:$0xff]
        %v6386 = vld [vmem:[%s4985 + $0x144] sm:$0xff]
        %v6387 = vld [vmem:[%s4985 + $0x154] sm:$0xff]
        %v6388 = vld [vmem:[%s4985 + $0x15c] sm:$0xff]
        %v6389 = vld [vmem:[%s4985 + $0x16c] sm:$0xff]
        %v6390 = vld [vmem:[%s4985 + $0x174] sm:$0xff]
        %v6391 = vld [vmem:[%s8 + $0xe] sm:$0x1]
        %v6392 = vperm.slane %v6391, 0
        %v6393 = vmul.f32 %v6359, %v6392
        %v6394 = vmul.f32 %v6360, %v6392
        %v6395 = vmul.f32 %v6361, %v6392
        %v6396 = vmul.f32 %v6362, %v6392
        %v6397 = vmul.f32 %v6363, %v6392
        %v6398 = vmul.f32 %v6364, %v6392
        %v6399 = vmul.f32 %v6365, %v6392
        %v6400 = vmul.f32 %v6366, %v6392
        %v6401 = vmul.f32 %v6367, %v6392
        %v6402 = vmul.f32 %v6368, %v6392
        %v6403 = vmul.f32 %v6369, %v6392
        %v6404 = vmul.f32 %v6370, %v6392
        %v6405 = vmul.f32 %v6371, %v6392
        %v6406 = vmul.f32 %v6372, %v6392
        %v6407 = vmul.f32 %v6373, %v6392
        %v6408 = vmul.f32 %v6374, %v6392
        %v6409 = vmul.f32 %v6375, %v6392
        %v6410 = vmul.f32 %v6376, %v6392
        %v6411 = vmul.f32 %v6377, %v6392
        %v6412 = vmul.f32 %v6378, %v6392
        %v6413 = vmul.f32 %v6379, %v6392
        %v6414 = vmul.f32 %v6380, %v6392
        %v6415 = vmul.f32 %v6381, %v6392
        %v6416 = vmul.f32 %v6382, %v6392
        %v6417 = vmul.f32 %v6383, %v6392
        %v6418 = vmul.f32 %v6384, %v6392
        %v6419 = vmul.f32 %v6385, %v6392
        %v6420 = vmul.f32 %v6386, %v6392
        %v6421 = vmul.f32 %v6387, %v6392
        %v6422 = vmul.f32 %v6388, %v6392
        %v6423 = vmul.f32 %v6389, %v6392
        %v6424 = vmul.f32 %v6390, %v6392
        %v6425 = vadd.f32 %v6327, %v6393
        %v6426 = vadd.f32 %v6328, %v6394
        %v6427 = vadd.f32 %v6329, %v6395
        %v6428 = vadd.f32 %v6330, %v6396
        %v6429 = vadd.f32 %v6331, %v6397
        %v6430 = vadd.f32 %v6332, %v6398
        %v6431 = vadd.f32 %v6333, %v6399
        %v6432 = vadd.f32 %v6334, %v6400
        %v6433 = vadd.f32 %v6335, %v6401
        %v6434 = vadd.f32 %v6336, %v6402
        %v6435 = vadd.f32 %v6337, %v6403
        %v6436 = vadd.f32 %v6338, %v6404
        %v6437 = vadd.f32 %v6339, %v6405
        %v6438 = vadd.f32 %v6340, %v6406
        %v6439 = vadd.f32 %v6341, %v6407
        %v6440 = vadd.f32 %v6342, %v6408
        %v6441 = vadd.f32 %v6343, %v6409
        %v6442 = vadd.f32 %v6344, %v6410
        %v6443 = vadd.f32 %v6345, %v6411
        %v6444 = vadd.f32 %v6346, %v6412
        %v6445 = vadd.f32 %v6347, %v6413
        %v6446 = vadd.f32 %v6348, %v6414
        %v6447 = vadd.f32 %v6349, %v6415
        %v6448 = vadd.f32 %v6350, %v6416
        %v6449 = vadd.f32 %v6351, %v6417
        %v6450 = vadd.f32 %v6352, %v6418
        %v6451 = vadd.f32 %v6353, %v6419
        %v6452 = vadd.f32 %v6354, %v6420
        %v6453 = vadd.f32 %v6355, %v6421
        %v6454 = vadd.f32 %v6356, %v6422
        %v6455 = vadd.f32 %v6357, %v6423
        %v6456 = vadd.f32 %v6358, %v6424
        %s6457 = scalar_lea.vmem [#allocation3], 72
        %v6458 = vld [vmem:[%s6457] sm:$0xff]
        %v6459 = vld [vmem:[%s6457 + $0x8] sm:$0xff]
        %v6460 = vld [vmem:[%s6457 + $0x18] sm:$0xff]
        %v6461 = vld [vmem:[%s6457 + $0x20] sm:$0xff]
        %v6462 = vld [vmem:[%s6457 + $0x30] sm:$0xff]
        %v6463 = vld [vmem:[%s6457 + $0x38] sm:$0xff]
        %v6464 = vld [vmem:[%s6457 + $0x48] sm:$0xff]
        %v6465 = vld [vmem:[%s6457 + $0x50] sm:$0xff]
        %v6466 = vld [vmem:[%s6457 + $0x60] sm:$0xff]
        %v6467 = vld [vmem:[%s6457 + $0x68] sm:$0xff]
        %v6468 = vld [vmem:[%s6457 + $0x78] sm:$0xff]
        %v6469 = vld [vmem:[%s6457 + $0x80] sm:$0xff]
        %v6470 = vld [vmem:[%s6457 + $0x90] sm:$0xff]
        %v6471 = vld [vmem:[%s6457 + $0x98] sm:$0xff]
        %v6472 = vld [vmem:[%s6457 + $0xa8] sm:$0xff]
        %v6473 = vld [vmem:[%s6457 + $0xb0] sm:$0xff]
        %v6474 = vld [vmem:[%s6457 + $0xc0] sm:$0xff]
        %v6475 = vld [vmem:[%s6457 + $0xc8] sm:$0xff]
        %v6476 = vld [vmem:[%s6457 + $0xd8] sm:$0xff]
        %v6477 = vld [vmem:[%s6457 + $0xe0] sm:$0xff]
        %v6478 = vld [vmem:[%s6457 + $0xf0] sm:$0xff]
        %v6479 = vld [vmem:[%s6457 + $0xf8] sm:$0xff]
        %v6480 = vld [vmem:[%s6457 + $0x108] sm:$0xff]
        %v6481 = vld [vmem:[%s6457 + $0x110] sm:$0xff]
        %v6482 = vld [vmem:[%s6457 + $0x120] sm:$0xff]
        %v6483 = vld [vmem:[%s6457 + $0x128] sm:$0xff]
        %v6484 = vld [vmem:[%s6457 + $0x138] sm:$0xff]
        %v6485 = vld [vmem:[%s6457 + $0x140] sm:$0xff]
        %v6486 = vld [vmem:[%s6457 + $0x150] sm:$0xff]
        %v6487 = vld [vmem:[%s6457 + $0x158] sm:$0xff]
        %v6488 = vld [vmem:[%s6457 + $0x168] sm:$0xff]
        %v6489 = vld [vmem:[%s6457 + $0x170] sm:$0xff]
        %v6490 = vld [vmem:[%s8 + $0xf] sm:$0x1]
        %v6491 = vperm.slane %v6490, 0
        %v6492 = vmul.f32 %v6458, %v6491
        %v6493 = vmul.f32 %v6459, %v6491
        %v6494 = vmul.f32 %v6460, %v6491
        %v6495 = vmul.f32 %v6461, %v6491
        %v6496 = vmul.f32 %v6462, %v6491
        %v6497 = vmul.f32 %v6463, %v6491
        %v6498 = vmul.f32 %v6464, %v6491
        %v6499 = vmul.f32 %v6465, %v6491
        %v6500 = vmul.f32 %v6466, %v6491
        %v6501 = vmul.f32 %v6467, %v6491
        %v6502 = vmul.f32 %v6468, %v6491
        %v6503 = vmul.f32 %v6469, %v6491
        %v6504 = vmul.f32 %v6470, %v6491
        %v6505 = vmul.f32 %v6471, %v6491
        %v6506 = vmul.f32 %v6472, %v6491
        %v6507 = vmul.f32 %v6473, %v6491
        %v6508 = vmul.f32 %v6474, %v6491
        %v6509 = vmul.f32 %v6475, %v6491
        %v6510 = vmul.f32 %v6476, %v6491
        %v6511 = vmul.f32 %v6477, %v6491
        %v6512 = vmul.f32 %v6478, %v6491
        %v6513 = vmul.f32 %v6479, %v6491
        %v6514 = vmul.f32 %v6480, %v6491
        %v6515 = vmul.f32 %v6481, %v6491
        %v6516 = vmul.f32 %v6482, %v6491
        %v6517 = vmul.f32 %v6483, %v6491
        %v6518 = vmul.f32 %v6484, %v6491
        %v6519 = vmul.f32 %v6485, %v6491
        %v6520 = vmul.f32 %v6486, %v6491
        %v6521 = vmul.f32 %v6487, %v6491
        %v6522 = vmul.f32 %v6488, %v6491
        %v6523 = vmul.f32 %v6489, %v6491
        %v6524 = vadd.f32 %v6425, %v6492
        %v6525 = vadd.f32 %v6426, %v6493
        %v6526 = vadd.f32 %v6427, %v6494
        %v6527 = vadd.f32 %v6428, %v6495
        %v6528 = vadd.f32 %v6429, %v6496
        %v6529 = vadd.f32 %v6430, %v6497
        %v6530 = vadd.f32 %v6431, %v6498
        %v6531 = vadd.f32 %v6432, %v6499
        %v6532 = vadd.f32 %v6433, %v6500
        %v6533 = vadd.f32 %v6434, %v6501
        %v6534 = vadd.f32 %v6435, %v6502
        %v6535 = vadd.f32 %v6436, %v6503
        %v6536 = vadd.f32 %v6437, %v6504
        %v6537 = vadd.f32 %v6438, %v6505
        %v6538 = vadd.f32 %v6439, %v6506
        %v6539 = vadd.f32 %v6440, %v6507
        %v6540 = vadd.f32 %v6441, %v6508
        %v6541 = vadd.f32 %v6442, %v6509
        %v6542 = vadd.f32 %v6443, %v6510
        %v6543 = vadd.f32 %v6444, %v6511
        %v6544 = vadd.f32 %v6445, %v6512
        %v6545 = vadd.f32 %v6446, %v6513
        %v6546 = vadd.f32 %v6447, %v6514
        %v6547 = vadd.f32 %v6448, %v6515
        %v6548 = vadd.f32 %v6449, %v6516
        %v6549 = vadd.f32 %v6450, %v6517
        %v6550 = vadd.f32 %v6451, %v6518
        %v6551 = vadd.f32 %v6452, %v6519
        %v6552 = vadd.f32 %v6453, %v6520
        %v6553 = vadd.f32 %v6454, %v6521
        %v6554 = vadd.f32 %v6455, %v6522
        %v6555 = vadd.f32 %v6456, %v6523
        %v6556 = vld [vmem:[%s6457 + $0x1] sm:$0xff]
        %v6557 = vld [vmem:[%s6457 + $0x9] sm:$0xff]
        %v6558 = vld [vmem:[%s6457 + $0x19] sm:$0xff]
        %v6559 = vld [vmem:[%s6457 + $0x21] sm:$0xff]
        %v6560 = vld [vmem:[%s6457 + $0x31] sm:$0xff]
        %v6561 = vld [vmem:[%s6457 + $0x39] sm:$0xff]
        %v6562 = vld [vmem:[%s6457 + $0x49] sm:$0xff]
        %v6563 = vld [vmem:[%s6457 + $0x51] sm:$0xff]
        %v6564 = vld [vmem:[%s6457 + $0x61] sm:$0xff]
        %v6565 = vld [vmem:[%s6457 + $0x69] sm:$0xff]
        %v6566 = vld [vmem:[%s6457 + $0x79] sm:$0xff]
        %v6567 = vld [vmem:[%s6457 + $0x81] sm:$0xff]
        %v6568 = vld [vmem:[%s6457 + $0x91] sm:$0xff]
        %v6569 = vld [vmem:[%s6457 + $0x99] sm:$0xff]
        %v6570 = vld [vmem:[%s6457 + $0xa9] sm:$0xff]
        %v6571 = vld [vmem:[%s6457 + $0xb1] sm:$0xff]
        %v6572 = vld [vmem:[%s6457 + $0xc1] sm:$0xff]
        %v6573 = vld [vmem:[%s6457 + $0xc9] sm:$0xff]
        %v6574 = vld [vmem:[%s6457 + $0xd9] sm:$0xff]
        %v6575 = vld [vmem:[%s6457 + $0xe1] sm:$0xff]
        %v6576 = vld [vmem:[%s6457 + $0xf1] sm:$0xff]
        %v6577 = vld [vmem:[%s6457 + $0xf9] sm:$0xff]
        %v6578 = vld [vmem:[%s6457 + $0x109] sm:$0xff]
        %v6579 = vld [vmem:[%s6457 + $0x111] sm:$0xff]
        %v6580 = vld [vmem:[%s6457 + $0x121] sm:$0xff]
        %v6581 = vld [vmem:[%s6457 + $0x129] sm:$0xff]
        %v6582 = vld [vmem:[%s6457 + $0x139] sm:$0xff]
        %v6583 = vld [vmem:[%s6457 + $0x141] sm:$0xff]
        %v6584 = vld [vmem:[%s6457 + $0x151] sm:$0xff]
        %v6585 = vld [vmem:[%s6457 + $0x159] sm:$0xff]
        %v6586 = vld [vmem:[%s6457 + $0x169] sm:$0xff]
        %v6587 = vld [vmem:[%s6457 + $0x171] sm:$0xff]
        %v6588 = vld [vmem:[%s8 + $0x10] sm:$0x1]
        %v6589 = vperm.slane %v6588, 0
        %v6590 = vmul.f32 %v6556, %v6589
        %v6591 = vmul.f32 %v6557, %v6589
        %v6592 = vmul.f32 %v6558, %v6589
        %v6593 = vmul.f32 %v6559, %v6589
        %v6594 = vmul.f32 %v6560, %v6589
        %v6595 = vmul.f32 %v6561, %v6589
        %v6596 = vmul.f32 %v6562, %v6589
        %v6597 = vmul.f32 %v6563, %v6589
        %v6598 = vmul.f32 %v6564, %v6589
        %v6599 = vmul.f32 %v6565, %v6589
        %v6600 = vmul.f32 %v6566, %v6589
        %v6601 = vmul.f32 %v6567, %v6589
        %v6602 = vmul.f32 %v6568, %v6589
        %v6603 = vmul.f32 %v6569, %v6589
        %v6604 = vmul.f32 %v6570, %v6589
        %v6605 = vmul.f32 %v6571, %v6589
        %v6606 = vmul.f32 %v6572, %v6589
        %v6607 = vmul.f32 %v6573, %v6589
        %v6608 = vmul.f32 %v6574, %v6589
        %v6609 = vmul.f32 %v6575, %v6589
        %v6610 = vmul.f32 %v6576, %v6589
        %v6611 = vmul.f32 %v6577, %v6589
        %v6612 = vmul.f32 %v6578, %v6589
        %v6613 = vmul.f32 %v6579, %v6589
        %v6614 = vmul.f32 %v6580, %v6589
        %v6615 = vmul.f32 %v6581, %v6589
        %v6616 = vmul.f32 %v6582, %v6589
        %v6617 = vmul.f32 %v6583, %v6589
        %v6618 = vmul.f32 %v6584, %v6589
        %v6619 = vmul.f32 %v6585, %v6589
        %v6620 = vmul.f32 %v6586, %v6589
        %v6621 = vmul.f32 %v6587, %v6589
        %v6622 = vadd.f32 %v6524, %v6590
        %v6623 = vadd.f32 %v6525, %v6591
        %v6624 = vadd.f32 %v6526, %v6592
        %v6625 = vadd.f32 %v6527, %v6593
        %v6626 = vadd.f32 %v6528, %v6594
        %v6627 = vadd.f32 %v6529, %v6595
        %v6628 = vadd.f32 %v6530, %v6596
        %v6629 = vadd.f32 %v6531, %v6597
        %v6630 = vadd.f32 %v6532, %v6598
        %v6631 = vadd.f32 %v6533, %v6599
        %v6632 = vadd.f32 %v6534, %v6600
        %v6633 = vadd.f32 %v6535, %v6601
        %v6634 = vadd.f32 %v6536, %v6602
        %v6635 = vadd.f32 %v6537, %v6603
        %v6636 = vadd.f32 %v6538, %v6604
        %v6637 = vadd.f32 %v6539, %v6605
        %v6638 = vadd.f32 %v6540, %v6606
        %v6639 = vadd.f32 %v6541, %v6607
        %v6640 = vadd.f32 %v6542, %v6608
        %v6641 = vadd.f32 %v6543, %v6609
        %v6642 = vadd.f32 %v6544, %v6610
        %v6643 = vadd.f32 %v6545, %v6611
        %v6644 = vadd.f32 %v6546, %v6612
        %v6645 = vadd.f32 %v6547, %v6613
        %v6646 = vadd.f32 %v6548, %v6614
        %v6647 = vadd.f32 %v6549, %v6615
        %v6648 = vadd.f32 %v6550, %v6616
        %v6649 = vadd.f32 %v6551, %v6617
        %v6650 = vadd.f32 %v6552, %v6618
        %v6651 = vadd.f32 %v6553, %v6619
        %v6652 = vadd.f32 %v6554, %v6620
        %v6653 = vadd.f32 %v6555, %v6621
        %v6654 = vld [vmem:[%s6457 + $0x2] sm:$0xff]
        %v6655 = vld [vmem:[%s6457 + $0xa] sm:$0xff]
        %v6656 = vld [vmem:[%s6457 + $0x1a] sm:$0xff]
        %v6657 = vld [vmem:[%s6457 + $0x22] sm:$0xff]
        %v6658 = vld [vmem:[%s6457 + $0x32] sm:$0xff]
        %v6659 = vld [vmem:[%s6457 + $0x3a] sm:$0xff]
        %v6660 = vld [vmem:[%s6457 + $0x4a] sm:$0xff]
        %v6661 = vld [vmem:[%s6457 + $0x52] sm:$0xff]
        %v6662 = vld [vmem:[%s6457 + $0x62] sm:$0xff]
        %v6663 = vld [vmem:[%s6457 + $0x6a] sm:$0xff]
        %v6664 = vld [vmem:[%s6457 + $0x7a] sm:$0xff]
        %v6665 = vld [vmem:[%s6457 + $0x82] sm:$0xff]
        %v6666 = vld [vmem:[%s6457 + $0x92] sm:$0xff]
        %v6667 = vld [vmem:[%s6457 + $0x9a] sm:$0xff]
        %v6668 = vld [vmem:[%s6457 + $0xaa] sm:$0xff]
        %v6669 = vld [vmem:[%s6457 + $0xb2] sm:$0xff]
        %v6670 = vld [vmem:[%s6457 + $0xc2] sm:$0xff]
        %v6671 = vld [vmem:[%s6457 + $0xca] sm:$0xff]
        %v6672 = vld [vmem:[%s6457 + $0xda] sm:$0xff]
        %v6673 = vld [vmem:[%s6457 + $0xe2] sm:$0xff]
        %v6674 = vld [vmem:[%s6457 + $0xf2] sm:$0xff]
        %v6675 = vld [vmem:[%s6457 + $0xfa] sm:$0xff]
        %v6676 = vld [vmem:[%s6457 + $0x10a] sm:$0xff]
        %v6677 = vld [vmem:[%s6457 + $0x112] sm:$0xff]
        %v6678 = vld [vmem:[%s6457 + $0x122] sm:$0xff]
        %v6679 = vld [vmem:[%s6457 + $0x12a] sm:$0xff]
        %v6680 = vld [vmem:[%s6457 + $0x13a] sm:$0xff]
        %v6681 = vld [vmem:[%s6457 + $0x142] sm:$0xff]
        %v6682 = vld [vmem:[%s6457 + $0x152] sm:$0xff]
        %v6683 = vld [vmem:[%s6457 + $0x15a] sm:$0xff]
        %v6684 = vld [vmem:[%s6457 + $0x16a] sm:$0xff]
        %v6685 = vld [vmem:[%s6457 + $0x172] sm:$0xff]
        %v6686 = vld [vmem:[%s8 + $0x11] sm:$0x1]
        %v6687 = vperm.slane %v6686, 0
        %v6688 = vmul.f32 %v6654, %v6687
        %v6689 = vmul.f32 %v6655, %v6687
        %v6690 = vmul.f32 %v6656, %v6687
        %v6691 = vmul.f32 %v6657, %v6687
        %v6692 = vmul.f32 %v6658, %v6687
        %v6693 = vmul.f32 %v6659, %v6687
        %v6694 = vmul.f32 %v6660, %v6687
        %v6695 = vmul.f32 %v6661, %v6687
        %v6696 = vmul.f32 %v6662, %v6687
        %v6697 = vmul.f32 %v6663, %v6687
        %v6698 = vmul.f32 %v6664, %v6687
        %v6699 = vmul.f32 %v6665, %v6687
        %v6700 = vmul.f32 %v6666, %v6687
        %v6701 = vmul.f32 %v6667, %v6687
        %v6702 = vmul.f32 %v6668, %v6687
        %v6703 = vmul.f32 %v6669, %v6687
        %v6704 = vmul.f32 %v6670, %v6687
        %v6705 = vmul.f32 %v6671, %v6687
        %v6706 = vmul.f32 %v6672, %v6687
        %v6707 = vmul.f32 %v6673, %v6687
        %v6708 = vmul.f32 %v6674, %v6687
        %v6709 = vmul.f32 %v6675, %v6687
        %v6710 = vmul.f32 %v6676, %v6687
        %v6711 = vmul.f32 %v6677, %v6687
        %v6712 = vmul.f32 %v6678, %v6687
        %v6713 = vmul.f32 %v6679, %v6687
        %v6714 = vmul.f32 %v6680, %v6687
        %v6715 = vmul.f32 %v6681, %v6687
        %v6716 = vmul.f32 %v6682, %v6687
        %v6717 = vmul.f32 %v6683, %v6687
        %v6718 = vmul.f32 %v6684, %v6687
        %v6719 = vmul.f32 %v6685, %v6687
        %v6720 = vadd.f32 %v6622, %v6688
        %v6721 = vadd.f32 %v6623, %v6689
        %v6722 = vadd.f32 %v6624, %v6690
        %v6723 = vadd.f32 %v6625, %v6691
        %v6724 = vadd.f32 %v6626, %v6692
        %v6725 = vadd.f32 %v6627, %v6693
        %v6726 = vadd.f32 %v6628, %v6694
        %v6727 = vadd.f32 %v6629, %v6695
        %v6728 = vadd.f32 %v6630, %v6696
        %v6729 = vadd.f32 %v6631, %v6697
        %v6730 = vadd.f32 %v6632, %v6698
        %v6731 = vadd.f32 %v6633, %v6699
        %v6732 = vadd.f32 %v6634, %v6700
        %v6733 = vadd.f32 %v6635, %v6701
        %v6734 = vadd.f32 %v6636, %v6702
        %v6735 = vadd.f32 %v6637, %v6703
        %v6736 = vadd.f32 %v6638, %v6704
        %v6737 = vadd.f32 %v6639, %v6705
        %v6738 = vadd.f32 %v6640, %v6706
        %v6739 = vadd.f32 %v6641, %v6707
        %v6740 = vadd.f32 %v6642, %v6708
        %v6741 = vadd.f32 %v6643, %v6709
        %v6742 = vadd.f32 %v6644, %v6710
        %v6743 = vadd.f32 %v6645, %v6711
        %v6744 = vadd.f32 %v6646, %v6712
        %v6745 = vadd.f32 %v6647, %v6713
        %v6746 = vadd.f32 %v6648, %v6714
        %v6747 = vadd.f32 %v6649, %v6715
        %v6748 = vadd.f32 %v6650, %v6716
        %v6749 = vadd.f32 %v6651, %v6717
        %v6750 = vadd.f32 %v6652, %v6718
        %v6751 = vadd.f32 %v6653, %v6719
        %v6752 = vld [vmem:[%s6457 + $0x3] sm:$0xff]
        %v6753 = vld [vmem:[%s6457 + $0xb] sm:$0xff]
        %v6754 = vld [vmem:[%s6457 + $0x1b] sm:$0xff]
        %v6755 = vld [vmem:[%s6457 + $0x23] sm:$0xff]
        %v6756 = vld [vmem:[%s6457 + $0x33] sm:$0xff]
        %v6757 = vld [vmem:[%s6457 + $0x3b] sm:$0xff]
        %v6758 = vld [vmem:[%s6457 + $0x4b] sm:$0xff]
        %v6759 = vld [vmem:[%s6457 + $0x53] sm:$0xff]
        %v6760 = vld [vmem:[%s6457 + $0x63] sm:$0xff]
        %v6761 = vld [vmem:[%s6457 + $0x6b] sm:$0xff]
        %v6762 = vld [vmem:[%s6457 + $0x7b] sm:$0xff]
        %v6763 = vld [vmem:[%s6457 + $0x83] sm:$0xff]
        %v6764 = vld [vmem:[%s6457 + $0x93] sm:$0xff]
        %v6765 = vld [vmem:[%s6457 + $0x9b] sm:$0xff]
        %v6766 = vld [vmem:[%s6457 + $0xab] sm:$0xff]
        %v6767 = vld [vmem:[%s6457 + $0xb3] sm:$0xff]
        %v6768 = vld [vmem:[%s6457 + $0xc3] sm:$0xff]
        %v6769 = vld [vmem:[%s6457 + $0xcb] sm:$0xff]
        %v6770 = vld [vmem:[%s6457 + $0xdb] sm:$0xff]
        %v6771 = vld [vmem:[%s6457 + $0xe3] sm:$0xff]
        %v6772 = vld [vmem:[%s6457 + $0xf3] sm:$0xff]
        %v6773 = vld [vmem:[%s6457 + $0xfb] sm:$0xff]
        %v6774 = vld [vmem:[%s6457 + $0x10b] sm:$0xff]
        %v6775 = vld [vmem:[%s6457 + $0x113] sm:$0xff]
        %v6776 = vld [vmem:[%s6457 + $0x123] sm:$0xff]
        %v6777 = vld [vmem:[%s6457 + $0x12b] sm:$0xff]
        %v6778 = vld [vmem:[%s6457 + $0x13b] sm:$0xff]
        %v6779 = vld [vmem:[%s6457 + $0x143] sm:$0xff]
        %v6780 = vld [vmem:[%s6457 + $0x153] sm:$0xff]
        %v6781 = vld [vmem:[%s6457 + $0x15b] sm:$0xff]
        %v6782 = vld [vmem:[%s6457 + $0x16b] sm:$0xff]
        %v6783 = vld [vmem:[%s6457 + $0x173] sm:$0xff]
        %v6784 = vld [vmem:[%s8 + $0x12] sm:$0x1]
        %v6785 = vperm.slane %v6784, 0
        %v6786 = vmul.f32 %v6752, %v6785
        %v6787 = vmul.f32 %v6753, %v6785
        %v6788 = vmul.f32 %v6754, %v6785
        %v6789 = vmul.f32 %v6755, %v6785
        %v6790 = vmul.f32 %v6756, %v6785
        %v6791 = vmul.f32 %v6757, %v6785
        %v6792 = vmul.f32 %v6758, %v6785
        %v6793 = vmul.f32 %v6759, %v6785
        %v6794 = vmul.f32 %v6760, %v6785
        %v6795 = vmul.f32 %v6761, %v6785
        %v6796 = vmul.f32 %v6762, %v6785
        %v6797 = vmul.f32 %v6763, %v6785
        %v6798 = vmul.f32 %v6764, %v6785
        %v6799 = vmul.f32 %v6765, %v6785
        %v6800 = vmul.f32 %v6766, %v6785
        %v6801 = vmul.f32 %v6767, %v6785
        %v6802 = vmul.f32 %v6768, %v6785
        %v6803 = vmul.f32 %v6769, %v6785
        %v6804 = vmul.f32 %v6770, %v6785
        %v6805 = vmul.f32 %v6771, %v6785
        %v6806 = vmul.f32 %v6772, %v6785
        %v6807 = vmul.f32 %v6773, %v6785
        %v6808 = vmul.f32 %v6774, %v6785
        %v6809 = vmul.f32 %v6775, %v6785
        %v6810 = vmul.f32 %v6776, %v6785
        %v6811 = vmul.f32 %v6777, %v6785
        %v6812 = vmul.f32 %v6778, %v6785
        %v6813 = vmul.f32 %v6779, %v6785
        %v6814 = vmul.f32 %v6780, %v6785
        %v6815 = vmul.f32 %v6781, %v6785
        %v6816 = vmul.f32 %v6782, %v6785
        %v6817 = vmul.f32 %v6783, %v6785
        %v6818 = vadd.f32 %v6720, %v6786
        %v6819 = vadd.f32 %v6721, %v6787
        %v6820 = vadd.f32 %v6722, %v6788
        %v6821 = vadd.f32 %v6723, %v6789
        %v6822 = vadd.f32 %v6724, %v6790
        %v6823 = vadd.f32 %v6725, %v6791
        %v6824 = vadd.f32 %v6726, %v6792
        %v6825 = vadd.f32 %v6727, %v6793
        %v6826 = vadd.f32 %v6728, %v6794
        %v6827 = vadd.f32 %v6729, %v6795
        %v6828 = vadd.f32 %v6730, %v6796
        %v6829 = vadd.f32 %v6731, %v6797
        %v6830 = vadd.f32 %v6732, %v6798
        %v6831 = vadd.f32 %v6733, %v6799
        %v6832 = vadd.f32 %v6734, %v6800
        %v6833 = vadd.f32 %v6735, %v6801
        %v6834 = vadd.f32 %v6736, %v6802
        %v6835 = vadd.f32 %v6737, %v6803
        %v6836 = vadd.f32 %v6738, %v6804
        %v6837 = vadd.f32 %v6739, %v6805
        %v6838 = vadd.f32 %v6740, %v6806
        %v6839 = vadd.f32 %v6741, %v6807
        %v6840 = vadd.f32 %v6742, %v6808
        %v6841 = vadd.f32 %v6743, %v6809
        %v6842 = vadd.f32 %v6744, %v6810
        %v6843 = vadd.f32 %v6745, %v6811
        %v6844 = vadd.f32 %v6746, %v6812
        %v6845 = vadd.f32 %v6747, %v6813
        %v6846 = vadd.f32 %v6748, %v6814
        %v6847 = vadd.f32 %v6749, %v6815
        %v6848 = vadd.f32 %v6750, %v6816
        %v6849 = vadd.f32 %v6751, %v6817
        %v6850 = vld [vmem:[%s6457 + $0x4] sm:$0xff]
        %v6851 = vld [vmem:[%s6457 + $0xc] sm:$0xff]
        %v6852 = vld [vmem:[%s6457 + $0x1c] sm:$0xff]
        %v6853 = vld [vmem:[%s6457 + $0x24] sm:$0xff]
        %v6854 = vld [vmem:[%s6457 + $0x34] sm:$0xff]
        %v6855 = vld [vmem:[%s6457 + $0x3c] sm:$0xff]
        %v6856 = vld [vmem:[%s6457 + $0x4c] sm:$0xff]
        %v6857 = vld [vmem:[%s6457 + $0x54] sm:$0xff]
        %v6858 = vld [vmem:[%s6457 + $0x64] sm:$0xff]
        %v6859 = vld [vmem:[%s6457 + $0x6c] sm:$0xff]
        %v6860 = vld [vmem:[%s6457 + $0x7c] sm:$0xff]
        %v6861 = vld [vmem:[%s6457 + $0x84] sm:$0xff]
        %v6862 = vld [vmem:[%s6457 + $0x94] sm:$0xff]
        %v6863 = vld [vmem:[%s6457 + $0x9c] sm:$0xff]
        %v6864 = vld [vmem:[%s6457 + $0xac] sm:$0xff]
        %v6865 = vld [vmem:[%s6457 + $0xb4] sm:$0xff]
        %v6866 = vld [vmem:[%s6457 + $0xc4] sm:$0xff]
        %v6867 = vld [vmem:[%s6457 + $0xcc] sm:$0xff]
        %v6868 = vld [vmem:[%s6457 + $0xdc] sm:$0xff]
        %v6869 = vld [vmem:[%s6457 + $0xe4] sm:$0xff]
        %v6870 = vld [vmem:[%s6457 + $0xf4] sm:$0xff]
        %v6871 = vld [vmem:[%s6457 + $0xfc] sm:$0xff]
        %v6872 = vld [vmem:[%s6457 + $0x10c] sm:$0xff]
        %v6873 = vld [vmem:[%s6457 + $0x114] sm:$0xff]
        %v6874 = vld [vmem:[%s6457 + $0x124] sm:$0xff]
        %v6875 = vld [vmem:[%s6457 + $0x12c] sm:$0xff]
        %v6876 = vld [vmem:[%s6457 + $0x13c] sm:$0xff]
        %v6877 = vld [vmem:[%s6457 + $0x144] sm:$0xff]
        %v6878 = vld [vmem:[%s6457 + $0x154] sm:$0xff]
        %v6879 = vld [vmem:[%s6457 + $0x15c] sm:$0xff]
        %v6880 = vld [vmem:[%s6457 + $0x16c] sm:$0xff]
        %v6881 = vld [vmem:[%s6457 + $0x174] sm:$0xff]
        %v6882 = vld [vmem:[%s8 + $0x13] sm:$0x1]
        %v6883 = vperm.slane %v6882, 0
        %v6884 = vmul.f32 %v6850, %v6883
        %v6885 = vmul.f32 %v6851, %v6883
        %v6886 = vmul.f32 %v6852, %v6883
        %v6887 = vmul.f32 %v6853, %v6883
        %v6888 = vmul.f32 %v6854, %v6883
        %v6889 = vmul.f32 %v6855, %v6883
        %v6890 = vmul.f32 %v6856, %v6883
        %v6891 = vmul.f32 %v6857, %v6883
        %v6892 = vmul.f32 %v6858, %v6883
        %v6893 = vmul.f32 %v6859, %v6883
        %v6894 = vmul.f32 %v6860, %v6883
        %v6895 = vmul.f32 %v6861, %v6883
        %v6896 = vmul.f32 %v6862, %v6883
        %v6897 = vmul.f32 %v6863, %v6883
        %v6898 = vmul.f32 %v6864, %v6883
        %v6899 = vmul.f32 %v6865, %v6883
        %v6900 = vmul.f32 %v6866, %v6883
        %v6901 = vmul.f32 %v6867, %v6883
        %v6902 = vmul.f32 %v6868, %v6883
        %v6903 = vmul.f32 %v6869, %v6883
        %v6904 = vmul.f32 %v6870, %v6883
        %v6905 = vmul.f32 %v6871, %v6883
        %v6906 = vmul.f32 %v6872, %v6883
        %v6907 = vmul.f32 %v6873, %v6883
        %v6908 = vmul.f32 %v6874, %v6883
        %v6909 = vmul.f32 %v6875, %v6883
        %v6910 = vmul.f32 %v6876, %v6883
        %v6911 = vmul.f32 %v6877, %v6883
        %v6912 = vmul.f32 %v6878, %v6883
        %v6913 = vmul.f32 %v6879, %v6883
        %v6914 = vmul.f32 %v6880, %v6883
        %v6915 = vmul.f32 %v6881, %v6883
        %v6916 = vadd.f32 %v6818, %v6884
        %v6917 = vadd.f32 %v6819, %v6885
        %v6918 = vadd.f32 %v6820, %v6886
        %v6919 = vadd.f32 %v6821, %v6887
        %v6920 = vadd.f32 %v6822, %v6888
        %v6921 = vadd.f32 %v6823, %v6889
        %v6922 = vadd.f32 %v6824, %v6890
        %v6923 = vadd.f32 %v6825, %v6891
        %v6924 = vadd.f32 %v6826, %v6892
        %v6925 = vadd.f32 %v6827, %v6893
        %v6926 = vadd.f32 %v6828, %v6894
        %v6927 = vadd.f32 %v6829, %v6895
        %v6928 = vadd.f32 %v6830, %v6896
        %v6929 = vadd.f32 %v6831, %v6897
        %v6930 = vadd.f32 %v6832, %v6898
        %v6931 = vadd.f32 %v6833, %v6899
        %v6932 = vadd.f32 %v6834, %v6900
        %v6933 = vadd.f32 %v6835, %v6901
        %v6934 = vadd.f32 %v6836, %v6902
        %v6935 = vadd.f32 %v6837, %v6903
        %v6936 = vadd.f32 %v6838, %v6904
        %v6937 = vadd.f32 %v6839, %v6905
        %v6938 = vadd.f32 %v6840, %v6906
        %v6939 = vadd.f32 %v6841, %v6907
        %v6940 = vadd.f32 %v6842, %v6908
        %v6941 = vadd.f32 %v6843, %v6909
        %v6942 = vadd.f32 %v6844, %v6910
        %v6943 = vadd.f32 %v6845, %v6911
        %v6944 = vadd.f32 %v6846, %v6912
        %v6945 = vadd.f32 %v6847, %v6913
        %v6946 = vadd.f32 %v6848, %v6914
        %v6947 = vadd.f32 %v6849, %v6915
        %s6948 = scalar_lea.vmem [#allocation3], 96
        %v6949 = vld [vmem:[%s6948] sm:$0xff]
        %v6950 = vld [vmem:[%s6948 + $0x8] sm:$0xff]
        %v6951 = vld [vmem:[%s6948 + $0x18] sm:$0xff]
        %v6952 = vld [vmem:[%s6948 + $0x20] sm:$0xff]
        %v6953 = vld [vmem:[%s6948 + $0x30] sm:$0xff]
        %v6954 = vld [vmem:[%s6948 + $0x38] sm:$0xff]
        %v6955 = vld [vmem:[%s6948 + $0x48] sm:$0xff]
        %v6956 = vld [vmem:[%s6948 + $0x50] sm:$0xff]
        %v6957 = vld [vmem:[%s6948 + $0x60] sm:$0xff]
        %v6958 = vld [vmem:[%s6948 + $0x68] sm:$0xff]
        %v6959 = vld [vmem:[%s6948 + $0x78] sm:$0xff]
        %v6960 = vld [vmem:[%s6948 + $0x80] sm:$0xff]
        %v6961 = vld [vmem:[%s6948 + $0x90] sm:$0xff]
        %v6962 = vld [vmem:[%s6948 + $0x98] sm:$0xff]
        %v6963 = vld [vmem:[%s6948 + $0xa8] sm:$0xff]
        %v6964 = vld [vmem:[%s6948 + $0xb0] sm:$0xff]
        %v6965 = vld [vmem:[%s6948 + $0xc0] sm:$0xff]
        %v6966 = vld [vmem:[%s6948 + $0xc8] sm:$0xff]
        %v6967 = vld [vmem:[%s6948 + $0xd8] sm:$0xff]
        %v6968 = vld [vmem:[%s6948 + $0xe0] sm:$0xff]
        %v6969 = vld [vmem:[%s6948 + $0xf0] sm:$0xff]
        %v6970 = vld [vmem:[%s6948 + $0xf8] sm:$0xff]
        %v6971 = vld [vmem:[%s6948 + $0x108] sm:$0xff]
        %v6972 = vld [vmem:[%s6948 + $0x110] sm:$0xff]
        %v6973 = vld [vmem:[%s6948 + $0x120] sm:$0xff]
        %v6974 = vld [vmem:[%s6948 + $0x128] sm:$0xff]
        %v6975 = vld [vmem:[%s6948 + $0x138] sm:$0xff]
        %v6976 = vld [vmem:[%s6948 + $0x140] sm:$0xff]
        %v6977 = vld [vmem:[%s6948 + $0x150] sm:$0xff]
        %v6978 = vld [vmem:[%s6948 + $0x158] sm:$0xff]
        %v6979 = vld [vmem:[%s6948 + $0x168] sm:$0xff]
        %v6980 = vld [vmem:[%s6948 + $0x170] sm:$0xff]
        %v6981 = vld [vmem:[%s8 + $0x14] sm:$0x1]
        %v6982 = vperm.slane %v6981, 0
        %v6983 = vmul.f32 %v6949, %v6982
        %v6984 = vmul.f32 %v6950, %v6982
        %v6985 = vmul.f32 %v6951, %v6982
        %v6986 = vmul.f32 %v6952, %v6982
        %v6987 = vmul.f32 %v6953, %v6982
        %v6988 = vmul.f32 %v6954, %v6982
        %v6989 = vmul.f32 %v6955, %v6982
        %v6990 = vmul.f32 %v6956, %v6982
        %v6991 = vmul.f32 %v6957, %v6982
        %v6992 = vmul.f32 %v6958, %v6982
        %v6993 = vmul.f32 %v6959, %v6982
        %v6994 = vmul.f32 %v6960, %v6982
        %v6995 = vmul.f32 %v6961, %v6982
        %v6996 = vmul.f32 %v6962, %v6982
        %v6997 = vmul.f32 %v6963, %v6982
        %v6998 = vmul.f32 %v6964, %v6982
        %v6999 = vmul.f32 %v6965, %v6982
        %v7000 = vmul.f32 %v6966, %v6982
        %v7001 = vmul.f32 %v6967, %v6982
        %v7002 = vmul.f32 %v6968, %v6982
        %v7003 = vmul.f32 %v6969, %v6982
        %v7004 = vmul.f32 %v6970, %v6982
        %v7005 = vmul.f32 %v6971, %v6982
        %v7006 = vmul.f32 %v6972, %v6982
        %v7007 = vmul.f32 %v6973, %v6982
        %v7008 = vmul.f32 %v6974, %v6982
        %v7009 = vmul.f32 %v6975, %v6982
        %v7010 = vmul.f32 %v6976, %v6982
        %v7011 = vmul.f32 %v6977, %v6982
        %v7012 = vmul.f32 %v6978, %v6982
        %v7013 = vmul.f32 %v6979, %v6982
        %v7014 = vmul.f32 %v6980, %v6982
        %v7015 = vadd.f32 %v6916, %v6983
        %v7016 = vadd.f32 %v6917, %v6984
        %v7017 = vadd.f32 %v6918, %v6985
        %v7018 = vadd.f32 %v6919, %v6986
        %v7019 = vadd.f32 %v6920, %v6987
        %v7020 = vadd.f32 %v6921, %v6988
        %v7021 = vadd.f32 %v6922, %v6989
        %v7022 = vadd.f32 %v6923, %v6990
        %v7023 = vadd.f32 %v6924, %v6991
        %v7024 = vadd.f32 %v6925, %v6992
        %v7025 = vadd.f32 %v6926, %v6993
        %v7026 = vadd.f32 %v6927, %v6994
        %v7027 = vadd.f32 %v6928, %v6995
        %v7028 = vadd.f32 %v6929, %v6996
        %v7029 = vadd.f32 %v6930, %v6997
        %v7030 = vadd.f32 %v6931, %v6998
        %v7031 = vadd.f32 %v6932, %v6999
        %v7032 = vadd.f32 %v6933, %v7000
        %v7033 = vadd.f32 %v6934, %v7001
        %v7034 = vadd.f32 %v6935, %v7002
        %v7035 = vadd.f32 %v6936, %v7003
        %v7036 = vadd.f32 %v6937, %v7004
        %v7037 = vadd.f32 %v6938, %v7005
        %v7038 = vadd.f32 %v6939, %v7006
        %v7039 = vadd.f32 %v6940, %v7007
        %v7040 = vadd.f32 %v6941, %v7008
        %v7041 = vadd.f32 %v6942, %v7009
        %v7042 = vadd.f32 %v6943, %v7010
        %v7043 = vadd.f32 %v6944, %v7011
        %v7044 = vadd.f32 %v6945, %v7012
        %v7045 = vadd.f32 %v6946, %v7013
        %v7046 = vadd.f32 %v6947, %v7014
        %v7047 = vld [vmem:[%s6948 + $0x1] sm:$0xff]
        %v7048 = vld [vmem:[%s6948 + $0x9] sm:$0xff]
        %v7049 = vld [vmem:[%s6948 + $0x19] sm:$0xff]
        %v7050 = vld [vmem:[%s6948 + $0x21] sm:$0xff]
        %v7051 = vld [vmem:[%s6948 + $0x31] sm:$0xff]
        %v7052 = vld [vmem:[%s6948 + $0x39] sm:$0xff]
        %v7053 = vld [vmem:[%s6948 + $0x49] sm:$0xff]
        %v7054 = vld [vmem:[%s6948 + $0x51] sm:$0xff]
        %v7055 = vld [vmem:[%s6948 + $0x61] sm:$0xff]
        %v7056 = vld [vmem:[%s6948 + $0x69] sm:$0xff]
        %v7057 = vld [vmem:[%s6948 + $0x79] sm:$0xff]
        %v7058 = vld [vmem:[%s6948 + $0x81] sm:$0xff]
        %v7059 = vld [vmem:[%s6948 + $0x91] sm:$0xff]
        %v7060 = vld [vmem:[%s6948 + $0x99] sm:$0xff]
        %v7061 = vld [vmem:[%s6948 + $0xa9] sm:$0xff]
        %v7062 = vld [vmem:[%s6948 + $0xb1] sm:$0xff]
        %v7063 = vld [vmem:[%s6948 + $0xc1] sm:$0xff]
        %v7064 = vld [vmem:[%s6948 + $0xc9] sm:$0xff]
        %v7065 = vld [vmem:[%s6948 + $0xd9] sm:$0xff]
        %v7066 = vld [vmem:[%s6948 + $0xe1] sm:$0xff]
        %v7067 = vld [vmem:[%s6948 + $0xf1] sm:$0xff]
        %v7068 = vld [vmem:[%s6948 + $0xf9] sm:$0xff]
        %v7069 = vld [vmem:[%s6948 + $0x109] sm:$0xff]
        %v7070 = vld [vmem:[%s6948 + $0x111] sm:$0xff]
        %v7071 = vld [vmem:[%s6948 + $0x121] sm:$0xff]
        %v7072 = vld [vmem:[%s6948 + $0x129] sm:$0xff]
        %v7073 = vld [vmem:[%s6948 + $0x139] sm:$0xff]
        %v7074 = vld [vmem:[%s6948 + $0x141] sm:$0xff]
        %v7075 = vld [vmem:[%s6948 + $0x151] sm:$0xff]
        %v7076 = vld [vmem:[%s6948 + $0x159] sm:$0xff]
        %v7077 = vld [vmem:[%s6948 + $0x169] sm:$0xff]
        %v7078 = vld [vmem:[%s6948 + $0x171] sm:$0xff]
        %v7079 = vld [vmem:[%s8 + $0x15] sm:$0x1]
        %v7080 = vperm.slane %v7079, 0
        %v7081 = vmul.f32 %v7047, %v7080
        %v7082 = vmul.f32 %v7048, %v7080
        %v7083 = vmul.f32 %v7049, %v7080
        %v7084 = vmul.f32 %v7050, %v7080
        %v7085 = vmul.f32 %v7051, %v7080
        %v7086 = vmul.f32 %v7052, %v7080
        %v7087 = vmul.f32 %v7053, %v7080
        %v7088 = vmul.f32 %v7054, %v7080
        %v7089 = vmul.f32 %v7055, %v7080
        %v7090 = vmul.f32 %v7056, %v7080
        %v7091 = vmul.f32 %v7057, %v7080
        %v7092 = vmul.f32 %v7058, %v7080
        %v7093 = vmul.f32 %v7059, %v7080
        %v7094 = vmul.f32 %v7060, %v7080
        %v7095 = vmul.f32 %v7061, %v7080
        %v7096 = vmul.f32 %v7062, %v7080
        %v7097 = vmul.f32 %v7063, %v7080
        %v7098 = vmul.f32 %v7064, %v7080
        %v7099 = vmul.f32 %v7065, %v7080
        %v7100 = vmul.f32 %v7066, %v7080
        %v7101 = vmul.f32 %v7067, %v7080
        %v7102 = vmul.f32 %v7068, %v7080
        %v7103 = vmul.f32 %v7069, %v7080
        %v7104 = vmul.f32 %v7070, %v7080
        %v7105 = vmul.f32 %v7071, %v7080
        %v7106 = vmul.f32 %v7072, %v7080
        %v7107 = vmul.f32 %v7073, %v7080
        %v7108 = vmul.f32 %v7074, %v7080
        %v7109 = vmul.f32 %v7075, %v7080
        %v7110 = vmul.f32 %v7076, %v7080
        %v7111 = vmul.f32 %v7077, %v7080
        %v7112 = vmul.f32 %v7078, %v7080
        %v7113 = vadd.f32 %v7015, %v7081
        %v7114 = vadd.f32 %v7016, %v7082
        %v7115 = vadd.f32 %v7017, %v7083
        %v7116 = vadd.f32 %v7018, %v7084
        %v7117 = vadd.f32 %v7019, %v7085
        %v7118 = vadd.f32 %v7020, %v7086
        %v7119 = vadd.f32 %v7021, %v7087
        %v7120 = vadd.f32 %v7022, %v7088
        %v7121 = vadd.f32 %v7023, %v7089
        %v7122 = vadd.f32 %v7024, %v7090
        %v7123 = vadd.f32 %v7025, %v7091
        %v7124 = vadd.f32 %v7026, %v7092
        %v7125 = vadd.f32 %v7027, %v7093
        %v7126 = vadd.f32 %v7028, %v7094
        %v7127 = vadd.f32 %v7029, %v7095
        %v7128 = vadd.f32 %v7030, %v7096
        %v7129 = vadd.f32 %v7031, %v7097
        %v7130 = vadd.f32 %v7032, %v7098
        %v7131 = vadd.f32 %v7033, %v7099
        %v7132 = vadd.f32 %v7034, %v7100
        %v7133 = vadd.f32 %v7035, %v7101
        %v7134 = vadd.f32 %v7036, %v7102
        %v7135 = vadd.f32 %v7037, %v7103
        %v7136 = vadd.f32 %v7038, %v7104
        %v7137 = vadd.f32 %v7039, %v7105
        %v7138 = vadd.f32 %v7040, %v7106
        %v7139 = vadd.f32 %v7041, %v7107
        %v7140 = vadd.f32 %v7042, %v7108
        %v7141 = vadd.f32 %v7043, %v7109
        %v7142 = vadd.f32 %v7044, %v7110
        %v7143 = vadd.f32 %v7045, %v7111
        %v7144 = vadd.f32 %v7046, %v7112
        %v7145 = vld [vmem:[%s6948 + $0x2] sm:$0xff]
        %v7146 = vld [vmem:[%s6948 + $0xa] sm:$0xff]
        %v7147 = vld [vmem:[%s6948 + $0x1a] sm:$0xff]
        %v7148 = vld [vmem:[%s6948 + $0x22] sm:$0xff]
        %v7149 = vld [vmem:[%s6948 + $0x32] sm:$0xff]
        %v7150 = vld [vmem:[%s6948 + $0x3a] sm:$0xff]
        %v7151 = vld [vmem:[%s6948 + $0x4a] sm:$0xff]
        %v7152 = vld [vmem:[%s6948 + $0x52] sm:$0xff]
        %v7153 = vld [vmem:[%s6948 + $0x62] sm:$0xff]
        %v7154 = vld [vmem:[%s6948 + $0x6a] sm:$0xff]
        %v7155 = vld [vmem:[%s6948 + $0x7a] sm:$0xff]
        %v7156 = vld [vmem:[%s6948 + $0x82] sm:$0xff]
        %v7157 = vld [vmem:[%s6948 + $0x92] sm:$0xff]
        %v7158 = vld [vmem:[%s6948 + $0x9a] sm:$0xff]
        %v7159 = vld [vmem:[%s6948 + $0xaa] sm:$0xff]
        %v7160 = vld [vmem:[%s6948 + $0xb2] sm:$0xff]
        %v7161 = vld [vmem:[%s6948 + $0xc2] sm:$0xff]
        %v7162 = vld [vmem:[%s6948 + $0xca] sm:$0xff]
        %v7163 = vld [vmem:[%s6948 + $0xda] sm:$0xff]
        %v7164 = vld [vmem:[%s6948 + $0xe2] sm:$0xff]
        %v7165 = vld [vmem:[%s6948 + $0xf2] sm:$0xff]
        %v7166 = vld [vmem:[%s6948 + $0xfa] sm:$0xff]
        %v7167 = vld [vmem:[%s6948 + $0x10a] sm:$0xff]
        %v7168 = vld [vmem:[%s6948 + $0x112] sm:$0xff]
        %v7169 = vld [vmem:[%s6948 + $0x122] sm:$0xff]
        %v7170 = vld [vmem:[%s6948 + $0x12a] sm:$0xff]
        %v7171 = vld [vmem:[%s6948 + $0x13a] sm:$0xff]
        %v7172 = vld [vmem:[%s6948 + $0x142] sm:$0xff]
        %v7173 = vld [vmem:[%s6948 + $0x152] sm:$0xff]
        %v7174 = vld [vmem:[%s6948 + $0x15a] sm:$0xff]
        %v7175 = vld [vmem:[%s6948 + $0x16a] sm:$0xff]
        %v7176 = vld [vmem:[%s6948 + $0x172] sm:$0xff]
        %v7177 = vld [vmem:[%s8 + $0x16] sm:$0x1]
        %v7178 = vperm.slane %v7177, 0
        %v7179 = vmul.f32 %v7145, %v7178
        %v7180 = vmul.f32 %v7146, %v7178
        %v7181 = vmul.f32 %v7147, %v7178
        %v7182 = vmul.f32 %v7148, %v7178
        %v7183 = vmul.f32 %v7149, %v7178
        %v7184 = vmul.f32 %v7150, %v7178
        %v7185 = vmul.f32 %v7151, %v7178
        %v7186 = vmul.f32 %v7152, %v7178
        %v7187 = vmul.f32 %v7153, %v7178
        %v7188 = vmul.f32 %v7154, %v7178
        %v7189 = vmul.f32 %v7155, %v7178
        %v7190 = vmul.f32 %v7156, %v7178
        %v7191 = vmul.f32 %v7157, %v7178
        %v7192 = vmul.f32 %v7158, %v7178
        %v7193 = vmul.f32 %v7159, %v7178
        %v7194 = vmul.f32 %v7160, %v7178
        %v7195 = vmul.f32 %v7161, %v7178
        %v7196 = vmul.f32 %v7162, %v7178
        %v7197 = vmul.f32 %v7163, %v7178
        %v7198 = vmul.f32 %v7164, %v7178
        %v7199 = vmul.f32 %v7165, %v7178
        %v7200 = vmul.f32 %v7166, %v7178
        %v7201 = vmul.f32 %v7167, %v7178
        %v7202 = vmul.f32 %v7168, %v7178
        %v7203 = vmul.f32 %v7169, %v7178
        %v7204 = vmul.f32 %v7170, %v7178
        %v7205 = vmul.f32 %v7171, %v7178
        %v7206 = vmul.f32 %v7172, %v7178
        %v7207 = vmul.f32 %v7173, %v7178
        %v7208 = vmul.f32 %v7174, %v7178
        %v7209 = vmul.f32 %v7175, %v7178
        %v7210 = vmul.f32 %v7176, %v7178
        %v7211 = vadd.f32 %v7113, %v7179
        %v7212 = vadd.f32 %v7114, %v7180
        %v7213 = vadd.f32 %v7115, %v7181
        %v7214 = vadd.f32 %v7116, %v7182
        %v7215 = vadd.f32 %v7117, %v7183
        %v7216 = vadd.f32 %v7118, %v7184
        %v7217 = vadd.f32 %v7119, %v7185
        %v7218 = vadd.f32 %v7120, %v7186
        %v7219 = vadd.f32 %v7121, %v7187
        %v7220 = vadd.f32 %v7122, %v7188
        %v7221 = vadd.f32 %v7123, %v7189
        %v7222 = vadd.f32 %v7124, %v7190
        %v7223 = vadd.f32 %v7125, %v7191
        %v7224 = vadd.f32 %v7126, %v7192
        %v7225 = vadd.f32 %v7127, %v7193
        %v7226 = vadd.f32 %v7128, %v7194
        %v7227 = vadd.f32 %v7129, %v7195
        %v7228 = vadd.f32 %v7130, %v7196
        %v7229 = vadd.f32 %v7131, %v7197
        %v7230 = vadd.f32 %v7132, %v7198
        %v7231 = vadd.f32 %v7133, %v7199
        %v7232 = vadd.f32 %v7134, %v7200
        %v7233 = vadd.f32 %v7135, %v7201
        %v7234 = vadd.f32 %v7136, %v7202
        %v7235 = vadd.f32 %v7137, %v7203
        %v7236 = vadd.f32 %v7138, %v7204
        %v7237 = vadd.f32 %v7139, %v7205
        %v7238 = vadd.f32 %v7140, %v7206
        %v7239 = vadd.f32 %v7141, %v7207
        %v7240 = vadd.f32 %v7142, %v7208
        %v7241 = vadd.f32 %v7143, %v7209
        %v7242 = vadd.f32 %v7144, %v7210
        %v7243 = vld [vmem:[%s6948 + $0x3] sm:$0xff]
        %v7244 = vld [vmem:[%s6948 + $0xb] sm:$0xff]
        %v7245 = vld [vmem:[%s6948 + $0x1b] sm:$0xff]
        %v7246 = vld [vmem:[%s6948 + $0x23] sm:$0xff]
        %v7247 = vld [vmem:[%s6948 + $0x33] sm:$0xff]
        %v7248 = vld [vmem:[%s6948 + $0x3b] sm:$0xff]
        %v7249 = vld [vmem:[%s6948 + $0x4b] sm:$0xff]
        %v7250 = vld [vmem:[%s6948 + $0x53] sm:$0xff]
        %v7251 = vld [vmem:[%s6948 + $0x63] sm:$0xff]
        %v7252 = vld [vmem:[%s6948 + $0x6b] sm:$0xff]
        %v7253 = vld [vmem:[%s6948 + $0x7b] sm:$0xff]
        %v7254 = vld [vmem:[%s6948 + $0x83] sm:$0xff]
        %v7255 = vld [vmem:[%s6948 + $0x93] sm:$0xff]
        %v7256 = vld [vmem:[%s6948 + $0x9b] sm:$0xff]
        %v7257 = vld [vmem:[%s6948 + $0xab] sm:$0xff]
        %v7258 = vld [vmem:[%s6948 + $0xb3] sm:$0xff]
        %v7259 = vld [vmem:[%s6948 + $0xc3] sm:$0xff]
        %v7260 = vld [vmem:[%s6948 + $0xcb] sm:$0xff]
        %v7261 = vld [vmem:[%s6948 + $0xdb] sm:$0xff]
        %v7262 = vld [vmem:[%s6948 + $0xe3] sm:$0xff]
        %v7263 = vld [vmem:[%s6948 + $0xf3] sm:$0xff]
        %v7264 = vld [vmem:[%s6948 + $0xfb] sm:$0xff]
        %v7265 = vld [vmem:[%s6948 + $0x10b] sm:$0xff]
        %v7266 = vld [vmem:[%s6948 + $0x113] sm:$0xff]
        %v7267 = vld [vmem:[%s6948 + $0x123] sm:$0xff]
        %v7268 = vld [vmem:[%s6948 + $0x12b] sm:$0xff]
        %v7269 = vld [vmem:[%s6948 + $0x13b] sm:$0xff]
        %v7270 = vld [vmem:[%s6948 + $0x143] sm:$0xff]
        %v7271 = vld [vmem:[%s6948 + $0x153] sm:$0xff]
        %v7272 = vld [vmem:[%s6948 + $0x15b] sm:$0xff]
        %v7273 = vld [vmem:[%s6948 + $0x16b] sm:$0xff]
        %v7274 = vld [vmem:[%s6948 + $0x173] sm:$0xff]
        %v7275 = vld [vmem:[%s8 + $0x17] sm:$0x1]
        %v7276 = vperm.slane %v7275, 0
        %v7277 = vmul.f32 %v7243, %v7276
        %v7278 = vmul.f32 %v7244, %v7276
        %v7279 = vmul.f32 %v7245, %v7276
        %v7280 = vmul.f32 %v7246, %v7276
        %v7281 = vmul.f32 %v7247, %v7276
        %v7282 = vmul.f32 %v7248, %v7276
        %v7283 = vmul.f32 %v7249, %v7276
        %v7284 = vmul.f32 %v7250, %v7276
        %v7285 = vmul.f32 %v7251, %v7276
        %v7286 = vmul.f32 %v7252, %v7276
        %v7287 = vmul.f32 %v7253, %v7276
        %v7288 = vmul.f32 %v7254, %v7276
        %v7289 = vmul.f32 %v7255, %v7276
        %v7290 = vmul.f32 %v7256, %v7276
        %v7291 = vmul.f32 %v7257, %v7276
        %v7292 = vmul.f32 %v7258, %v7276
        %v7293 = vmul.f32 %v7259, %v7276
        %v7294 = vmul.f32 %v7260, %v7276
        %v7295 = vmul.f32 %v7261, %v7276
        %v7296 = vmul.f32 %v7262, %v7276
        %v7297 = vmul.f32 %v7263, %v7276
        %v7298 = vmul.f32 %v7264, %v7276
        %v7299 = vmul.f32 %v7265, %v7276
        %v7300 = vmul.f32 %v7266, %v7276
        %v7301 = vmul.f32 %v7267, %v7276
        %v7302 = vmul.f32 %v7268, %v7276
        %v7303 = vmul.f32 %v7269, %v7276
        %v7304 = vmul.f32 %v7270, %v7276
        %v7305 = vmul.f32 %v7271, %v7276
        %v7306 = vmul.f32 %v7272, %v7276
        %v7307 = vmul.f32 %v7273, %v7276
        %v7308 = vmul.f32 %v7274, %v7276
        %v7309 = vadd.f32 %v7211, %v7277
        %v7310 = vadd.f32 %v7212, %v7278
        %v7311 = vadd.f32 %v7213, %v7279
        %v7312 = vadd.f32 %v7214, %v7280
        %v7313 = vadd.f32 %v7215, %v7281
        %v7314 = vadd.f32 %v7216, %v7282
        %v7315 = vadd.f32 %v7217, %v7283
        %v7316 = vadd.f32 %v7218, %v7284
        %v7317 = vadd.f32 %v7219, %v7285
        %v7318 = vadd.f32 %v7220, %v7286
        %v7319 = vadd.f32 %v7221, %v7287
        %v7320 = vadd.f32 %v7222, %v7288
        %v7321 = vadd.f32 %v7223, %v7289
        %v7322 = vadd.f32 %v7224, %v7290
        %v7323 = vadd.f32 %v7225, %v7291
        %v7324 = vadd.f32 %v7226, %v7292
        %v7325 = vadd.f32 %v7227, %v7293
        %v7326 = vadd.f32 %v7228, %v7294
        %v7327 = vadd.f32 %v7229, %v7295
        %v7328 = vadd.f32 %v7230, %v7296
        %v7329 = vadd.f32 %v7231, %v7297
        %v7330 = vadd.f32 %v7232, %v7298
        %v7331 = vadd.f32 %v7233, %v7299
        %v7332 = vadd.f32 %v7234, %v7300
        %v7333 = vadd.f32 %v7235, %v7301
        %v7334 = vadd.f32 %v7236, %v7302
        %v7335 = vadd.f32 %v7237, %v7303
        %v7336 = vadd.f32 %v7238, %v7304
        %v7337 = vadd.f32 %v7239, %v7305
        %v7338 = vadd.f32 %v7240, %v7306
        %v7339 = vadd.f32 %v7241, %v7307
        %v7340 = vadd.f32 %v7242, %v7308
        %v7341 = vld [vmem:[%s6948 + $0x4] sm:$0xff]
        %v7342 = vld [vmem:[%s6948 + $0xc] sm:$0xff]
        %v7343 = vld [vmem:[%s6948 + $0x1c] sm:$0xff]
        %v7344 = vld [vmem:[%s6948 + $0x24] sm:$0xff]
        %v7345 = vld [vmem:[%s6948 + $0x34] sm:$0xff]
        %v7346 = vld [vmem:[%s6948 + $0x3c] sm:$0xff]
        %v7347 = vld [vmem:[%s6948 + $0x4c] sm:$0xff]
        %v7348 = vld [vmem:[%s6948 + $0x54] sm:$0xff]
        %v7349 = vld [vmem:[%s6948 + $0x64] sm:$0xff]
        %v7350 = vld [vmem:[%s6948 + $0x6c] sm:$0xff]
        %v7351 = vld [vmem:[%s6948 + $0x7c] sm:$0xff]
        %v7352 = vld [vmem:[%s6948 + $0x84] sm:$0xff]
        %v7353 = vld [vmem:[%s6948 + $0x94] sm:$0xff]
        %v7354 = vld [vmem:[%s6948 + $0x9c] sm:$0xff]
        %v7355 = vld [vmem:[%s6948 + $0xac] sm:$0xff]
        %v7356 = vld [vmem:[%s6948 + $0xb4] sm:$0xff]
        %v7357 = vld [vmem:[%s6948 + $0xc4] sm:$0xff]
        %v7358 = vld [vmem:[%s6948 + $0xcc] sm:$0xff]
        %v7359 = vld [vmem:[%s6948 + $0xdc] sm:$0xff]
        %v7360 = vld [vmem:[%s6948 + $0xe4] sm:$0xff]
        %v7361 = vld [vmem:[%s6948 + $0xf4] sm:$0xff]
        %v7362 = vld [vmem:[%s6948 + $0xfc] sm:$0xff]
        %v7363 = vld [vmem:[%s6948 + $0x10c] sm:$0xff]
        %v7364 = vld [vmem:[%s6948 + $0x114] sm:$0xff]
        %v7365 = vld [vmem:[%s6948 + $0x124] sm:$0xff]
        %v7366 = vld [vmem:[%s6948 + $0x12c] sm:$0xff]
        %v7367 = vld [vmem:[%s6948 + $0x13c] sm:$0xff]
        %v7368 = vld [vmem:[%s6948 + $0x144] sm:$0xff]
        %v7369 = vld [vmem:[%s6948 + $0x154] sm:$0xff]
        %v7370 = vld [vmem:[%s6948 + $0x15c] sm:$0xff]
        %v7371 = vld [vmem:[%s6948 + $0x16c] sm:$0xff]
        %v7372 = vld [vmem:[%s6948 + $0x174] sm:$0xff]
        %v7373 = vld [vmem:[%s8 + $0x18] sm:$0x1]
        %v7374 = vperm.slane %v7373, 0
        %v7375 = vmul.f32 %v7341, %v7374
        %v7376 = vmul.f32 %v7342, %v7374
        %v7377 = vmul.f32 %v7343, %v7374
        %v7378 = vmul.f32 %v7344, %v7374
        %v7379 = vmul.f32 %v7345, %v7374
        %v7380 = vmul.f32 %v7346, %v7374
        %v7381 = vmul.f32 %v7347, %v7374
        %v7382 = vmul.f32 %v7348, %v7374
        %v7383 = vmul.f32 %v7349, %v7374
        %v7384 = vmul.f32 %v7350, %v7374
        %v7385 = vmul.f32 %v7351, %v7374
        %v7386 = vmul.f32 %v7352, %v7374
        %v7387 = vmul.f32 %v7353, %v7374
        %v7388 = vmul.f32 %v7354, %v7374
        %v7389 = vmul.f32 %v7355, %v7374
        %v7390 = vmul.f32 %v7356, %v7374
        %v7391 = vmul.f32 %v7357, %v7374
        %v7392 = vmul.f32 %v7358, %v7374
        %v7393 = vmul.f32 %v7359, %v7374
        %v7394 = vmul.f32 %v7360, %v7374
        %v7395 = vmul.f32 %v7361, %v7374
        %v7396 = vmul.f32 %v7362, %v7374
        %v7397 = vmul.f32 %v7363, %v7374
        %v7398 = vmul.f32 %v7364, %v7374
        %v7399 = vmul.f32 %v7365, %v7374
        %v7400 = vmul.f32 %v7366, %v7374
        %v7401 = vmul.f32 %v7367, %v7374
        %v7402 = vmul.f32 %v7368, %v7374
        %v7403 = vmul.f32 %v7369, %v7374
        %v7404 = vmul.f32 %v7370, %v7374
        %v7405 = vmul.f32 %v7371, %v7374
        %v7406 = vmul.f32 %v7372, %v7374
        %v7407 = vadd.f32 %v7309, %v7375
        %v7408 = vadd.f32 %v7310, %v7376
        %v7409 = vadd.f32 %v7311, %v7377
        %v7410 = vadd.f32 %v7312, %v7378
        %v7411 = vadd.f32 %v7313, %v7379
        %v7412 = vadd.f32 %v7314, %v7380
        %v7413 = vadd.f32 %v7315, %v7381
        %v7414 = vadd.f32 %v7316, %v7382
        %v7415 = vadd.f32 %v7317, %v7383
        %v7416 = vadd.f32 %v7318, %v7384
        %v7417 = vadd.f32 %v7319, %v7385
        %v7418 = vadd.f32 %v7320, %v7386
        %v7419 = vadd.f32 %v7321, %v7387
        %v7420 = vadd.f32 %v7322, %v7388
        %v7421 = vadd.f32 %v7323, %v7389
        %v7422 = vadd.f32 %v7324, %v7390
        %v7423 = vadd.f32 %v7325, %v7391
        %v7424 = vadd.f32 %v7326, %v7392
        %v7425 = vadd.f32 %v7327, %v7393
        %v7426 = vadd.f32 %v7328, %v7394
        %v7427 = vadd.f32 %v7329, %v7395
        %v7428 = vadd.f32 %v7330, %v7396
        %v7429 = vadd.f32 %v7331, %v7397
        %v7430 = vadd.f32 %v7332, %v7398
        %v7431 = vadd.f32 %v7333, %v7399
        %v7432 = vadd.f32 %v7334, %v7400
        %v7433 = vadd.f32 %v7335, %v7401
        %v7434 = vadd.f32 %v7336, %v7402
        %v7435 = vadd.f32 %v7337, %v7403
        %v7436 = vadd.f32 %v7338, %v7404
        %v7437 = vadd.f32 %v7339, %v7405
        %v7438 = vadd.f32 %v7340, %v7406
        %v7439 = vld [vmem:[%s9] sm:$0x1]
        %v7441 = vperm.slane %v7439, 0
        %v7443 = vadd.f32 %v7407, %v7441
        %v7444 = vadd.f32 %v7408, %v7441
        %v7445 = vadd.f32 %v7409, %v7441
        %v7446 = vadd.f32 %v7410, %v7441
        %v7447 = vadd.f32 %v7411, %v7441
        %v7448 = vadd.f32 %v7412, %v7441
        %v7449 = vadd.f32 %v7413, %v7441
        %v7450 = vadd.f32 %v7414, %v7441
        %v7451 = vadd.f32 %v7415, %v7441
        %v7452 = vadd.f32 %v7416, %v7441
        %v7453 = vadd.f32 %v7417, %v7441
        %v7454 = vadd.f32 %v7418, %v7441
        %v7455 = vadd.f32 %v7419, %v7441
        %v7456 = vadd.f32 %v7420, %v7441
        %v7457 = vadd.f32 %v7421, %v7441
        %v7458 = vadd.f32 %v7422, %v7441
        %v7459 = vadd.f32 %v7423, %v7441
        %v7460 = vadd.f32 %v7424, %v7441
        %v7461 = vadd.f32 %v7425, %v7441
        %v7462 = vadd.f32 %v7426, %v7441
        %v7463 = vadd.f32 %v7427, %v7441
        %v7464 = vadd.f32 %v7428, %v7441
        %v7465 = vadd.f32 %v7429, %v7441
        %v7466 = vadd.f32 %v7430, %v7441
        %v7467 = vadd.f32 %v7431, %v7441
        %v7468 = vadd.f32 %v7432, %v7441
        %v7469 = vadd.f32 %v7433, %v7441
        %v7470 = vadd.f32 %v7434, %v7441
        %v7471 = vadd.f32 %v7435, %v7441
        %v7472 = vadd.f32 %v7436, %v7441
        %v7473 = vadd.f32 %v7437, %v7441
        %v7474 = vadd.f32 %v7438, %v7441
        %v7475 = vadd.f32 %v4891, %v380
        %v7476 = vadd.f32 %v4892, %v381
        %v7477 = vadd.f32 %v4893, %v382
        %v7478 = vadd.f32 %v4894, %v383
        %v7479 = vadd.f32 %v4895, %v384
        %v7480 = vadd.f32 %v4896, %v385
        %v7481 = vadd.f32 %v4897, %v386
        %v7482 = vadd.f32 %v4898, %v387
        %v7483 = vadd.f32 %v4899, %v388
        %v7484 = vadd.f32 %v4900, %v389
        %v7485 = vadd.f32 %v4901, %v390
        %v7486 = vadd.f32 %v4902, %v391
        %v7487 = vadd.f32 %v4903, %v392
        %v7488 = vadd.f32 %v4904, %v393
        %v7489 = vadd.f32 %v4905, %v394
        %v7490 = vadd.f32 %v4906, %v395
        %v7491 = vadd.f32 %v4907, %v396
        %v7492 = vadd.f32 %v4908, %v397
        %v7493 = vadd.f32 %v4909, %v398
        %v7494 = vadd.f32 %v4910, %v399
        %v7495 = vadd.f32 %v4911, %v400
        %v7496 = vadd.f32 %v4912, %v401
        %v7497 = vadd.f32 %v4913, %v402
        %v7498 = vadd.f32 %v4914, %v403
        %v7499 = vadd.f32 %v4915, %v404
        %v7500 = vadd.f32 %v4916, %v405
        %v7501 = vadd.f32 %v4917, %v406
        %v7502 = vadd.f32 %v4918, %v407
        %v7503 = vadd.f32 %v4919, %v408
        %v7504 = vadd.f32 %v4920, %v409
        %v7505 = vadd.f32 %v4921, %v410
        %v7506 = vadd.f32 %v4922, %v411
        %7507 = vrot.lane.b32.xlu0 %v380, 120
        %v7508 = vpop.permute.xlu0 %7507
        %7509 = vrot.lane.b32.xlu0 %v381, 120
        %v7510 = vpop.permute.xlu0 %7509
        %7511 = vrot.lane.b32.xlu0 %v382, 120
        %v7512 = vpop.permute.xlu0 %7511
        %7513 = vrot.lane.b32.xlu0 %v383, 120
        %v7514 = vpop.permute.xlu0 %7513
        %7515 = vrot.lane.b32.xlu0 %v384, 120
        %v7516 = vpop.permute.xlu0 %7515
        %7517 = vrot.lane.b32.xlu0 %v385, 120
        %v7518 = vpop.permute.xlu0 %7517
        %7519 = vrot.lane.b32.xlu0 %v386, 120
        %v7520 = vpop.permute.xlu0 %7519
        %7521 = vrot.lane.b32.xlu0 %v387, 120
        %v7522 = vpop.permute.xlu0 %7521
        %7523 = vrot.lane.b32.xlu0 %v388, 120
        %v7524 = vpop.permute.xlu0 %7523
        %7525 = vrot.lane.b32.xlu0 %v389, 120
        %v7526 = vpop.permute.xlu0 %7525
        %7527 = vrot.lane.b32.xlu0 %v390, 120
        %v7528 = vpop.permute.xlu0 %7527
        %7529 = vrot.lane.b32.xlu0 %v391, 120
        %v7530 = vpop.permute.xlu0 %7529
        %7531 = vrot.lane.b32.xlu0 %v392, 120
        %v7532 = vpop.permute.xlu0 %7531
        %7533 = vrot.lane.b32.xlu0 %v393, 120
        %v7534 = vpop.permute.xlu0 %7533
        %7535 = vrot.lane.b32.xlu0 %v394, 120
        %v7536 = vpop.permute.xlu0 %7535
        %7537 = vrot.lane.b32.xlu0 %v395, 120
        %v7538 = vpop.permute.xlu0 %7537
        %7539 = vrot.lane.b32.xlu0 %v396, 120
        %v7540 = vpop.permute.xlu0 %7539
        %7541 = vrot.lane.b32.xlu0 %v397, 120
        %v7542 = vpop.permute.xlu0 %7541
        %7543 = vrot.lane.b32.xlu0 %v398, 120
        %v7544 = vpop.permute.xlu0 %7543
        %7545 = vrot.lane.b32.xlu0 %v399, 120
        %v7546 = vpop.permute.xlu0 %7545
        %7547 = vrot.lane.b32.xlu0 %v400, 120
        %v7548 = vpop.permute.xlu0 %7547
        %7549 = vrot.lane.b32.xlu0 %v401, 120
        %v7550 = vpop.permute.xlu0 %7549
        %7551 = vrot.lane.b32.xlu0 %v402, 120
        %v7552 = vpop.permute.xlu0 %7551
        %7553 = vrot.lane.b32.xlu0 %v403, 120
        %v7554 = vpop.permute.xlu0 %7553
        %7555 = vrot.lane.b32.xlu0 %v404, 120
        %v7556 = vpop.permute.xlu0 %7555
        %7557 = vrot.lane.b32.xlu0 %v405, 120
        %v7558 = vpop.permute.xlu0 %7557
        %7559 = vrot.lane.b32.xlu0 %v406, 120
        %v7560 = vpop.permute.xlu0 %7559
        %7561 = vrot.lane.b32.xlu0 %v407, 120
        %v7562 = vpop.permute.xlu0 %7561
        %7563 = vrot.lane.b32.xlu0 %v408, 120
        %v7564 = vpop.permute.xlu0 %7563
        %7565 = vrot.lane.b32.xlu0 %v409, 120
        %v7566 = vpop.permute.xlu0 %7565
        %7567 = vrot.lane.b32.xlu0 %v410, 120
        %v7568 = vpop.permute.xlu0 %7567
        %7569 = vrot.lane.b32.xlu0 %v411, 120
        %v7570 = vpop.permute.xlu0 %7569
        %v7603 = vadd.f32 %v7443, %v7508
        %v7604 = vadd.f32 %v7444, %v7510
        %v7605 = vadd.f32 %v7445, %v7512
        %v7606 = vadd.f32 %v7446, %v7514
        %v7607 = vadd.f32 %v7447, %v7516
        %v7608 = vadd.f32 %v7448, %v7518
        %v7609 = vadd.f32 %v7449, %v7520
        %v7610 = vadd.f32 %v7450, %v7522
        %v7611 = vadd.f32 %v7451, %v7524
        %v7612 = vadd.f32 %v7452, %v7526
        %v7613 = vadd.f32 %v7453, %v7528
        %v7614 = vadd.f32 %v7454, %v7530
        %v7615 = vadd.f32 %v7455, %v7532
        %v7616 = vadd.f32 %v7456, %v7534
        %v7617 = vadd.f32 %v7457, %v7536
        %v7618 = vadd.f32 %v7458, %v7538
        %v7619 = vadd.f32 %v7459, %v7540
        %v7620 = vadd.f32 %v7460, %v7542
        %v7621 = vadd.f32 %v7461, %v7544
        %v7622 = vadd.f32 %v7462, %v7546
        %v7623 = vadd.f32 %v7463, %v7548
        %v7624 = vadd.f32 %v7464, %v7550
        %v7625 = vadd.f32 %v7465, %v7552
        %v7626 = vadd.f32 %v7466, %v7554
        %v7627 = vadd.f32 %v7467, %v7556
        %v7628 = vadd.f32 %v7468, %v7558
        %v7629 = vadd.f32 %v7469, %v7560
        %v7630 = vadd.f32 %v7470, %v7562
        %v7631 = vadd.f32 %v7471, %v7564
        %v7632 = vadd.f32 %v7472, %v7566
        %v7633 = vadd.f32 %v7473, %v7568
        %v7634 = vadd.f32 %v7474, %v7570
        %7667 = vrot.lane.b32.xlu0 %v7603, 8
        %v7668 = vpop.permute.xlu0 %7667
        %7669 = vrot.lane.b32.xlu0 %v7604, 8
        %v7670 = vpop.permute.xlu0 %7669
        %7671 = vrot.lane.b32.xlu0 %v7605, 8
        %v7672 = vpop.permute.xlu0 %7671
        %7673 = vrot.lane.b32.xlu0 %v7606, 8
        %v7674 = vpop.permute.xlu0 %7673
        %7675 = vrot.lane.b32.xlu0 %v7607, 8
        %v7676 = vpop.permute.xlu0 %7675
        %7677 = vrot.lane.b32.xlu0 %v7608, 8
        %v7678 = vpop.permute.xlu0 %7677
        %7679 = vrot.lane.b32.xlu0 %v7609, 8
        %v7680 = vpop.permute.xlu0 %7679
        %7681 = vrot.lane.b32.xlu0 %v7610, 8
        %v7682 = vpop.permute.xlu0 %7681
        %7683 = vrot.lane.b32.xlu0 %v7611, 8
        %v7684 = vpop.permute.xlu0 %7683
        %7685 = vrot.lane.b32.xlu0 %v7612, 8
        %v7686 = vpop.permute.xlu0 %7685
        %7687 = vrot.lane.b32.xlu0 %v7613, 8
        %v7688 = vpop.permute.xlu0 %7687
        %7689 = vrot.lane.b32.xlu0 %v7614, 8
        %v7690 = vpop.permute.xlu0 %7689
        %7691 = vrot.lane.b32.xlu0 %v7615, 8
        %v7692 = vpop.permute.xlu0 %7691
        %7693 = vrot.lane.b32.xlu0 %v7616, 8
        %v7694 = vpop.permute.xlu0 %7693
        %7695 = vrot.lane.b32.xlu0 %v7617, 8
        %v7696 = vpop.permute.xlu0 %7695
        %7697 = vrot.lane.b32.xlu0 %v7618, 8
        %v7698 = vpop.permute.xlu0 %7697
        %7699 = vrot.lane.b32.xlu0 %v7619, 8
        %v7700 = vpop.permute.xlu0 %7699
        %7701 = vrot.lane.b32.xlu0 %v7620, 8
        %v7702 = vpop.permute.xlu0 %7701
        %7703 = vrot.lane.b32.xlu0 %v7621, 8
        %v7704 = vpop.permute.xlu0 %7703
        %7705 = vrot.lane.b32.xlu0 %v7622, 8
        %v7706 = vpop.permute.xlu0 %7705
        %7707 = vrot.lane.b32.xlu0 %v7623, 8
        %v7708 = vpop.permute.xlu0 %7707
        %7709 = vrot.lane.b32.xlu0 %v7624, 8
        %v7710 = vpop.permute.xlu0 %7709
        %7711 = vrot.lane.b32.xlu0 %v7625, 8
        %v7712 = vpop.permute.xlu0 %7711
        %7713 = vrot.lane.b32.xlu0 %v7626, 8
        %v7714 = vpop.permute.xlu0 %7713
        %7715 = vrot.lane.b32.xlu0 %v7627, 8
        %v7716 = vpop.permute.xlu0 %7715
        %7717 = vrot.lane.b32.xlu0 %v7628, 8
        %v7718 = vpop.permute.xlu0 %7717
        %7719 = vrot.lane.b32.xlu0 %v7629, 8
        %v7720 = vpop.permute.xlu0 %7719
        %7721 = vrot.lane.b32.xlu0 %v7630, 8
        %v7722 = vpop.permute.xlu0 %7721
        %7723 = vrot.lane.b32.xlu0 %v7631, 8
        %v7724 = vpop.permute.xlu0 %7723
        %7725 = vrot.lane.b32.xlu0 %v7632, 8
        %v7726 = vpop.permute.xlu0 %7725
        %7727 = vrot.lane.b32.xlu0 %v7633, 8
        %v7728 = vpop.permute.xlu0 %7727
        %7729 = vrot.lane.b32.xlu0 %v7634, 8
        %v7730 = vpop.permute.xlu0 %7729
        %v7763 = vsel %vm4923, %v7475, %v7668
        %v7764 = vsel %vm4923, %v7476, %v7670
        %v7765 = vsel %vm4923, %v7477, %v7672
        %v7766 = vsel %vm4923, %v7478, %v7674
        %v7767 = vsel %vm4923, %v7479, %v7676
        %v7768 = vsel %vm4923, %v7480, %v7678
        %v7769 = vsel %vm4923, %v7481, %v7680
        %v7770 = vsel %vm4923, %v7482, %v7682
        %v7771 = vsel %vm4923, %v7483, %v7684
        %v7772 = vsel %vm4923, %v7484, %v7686
        %v7773 = vsel %vm4923, %v7485, %v7688
        %v7774 = vsel %vm4923, %v7486, %v7690
        %v7775 = vsel %vm4923, %v7487, %v7692
        %v7776 = vsel %vm4923, %v7488, %v7694
        %v7777 = vsel %vm4923, %v7489, %v7696
        %v7778 = vsel %vm4923, %v7490, %v7698
        %v7779 = vsel %vm4923, %v7491, %v7700
        %v7780 = vsel %vm4923, %v7492, %v7702
        %v7781 = vsel %vm4923, %v7493, %v7704
        %v7782 = vsel %vm4923, %v7494, %v7706
        %v7783 = vsel %vm4923, %v7495, %v7708
        %v7784 = vsel %vm4923, %v7496, %v7710
        %v7785 = vsel %vm4923, %v7497, %v7712
        %v7786 = vsel %vm4923, %v7498, %v7714
        %v7787 = vsel %vm4923, %v7499, %v7716
        %v7788 = vsel %vm4923, %v7500, %v7718
        %v7789 = vsel %vm4923, %v7501, %v7720
        %v7790 = vsel %vm4923, %v7502, %v7722
        %v7791 = vsel %vm4923, %v7503, %v7724
        %v7792 = vsel %vm4923, %v7504, %v7726
        %v7793 = vsel %vm4923, %v7505, %v7728
        %v7794 = vsel %vm4923, %v7506, %v7730
        %7795 = vst.msk [vmem:[%s379] sm:$0xff] %vm418, %v7763
        %7796 = vst.msk [vmem:[%s379 + $0x8] sm:$0xff] %vm418, %v7764
        %7797 = vst.msk [vmem:[%s379 + $0x10] sm:$0xff] %vm418, %v7765
        %7798 = vst.msk [vmem:[%s379 + $0x18] sm:$0xff] %vm418, %v7766
        %7799 = vst.msk [vmem:[%s379 + $0x20] sm:$0xff] %vm418, %v7767
        %7800 = vst.msk [vmem:[%s379 + $0x28] sm:$0xff] %vm418, %v7768
        %7801 = vst.msk [vmem:[%s379 + $0x30] sm:$0xff] %vm418, %v7769
        %7802 = vst.msk [vmem:[%s379 + $0x38] sm:$0xff] %vm418, %v7770
        %7803 = vst.msk [vmem:[%s379 + $0x40] sm:$0xff] %vm418, %v7771
        %7804 = vst.msk [vmem:[%s379 + $0x48] sm:$0xff] %vm418, %v7772
        %7805 = vst.msk [vmem:[%s379 + $0x50] sm:$0xff] %vm418, %v7773
        %7806 = vst.msk [vmem:[%s379 + $0x58] sm:$0xff] %vm418, %v7774
        %7807 = vst.msk [vmem:[%s379 + $0x60] sm:$0xff] %vm418, %v7775
        %7808 = vst.msk [vmem:[%s379 + $0x68] sm:$0xff] %vm418, %v7776
        %7809 = vst.msk [vmem:[%s379 + $0x70] sm:$0xff] %vm418, %v7777
        %7810 = vst.msk [vmem:[%s379 + $0x78] sm:$0xff] %vm418, %v7778
        %7811 = vst.msk [vmem:[%s379 + $0x80] sm:$0xff] %vm418, %v7779
        %7812 = vst.msk [vmem:[%s379 + $0x88] sm:$0xff] %vm418, %v7780
        %7813 = vst.msk [vmem:[%s379 + $0x90] sm:$0xff] %vm418, %v7781
        %7814 = vst.msk [vmem:[%s379 + $0x98] sm:$0xff] %vm418, %v7782
        %7815 = vst.msk [vmem:[%s379 + $0xa0] sm:$0xff] %vm418, %v7783
        %7816 = vst.msk [vmem:[%s379 + $0xa8] sm:$0xff] %vm418, %v7784
        %7817 = vst.msk [vmem:[%s379 + $0xb0] sm:$0xff] %vm418, %v7785
        %7818 = vst.msk [vmem:[%s379 + $0xb8] sm:$0xff] %vm418, %v7786
        %7819 = vst.msk [vmem:[%s379 + $0xc0] sm:$0xff] %vm418, %v7787
        %7820 = vst.msk [vmem:[%s379 + $0xc8] sm:$0xff] %vm418, %v7788
        %7821 = vst.msk [vmem:[%s379 + $0xd0] sm:$0xff] %vm418, %v7789
        %7822 = vst.msk [vmem:[%s379 + $0xd8] sm:$0xff] %vm418, %v7790
        %7823 = vst.msk [vmem:[%s379 + $0xe0] sm:$0xff] %vm418, %v7791
        %7824 = vst.msk [vmem:[%s379 + $0xe8] sm:$0xff] %vm418, %v7792
        %7825 = vst.msk [vmem:[%s379 + $0xf0] sm:$0xff] %vm418, %v7793
        %7826 = vst.msk [vmem:[%s379 + $0xf8] sm:$0xff] %vm418, %v7794
        %s7827 = sand.u32 %s250, 1
        %s7828 = scalar_lea.sflag [#allocation6], %s7827
        %s7829 = sand.u32 %s250, 1
        %s7830 = smul.addr %s7829, 256
        %s7831 = scalar_lea.vmem [#allocation7], %s7830
        // Predicated region
        $region65: #{tpu_custom_call.1} parent=59 // pred_check
          %p7832 = pneg %p260
        $region66: #{tpu_custom_call.1} parent=59 // pred_check_branch
          %7834 = sbr.rel (%p7832) target = $region68
        $region67: #{tpu_custom_call.1} parent=59 // pred_region
          %7836 = vsyncadd %s7828, 0
          %s7837 = smul.addr %s27, 32
          %s7838 = smul.addr %s7837, 8
          %s7839 = scalar_lea.hbm %s10, %s7838
          %s7840 = sshll.u32 %s7831, 4
          %s7841 = int_to_ptr.vmem [resolvable:$true] %s7840
          %s7842 = sshll.u32 %s7839, 4
          %s7843 = int_to_ptr.hbm [resolvable:$true] %s7842
          %7848 = dma.vmem_to_hbm [thread:$0]  %s7841, 4096, %s7843, %s7828, 128, 128, 8
        $region68: #{tpu_custom_call.1} parent=59 // pred_fallthru
          _
      $region60: #{tpu_custom_call.1} parent=5 // pred_fallthru
        _
      %p7849 = scmp.le.s32.totalorder 2, %s22
      // Predicated region
      $region69: #{tpu_custom_call.1} parent=5 // pred_check
        %p7850 = pneg %p7849
      $region70: #{tpu_custom_call.1} parent=5 // pred_check_branch
        %7852 = sbr.rel (%p7850) target = $region72
      $region71: #{tpu_custom_call.1} parent=5 // pred_region
        %s7853 = ssub.s32 %s22, 2
        // Predicated region
        $region73: #{tpu_custom_call.1} parent=71 // pred_check
          %p7854 = pneg %p266
        $region74: #{tpu_custom_call.1} parent=71 // pred_check_branch
          %7856 = sbr.rel (%p7854) target = $region76
        $region75: #{tpu_custom_call.1} parent=71 // pred_region
          %s7857 = sand.u32 %s251, 1
          %s7858 = scalar_lea.sflag [#allocation6], %s7857
          %s7859 = sand.u32 %s251, 1
          %s7860 = smul.addr %s7859, 256
          %s7861 = scalar_lea.vmem [#allocation7], %s7860
          %7863 = dma.done %s7858, 4096
        $region76: #{tpu_custom_call.1} parent=71 // pred_fallthru
          _
      $region72: #{tpu_custom_call.1} parent=5 // pred_fallthru
        _
    $region6: #{tpu_custom_call.1} parent=1 // loop_footer
      %s26 = sadd.s32 1, %s22
    $region7: #{tpu_custom_call.1} parent=1 // loop_footer_branch
      %21 = sbr.rel target = $region3
    $region8: #{tpu_custom_call.1} parent=1 // loop_exit
      _
    %7864 = vsyncpa [#allocation5], 1
    %s7865 = scalar_lea.sflag [#allocation5], 1
    %7866 = vsyncpa %s7865, 1
    %7867 = vsyncpa [#allocation6], 1
    %s7868 = scalar_lea.sflag [#allocation6], 1
    %7869 = vsyncpa %s7868, 1

</llo_original>
